<compile_context>
chip_gen: v7x
topology: tpu7x:2x2x1
jax: 0.10.0
libtpu: 0.0.40
codegen_flags: <defaults>
</compile_context>

<pallas_src>
import functools

import jax
import jax.numpy as jnp
from jax import lax
from jax.experimental import pallas as pl
from jax.experimental.pallas import tpu as pltpu


def _basic_block_kernel(x_ref, w1_ref, w2_ref, s1_ref, b1_ref, s2_ref, b2_ref,
                        o_ref, col1, col2, *, H, W, C, chunks):
    """One batch element per grid step.

    x_ref : (1, H, W, C)        bf16   NHWC activation (C already lane-padded)
    w*_ref: (3, 3*C, C)         bf16   weight with (dx, cin) folded into K
    s/b   : (1, C)              f32    BN scale / shift
    o_ref : (1, H, W, C)        f32    output
    col1/2: (H+2, W, 3*C)       bf16   scratch: padded rows x (dx-tap, cin) cols
    """
    s1 = s1_ref[0]
    b1 = b1_ref[0]
    s2 = s2_ref[0]
    b2 = b2_ref[0]

    # Zero only the halo rows; interior rows (and the left/right zero columns)
    # are fully rewritten by write_col every step, so no full-buffer memset.
    zero_row = jnp.zeros((W, 3 * C), jnp.bfloat16)
    col1[0, :, :] = zero_row
    col1[H + 1, :, :] = zero_row
    col2[0, :, :] = zero_row
    col2[H + 1, :, :] = zero_row

    def write_col(col_ref, v, h0):
        # v: (hc, W, C) f32 chunk of the activation; destination rows h0+1..h0+hc.
        # dx taps are laid out along the channel/K axis:
        #   [0:C]   -> padded column j   (left-shifted, zero at j=0)
        #   [C:2C]  -> padded column j+1 (the activation itself, no shift)
        #   [2C:3C] -> padded column j+2 (right-shifted, zero at j=W-1)
        hc = v.shape[0]
        z = jnp.zeros((hc, 1, C), jnp.float32)
        left = jnp.concatenate([z, v[:, :W - 1, :]], axis=1)
        right = jnp.concatenate([v[:, 1:, :], z], axis=1)
        r0 = h0 + 1
        col_ref[r0:r0 + hc, :, 0:C] = left.astype(jnp.bfloat16)
        col_ref[r0:r0 + hc, :, C:2 * C] = v.astype(jnp.bfloat16)
        col_ref[r0:r0 + hc, :, 2 * C:3 * C] = right.astype(jnp.bfloat16)

    def conv_rows(col_ref, w_ref, h0, hc):
        # K = 3*C per matmul; dy handled as a cheap leading-axis offset.
        acc = jnp.zeros((hc * W, C), jnp.float32)
        for dy in range(3):
            patch = col_ref[h0 + dy:h0 + dy + hc, :, :].reshape(hc * W, 3 * C)
            acc = acc + jnp.dot(patch, w_ref[dy],
                                preferred_element_type=jnp.float32)
        return acc.reshape(hc, W, C)

    # ---- stage 1: bn1 + relu (f32), build col1 ----
    h0 = 0
    for hc in chunks:
        xc = x_ref[0, h0:h0 + hc, :, :].astype(jnp.float32)
        a = jnp.maximum(xc * s1 + b1, 0.0)
        write_col(col1, a, h0)
        h0 += hc

    # ---- stage 2: conv1 (bf16 MXU, f32 acc) + bn2 + relu, build col2 ----
    h0 = 0
    for hc in chunks:
        out1 = conv_rows(col1, w1_ref, h0, hc)
        bact = jnp.maximum(out1 * s2 + b2, 0.0)
        write_col(col2, bact, h0)
        h0 += hc

    # ---- stage 3: conv2 + residual add, store lane-dense f32 output ----
    h0 = 0
    for hc in chunks:
        out2 = conv_rows(col2, w2_ref, h0, hc)
        res = x_ref[0, h0:h0 + hc, :, :].astype(jnp.float32)
        o_ref[0, h0:h0 + hc, :, :] = (out2 + res).astype(o_ref.dtype)
        h0 += hc


def basic_block_pallas(x_nchw, w1_oihw, w2_oihw, s1, b1, s2, b2):
    """x_nchw: (N, C, H, W) f32.  Returns (N, C, H, W) f32."""
    N, C_in, H, W = x_nchw.shape
    C_out = w1_oihw.shape[0]
    assert C_in == C_out, (
        "BasicBlock with bn1(planes) applied to x requires inplanes == planes")
    C = C_in
    LANE = 128
    C_pad = ((C + LANE - 1) // LANE) * LANE  # lane-dense channel padding

    # --- boundary glue: NCHW -> NHWC, pad channels, cast to bf16 ---
    # TODO(synk): keep activations NHWC/bf16 end-to-end in a real model to
    # avoid these extra HBM passes.
    x = jnp.transpose(x_nchw, (0, 2, 3, 1))
    x = jnp.pad(x, ((0, 0), (0, 0), (0, 0), (0, C_pad - C))).astype(jnp.bfloat16)

    def prep_w(w_oihw):
        w = jnp.transpose(w_oihw, (2, 3, 1, 0))               # (3,3,Cin,Cout)
        w = jnp.pad(w, ((0, 0), (0, 0), (0, C_pad - C), (0, C_pad - C)))
        # fold (dx, cin) into K so it matches the col buffer layout
        return w.reshape(3, 3 * C_pad, C_pad).astype(jnp.bfloat16)

    w1 = prep_w(w1_oihw)
    w2 = prep_w(w2_oihw)

    def prep_v(v):
        return jnp.pad(v, (0, C_pad - C)).reshape(1, C_pad).astype(jnp.float32)

    s1p, b1p, s2p, b2p = (prep_v(v) for v in (s1, b1, s2, b2))

    # Static H-chunking: ~128 output rows of the (H*W, C) matmul per chunk.
    ch = max(1, min(H, 128 // max(1, W)))
    chunks = []
    h = 0
    while h < H:
        chunks.append(min(ch, H - h))
        h += ch
    chunks = tuple(chunks)

    kernel = functools.partial(_basic_block_kernel, H=H, W=W, C=C_pad,
                               chunks=chunks)

    out_nhwc = pl.pallas_call(
        kernel,
        out_shape=jax.ShapeDtypeStruct((N, H, W, C_pad), jnp.float32),
        grid_spec=pltpu.PrefetchScalarGridSpec(
            num_scalar_prefetch=0,
            grid=(N,),
            in_specs=[
                pl.BlockSpec((1, H, W, C_pad), lambda n: (n, 0, 0, 0)),
                pl.BlockSpec((3, 3 * C_pad, C_pad), lambda n: (0, 0, 0)),
                pl.BlockSpec((3, 3 * C_pad, C_pad), lambda n: (0, 0, 0)),
                pl.BlockSpec((1, C_pad), lambda n: (0, 0)),
                pl.BlockSpec((1, C_pad), lambda n: (0, 0)),
                pl.BlockSpec((1, C_pad), lambda n: (0, 0)),
                pl.BlockSpec((1, C_pad), lambda n: (0, 0)),
            ],
            out_specs=pl.BlockSpec((1, H, W, C_pad), lambda n: (n, 0, 0, 0)),
            scratch_shapes=[
                pltpu.VMEM((H + 2, W, 3 * C_pad), jnp.bfloat16),
                pltpu.VMEM((H + 2, W, 3 * C_pad), jnp.bfloat16),
            ],
        ),
        compiler_params=pltpu.CompilerParams(
            dimension_semantics=("parallel",),
            vmem_limit_bytes=32 * 1024 * 1024),
    )(x, w1, w2, s1p, b1p, s2p, b2p)

    # strip channel padding, NHWC -> NCHW (boundary glue)
    return jnp.transpose(out_nhwc[..., :C], (0, 3, 1, 2))


def basic_block_reference(x_nchw, w1_oihw, w2_oihw, s1, b1, s2, b2):
    """Pure-JAX f32 reference (NCHW, same as the PyTorch module in eval mode)."""
    def bn(x, s, b):
        return x * s[None, :, None, None] + b[None, :, None, None]

    dn = ("NCHW", "OIHW", "NCHW")
    a = jnp.maximum(bn(x_nchw, s1, b1), 0.0)
    out = lax.conv_general_dilated(a, w1_oihw, (1, 1), ((1, 1), (1, 1)),
                                   dimension_numbers=dn)
    out = jnp.maximum(bn(out, s2, b2), 0.0)
    out = lax.conv_general_dilated(out, w2_oihw, (1, 1), ((1, 1), (1, 1)),
                                   dimension_numbers=dn)
    return out + x_nchw


if __name__ == "__main__":
    # Small, deterministic setup: inplanes = planes = 4, batch = 2, 16x16 spatial.
    N, C, H, W = 2, 4, 16, 16
    key = jax.random.PRNGKey(0)
    kx, kw1, kw2, kg1, kb1, km1, kv1, kg2, kb2, km2, kv2 = jax.random.split(key, 11)

    x = jax.random.normal(kx, (N, C, H, W), jnp.float32)

    # conv weights, PyTorch OIHW layout: (out, in, 3, 3)
    w1 = jax.random.normal(kw1, (C, C, 3, 3), jnp.float32) * 0.1
    w2 = jax.random.normal(kw2, (C, C, 3, 3), jnp.float32) * 0.1

    # BatchNorm (eval mode) parameters, folded into per-channel scale / shift.
    eps = 1e-5
    g1 = 1.0 + 0.1 * jax.random.normal(kg1, (C,), jnp.float32)
    be1 = 0.1 * jax.random.normal(kb1, (C,), jnp.float32)
    m1 = 0.1 * jax.random.normal(km1, (C,), jnp.float32)
    v1 = jnp.abs(jax.random.normal(kv1, (C,), jnp.float32)) + 0.5
    g2 = 1.0 + 0.1 * jax.random.normal(kg2, (C,), jnp.float32)
    be2 = 0.1 * jax.random.normal(kb2, (C,), jnp.float32)
    m2 = 0.1 * jax.random.normal(km2, (C,), jnp.float32)
    v2 = jnp.abs(jax.random.normal(kv2, (C,), jnp.float32)) + 0.5

    s1 = g1 / jnp.sqrt(v1 + eps)
    b1 = be1 - m1 * s1
    s2 = g2 / jnp.sqrt(v2 + eps)
    b2 = be2 - m2 * s2

    out = basic_block_pallas(x, w1, w2, s1, b1, s2, b2)
    out = jax.block_until_ready(out)

    ref = basic_block_reference(x, w1, w2, s1, b1, s2, b2)
    ref = jax.block_until_ready(ref)

    assert out.shape == (N, C, H, W)
    # Tolerance accounts for bf16 conv operands on the MXU (f32 accumulation).
    assert jnp.allclose(out, ref, atol=5e-2, rtol=5e-2), (
        float(jnp.max(jnp.abs(out - ref))))

    print("KERNEL_OK")
</pallas_src>

<mosaic_0001>
module attributes {stable_mosaic.version = 11 : i64} {
  func.func @_basic_block_kernel(%arg0: i32, %arg1: memref<1x16x16x128xbf16, #tpu.memory_space<vmem>>, %arg2: memref<3x384x128xbf16, #tpu.memory_space<vmem>>, %arg3: memref<3x384x128xbf16, #tpu.memory_space<vmem>>, %arg4: memref<1x128xf32, #tpu.memory_space<vmem>>, %arg5: memref<1x128xf32, #tpu.memory_space<vmem>>, %arg6: memref<1x128xf32, #tpu.memory_space<vmem>>, %arg7: memref<1x128xf32, #tpu.memory_space<vmem>>, %arg8: memref<1x16x16x128xf32, #tpu.memory_space<vmem>>, %arg9: memref<18x16x384xbf16, #tpu.memory_space<vmem>>, %arg10: memref<18x16x384xbf16, #tpu.memory_space<vmem>>) attributes {dimension_semantics = [#tpu.dimension_semantics<parallel>], iteration_bounds = array<i64: 2>, scalar_prefetch = 0 : i64, scratch_operands = 2 : i64, tpu.core_type = #tpu.core_type<tc>, window_params = [{transform_indices = @transform_0, window_bounds = array<i64: 1, 16, 16, 128>}, {pipeline_mode = #tpu.pipeline_mode<synchronous>, transform_indices = @transform_1, window_bounds = array<i64: 3, 384, 128>}, {pipeline_mode = #tpu.pipeline_mode<synchronous>, transform_indices = @transform_2, window_bounds = array<i64: 3, 384, 128>}, {pipeline_mode = #tpu.pipeline_mode<synchronous>, transform_indices = @transform_3, window_bounds = array<i64: 1, 128>}, {pipeline_mode = #tpu.pipeline_mode<synchronous>, transform_indices = @transform_4, window_bounds = array<i64: 1, 128>}, {pipeline_mode = #tpu.pipeline_mode<synchronous>, transform_indices = @transform_5, window_bounds = array<i64: 1, 128>}, {pipeline_mode = #tpu.pipeline_mode<synchronous>, transform_indices = @transform_6, window_bounds = array<i64: 1, 128>}, {transform_indices = @transform_7, window_bounds = array<i64: 1, 16, 16, 128>}]} {
    %c0 = arith.constant 0 : index
    %c0_0 = arith.constant 0 : index
    %0 = vector.load %arg4[%c0, %c0_0] : memref<1x128xf32, #tpu.memory_space<vmem>>, vector<1x128xf32>
    %1 = vector.shape_cast %0 : vector<1x128xf32> to vector<128xf32>
    %c0_1 = arith.constant 0 : index
    %c0_2 = arith.constant 0 : index
    %2 = vector.load %arg5[%c0_1, %c0_2] : memref<1x128xf32, #tpu.memory_space<vmem>>, vector<1x128xf32>
    %3 = vector.shape_cast %2 : vector<1x128xf32> to vector<128xf32>
    %c0_3 = arith.constant 0 : index
    %c0_4 = arith.constant 0 : index
    %4 = vector.load %arg6[%c0_3, %c0_4] : memref<1x128xf32, #tpu.memory_space<vmem>>, vector<1x128xf32>
    %5 = vector.shape_cast %4 : vector<1x128xf32> to vector<128xf32>
    %c0_5 = arith.constant 0 : index
    %c0_6 = arith.constant 0 : index
    %6 = vector.load %arg7[%c0_5, %c0_6] : memref<1x128xf32, #tpu.memory_space<vmem>>, vector<1x128xf32>
    %7 = vector.shape_cast %6 : vector<1x128xf32> to vector<128xf32>
    %cst = arith.constant 0.000000e+00 : bf16
    %8 = vector.broadcast %cst : bf16 to vector<16x384xbf16>
    %c0_7 = arith.constant 0 : index
    %c0_8 = arith.constant 0 : index
    %c0_9 = arith.constant 0 : index
    %9 = vector.load %arg9[%c0_7, %c0_8, %c0_9] : memref<18x16x384xbf16, #tpu.memory_space<vmem>>, vector<1x16x384xbf16>
    %10 = vector.shape_cast %9 : vector<1x16x384xbf16> to vector<16x384xbf16>
    %11 = vector.shape_cast %8 : vector<16x384xbf16> to vector<1x16x384xbf16>
    tpu.vector_store %arg9[%c0_7, %c0_8, %c0_9], %11 {strides = array<i32>} : memref<18x16x384xbf16, #tpu.memory_space<vmem>>, vector<1x16x384xbf16>,
    %c17 = arith.constant 17 : index
    %c0_10 = arith.constant 0 : index
    %c0_11 = arith.constant 0 : index
    %12 = vector.load %arg9[%c17, %c0_10, %c0_11] : memref<18x16x384xbf16, #tpu.memory_space<vmem>>, vector<1x16x384xbf16>
    %13 = vector.shape_cast %12 : vector<1x16x384xbf16> to vector<16x384xbf16>
    %14 = vector.shape_cast %8 : vector<16x384xbf16> to vector<1x16x384xbf16>
    tpu.vector_store %arg9[%c17, %c0_10, %c0_11], %14 {strides = array<i32>} : memref<18x16x384xbf16, #tpu.memory_space<vmem>>, vector<1x16x384xbf16>,
    %c0_12 = arith.constant 0 : index
    %c0_13 = arith.constant 0 : index
    %c0_14 = arith.constant 0 : index
    %15 = vector.load %arg10[%c0_12, %c0_13, %c0_14] : memref<18x16x384xbf16, #tpu.memory_space<vmem>>, vector<1x16x384xbf16>
    %16 = vector.shape_cast %15 : vector<1x16x384xbf16> to vector<16x384xbf16>
    %17 = vector.shape_cast %8 : vector<16x384xbf16> to vector<1x16x384xbf16>
    tpu.vector_store %arg10[%c0_12, %c0_13, %c0_14], %17 {strides = array<i32>} : memref<18x16x384xbf16, #tpu.memory_space<vmem>>, vector<1x16x384xbf16>,
    %c17_15 = arith.constant 17 : index
    %c0_16 = arith.constant 0 : index
    %c0_17 = arith.constant 0 : index
    %18 = vector.load %arg10[%c17_15, %c0_16, %c0_17] : memref<18x16x384xbf16, #tpu.memory_space<vmem>>, vector<1x16x384xbf16>
    %19 = vector.shape_cast %18 : vector<1x16x384xbf16> to vector<16x384xbf16>
    %20 = vector.shape_cast %8 : vector<16x384xbf16> to vector<1x16x384xbf16>
    tpu.vector_store %arg10[%c17_15, %c0_16, %c0_17], %20 {strides = array<i32>} : memref<18x16x384xbf16, #tpu.memory_space<vmem>>, vector<1x16x384xbf16>,
    %c0_18 = arith.constant 0 : index
    %c0_19 = arith.constant 0 : index
    %c0_20 = arith.constant 0 : index
    %c0_21 = arith.constant 0 : index
    %21 = vector.load %arg1[%c0_18, %c0_19, %c0_20, %c0_21] : memref<1x16x16x128xbf16, #tpu.memory_space<vmem>>, vector<1x8x16x128xbf16>
    %22 = vector.shape_cast %21 : vector<1x8x16x128xbf16> to vector<8x16x128xbf16>
    %23 = arith.extf %22 : vector<8x16x128xbf16> to vector<8x16x128xf32>
    %24 = vector.shape_cast %1 : vector<128xf32> to vector<1x1x128xf32>
    %25 = vector.broadcast %24 : vector<1x1x128xf32> to vector<8x16x128xf32>
    %26 = arith.mulf %23, %25 : vector<8x16x128xf32>
    %27 = vector.shape_cast %3 : vector<128xf32> to vector<1x1x128xf32>
    %28 = vector.broadcast %27 : vector<1x1x128xf32> to vector<8x16x128xf32>
    %29 = arith.addf %26, %28 : vector<8x16x128xf32>
    %cst_22 = arith.constant 0.000000e+00 : f32
    %30 = vector.broadcast %cst_22 : f32 to vector<8x16x128xf32>
    %31 = arith.maximumf %29, %30 : vector<8x16x128xf32>
    %cst_23 = arith.constant 0.000000e+00 : f32
    %32 = vector.broadcast %cst_23 : f32 to vector<8x1x128xf32>
    %33 = vector.extract_strided_slice %31 {offsets = [0, 0, 0], sizes = [8, 15, 128], strides = [1, 1, 1]} : vector<8x16x128xf32> to vector<8x15x128xf32>
    %34 = tpu.concatenate %32, %33 in 1 : vector<8x1x128xf32>, vector<8x15x128xf32> -> vector<8x16x128xf32>
    %35 = vector.extract_strided_slice %31 {offsets = [0, 1, 0], sizes = [8, 15, 128], strides = [1, 1, 1]} : vector<8x16x128xf32> to vector<8x15x128xf32>
    %36 = tpu.concatenate %35, %32 in 1 : vector<8x15x128xf32>, vector<8x1x128xf32> -> vector<8x16x128xf32>
    %37 = arith.truncf %34 : vector<8x16x128xf32> to vector<8x16x128xbf16>
    %c1 = arith.constant 1 : index
    %c0_24 = arith.constant 0 : index
    %c0_25 = arith.constant 0 : index
    %38 = vector.load %arg9[%c1, %c0_24, %c0_25] : memref<18x16x384xbf16, #tpu.memory_space<vmem>>, vector<8x16x128xbf16>
    tpu.vector_store %arg9[%c1, %c0_24, %c0_25], %37 {strides = array<i32>} : memref<18x16x384xbf16, #tpu.memory_space<vmem>>, vector<8x16x128xbf16>,
    %39 = arith.truncf %31 : vector<8x16x128xf32> to vector<8x16x128xbf16>
    %c1_26 = arith.constant 1 : index
    %c0_27 = arith.constant 0 : index
    %c128 = arith.constant 128 : index
    %40 = vector.load %arg9[%c1_26, %c0_27, %c128] : memref<18x16x384xbf16, #tpu.memory_space<vmem>>, vector<8x16x128xbf16>
    tpu.vector_store %arg9[%c1_26, %c0_27, %c128], %39 {strides = array<i32>} : memref<18x16x384xbf16, #tpu.memory_space<vmem>>, vector<8x16x128xbf16>,
    %41 = arith.truncf %36 : vector<8x16x128xf32> to vector<8x16x128xbf16>
    %c1_28 = arith.constant 1 : index
    %c0_29 = arith.constant 0 : index
    %c256 = arith.constant 256 : index
    %42 = vector.load %arg9[%c1_28, %c0_29, %c256] : memref<18x16x384xbf16, #tpu.memory_space<vmem>>, vector<8x16x128xbf16>
    tpu.vector_store %arg9[%c1_28, %c0_29, %c256], %41 {strides = array<i32>} : memref<18x16x384xbf16, #tpu.memory_space<vmem>>, vector<8x16x128xbf16>,
    %c0_30 = arith.constant 0 : index
    %c8 = arith.constant 8 : index
    %c0_31 = arith.constant 0 : index
    %c0_32 = arith.constant 0 : index
    %43 = vector.load %arg1[%c0_30, %c8, %c0_31, %c0_32] : memref<1x16x16x128xbf16, #tpu.memory_space<vmem>>, vector<1x8x16x128xbf16>
    %44 = vector.shape_cast %43 : vector<1x8x16x128xbf16> to vector<8x16x128xbf16>
    %45 = arith.extf %44 : vector<8x16x128xbf16> to vector<8x16x128xf32>
    %46 = vector.shape_cast %1 : vector<128xf32> to vector<1x1x128xf32>
    %47 = vector.broadcast %46 : vector<1x1x128xf32> to vector<8x16x128xf32>
    %48 = arith.mulf %45, %47 : vector<8x16x128xf32>
    %49 = vector.shape_cast %3 : vector<128xf32> to vector<1x1x128xf32>
    %50 = vector.broadcast %49 : vector<1x1x128xf32> to vector<8x16x128xf32>
    %51 = arith.addf %48, %50 : vector<8x16x128xf32>
    %cst_33 = arith.constant 0.000000e+00 : f32
    %52 = vector.broadcast %cst_33 : f32 to vector<8x16x128xf32>
    %53 = arith.maximumf %51, %52 : vector<8x16x128xf32>
    %cst_34 = arith.constant 0.000000e+00 : f32
    %54 = vector.broadcast %cst_34 : f32 to vector<8x1x128xf32>
    %55 = vector.extract_strided_slice %53 {offsets = [0, 0, 0], sizes = [8, 15, 128], strides = [1, 1, 1]} : vector<8x16x128xf32> to vector<8x15x128xf32>
    %56 = tpu.concatenate %54, %55 in 1 : vector<8x1x128xf32>, vector<8x15x128xf32> -> vector<8x16x128xf32>
    %57 = vector.extract_strided_slice %53 {offsets = [0, 1, 0], sizes = [8, 15, 128], strides = [1, 1, 1]} : vector<8x16x128xf32> to vector<8x15x128xf32>
    %58 = tpu.concatenate %57, %54 in 1 : vector<8x15x128xf32>, vector<8x1x128xf32> -> vector<8x16x128xf32>
    %59 = arith.truncf %56 : vector<8x16x128xf32> to vector<8x16x128xbf16>
    %c9 = arith.constant 9 : index
    %c0_35 = arith.constant 0 : index
    %c0_36 = arith.constant 0 : index
    %60 = vector.load %arg9[%c9, %c0_35, %c0_36] : memref<18x16x384xbf16, #tpu.memory_space<vmem>>, vector<8x16x128xbf16>
    tpu.vector_store %arg9[%c9, %c0_35, %c0_36], %59 {strides = array<i32>} : memref<18x16x384xbf16, #tpu.memory_space<vmem>>, vector<8x16x128xbf16>,
    %61 = arith.truncf %53 : vector<8x16x128xf32> to vector<8x16x128xbf16>
    %c9_37 = arith.constant 9 : index
    %c0_38 = arith.constant 0 : index
    %c128_39 = arith.constant 128 : index
    %62 = vector.load %arg9[%c9_37, %c0_38, %c128_39] : memref<18x16x384xbf16, #tpu.memory_space<vmem>>, vector<8x16x128xbf16>
    tpu.vector_store %arg9[%c9_37, %c0_38, %c128_39], %61 {strides = array<i32>} : memref<18x16x384xbf16, #tpu.memory_space<vmem>>, vector<8x16x128xbf16>,
    %63 = arith.truncf %58 : vector<8x16x128xf32> to vector<8x16x128xbf16>
    %c9_40 = arith.constant 9 : index
    %c0_41 = arith.constant 0 : index
    %c256_42 = arith.constant 256 : index
    %64 = vector.load %arg9[%c9_40, %c0_41, %c256_42] : memref<18x16x384xbf16, #tpu.memory_space<vmem>>, vector<8x16x128xbf16>
    tpu.vector_store %arg9[%c9_40, %c0_41, %c256_42], %63 {strides = array<i32>} : memref<18x16x384xbf16, #tpu.memory_space<vmem>>, vector<8x16x128xbf16>,
    %cst_43 = arith.constant 0.000000e+00 : f32
    %65 = vector.broadcast %cst_43 : f32 to vector<128x128xf32>
    %c0_44 = arith.constant 0 : index
    %c0_45 = arith.constant 0 : index
    %c0_46 = arith.constant 0 : index
    %66 = vector.load %arg9[%c0_44, %c0_45, %c0_46] : memref<18x16x384xbf16, #tpu.memory_space<vmem>>, vector<8x16x384xbf16>
    %67 = vector.shape_cast %66 : vector<8x16x384xbf16> to vector<128x384xbf16>
    %c0_47 = arith.constant 0 : index
    %c0_48 = arith.constant 0 : index
    %c0_49 = arith.constant 0 : index
    %68 = vector.load %arg2[%c0_47, %c0_48, %c0_49] : memref<3x384x128xbf16, #tpu.memory_space<vmem>>, vector<1x384x128xbf16>
    %69 = vector.shape_cast %68 : vector<1x384x128xbf16> to vector<384x128xbf16>
    %cst_50 = arith.constant dense<0.000000e+00> : vector<128x128xf32>
    %70 = tpu.matmul %67, %69, %cst_50 {dimension_numbers = #tpu.dot_dimension_numbers<[1], [0], [0], [1], [0, 0, 1, 1], [], []>} : vector<128x384xbf16>, vector<384x128xbf16>, vector<128x128xf32> -> vector<128x128xf32>
    %71 = arith.addf %65, %70 : vector<128x128xf32>
    %c1_51 = arith.constant 1 : index
    %c0_52 = arith.constant 0 : index
    %c0_53 = arith.constant 0 : index
    %72 = vector.load %arg9[%c1_51, %c0_52, %c0_53] : memref<18x16x384xbf16, #tpu.memory_space<vmem>>, vector<8x16x384xbf16>
    %73 = vector.shape_cast %72 : vector<8x16x384xbf16> to vector<128x384xbf16>
    %c1_54 = arith.constant 1 : index
    %c0_55 = arith.constant 0 : index
    %c0_56 = arith.constant 0 : index
    %74 = vector.load %arg2[%c1_54, %c0_55, %c0_56] : memref<3x384x128xbf16, #tpu.memory_space<vmem>>, vector<1x384x128xbf16>
    %75 = vector.shape_cast %74 : vector<1x384x128xbf16> to vector<384x128xbf16>
    %cst_57 = arith.constant dense<0.000000e+00> : vector<128x128xf32>
    %76 = tpu.matmul %73, %75, %cst_57 {dimension_numbers = #tpu.dot_dimension_numbers<[1], [0], [0], [1], [0, 0, 1, 1], [], []>} : vector<128x384xbf16>, vector<384x128xbf16>, vector<128x128xf32> -> vector<128x128xf32>
    %77 = arith.addf %71, %76 : vector<128x128xf32>
    %c2 = arith.constant 2 : index
    %c0_58 = arith.constant 0 : index
    %c0_59 = arith.constant 0 : index
    %78 = vector.load %arg9[%c2, %c0_58, %c0_59] : memref<18x16x384xbf16, #tpu.memory_space<vmem>>, vector<8x16x384xbf16>
    %79 = vector.shape_cast %78 : vector<8x16x384xbf16> to vector<128x384xbf16>
    %c2_60 = arith.constant 2 : index
    %c0_61 = arith.constant 0 : index
    %c0_62 = arith.constant 0 : index
    %80 = vector.load %arg2[%c2_60, %c0_61, %c0_62] : memref<3x384x128xbf16, #tpu.memory_space<vmem>>, vector<1x384x128xbf16>
    %81 = vector.shape_cast %80 : vector<1x384x128xbf16> to vector<384x128xbf16>
    %cst_63 = arith.constant dense<0.000000e+00> : vector<128x128xf32>
    %82 = tpu.matmul %79, %81, %cst_63 {dimension_numbers = #tpu.dot_dimension_numbers<[1], [0], [0], [1], [0, 0, 1, 1], [], []>} : vector<128x384xbf16>, vector<384x128xbf16>, vector<128x128xf32> -> vector<128x128xf32>
    %83 = arith.addf %77, %82 : vector<128x128xf32>
    %84 = vector.shape_cast %83 : vector<128x128xf32> to vector<8x16x128xf32>
    %85 = vector.shape_cast %5 : vector<128xf32> to vector<1x1x128xf32>
    %86 = vector.broadcast %85 : vector<1x1x128xf32> to vector<8x16x128xf32>
    %87 = arith.mulf %84, %86 : vector<8x16x128xf32>
    %88 = vector.shape_cast %7 : vector<128xf32> to vector<1x1x128xf32>
    %89 = vector.broadcast %88 : vector<1x1x128xf32> to vector<8x16x128xf32>
    %90 = arith.addf %87, %89 : vector<8x16x128xf32>
    %cst_64 = arith.constant 0.000000e+00 : f32
    %91 = vector.broadcast %cst_64 : f32 to vector<8x16x128xf32>
    %92 = arith.maximumf %90, %91 : vector<8x16x128xf32>
    %cst_65 = arith.constant 0.000000e+00 : f32
    %93 = vector.broadcast %cst_65 : f32 to vector<8x1x128xf32>
    %94 = vector.extract_strided_slice %92 {offsets = [0, 0, 0], sizes = [8, 15, 128], strides = [1, 1, 1]} : vector<8x16x128xf32> to vector<8x15x128xf32>
    %95 = tpu.concatenate %93, %94 in 1 : vector<8x1x128xf32>, vector<8x15x128xf32> -> vector<8x16x128xf32>
    %96 = vector.extract_strided_slice %92 {offsets = [0, 1, 0], sizes = [8, 15, 128], strides = [1, 1, 1]} : vector<8x16x128xf32> to vector<8x15x128xf32>
    %97 = tpu.concatenate %96, %93 in 1 : vector<8x15x128xf32>, vector<8x1x128xf32> -> vector<8x16x128xf32>
    %98 = arith.truncf %95 : vector<8x16x128xf32> to vector<8x16x128xbf16>
    %c1_66 = arith.constant 1 : index
    %c0_67 = arith.constant 0 : index
    %c0_68 = arith.constant 0 : index
    %99 = vector.load %arg10[%c1_66, %c0_67, %c0_68] : memref<18x16x384xbf16, #tpu.memory_space<vmem>>, vector<8x16x128xbf16>
    tpu.vector_store %arg10[%c1_66, %c0_67, %c0_68], %98 {strides = array<i32>} : memref<18x16x384xbf16, #tpu.memory_space<vmem>>, vector<8x16x128xbf16>,
    %100 = arith.truncf %92 : vector<8x16x128xf32> to vector<8x16x128xbf16>
    %c1_69 = arith.constant 1 : index
    %c0_70 = arith.constant 0 : index
    %c128_71 = arith.constant 128 : index
    %101 = vector.load %arg10[%c1_69, %c0_70, %c128_71] : memref<18x16x384xbf16, #tpu.memory_space<vmem>>, vector<8x16x128xbf16>
    tpu.vector_store %arg10[%c1_69, %c0_70, %c128_71], %100 {strides = array<i32>} : memref<18x16x384xbf16, #tpu.memory_space<vmem>>, vector<8x16x128xbf16>,
    %102 = arith.truncf %97 : vector<8x16x128xf32> to vector<8x16x128xbf16>
    %c1_72 = arith.constant 1 : index
    %c0_73 = arith.constant 0 : index
    %c256_74 = arith.constant 256 : index
    %103 = vector.load %arg10[%c1_72, %c0_73, %c256_74] : memref<18x16x384xbf16, #tpu.memory_space<vmem>>, vector<8x16x128xbf16>
    tpu.vector_store %arg10[%c1_72, %c0_73, %c256_74], %102 {strides = array<i32>} : memref<18x16x384xbf16, #tpu.memory_space<vmem>>, vector<8x16x128xbf16>,
    %cst_75 = arith.constant 0.000000e+00 : f32
    %104 = vector.broadcast %cst_75 : f32 to vector<128x128xf32>
    %c8_76 = arith.constant 8 : index
    %c0_77 = arith.constant 0 : index
    %c0_78 = arith.constant 0 : index
    %105 = vector.load %arg9[%c8_76, %c0_77, %c0_78] : memref<18x16x384xbf16, #tpu.memory_space<vmem>>, vector<8x16x384xbf16>
    %106 = vector.shape_cast %105 : vector<8x16x384xbf16> to vector<128x384xbf16>
    %c0_79 = arith.constant 0 : index
    %c0_80 = arith.constant 0 : index
    %c0_81 = arith.constant 0 : index
    %107 = vector.load %arg2[%c0_79, %c0_80, %c0_81] : memref<3x384x128xbf16, #tpu.memory_space<vmem>>, vector<1x384x128xbf16>
    %108 = vector.shape_cast %107 : vector<1x384x128xbf16> to vector<384x128xbf16>
    %cst_82 = arith.constant dense<0.000000e+00> : vector<128x128xf32>
    %109 = tpu.matmul %106, %108, %cst_82 {dimension_numbers = #tpu.dot_dimension_numbers<[1], [0], [0], [1], [0, 0, 1, 1], [], []>} : vector<128x384xbf16>, vector<384x128xbf16>, vector<128x128xf32> -> vector<128x128xf32>
    %110 = arith.addf %104, %109 : vector<128x128xf32>
    %c9_83 = arith.constant 9 : index
    %c0_84 = arith.constant 0 : index
    %c0_85 = arith.constant 0 : index
    %111 = vector.load %arg9[%c9_83, %c0_84, %c0_85] : memref<18x16x384xbf16, #tpu.memory_space<vmem>>, vector<8x16x384xbf16>
    %112 = vector.shape_cast %111 : vector<8x16x384xbf16> to vector<128x384xbf16>
    %c1_86 = arith.constant 1 : index
    %c0_87 = arith.constant 0 : index
    %c0_88 = arith.constant 0 : index
    %113 = vector.load %arg2[%c1_86, %c0_87, %c0_88] : memref<3x384x128xbf16, #tpu.memory_space<vmem>>, vector<1x384x128xbf16>
    %114 = vector.shape_cast %113 : vector<1x384x128xbf16> to vector<384x128xbf16>
    %cst_89 = arith.constant dense<0.000000e+00> : vector<128x128xf32>
    %115 = tpu.matmul %112, %114, %cst_89 {dimension_numbers = #tpu.dot_dimension_numbers<[1], [0], [0], [1], [0, 0, 1, 1], [], []>} : vector<128x384xbf16>, vector<384x128xbf16>, vector<128x128xf32> -> vector<128x128xf32>
    %116 = arith.addf %110, %115 : vector<128x128xf32>
    %c10 = arith.constant 10 : index
    %c0_90 = arith.constant 0 : index
    %c0_91 = arith.constant 0 : index
    %117 = vector.load %arg9[%c10, %c0_90, %c0_91] : memref<18x16x384xbf16, #tpu.memory_space<vmem>>, vector<8x16x384xbf16>
    %118 = vector.shape_cast %117 : vector<8x16x384xbf16> to vector<128x384xbf16>
    %c2_92 = arith.constant 2 : index
    %c0_93 = arith.constant 0 : index
    %c0_94 = arith.constant 0 : index
    %119 = vector.load %arg2[%c2_92, %c0_93, %c0_94] : memref<3x384x128xbf16, #tpu.memory_space<vmem>>, vector<1x384x128xbf16>
    %120 = vector.shape_cast %119 : vector<1x384x128xbf16> to vector<384x128xbf16>
    %cst_95 = arith.constant dense<0.000000e+00> : vector<128x128xf32>
    %121 = tpu.matmul %118, %120, %cst_95 {dimension_numbers = #tpu.dot_dimension_numbers<[1], [0], [0], [1], [0, 0, 1, 1], [], []>} : vector<128x384xbf16>, vector<384x128xbf16>, vector<128x128xf32> -> vector<128x128xf32>
    %122 = arith.addf %116, %121 : vector<128x128xf32>
    %123 = vector.shape_cast %122 : vector<128x128xf32> to vector<8x16x128xf32>
    %124 = vector.shape_cast %5 : vector<128xf32> to vector<1x1x128xf32>
    %125 = vector.broadcast %124 : vector<1x1x128xf32> to vector<8x16x128xf32>
    %126 = arith.mulf %123, %125 : vector<8x16x128xf32>
    %127 = vector.shape_cast %7 : vector<128xf32> to vector<1x1x128xf32>
    %128 = vector.broadcast %127 : vector<1x1x128xf32> to vector<8x16x128xf32>
    %129 = arith.addf %126, %128 : vector<8x16x128xf32>
    %cst_96 = arith.constant 0.000000e+00 : f32
    %130 = vector.broadcast %cst_96 : f32 to vector<8x16x128xf32>
    %131 = arith.maximumf %129, %130 : vector<8x16x128xf32>
    %cst_97 = arith.constant 0.000000e+00 : f32
    %132 = vector.broadcast %cst_97 : f32 to vector<8x1x128xf32>
    %133 = vector.extract_strided_slice %131 {offsets = [0, 0, 0], sizes = [8, 15, 128], strides = [1, 1, 1]} : vector<8x16x128xf32> to vector<8x15x128xf32>
    %134 = tpu.concatenate %132, %133 in 1 : vector<8x1x128xf32>, vector<8x15x128xf32> -> vector<8x16x128xf32>
    %135 = vector.extract_strided_slice %131 {offsets = [0, 1, 0], sizes = [8, 15, 128], strides = [1, 1, 1]} : vector<8x16x128xf32> to vector<8x15x128xf32>
    %136 = tpu.concatenate %135, %132 in 1 : vector<8x15x128xf32>, vector<8x1x128xf32> -> vector<8x16x128xf32>
    %137 = arith.truncf %134 : vector<8x16x128xf32> to vector<8x16x128xbf16>
    %c9_98 = arith.constant 9 : index
    %c0_99 = arith.constant 0 : index
    %c0_100 = arith.constant 0 : index
    %138 = vector.load %arg10[%c9_98, %c0_99, %c0_100] : memref<18x16x384xbf16, #tpu.memory_space<vmem>>, vector<8x16x128xbf16>
    tpu.vector_store %arg10[%c9_98, %c0_99, %c0_100], %137 {strides = array<i32>} : memref<18x16x384xbf16, #tpu.memory_space<vmem>>, vector<8x16x128xbf16>,
    %139 = arith.truncf %131 : vector<8x16x128xf32> to vector<8x16x128xbf16>
    %c9_101 = arith.constant 9 : index
    %c0_102 = arith.constant 0 : index
    %c128_103 = arith.constant 128 : index
    %140 = vector.load %arg10[%c9_101, %c0_102, %c128_103] : memref<18x16x384xbf16, #tpu.memory_space<vmem>>, vector<8x16x128xbf16>
    tpu.vector_store %arg10[%c9_101, %c0_102, %c128_103], %139 {strides = array<i32>} : memref<18x16x384xbf16, #tpu.memory_space<vmem>>, vector<8x16x128xbf16>,
    %141 = arith.truncf %136 : vector<8x16x128xf32> to vector<8x16x128xbf16>
    %c9_104 = arith.constant 9 : index
    %c0_105 = arith.constant 0 : index
    %c256_106 = arith.constant 256 : index
    %142 = vector.load %arg10[%c9_104, %c0_105, %c256_106] : memref<18x16x384xbf16, #tpu.memory_space<vmem>>, vector<8x16x128xbf16>
    tpu.vector_store %arg10[%c9_104, %c0_105, %c256_106], %141 {strides = array<i32>} : memref<18x16x384xbf16, #tpu.memory_space<vmem>>, vector<8x16x128xbf16>,
    %cst_107 = arith.constant 0.000000e+00 : f32
    %143 = vector.broadcast %cst_107 : f32 to vector<128x128xf32>
    %c0_108 = arith.constant 0 : index
    %c0_109 = arith.constant 0 : index
    %c0_110 = arith.constant 0 : index
    %144 = vector.load %arg10[%c0_108, %c0_109, %c0_110] : memref<18x16x384xbf16, #tpu.memory_space<vmem>>, vector<8x16x384xbf16>
    %145 = vector.shape_cast %144 : vector<8x16x384xbf16> to vector<128x384xbf16>
    %c0_111 = arith.constant 0 : index
    %c0_112 = arith.constant 0 : index
    %c0_113 = arith.constant 0 : index
    %146 = vector.load %arg3[%c0_111, %c0_112, %c0_113] : memref<3x384x128xbf16, #tpu.memory_space<vmem>>, vector<1x384x128xbf16>
    %147 = vector.shape_cast %146 : vector<1x384x128xbf16> to vector<384x128xbf16>
    %cst_114 = arith.constant dense<0.000000e+00> : vector<128x128xf32>
    %148 = tpu.matmul %145, %147, %cst_114 {dimension_numbers = #tpu.dot_dimension_numbers<[1], [0], [0], [1], [0, 0, 1, 1], [], []>} : vector<128x384xbf16>, vector<384x128xbf16>, vector<128x128xf32> -> vector<128x128xf32>
    %149 = arith.addf %143, %148 : vector<128x128xf32>
    %c1_115 = arith.constant 1 : index
    %c0_116 = arith.constant 0 : index
    %c0_117 = arith.constant 0 : index
    %150 = vector.load %arg10[%c1_115, %c0_116, %c0_117] : memref<18x16x384xbf16, #tpu.memory_space<vmem>>, vector<8x16x384xbf16>
    %151 = vector.shape_cast %150 : vector<8x16x384xbf16> to vector<128x384xbf16>
    %c1_118 = arith.constant 1 : index
    %c0_119 = arith.constant 0 : index
    %c0_120 = arith.constant 0 : index
    %152 = vector.load %arg3[%c1_118, %c0_119, %c0_120] : memref<3x384x128xbf16, #tpu.memory_space<vmem>>, vector<1x384x128xbf16>
    %153 = vector.shape_cast %152 : vector<1x384x128xbf16> to vector<384x128xbf16>
    %cst_121 = arith.constant dense<0.000000e+00> : vector<128x128xf32>
    %154 = tpu.matmul %151, %153, %cst_121 {dimension_numbers = #tpu.dot_dimension_numbers<[1], [0], [0], [1], [0, 0, 1, 1], [], []>} : vector<128x384xbf16>, vector<384x128xbf16>, vector<128x128xf32> -> vector<128x128xf32>
    %155 = arith.addf %149, %154 : vector<128x128xf32>
    %c2_122 = arith.constant 2 : index
    %c0_123 = arith.constant 0 : index
    %c0_124 = arith.constant 0 : index
    %156 = vector.load %arg10[%c2_122, %c0_123, %c0_124] : memref<18x16x384xbf16, #tpu.memory_space<vmem>>, vector<8x16x384xbf16>
    %157 = vector.shape_cast %156 : vector<8x16x384xbf16> to vector<128x384xbf16>
    %c2_125 = arith.constant 2 : index
    %c0_126 = arith.constant 0 : index
    %c0_127 = arith.constant 0 : index
    %158 = vector.load %arg3[%c2_125, %c0_126, %c0_127] : memref<3x384x128xbf16, #tpu.memory_space<vmem>>, vector<1x384x128xbf16>
    %159 = vector.shape_cast %158 : vector<1x384x128xbf16> to vector<384x128xbf16>
    %cst_128 = arith.constant dense<0.000000e+00> : vector<128x128xf32>
    %160 = tpu.matmul %157, %159, %cst_128 {dimension_numbers = #tpu.dot_dimension_numbers<[1], [0], [0], [1], [0, 0, 1, 1], [], []>} : vector<128x384xbf16>, vector<384x128xbf16>, vector<128x128xf32> -> vector<128x128xf32>
    %161 = arith.addf %155, %160 : vector<128x128xf32>
    %162 = vector.shape_cast %161 : vector<128x128xf32> to vector<8x16x128xf32>
    %c0_129 = arith.constant 0 : index
    %c0_130 = arith.constant 0 : index
    %c0_131 = arith.constant 0 : index
    %c0_132 = arith.constant 0 : index
    %163 = vector.load %arg1[%c0_129, %c0_130, %c0_131, %c0_132] : memref<1x16x16x128xbf16, #tpu.memory_space<vmem>>, vector<1x8x16x128xbf16>
    %164 = vector.shape_cast %163 : vector<1x8x16x128xbf16> to vector<8x16x128xbf16>
    %165 = arith.extf %164 : vector<8x16x128xbf16> to vector<8x16x128xf32>
    %166 = arith.addf %162, %165 : vector<8x16x128xf32>
    %c0_133 = arith.constant 0 : index
    %c0_134 = arith.constant 0 : index
    %c0_135 = arith.constant 0 : index
    %c0_136 = arith.constant 0 : index
    %167 = vector.load %arg8[%c0_133, %c0_134, %c0_135, %c0_136] : memref<1x16x16x128xf32, #tpu.memory_space<vmem>>, vector<1x8x16x128xf32>
    %168 = vector.shape_cast %167 : vector<1x8x16x128xf32> to vector<8x16x128xf32>
    %169 = vector.shape_cast %166 : vector<8x16x128xf32> to vector<1x8x16x128xf32>
    tpu.vector_store %arg8[%c0_133, %c0_134, %c0_135, %c0_136], %169 {strides = array<i32>} : memref<1x16x16x128xf32, #tpu.memory_space<vmem>>, vector<1x8x16x128xf32>,
    %cst_137 = arith.constant 0.000000e+00 : f32
    %170 = vector.broadcast %cst_137 : f32 to vector<128x128xf32>
    %c8_138 = arith.constant 8 : index
    %c0_139 = arith.constant 0 : index
    %c0_140 = arith.constant 0 : index
    %171 = vector.load %arg10[%c8_138, %c0_139, %c0_140] : memref<18x16x384xbf16, #tpu.memory_space<vmem>>, vector<8x16x384xbf16>
    %172 = vector.shape_cast %171 : vector<8x16x384xbf16> to vector<128x384xbf16>
    %c0_141 = arith.constant 0 : index
    %c0_142 = arith.constant 0 : index
    %c0_143 = arith.constant 0 : index
    %173 = vector.load %arg3[%c0_141, %c0_142, %c0_143] : memref<3x384x128xbf16, #tpu.memory_space<vmem>>, vector<1x384x128xbf16>
    %174 = vector.shape_cast %173 : vector<1x384x128xbf16> to vector<384x128xbf16>
    %cst_144 = arith.constant dense<0.000000e+00> : vector<128x128xf32>
    %175 = tpu.matmul %172, %174, %cst_144 {dimension_numbers = #tpu.dot_dimension_numbers<[1], [0], [0], [1], [0, 0, 1, 1], [], []>} : vector<128x384xbf16>, vector<384x128xbf16>, vector<128x128xf32> -> vector<128x128xf32>
    %176 = arith.addf %170, %175 : vector<128x128xf32>
    %c9_145 = arith.constant 9 : index
    %c0_146 = arith.constant 0 : index
    %c0_147 = arith.constant 0 : index
    %177 = vector.load %arg10[%c9_145, %c0_146, %c0_147] : memref<18x16x384xbf16, #tpu.memory_space<vmem>>, vector<8x16x384xbf16>
    %178 = vector.shape_cast %177 : vector<8x16x384xbf16> to vector<128x384xbf16>
    %c1_148 = arith.constant 1 : index
    %c0_149 = arith.constant 0 : index
    %c0_150 = arith.constant 0 : index
    %179 = vector.load %arg3[%c1_148, %c0_149, %c0_150] : memref<3x384x128xbf16, #tpu.memory_space<vmem>>, vector<1x384x128xbf16>
    %180 = vector.shape_cast %179 : vector<1x384x128xbf16> to vector<384x128xbf16>
    %cst_151 = arith.constant dense<0.000000e+00> : vector<128x128xf32>
    %181 = tpu.matmul %178, %180, %cst_151 {dimension_numbers = #tpu.dot_dimension_numbers<[1], [0], [0], [1], [0, 0, 1, 1], [], []>} : vector<128x384xbf16>, vector<384x128xbf16>, vector<128x128xf32> -> vector<128x128xf32>
    %182 = arith.addf %176, %181 : vector<128x128xf32>
    %c10_152 = arith.constant 10 : index
    %c0_153 = arith.constant 0 : index
    %c0_154 = arith.constant 0 : index
    %183 = vector.load %arg10[%c10_152, %c0_153, %c0_154] : memref<18x16x384xbf16, #tpu.memory_space<vmem>>, vector<8x16x384xbf16>
    %184 = vector.shape_cast %183 : vector<8x16x384xbf16> to vector<128x384xbf16>
    %c2_155 = arith.constant 2 : index
    %c0_156 = arith.constant 0 : index
    %c0_157 = arith.constant 0 : index
    %185 = vector.load %arg3[%c2_155, %c0_156, %c0_157] : memref<3x384x128xbf16, #tpu.memory_space<vmem>>, vector<1x384x128xbf16>
    %186 = vector.shape_cast %185 : vector<1x384x128xbf16> to vector<384x128xbf16>
    %cst_158 = arith.constant dense<0.000000e+00> : vector<128x128xf32>
    %187 = tpu.matmul %184, %186, %cst_158 {dimension_numbers = #tpu.dot_dimension_numbers<[1], [0], [0], [1], [0, 0, 1, 1], [], []>} : vector<128x384xbf16>, vector<384x128xbf16>, vector<128x128xf32> -> vector<128x128xf32>
    %188 = arith.addf %182, %187 : vector<128x128xf32>
    %189 = vector.shape_cast %188 : vector<128x128xf32> to vector<8x16x128xf32>
    %c0_159 = arith.constant 0 : index
    %c8_160 = arith.constant 8 : index
    %c0_161 = arith.constant 0 : index
    %c0_162 = arith.constant 0 : index
    %190 = vector.load %arg1[%c0_159, %c8_160, %c0_161, %c0_162] : memref<1x16x16x128xbf16, #tpu.memory_space<vmem>>, vector<1x8x16x128xbf16>
    %191 = vector.shape_cast %190 : vector<1x8x16x128xbf16> to vector<8x16x128xbf16>
    %192 = arith.extf %191 : vector<8x16x128xbf16> to vector<8x16x128xf32>
    %193 = arith.addf %189, %192 : vector<8x16x128xf32>
    %c0_163 = arith.constant 0 : index
    %c8_164 = arith.constant 8 : index
    %c0_165 = arith.constant 0 : index
    %c0_166 = arith.constant 0 : index
    %194 = vector.load %arg8[%c0_163, %c8_164, %c0_165, %c0_166] : memref<1x16x16x128xf32, #tpu.memory_space<vmem>>, vector<1x8x16x128xf32>
    %195 = vector.shape_cast %194 : vector<1x8x16x128xf32> to vector<8x16x128xf32>
    %196 = vector.shape_cast %193 : vector<8x16x128xf32> to vector<1x8x16x128xf32>
    tpu.vector_store %arg8[%c0_163, %c8_164, %c0_165, %c0_166], %196 {strides = array<i32>} : memref<1x16x16x128xf32, #tpu.memory_space<vmem>>, vector<1x8x16x128xf32>,
    return
  }
  func.func @transform_0(%arg0: i32) -> (i32, i32, i32, i32) {
    %c0_i32 = arith.constant 0 : i32
    %c0_i32_0 = arith.constant 0 : i32
    %c0_i32_1 = arith.constant 0 : i32
    %c0_i32_2 = arith.constant 0 : i32
    return %arg0, %c0_i32, %c0_i32_0, %c0_i32_1 : i32, i32, i32, i32
  }
  func.func @transform_1(%arg0: i32) -> (i32, i32, i32) {
    %c0_i32 = arith.constant 0 : i32
    %c0_i32_0 = arith.constant 0 : i32
    %c0_i32_1 = arith.constant 0 : i32
    %c0_i32_2 = arith.constant 0 : i32
    return %c0_i32, %c0_i32_0, %c0_i32_1 : i32, i32, i32
  }
  func.func @transform_2(%arg0: i32) -> (i32, i32, i32) {
    %c0_i32 = arith.constant 0 : i32
    %c0_i32_0 = arith.constant 0 : i32
    %c0_i32_1 = arith.constant 0 : i32
    %c0_i32_2 = arith.constant 0 : i32
    return %c0_i32, %c0_i32_0, %c0_i32_1 : i32, i32, i32
  }
  func.func @transform_3(%arg0: i32) -> (i32, i32) {
    %c0_i32 = arith.constant 0 : i32
    %c0_i32_0 = arith.constant 0 : i32
    %c0_i32_1 = arith.constant 0 : i32
    return %c0_i32, %c0_i32_0 : i32, i32
  }
  func.func @transform_4(%arg0: i32) -> (i32, i32) {
    %c0_i32 = arith.constant 0 : i32
    %c0_i32_0 = arith.constant 0 : i32
    %c0_i32_1 = arith.constant 0 : i32
    return %c0_i32, %c0_i32_0 : i32, i32
  }
  func.func @transform_5(%arg0: i32) -> (i32, i32) {
    %c0_i32 = arith.constant 0 : i32
    %c0_i32_0 = arith.constant 0 : i32
    %c0_i32_1 = arith.constant 0 : i32
    return %c0_i32, %c0_i32_0 : i32, i32
  }
  func.func @transform_6(%arg0: i32) -> (i32, i32) {
    %c0_i32 = arith.constant 0 : i32
    %c0_i32_0 = arith.constant 0 : i32
    %c0_i32_1 = arith.constant 0 : i32
    return %c0_i32, %c0_i32_0 : i32, i32
  }
  func.func @transform_7(%arg0: i32) -> (i32, i32, i32, i32) {
    %c0_i32 = arith.constant 0 : i32
    %c0_i32_0 = arith.constant 0 : i32
    %c0_i32_1 = arith.constant 0 : i32
    %c0_i32_2 = arith.constant 0 : i32
    return %arg0, %c0_i32, %c0_i32_0, %c0_i32_1 : i32, i32, i32, i32
  }
}

</mosaic_0001>

<llo_original>
// kernel: tpu_custom_call.1
$region0: #{tpu_custom_call.1}
  #allocation0 [shape = 'u32[]', space=smem, size = 0x4, offset = 0x4, fixed_abs, tag = 'smem constant byte address 0x4 - core index']
  #allocation1 [shape = 'u32[144,128]{1,0:T(1,128)}', space=vmem, size = 0x12000, scoped, tag = 'internal scratch']
  #allocation2 [shape = 'bf16[18,16,384]{2,1,0:T(16,128)(2,1)}', space=vmem, size = 0x36000, scoped, tag = 'scratch operand']
  #allocation3 [shape = 'bf16[18,16,384]{2,1,0:T(16,128)(2,1)}', space=vmem, size = 0x36000, scoped, tag = 'scratch operand']
  %s0 = inlined_call_operand.hbm [shape: bf16[2,16,16,128], index: 0, kind: input, shape index: {}]
  %s1 = inlined_call_operand.hbm [shape: bf16[3,384,128], index: 1, kind: input, shape index: {}]
  %s2 = inlined_call_operand.hbm [shape: bf16[3,384,128], index: 2, kind: input, shape index: {}]
  %s3 = inlined_call_operand.vmem [shape: f32[1,128], index: 3, kind: input, shape index: {}]
  %s4 = inlined_call_operand.vmem [shape: f32[1,128], index: 4, kind: input, shape index: {}]
  %s5 = inlined_call_operand.vmem [shape: f32[1,128], index: 5, kind: input, shape index: {}]
  %s6 = inlined_call_operand.vmem [shape: f32[1,128], index: 6, kind: input, shape index: {}]
  %s7 = inlined_call_operand.hbm [shape: f32[2,16,16,128], index: 7, kind: output, shape index: {}]
  %s8 = sld [smem:[#allocation0]]
  $region73: #{tpu_custom_call.1} parent=0
    _
  %s10 = ssub.s32 1, %s8
  %s11 = scalar_select 0, %s10, %s8
  $region1: #{tpu_custom_call.1} parent=0
    #allocation4 [shape = 'u8[131072]{0}', space=vmem, size = 0x20000, scoped, tag = 'input window, operand 0']
    #allocation5 [shape = 's32[2]{0}', space=sflag, size = 0x8, scoped, tag = 'scoped memory for tpu_custom_call.1']
    #allocation6 [shape = 's32[2]{0}', space=sflag, size = 0x8, scoped, tag = 'scoped memory for tpu_custom_call.1']
    #allocation7 [shape = 'u8[294912]{0}', space=vmem, size = 0x48000, scoped, tag = 'input window, operand 1, single buffered']
    #allocation8 [shape = 's32[1]{0}', space=sflag, size = 0x4, scoped, tag = 'scoped memory for tpu_custom_call.1']
    #allocation9 [shape = 'u8[294912]{0}', space=vmem, size = 0x48000, scoped, tag = 'input window, operand 2, single buffered']
    #allocation10 [shape = 'u8[262144]{0}', space=vmem, size = 0x40000, scoped, tag = 'output window, operand 0']
    %12 = vsyncpa [#allocation5], 0
    %s13 = scalar_lea.sflag [#allocation5], 1
    %14 = vsyncpa %s13, 0
    %15 = vsyncpa [#allocation8], 0
    %16 = vsyncpa [#allocation6], 0
    %s17 = scalar_lea.sflag [#allocation6], 1
    %18 = vsyncpa %s17, 0
    loop: start=0, step=1, limit=4
    $region2: #{tpu_custom_call.1} parent=1 // loop_pre_header
      _
    $region3: #{tpu_custom_call.1} parent=1 // loop_header
      %s20 = sphi 0, %s24
      %p21 = scmp.ge.s32.totalorder %s20, 4
      %s30 = sphi 0, %s32
      %s33 = sphi 0, %s30
      %s34 = sphi 0, %s33
      %s50 = sphi 0, %s34
      %s54 = sphi 0, %s54
      %s56 = sphi 0, %s54
      %s57 = sphi 0, %s56
      %s71 = sphi 0, %s57
      %s75 = sphi 0, %s75
      %s77 = sphi 0, %s75
      %s78 = sphi 0, %s77
      %s92 = sphi 0, %s78
      %s96 = sphi 0, %s96
      %s98 = sphi 0, %s96
      %s99 = sphi 0, %s98
      %s113 = sphi 0, %s99
      %s117 = sphi 0, %s117
      %s119 = sphi 0, %s117
      %s120 = sphi 0, %s119
      %s134 = sphi 0, %s120
      %s138 = sphi 0, %s138
      %s140 = sphi 0, %s138
      %s141 = sphi 0, %s140
      %s155 = sphi 0, %s141
      %s159 = sphi 0, %s159
      %s161 = sphi 0, %s159
      %s162 = sphi 0, %s161
      %s176 = sphi 0, %s162
      %s182 = sphi 0, %s184
      %s185 = sphi 0, %s182
      %s186 = sphi 0, %s185
      %s202 = sphi 0, %s186
    $region4: #{tpu_custom_call.1} parent=1 // loop_header_branch
      %23 = sbr.rel (%p21) target = $region8
    $region5: #{tpu_custom_call.1} parent=1 // loop_body
      %s25 = ssub.s32 %s20, 1
      %s26 = ssub.s32 %s20, 2
      %s27 = sadd.s32 %s20, 1
      %s28 = ssub.s32 %s20, %s27
      %p29 = scmp.eq.s32.totalorder %s28, 0
      %s31 = sadd.s32 %s30, 1
      %s32 = scalar_select %p29, %s30, %s31
      %p35 = pneg %p29
      %p36 = scmp.eq.s32.totalorder %s20, 1
      %p37 = por %p35, %p36
      %p38 = scmp.ne.s32.totalorder %s30, %s33
      %p39 = scmp.eq.s32.totalorder %s20, 0
      %p40 = por %p38, %p39
      %p41 = scmp.ne.s32.totalorder %s30, %s33
      %p42 = scmp.eq.s32.totalorder %s25, 1
      %p43 = por %p41, %p42
      %p44 = scmp.ne.s32.totalorder %s33, %s34
      %p45 = scmp.eq.s32.totalorder %s25, 0
      %p46 = por %p44, %p45
      %p47 = scmp.ne.s32.totalorder %s33, %s34
      %p48 = scmp.eq.s32.totalorder %s26, 1
      %p49 = por %p47, %p48
      %p51 = scmp.ne.s32.totalorder %s34, %s50
      %p52 = scmp.eq.s32.totalorder %s26, 0
      %p53 = por %p51, %p52
      %s55 = sadd.s32 %s54, 1
      %p58 = scmp.eq.s32.totalorder %s20, 1
      %p59 = scmp.ne.s32.totalorder %s54, %s56
      %p60 = scmp.eq.s32.totalorder %s20, 0
      %p61 = por %p59, %p60
      %p62 = scmp.ne.s32.totalorder %s54, %s56
      %p63 = scmp.eq.s32.totalorder %s25, 1
      %p64 = por %p62, %p63
      %p65 = scmp.ne.s32.totalorder %s56, %s57
      %p66 = scmp.eq.s32.totalorder %s25, 0
      %p67 = por %p65, %p66
      %p68 = scmp.ne.s32.totalorder %s56, %s57
      %p69 = scmp.eq.s32.totalorder %s26, 1
      %p70 = por %p68, %p69
      %p72 = scmp.ne.s32.totalorder %s57, %s71
      %p73 = scmp.eq.s32.totalorder %s26, 0
      %p74 = por %p72, %p73
      %s76 = sadd.s32 %s75, 1
      %p79 = scmp.eq.s32.totalorder %s20, 1
      %p80 = scmp.ne.s32.totalorder %s75, %s77
      %p81 = scmp.eq.s32.totalorder %s20, 0
      %p82 = por %p80, %p81
      %p83 = scmp.ne.s32.totalorder %s75, %s77
      %p84 = scmp.eq.s32.totalorder %s25, 1
      %p85 = por %p83, %p84
      %p86 = scmp.ne.s32.totalorder %s77, %s78
      %p87 = scmp.eq.s32.totalorder %s25, 0
      %p88 = por %p86, %p87
      %p89 = scmp.ne.s32.totalorder %s77, %s78
      %p90 = scmp.eq.s32.totalorder %s26, 1
      %p91 = por %p89, %p90
      %p93 = scmp.ne.s32.totalorder %s78, %s92
      %p94 = scmp.eq.s32.totalorder %s26, 0
      %p95 = por %p93, %p94
      %s97 = sadd.s32 %s96, 1
      %p100 = scmp.eq.s32.totalorder %s20, 1
      %p101 = scmp.ne.s32.totalorder %s96, %s98
      %p102 = scmp.eq.s32.totalorder %s20, 0
      %p103 = por %p101, %p102
      %p104 = scmp.ne.s32.totalorder %s96, %s98
      %p105 = scmp.eq.s32.totalorder %s25, 1
      %p106 = por %p104, %p105
      %p107 = scmp.ne.s32.totalorder %s98, %s99
      %p108 = scmp.eq.s32.totalorder %s25, 0
      %p109 = por %p107, %p108
      %p110 = scmp.ne.s32.totalorder %s98, %s99
      %p111 = scmp.eq.s32.totalorder %s26, 1
      %p112 = por %p110, %p111
      %p114 = scmp.ne.s32.totalorder %s99, %s113
      %p115 = scmp.eq.s32.totalorder %s26, 0
      %p116 = por %p114, %p115
      %s118 = sadd.s32 %s117, 1
      %p121 = scmp.eq.s32.totalorder %s20, 1
      %p122 = scmp.ne.s32.totalorder %s117, %s119
      %p123 = scmp.eq.s32.totalorder %s20, 0
      %p124 = por %p122, %p123
      %p125 = scmp.ne.s32.totalorder %s117, %s119
      %p126 = scmp.eq.s32.totalorder %s25, 1
      %p127 = por %p125, %p126
      %p128 = scmp.ne.s32.totalorder %s119, %s120
      %p129 = scmp.eq.s32.totalorder %s25, 0
      %p130 = por %p128, %p129
      %p131 = scmp.ne.s32.totalorder %s119, %s120
      %p132 = scmp.eq.s32.totalorder %s26, 1
      %p133 = por %p131, %p132
      %p135 = scmp.ne.s32.totalorder %s120, %s134
      %p136 = scmp.eq.s32.totalorder %s26, 0
      %p137 = por %p135, %p136
      %s139 = sadd.s32 %s138, 1
      %p142 = scmp.eq.s32.totalorder %s20, 1
      %p143 = scmp.ne.s32.totalorder %s138, %s140
      %p144 = scmp.eq.s32.totalorder %s20, 0
      %p145 = por %p143, %p144
      %p146 = scmp.ne.s32.totalorder %s138, %s140
      %p147 = scmp.eq.s32.totalorder %s25, 1
      %p148 = por %p146, %p147
      %p149 = scmp.ne.s32.totalorder %s140, %s141
      %p150 = scmp.eq.s32.totalorder %s25, 0
      %p151 = por %p149, %p150
      %p152 = scmp.ne.s32.totalorder %s140, %s141
      %p153 = scmp.eq.s32.totalorder %s26, 1
      %p154 = por %p152, %p153
      %p156 = scmp.ne.s32.totalorder %s141, %s155
      %p157 = scmp.eq.s32.totalorder %s26, 0
      %p158 = por %p156, %p157
      %s160 = sadd.s32 %s159, 1
      %p163 = scmp.eq.s32.totalorder %s20, 1
      %p164 = scmp.ne.s32.totalorder %s159, %s161
      %p165 = scmp.eq.s32.totalorder %s20, 0
      %p166 = por %p164, %p165
      %p167 = scmp.ne.s32.totalorder %s159, %s161
      %p168 = scmp.eq.s32.totalorder %s25, 1
      %p169 = por %p167, %p168
      %p170 = scmp.ne.s32.totalorder %s161, %s162
      %p171 = scmp.eq.s32.totalorder %s25, 0
      %p172 = por %p170, %p171
      %p173 = scmp.ne.s32.totalorder %s161, %s162
      %p174 = scmp.eq.s32.totalorder %s26, 1
      %p175 = por %p173, %p174
      %p177 = scmp.ne.s32.totalorder %s162, %s176
      %p178 = scmp.eq.s32.totalorder %s26, 0
      %p179 = por %p177, %p178
      %s180 = ssub.s32 %s20, %s27
      %p181 = scmp.eq.s32.totalorder %s180, 0
      %s183 = sadd.s32 %s182, 1
      %s184 = scalar_select %p181, %s182, %s183
      %p187 = pneg %p181
      %p188 = scmp.eq.s32.totalorder %s20, 1
      %p189 = por %p187, %p188
      %p190 = scmp.ne.s32.totalorder %s182, %s185
      %p191 = scmp.eq.s32.totalorder %s20, 0
      %p192 = por %p190, %p191
      %p193 = scmp.ne.s32.totalorder %s182, %s185
      %p194 = scmp.eq.s32.totalorder %s25, 1
      %p195 = por %p193, %p194
      %p196 = scmp.ne.s32.totalorder %s185, %s186
      %p197 = scmp.eq.s32.totalorder %s25, 0
      %p198 = por %p196, %p197
      %p199 = scmp.ne.s32.totalorder %s185, %s186
      %p200 = scmp.eq.s32.totalorder %s26, 1
      %p201 = por %p199, %p200
      %p203 = scmp.ne.s32.totalorder %s186, %s202
      %p204 = scmp.eq.s32.totalorder %s26, 0
      %p205 = por %p203, %p204
      %p206 = scmp.le.s32.totalorder 1, %s20
      %p207 = scmp.lt.s32.totalorder %s20, 3
      %p208 = pnand %p206, %p207
      %p209 = pneg %p208
      // Predicated region
      $region9: #{tpu_custom_call.1} parent=5 // pred_check
        _
      $region10: #{tpu_custom_call.1} parent=5 // pred_check_branch
        %211 = sbr.rel (%p208) target = $region12
      $region11: #{tpu_custom_call.1} parent=5 // pred_region
        %s212 = ssub.s32 %s20, 1
        // Predicated region
        $region13: #{tpu_custom_call.1} parent=11 // pred_check
          %p213 = pneg %p67
        $region14: #{tpu_custom_call.1} parent=11 // pred_check_branch
          %215 = sbr.rel (%p213) target = $region16
        $region15: #{tpu_custom_call.1} parent=11 // pred_region
          %s217 = ssub.s32 9216, 9216
          %218 = vsyncadd [#allocation8], %s217
          %s219 = sshll.u32 [#allocation7], 4
          %s220 = int_to_ptr.vmem [resolvable:$true] %s219
          %225 = dma.hbm_to_vmem [thread:$0]  %s1, 9216, %s220, [#allocation8], 64, 64, 4
        $region16: #{tpu_custom_call.1} parent=11 // pred_fallthru
          _
        // Predicated region
        $region17: #{tpu_custom_call.1} parent=11 // pred_check
          %p226 = pneg %p88
        $region18: #{tpu_custom_call.1} parent=11 // pred_check_branch
          %228 = sbr.rel (%p226) target = $region20
        $region19: #{tpu_custom_call.1} parent=11 // pred_region
          %s230 = ssub.s32 9216, 9216
          %231 = vsyncadd [#allocation8], %s230
          %s232 = sshll.u32 [#allocation9], 4
          %s233 = int_to_ptr.vmem [resolvable:$true] %s232
          %238 = dma.hbm_to_vmem [thread:$0]  %s2, 9216, %s233, [#allocation8], 64, 64, 4
        $region20: #{tpu_custom_call.1} parent=11 // pred_fallthru
          _
        // Predicated region
        $region21: #{tpu_custom_call.1} parent=11 // pred_check
          %p239 = pneg %p109
        $region22: #{tpu_custom_call.1} parent=11 // pred_check_branch
          %241 = sbr.rel (%p239) target = $region24
        $region23: #{tpu_custom_call.1} parent=11 // pred_region
          _
        $region24: #{tpu_custom_call.1} parent=11 // pred_fallthru
          _
        // Predicated region
        $region25: #{tpu_custom_call.1} parent=11 // pred_check
          %p242 = pneg %p130
        $region26: #{tpu_custom_call.1} parent=11 // pred_check_branch
          %244 = sbr.rel (%p242) target = $region28
        $region27: #{tpu_custom_call.1} parent=11 // pred_region
          _
        $region28: #{tpu_custom_call.1} parent=11 // pred_fallthru
          _
        // Predicated region
        $region29: #{tpu_custom_call.1} parent=11 // pred_check
          %p245 = pneg %p151
        $region30: #{tpu_custom_call.1} parent=11 // pred_check_branch
          %247 = sbr.rel (%p245) target = $region32
        $region31: #{tpu_custom_call.1} parent=11 // pred_region
          _
        $region32: #{tpu_custom_call.1} parent=11 // pred_fallthru
          _
        // Predicated region
        $region33: #{tpu_custom_call.1} parent=11 // pred_check
          %p248 = pneg %p172
        $region34: #{tpu_custom_call.1} parent=11 // pred_check_branch
          %250 = sbr.rel (%p248) target = $region36
        $region35: #{tpu_custom_call.1} parent=11 // pred_region
          _
        $region36: #{tpu_custom_call.1} parent=11 // pred_fallthru
          _
      $region12: #{tpu_custom_call.1} parent=5 // pred_fallthru
        _
      %p251 = scmp.lt.s32.totalorder %s20, 2
      // Predicated region
      $region37: #{tpu_custom_call.1} parent=5 // pred_check
        %p252 = pneg %p251
      $region38: #{tpu_custom_call.1} parent=5 // pred_check_branch
        %254 = sbr.rel (%p252) target = $region40
      $region39: #{tpu_custom_call.1} parent=5 // pred_region
        // Predicated region
        $region41: #{tpu_custom_call.1} parent=39 // pred_check
          %p255 = pneg %p40
        $region42: #{tpu_custom_call.1} parent=39 // pred_check_branch
          %257 = sbr.rel (%p255) target = $region44
        $region43: #{tpu_custom_call.1} parent=39 // pred_region
          %s258 = sand.u32 %s30, 1
          %s259 = scalar_lea.sflag [#allocation5], %s258
          %s260 = sand.u32 %s30, 1
          %s261 = smul.addr %s260, 128
          %s262 = scalar_lea.vmem [#allocation4], %s261
          %s264 = ssub.s32 2048, 2048
          %265 = vsyncadd %s259, %s264
          %s266 = smul.addr %s20, 32
          %s267 = smul.addr %s266, 64
          %s268 = scalar_lea.hbm %s0, %s267
          %s269 = sshll.u32 %s262, 4
          %s270 = int_to_ptr.vmem [resolvable:$true] %s269
          %275 = dma.hbm_to_vmem [thread:$0]  %s268, 2048, %s270, %s259, 64, 64, 4
        $region44: #{tpu_custom_call.1} parent=39 // pred_fallthru
          _
      $region40: #{tpu_custom_call.1} parent=5 // pred_fallthru
        _
      %p276 = scmp.le.s32.totalorder 1, %s20
      %p277 = scmp.lt.s32.totalorder %s20, 3
      %p278 = pnand %p276, %p277
      %p279 = pneg %p278
      // Predicated region
      $region45: #{tpu_custom_call.1} parent=5 // pred_check
        _
      $region46: #{tpu_custom_call.1} parent=5 // pred_check_branch
        %281 = sbr.rel (%p278) target = $region48
      $region47: #{tpu_custom_call.1} parent=5 // pred_region
        %s282 = ssub.s32 %s20, 1
        %s283 = sand.u32 %s33, 1
        %s284 = scalar_lea.sflag [#allocation5], %s283
        %s285 = sand.u32 %s33, 1
        %s286 = smul.addr %s285, 128
        %s287 = scalar_lea.vmem [#allocation4], %s286
        // Predicated region
        $region49: #{tpu_custom_call.1} parent=47 // pred_check
          %p288 = pneg %p46
        $region50: #{tpu_custom_call.1} parent=47 // pred_check_branch
          %290 = sbr.rel (%p288) target = $region52
        $region51: #{tpu_custom_call.1} parent=47 // pred_region
          %291 = dma.done %s284, 2048
        $region52: #{tpu_custom_call.1} parent=47 // pred_fallthru
          _
        // Predicated region
        $region53: #{tpu_custom_call.1} parent=47 // pred_check
          %p292 = pneg %p67
        $region54: #{tpu_custom_call.1} parent=47 // pred_check_branch
          %294 = sbr.rel (%p292) target = $region56
        $region55: #{tpu_custom_call.1} parent=47 // pred_region
          %295 = dma.done [#allocation8], 9216
        $region56: #{tpu_custom_call.1} parent=47 // pred_fallthru
          _
        // Predicated region
        $region57: #{tpu_custom_call.1} parent=47 // pred_check
          %p296 = pneg %p88
        $region58: #{tpu_custom_call.1} parent=47 // pred_check_branch
          %298 = sbr.rel (%p296) target = $region60
        $region59: #{tpu_custom_call.1} parent=47 // pred_region
          %299 = dma.done [#allocation8], 9216
        $region60: #{tpu_custom_call.1} parent=47 // pred_fallthru
          _
        %s300 = sand.u32 %s33, 1
        %s301 = scalar_lea.sflag [#allocation5], %s300
        %s302 = sand.u32 %s33, 1
        %s303 = smul.addr %s302, 128
        %s304 = scalar_lea.vmem [#allocation4], %s303
        %p305 = pneg %p46
        %p306 = pneg %p43
        %p307 = pneg %p67
        %p308 = pneg %p64
        %p309 = pneg %p88
        %p310 = pneg %p85
        %p311 = pneg %p109
        %p312 = pneg %p106
        %p313 = pneg %p130
        %p314 = pneg %p127
        %p315 = pneg %p151
        %p316 = pneg %p148
        %p317 = pneg %p172
        %p318 = pneg %p169
        %p319 = pneg %p198
        %p320 = pneg %p195
        %s321 = sand.u32 %s185, 1
        %s322 = scalar_lea.sflag [#allocation6], %s321
        %s323 = sand.u32 %s185, 1
        %s324 = smul.addr %s323, 256
        %s325 = scalar_lea.vmem [#allocation10], %s324
        %v327 = vld [vmem:[%s3] sm:$0x1]
        %v328 = vld [vmem:[%s4] sm:$0x1]
        %v329 = vld [vmem:[%s5] sm:$0x1]
        %v330 = vld [vmem:[%s6] sm:$0x1]
        %331 = vst [vmem:[#allocation2] sm:$0xff] 0
        %332 = vst [vmem:[#allocation2 + $0x8] sm:$0xff] 0
        %333 = vst [vmem:[#allocation2 + $0x10] sm:$0xff] 0
        %s334 = scalar_lea.vmem [#allocation2], 408
        %335 = vst [vmem:[%s334] sm:$0xff] 0
        %336 = vst [vmem:[%s334 + $0x8] sm:$0xff] 0
        %337 = vst [vmem:[%s334 + $0x10] sm:$0xff] 0
        %338 = vst [vmem:[#allocation3] sm:$0xff] 0
        %339 = vst [vmem:[#allocation3 + $0x8] sm:$0xff] 0
        %340 = vst [vmem:[#allocation3 + $0x10] sm:$0xff] 0
        %s341 = scalar_lea.vmem [#allocation3], 408
        %342 = vst [vmem:[%s341] sm:$0xff] 0
        %343 = vst [vmem:[%s341 + $0x8] sm:$0xff] 0
        %344 = vst [vmem:[%s341 + $0x10] sm:$0xff] 0
        %v345 = vld [vmem:[%s287] sm:$0xf]
        %v346 = vld [vmem:[%s287 + $0x4] sm:$0xf]
        %v347 = vld [vmem:[%s287 + $0x8] sm:$0xf]
        %v348 = vld [vmem:[%s287 + $0xc] sm:$0xf]
        %v349 = vld [vmem:[%s287 + $0x10] sm:$0xf]
        %v350 = vld [vmem:[%s287 + $0x14] sm:$0xf]
        %v351 = vld [vmem:[%s287 + $0x18] sm:$0xf]
        %v352 = vld [vmem:[%s287 + $0x1c] sm:$0xf]
        %v353 = vld [vmem:[%s287 + $0x20] sm:$0xf]
        %v354 = vld [vmem:[%s287 + $0x24] sm:$0xf]
        %v355 = vld [vmem:[%s287 + $0x28] sm:$0xf]
        %v356 = vld [vmem:[%s287 + $0x2c] sm:$0xf]
        %v357 = vld [vmem:[%s287 + $0x30] sm:$0xf]
        %v358 = vld [vmem:[%s287 + $0x34] sm:$0xf]
        %v359 = vld [vmem:[%s287 + $0x38] sm:$0xf]
        %v360 = vld [vmem:[%s287 + $0x3c] sm:$0xf]
        %v361 = vunpack.c.l.bf16 %v345
        %v362 = vunpack.c.l.bf16 %v346
        %v363 = vunpack.c.l.bf16 %v347
        %v364 = vunpack.c.l.bf16 %v348
        %v365 = vunpack.c.l.bf16 %v349
        %v366 = vunpack.c.l.bf16 %v350
        %v367 = vunpack.c.l.bf16 %v351
        %v368 = vunpack.c.l.bf16 %v352
        %v369 = vunpack.c.l.bf16 %v353
        %v370 = vunpack.c.l.bf16 %v354
        %v371 = vunpack.c.l.bf16 %v355
        %v372 = vunpack.c.l.bf16 %v356
        %v373 = vunpack.c.l.bf16 %v357
        %v374 = vunpack.c.l.bf16 %v358
        %v375 = vunpack.c.l.bf16 %v359
        %v376 = vunpack.c.l.bf16 %v360
        %v378 = vlaneseq
        %v379 = vshrl.u32 %v378, 7
        %v380 = vsub.s32 0, %v379
        %v381 = vrot.slane %v327, %v380
        %v383 = vmul.f32 %v361, %v381
        %v384 = vmul.f32 %v362, %v381
        %v385 = vmul.f32 %v363, %v381
        %v386 = vmul.f32 %v364, %v381
        %v387 = vmul.f32 %v365, %v381
        %v388 = vmul.f32 %v366, %v381
        %v389 = vmul.f32 %v367, %v381
        %v390 = vmul.f32 %v368, %v381
        %v391 = vmul.f32 %v369, %v381
        %v392 = vmul.f32 %v370, %v381
        %v393 = vmul.f32 %v371, %v381
        %v394 = vmul.f32 %v372, %v381
        %v395 = vmul.f32 %v373, %v381
        %v396 = vmul.f32 %v374, %v381
        %v397 = vmul.f32 %v375, %v381
        %v398 = vmul.f32 %v376, %v381
        %v400 = vlaneseq
        %v401 = vshrl.u32 %v400, 7
        %v402 = vsub.s32 0, %v401
        %v403 = vrot.slane %v328, %v402
        %v405 = vadd.f32 %v383, %v403
        %v406 = vadd.f32 %v384, %v403
        %v407 = vadd.f32 %v385, %v403
        %v408 = vadd.f32 %v386, %v403
        %v409 = vadd.f32 %v387, %v403
        %v410 = vadd.f32 %v388, %v403
        %v411 = vadd.f32 %v389, %v403
        %v412 = vadd.f32 %v390, %v403
        %v413 = vadd.f32 %v391, %v403
        %v414 = vadd.f32 %v392, %v403
        %v415 = vadd.f32 %v393, %v403
        %v416 = vadd.f32 %v394, %v403
        %v417 = vadd.f32 %v395, %v403
        %v418 = vadd.f32 %v396, %v403
        %v419 = vadd.f32 %v397, %v403
        %v420 = vadd.f32 %v398, %v403
        %v421 = vmax.f32 %v405, 0.0
        %v422 = vmax.f32 %v406, 0.0
        %v423 = vmax.f32 %v407, 0.0
        %v424 = vmax.f32 %v408, 0.0
        %v425 = vmax.f32 %v409, 0.0
        %v426 = vmax.f32 %v410, 0.0
        %v427 = vmax.f32 %v411, 0.0
        %v428 = vmax.f32 %v412, 0.0
        %v429 = vmax.f32 %v413, 0.0
        %v430 = vmax.f32 %v414, 0.0
        %v431 = vmax.f32 %v415, 0.0
        %v432 = vmax.f32 %v416, 0.0
        %v433 = vmax.f32 %v417, 0.0
        %v434 = vmax.f32 %v418, 0.0
        %v435 = vmax.f32 %v419, 0.0
        %v436 = vmax.f32 %v420, 0.0
        %vm453 = vcmask 1040384
        %v454 = vrot.slane %v421, 7
        %v455 = vrot.slane %v422, 7
        %v456 = vsel %vm453, %v454, %v455
        %v457 = vrot.slane %v423, 7
        %v458 = vrot.slane %v424, 7
        %v459 = vsel %vm453, %v457, %v458
        %v460 = vrot.slane %v425, 7
        %v461 = vrot.slane %v426, 7
        %v462 = vsel %vm453, %v460, %v461
        %v463 = vrot.slane %v427, 7
        %v464 = vrot.slane %v428, 7
        %v465 = vsel %vm453, %v463, %v464
        %v466 = vrot.slane %v429, 7
        %v467 = vrot.slane %v430, 7
        %v468 = vsel %vm453, %v466, %v467
        %v469 = vrot.slane %v431, 7
        %v470 = vrot.slane %v432, 7
        %v471 = vsel %vm453, %v469, %v470
        %v472 = vrot.slane %v433, 7
        %v473 = vrot.slane %v434, 7
        %v474 = vsel %vm453, %v472, %v473
        %v475 = vrot.slane %v435, 7
        %v476 = vrot.slane %v436, 7
        %v477 = vsel %vm453, %v475, %v476
        %v494 = vsel %vm453, 0.0, %v454
        %v495 = vsel %vm453, 0.0, %v457
        %v496 = vsel %vm453, 0.0, %v460
        %v497 = vsel %vm453, 0.0, %v463
        %v498 = vsel %vm453, 0.0, %v466
        %v499 = vsel %vm453, 0.0, %v469
        %v500 = vsel %vm453, 0.0, %v472
        %v501 = vsel %vm453, 0.0, %v475
        %vm502 = vcmask 1046528
        %v503 = vrot.slane %v421, 1
        %v504 = vrot.slane %v422, 1
        %v505 = vsel %vm502, %v503, %v504
        %v506 = vrot.slane %v423, 1
        %v507 = vrot.slane %v424, 1
        %v508 = vsel %vm502, %v506, %v507
        %v509 = vrot.slane %v425, 1
        %v510 = vrot.slane %v426, 1
        %v511 = vsel %vm502, %v509, %v510
        %v512 = vrot.slane %v427, 1
        %v513 = vrot.slane %v428, 1
        %v514 = vsel %vm502, %v512, %v513
        %v515 = vrot.slane %v429, 1
        %v516 = vrot.slane %v430, 1
        %v517 = vsel %vm502, %v515, %v516
        %v518 = vrot.slane %v431, 1
        %v519 = vrot.slane %v432, 1
        %v520 = vsel %vm502, %v518, %v519
        %v521 = vrot.slane %v433, 1
        %v522 = vrot.slane %v434, 1
        %v523 = vsel %vm502, %v521, %v522
        %v524 = vrot.slane %v435, 1
        %v525 = vrot.slane %v436, 1
        %v526 = vsel %vm502, %v524, %v525
        %v543 = vsel %vm502, %v504, 0.0
        %v544 = vsel %vm502, %v507, 0.0
        %v545 = vsel %vm502, %v510, 0.0
        %v546 = vsel %vm502, %v513, 0.0
        %v547 = vsel %vm502, %v516, 0.0
        %v548 = vsel %vm502, %v519, 0.0
        %v549 = vsel %vm502, %v522, 0.0
        %v550 = vsel %vm502, %v525, 0.0
        %v551 = vpack.c.bf16 %v456, %v494
        %v552 = vpack.c.bf16 %v459, %v495
        %v553 = vpack.c.bf16 %v462, %v496
        %v554 = vpack.c.bf16 %v465, %v497
        %v555 = vpack.c.bf16 %v468, %v498
        %v556 = vpack.c.bf16 %v471, %v499
        %v557 = vpack.c.bf16 %v474, %v500
        %v558 = vpack.c.bf16 %v477, %v501
        %s559 = scalar_lea.vmem [#allocation2], 24
        %560 = vst [vmem:[%s559] sm:$0xff] %v551
        %561 = vst [vmem:[%s559 + $0x18] sm:$0xff] %v552
        %562 = vst [vmem:[%s559 + $0x30] sm:$0xff] %v553
        %563 = vst [vmem:[%s559 + $0x48] sm:$0xff] %v554
        %564 = vst [vmem:[%s559 + $0x60] sm:$0xff] %v555
        %565 = vst [vmem:[%s559 + $0x78] sm:$0xff] %v556
        %566 = vst [vmem:[%s559 + $0x90] sm:$0xff] %v557
        %567 = vst [vmem:[%s559 + $0xa8] sm:$0xff] %v558
        %v568 = vpack.c.bf16 %v422, %v421
        %v569 = vpack.c.bf16 %v424, %v423
        %v570 = vpack.c.bf16 %v426, %v425
        %v571 = vpack.c.bf16 %v428, %v427
        %v572 = vpack.c.bf16 %v430, %v429
        %v573 = vpack.c.bf16 %v432, %v431
        %v574 = vpack.c.bf16 %v434, %v433
        %v575 = vpack.c.bf16 %v436, %v435
        %576 = vst [vmem:[%s559 + $0x8] sm:$0xff] %v568
        %577 = vst [vmem:[%s559 + $0x20] sm:$0xff] %v569
        %578 = vst [vmem:[%s559 + $0x38] sm:$0xff] %v570
        %579 = vst [vmem:[%s559 + $0x50] sm:$0xff] %v571
        %580 = vst [vmem:[%s559 + $0x68] sm:$0xff] %v572
        %581 = vst [vmem:[%s559 + $0x80] sm:$0xff] %v573
        %582 = vst [vmem:[%s559 + $0x98] sm:$0xff] %v574
        %583 = vst [vmem:[%s559 + $0xb0] sm:$0xff] %v575
        %v584 = vpack.c.bf16 %v543, %v505
        %v585 = vpack.c.bf16 %v544, %v508
        %v586 = vpack.c.bf16 %v545, %v511
        %v587 = vpack.c.bf16 %v546, %v514
        %v588 = vpack.c.bf16 %v547, %v517
        %v589 = vpack.c.bf16 %v548, %v520
        %v590 = vpack.c.bf16 %v549, %v523
        %v591 = vpack.c.bf16 %v550, %v526
        %592 = vst [vmem:[%s559 + $0x10] sm:$0xff] %v584
        %593 = vst [vmem:[%s559 + $0x28] sm:$0xff] %v585
        %594 = vst [vmem:[%s559 + $0x40] sm:$0xff] %v586
        %595 = vst [vmem:[%s559 + $0x58] sm:$0xff] %v587
        %596 = vst [vmem:[%s559 + $0x70] sm:$0xff] %v588
        %597 = vst [vmem:[%s559 + $0x88] sm:$0xff] %v589
        %598 = vst [vmem:[%s559 + $0xa0] sm:$0xff] %v590
        %599 = vst [vmem:[%s559 + $0xb8] sm:$0xff] %v591
        %s600 = scalar_lea.vmem %s287, 64 [#allocation4]
        %v601 = vld [vmem:[%s600] sm:$0xf]
        %v602 = vld [vmem:[%s600 + $0x4] sm:$0xf]
        %v603 = vld [vmem:[%s600 + $0x8] sm:$0xf]
        %v604 = vld [vmem:[%s600 + $0xc] sm:$0xf]
        %v605 = vld [vmem:[%s600 + $0x10] sm:$0xf]
        %v606 = vld [vmem:[%s600 + $0x14] sm:$0xf]
        %v607 = vld [vmem:[%s600 + $0x18] sm:$0xf]
        %v608 = vld [vmem:[%s600 + $0x1c] sm:$0xf]
        %v609 = vld [vmem:[%s600 + $0x20] sm:$0xf]
        %v610 = vld [vmem:[%s600 + $0x24] sm:$0xf]
        %v611 = vld [vmem:[%s600 + $0x28] sm:$0xf]
        %v612 = vld [vmem:[%s600 + $0x2c] sm:$0xf]
        %v613 = vld [vmem:[%s600 + $0x30] sm:$0xf]
        %v614 = vld [vmem:[%s600 + $0x34] sm:$0xf]
        %v615 = vld [vmem:[%s600 + $0x38] sm:$0xf]
        %v616 = vld [vmem:[%s600 + $0x3c] sm:$0xf]
        %v617 = vunpack.c.l.bf16 %v601
        %v618 = vunpack.c.l.bf16 %v602
        %v619 = vunpack.c.l.bf16 %v603
        %v620 = vunpack.c.l.bf16 %v604
        %v621 = vunpack.c.l.bf16 %v605
        %v622 = vunpack.c.l.bf16 %v606
        %v623 = vunpack.c.l.bf16 %v607
        %v624 = vunpack.c.l.bf16 %v608
        %v625 = vunpack.c.l.bf16 %v609
        %v626 = vunpack.c.l.bf16 %v610
        %v627 = vunpack.c.l.bf16 %v611
        %v628 = vunpack.c.l.bf16 %v612
        %v629 = vunpack.c.l.bf16 %v613
        %v630 = vunpack.c.l.bf16 %v614
        %v631 = vunpack.c.l.bf16 %v615
        %v632 = vunpack.c.l.bf16 %v616
        %v633 = vmul.f32 %v617, %v381
        %v634 = vmul.f32 %v618, %v381
        %v635 = vmul.f32 %v619, %v381
        %v636 = vmul.f32 %v620, %v381
        %v637 = vmul.f32 %v621, %v381
        %v638 = vmul.f32 %v622, %v381
        %v639 = vmul.f32 %v623, %v381
        %v640 = vmul.f32 %v624, %v381
        %v641 = vmul.f32 %v625, %v381
        %v642 = vmul.f32 %v626, %v381
        %v643 = vmul.f32 %v627, %v381
        %v644 = vmul.f32 %v628, %v381
        %v645 = vmul.f32 %v629, %v381
        %v646 = vmul.f32 %v630, %v381
        %v647 = vmul.f32 %v631, %v381
        %v648 = vmul.f32 %v632, %v381
        %v649 = vadd.f32 %v633, %v403
        %v650 = vadd.f32 %v634, %v403
        %v651 = vadd.f32 %v635, %v403
        %v652 = vadd.f32 %v636, %v403
        %v653 = vadd.f32 %v637, %v403
        %v654 = vadd.f32 %v638, %v403
        %v655 = vadd.f32 %v639, %v403
        %v656 = vadd.f32 %v640, %v403
        %v657 = vadd.f32 %v641, %v403
        %v658 = vadd.f32 %v642, %v403
        %v659 = vadd.f32 %v643, %v403
        %v660 = vadd.f32 %v644, %v403
        %v661 = vadd.f32 %v645, %v403
        %v662 = vadd.f32 %v646, %v403
        %v663 = vadd.f32 %v647, %v403
        %v664 = vadd.f32 %v648, %v403
        %v665 = vmax.f32 %v649, 0.0
        %v666 = vmax.f32 %v650, 0.0
        %v667 = vmax.f32 %v651, 0.0
        %v668 = vmax.f32 %v652, 0.0
        %v669 = vmax.f32 %v653, 0.0
        %v670 = vmax.f32 %v654, 0.0
        %v671 = vmax.f32 %v655, 0.0
        %v672 = vmax.f32 %v656, 0.0
        %v673 = vmax.f32 %v657, 0.0
        %v674 = vmax.f32 %v658, 0.0
        %v675 = vmax.f32 %v659, 0.0
        %v676 = vmax.f32 %v660, 0.0
        %v677 = vmax.f32 %v661, 0.0
        %v678 = vmax.f32 %v662, 0.0
        %v679 = vmax.f32 %v663, 0.0
        %v680 = vmax.f32 %v664, 0.0
        %v697 = vrot.slane %v665, 7
        %v698 = vrot.slane %v666, 7
        %v699 = vsel %vm453, %v697, %v698
        %v700 = vrot.slane %v667, 7
        %v701 = vrot.slane %v668, 7
        %v702 = vsel %vm453, %v700, %v701
        %v703 = vrot.slane %v669, 7
        %v704 = vrot.slane %v670, 7
        %v705 = vsel %vm453, %v703, %v704
        %v706 = vrot.slane %v671, 7
        %v707 = vrot.slane %v672, 7
        %v708 = vsel %vm453, %v706, %v707
        %v709 = vrot.slane %v673, 7
        %v710 = vrot.slane %v674, 7
        %v711 = vsel %vm453, %v709, %v710
        %v712 = vrot.slane %v675, 7
        %v713 = vrot.slane %v676, 7
        %v714 = vsel %vm453, %v712, %v713
        %v715 = vrot.slane %v677, 7
        %v716 = vrot.slane %v678, 7
        %v717 = vsel %vm453, %v715, %v716
        %v718 = vrot.slane %v679, 7
        %v719 = vrot.slane %v680, 7
        %v720 = vsel %vm453, %v718, %v719
        %v737 = vsel %vm453, 0.0, %v697
        %v738 = vsel %vm453, 0.0, %v700
        %v739 = vsel %vm453, 0.0, %v703
        %v740 = vsel %vm453, 0.0, %v706
        %v741 = vsel %vm453, 0.0, %v709
        %v742 = vsel %vm453, 0.0, %v712
        %v743 = vsel %vm453, 0.0, %v715
        %v744 = vsel %vm453, 0.0, %v718
        %v745 = vrot.slane %v665, 1
        %v746 = vrot.slane %v666, 1
        %v747 = vsel %vm502, %v745, %v746
        %v748 = vrot.slane %v667, 1
        %v749 = vrot.slane %v668, 1
        %v750 = vsel %vm502, %v748, %v749
        %v751 = vrot.slane %v669, 1
        %v752 = vrot.slane %v670, 1
        %v753 = vsel %vm502, %v751, %v752
        %v754 = vrot.slane %v671, 1
        %v755 = vrot.slane %v672, 1
        %v756 = vsel %vm502, %v754, %v755
        %v757 = vrot.slane %v673, 1
        %v758 = vrot.slane %v674, 1
        %v759 = vsel %vm502, %v757, %v758
        %v760 = vrot.slane %v675, 1
        %v761 = vrot.slane %v676, 1
        %v762 = vsel %vm502, %v760, %v761
        %v763 = vrot.slane %v677, 1
        %v764 = vrot.slane %v678, 1
        %v765 = vsel %vm502, %v763, %v764
        %v766 = vrot.slane %v679, 1
        %v767 = vrot.slane %v680, 1
        %v768 = vsel %vm502, %v766, %v767
        %v785 = vsel %vm502, %v746, 0.0
        %v786 = vsel %vm502, %v749, 0.0
        %v787 = vsel %vm502, %v752, 0.0
        %v788 = vsel %vm502, %v755, 0.0
        %v789 = vsel %vm502, %v758, 0.0
        %v790 = vsel %vm502, %v761, 0.0
        %v791 = vsel %vm502, %v764, 0.0
        %v792 = vsel %vm502, %v767, 0.0
        %v793 = vpack.c.bf16 %v699, %v737
        %v794 = vpack.c.bf16 %v702, %v738
        %v795 = vpack.c.bf16 %v705, %v739
        %v796 = vpack.c.bf16 %v708, %v740
        %v797 = vpack.c.bf16 %v711, %v741
        %v798 = vpack.c.bf16 %v714, %v742
        %v799 = vpack.c.bf16 %v717, %v743
        %v800 = vpack.c.bf16 %v720, %v744
        %s801 = scalar_lea.vmem [#allocation2], 216
        %802 = vst [vmem:[%s801] sm:$0xff] %v793
        %803 = vst [vmem:[%s801 + $0x18] sm:$0xff] %v794
        %804 = vst [vmem:[%s801 + $0x30] sm:$0xff] %v795
        %805 = vst [vmem:[%s801 + $0x48] sm:$0xff] %v796
        %806 = vst [vmem:[%s801 + $0x60] sm:$0xff] %v797
        %807 = vst [vmem:[%s801 + $0x78] sm:$0xff] %v798
        %808 = vst [vmem:[%s801 + $0x90] sm:$0xff] %v799
        %809 = vst [vmem:[%s801 + $0xa8] sm:$0xff] %v800
        %v810 = vpack.c.bf16 %v666, %v665
        %v811 = vpack.c.bf16 %v668, %v667
        %v812 = vpack.c.bf16 %v670, %v669
        %v813 = vpack.c.bf16 %v672, %v671
        %v814 = vpack.c.bf16 %v674, %v673
        %v815 = vpack.c.bf16 %v676, %v675
        %v816 = vpack.c.bf16 %v678, %v677
        %v817 = vpack.c.bf16 %v680, %v679
        %818 = vst [vmem:[%s801 + $0x8] sm:$0xff] %v810
        %819 = vst [vmem:[%s801 + $0x20] sm:$0xff] %v811
        %820 = vst [vmem:[%s801 + $0x38] sm:$0xff] %v812
        %821 = vst [vmem:[%s801 + $0x50] sm:$0xff] %v813
        %822 = vst [vmem:[%s801 + $0x68] sm:$0xff] %v814
        %823 = vst [vmem:[%s801 + $0x80] sm:$0xff] %v815
        %824 = vst [vmem:[%s801 + $0x98] sm:$0xff] %v816
        %825 = vst [vmem:[%s801 + $0xb0] sm:$0xff] %v817
        %v826 = vpack.c.bf16 %v785, %v747
        %v827 = vpack.c.bf16 %v786, %v750
        %v828 = vpack.c.bf16 %v787, %v753
        %v829 = vpack.c.bf16 %v788, %v756
        %v830 = vpack.c.bf16 %v789, %v759
        %v831 = vpack.c.bf16 %v790, %v762
        %v832 = vpack.c.bf16 %v791, %v765
        %v833 = vpack.c.bf16 %v792, %v768
        %834 = vst [vmem:[%s801 + $0x10] sm:$0xff] %v826
        %835 = vst [vmem:[%s801 + $0x28] sm:$0xff] %v827
        %836 = vst [vmem:[%s801 + $0x40] sm:$0xff] %v828
        %837 = vst [vmem:[%s801 + $0x58] sm:$0xff] %v829
        %838 = vst [vmem:[%s801 + $0x70] sm:$0xff] %v830
        %839 = vst [vmem:[%s801 + $0x88] sm:$0xff] %v831
        %840 = vst [vmem:[%s801 + $0xa0] sm:$0xff] %v832
        %841 = vst [vmem:[%s801 + $0xb8] sm:$0xff] %v833
        %v842 = vld [vmem:[#allocation2] sm:$0xff]
        %v843 = vld [vmem:[#allocation2 + $0x8] sm:$0xff]
        %v844 = vld [vmem:[#allocation2 + $0x10] sm:$0xff]
        %v845 = vld [vmem:[#allocation2 + $0x18] sm:$0xff]
        %v846 = vld [vmem:[#allocation2 + $0x20] sm:$0xff]
        %v847 = vld [vmem:[#allocation2 + $0x28] sm:$0xff]
        %v848 = vld [vmem:[#allocation2 + $0x30] sm:$0xff]
        %v849 = vld [vmem:[#allocation2 + $0x38] sm:$0xff]
        %v850 = vld [vmem:[#allocation2 + $0x40] sm:$0xff]
        %v851 = vld [vmem:[#allocation2 + $0x48] sm:$0xff]
        %v852 = vld [vmem:[#allocation2 + $0x50] sm:$0xff]
        %v853 = vld [vmem:[#allocation2 + $0x58] sm:$0xff]
        %v854 = vld [vmem:[#allocation2 + $0x60] sm:$0xff]
        %v855 = vld [vmem:[#allocation2 + $0x68] sm:$0xff]
        %v856 = vld [vmem:[#allocation2 + $0x70] sm:$0xff]
        %v857 = vld [vmem:[#allocation2 + $0x78] sm:$0xff]
        %v858 = vld [vmem:[#allocation2 + $0x80] sm:$0xff]
        %v859 = vld [vmem:[#allocation2 + $0x88] sm:$0xff]
        %v860 = vld [vmem:[#allocation2 + $0x90] sm:$0xff]
        %v861 = vld [vmem:[#allocation2 + $0x98] sm:$0xff]
        %v862 = vld [vmem:[#allocation2 + $0xa0] sm:$0xff]
        %v863 = vld [vmem:[#allocation2 + $0xa8] sm:$0xff]
        %v864 = vld [vmem:[#allocation2 + $0xb0] sm:$0xff]
        %v865 = vld [vmem:[#allocation2 + $0xb8] sm:$0xff]
        %v866 = vld [vmem:[#allocation7] sm:$0xf]
        %v867 = vld [vmem:[#allocation7 + $0x4] sm:$0xf]
        %v868 = vld [vmem:[#allocation7 + $0x8] sm:$0xf]
        %v869 = vld [vmem:[#allocation7 + $0xc] sm:$0xf]
        %v870 = vld [vmem:[#allocation7 + $0x10] sm:$0xf]
        %v871 = vld [vmem:[#allocation7 + $0x14] sm:$0xf]
        %v872 = vld [vmem:[#allocation7 + $0x18] sm:$0xf]
        %v873 = vld [vmem:[#allocation7 + $0x1c] sm:$0xf]
        %v874 = vld [vmem:[#allocation7 + $0x20] sm:$0xf]
        %v875 = vld [vmem:[#allocation7 + $0x24] sm:$0xf]
        %v876 = vld [vmem:[#allocation7 + $0x28] sm:$0xf]
        %v877 = vld [vmem:[#allocation7 + $0x2c] sm:$0xf]
        %v878 = vld [vmem:[#allocation7 + $0x30] sm:$0xf]
        %v879 = vld [vmem:[#allocation7 + $0x34] sm:$0xf]
        %v880 = vld [vmem:[#allocation7 + $0x38] sm:$0xf]
        %v881 = vld [vmem:[#allocation7 + $0x3c] sm:$0xf]
        %v882 = vld [vmem:[#allocation7 + $0x40] sm:$0xf]
        %v883 = vld [vmem:[#allocation7 + $0x44] sm:$0xf]
        %v884 = vld [vmem:[#allocation7 + $0x48] sm:$0xf]
        %v885 = vld [vmem:[#allocation7 + $0x4c] sm:$0xf]
        %v886 = vld [vmem:[#allocation7 + $0x50] sm:$0xf]
        %v887 = vld [vmem:[#allocation7 + $0x54] sm:$0xf]
        %v888 = vld [vmem:[#allocation7 + $0x58] sm:$0xf]
        %v889 = vld [vmem:[#allocation7 + $0x5c] sm:$0xf]
        %v890 = vld [vmem:[#allocation7 + $0x60] sm:$0xf]
        %v891 = vld [vmem:[#allocation7 + $0x64] sm:$0xf]
        %v892 = vld [vmem:[#allocation7 + $0x68] sm:$0xf]
        %v893 = vld [vmem:[#allocation7 + $0x6c] sm:$0xf]
        %v894 = vld [vmem:[#allocation7 + $0x70] sm:$0xf]
        %v895 = vld [vmem:[#allocation7 + $0x74] sm:$0xf]
        %v896 = vld [vmem:[#allocation7 + $0x78] sm:$0xf]
        %v897 = vld [vmem:[#allocation7 + $0x7c] sm:$0xf]
        %v898 = vld [vmem:[#allocation7 + $0x80] sm:$0xf]
        %v899 = vld [vmem:[#allocation7 + $0x84] sm:$0xf]
        %v900 = vld [vmem:[#allocation7 + $0x88] sm:$0xf]
        %v901 = vld [vmem:[#allocation7 + $0x8c] sm:$0xf]
        %v902 = vld [vmem:[#allocation7 + $0x90] sm:$0xf]
        %v903 = vld [vmem:[#allocation7 + $0x94] sm:$0xf]
        %v904 = vld [vmem:[#allocation7 + $0x98] sm:$0xf]
        %v905 = vld [vmem:[#allocation7 + $0x9c] sm:$0xf]
        %v906 = vld [vmem:[#allocation7 + $0xa0] sm:$0xf]
        %v907 = vld [vmem:[#allocation7 + $0xa4] sm:$0xf]
        %v908 = vld [vmem:[#allocation7 + $0xa8] sm:$0xf]
        %v909 = vld [vmem:[#allocation7 + $0xac] sm:$0xf]
        %v910 = vld [vmem:[#allocation7 + $0xb0] sm:$0xf]
        %v911 = vld [vmem:[#allocation7 + $0xb4] sm:$0xf]
        %v912 = vld [vmem:[#allocation7 + $0xb8] sm:$0xf]
        %v913 = vld [vmem:[#allocation7 + $0xbc] sm:$0xf]
        %v914 = vld [vmem:[%s559] sm:$0xff]
        %v915 = vld [vmem:[%s559 + $0x8] sm:$0xff]
        %v916 = vld [vmem:[%s559 + $0x10] sm:$0xff]
        %v917 = vld [vmem:[%s559 + $0x18] sm:$0xff]
        %v918 = vld [vmem:[%s559 + $0x20] sm:$0xff]
        %v919 = vld [vmem:[%s559 + $0x28] sm:$0xff]
        %v920 = vld [vmem:[%s559 + $0x30] sm:$0xff]
        %v921 = vld [vmem:[%s559 + $0x38] sm:$0xff]
        %v922 = vld [vmem:[%s559 + $0x40] sm:$0xff]
        %v923 = vld [vmem:[%s559 + $0x48] sm:$0xff]
        %v924 = vld [vmem:[%s559 + $0x50] sm:$0xff]
        %v925 = vld [vmem:[%s559 + $0x58] sm:$0xff]
        %v926 = vld [vmem:[%s559 + $0x60] sm:$0xff]
        %v927 = vld [vmem:[%s559 + $0x68] sm:$0xff]
        %v928 = vld [vmem:[%s559 + $0x70] sm:$0xff]
        %v929 = vld [vmem:[%s559 + $0x78] sm:$0xff]
        %v930 = vld [vmem:[%s559 + $0x80] sm:$0xff]
        %v931 = vld [vmem:[%s559 + $0x88] sm:$0xff]
        %v932 = vld [vmem:[%s559 + $0x90] sm:$0xff]
        %v933 = vld [vmem:[%s559 + $0x98] sm:$0xff]
        %v934 = vld [vmem:[%s559 + $0xa0] sm:$0xff]
        %v935 = vld [vmem:[%s559 + $0xa8] sm:$0xff]
        %v936 = vld [vmem:[%s559 + $0xb0] sm:$0xff]
        %v937 = vld [vmem:[%s559 + $0xb8] sm:$0xff]
        %s938 = scalar_lea.vmem [#allocation7], 192
        %v939 = vld [vmem:[%s938] sm:$0xf]
        %v940 = vld [vmem:[%s938 + $0x4] sm:$0xf]
        %v941 = vld [vmem:[%s938 + $0x8] sm:$0xf]
        %v942 = vld [vmem:[%s938 + $0xc] sm:$0xf]
        %v943 = vld [vmem:[%s938 + $0x10] sm:$0xf]
        %v944 = vld [vmem:[%s938 + $0x14] sm:$0xf]
        %v945 = vld [vmem:[%s938 + $0x18] sm:$0xf]
        %v946 = vld [vmem:[%s938 + $0x1c] sm:$0xf]
        %v947 = vld [vmem:[%s938 + $0x20] sm:$0xf]
        %v948 = vld [vmem:[%s938 + $0x24] sm:$0xf]
        %v949 = vld [vmem:[%s938 + $0x28] sm:$0xf]
        %v950 = vld [vmem:[%s938 + $0x2c] sm:$0xf]
        %v951 = vld [vmem:[%s938 + $0x30] sm:$0xf]
        %v952 = vld [vmem:[%s938 + $0x34] sm:$0xf]
        %v953 = vld [vmem:[%s938 + $0x38] sm:$0xf]
        %v954 = vld [vmem:[%s938 + $0x3c] sm:$0xf]
        %v955 = vld [vmem:[%s938 + $0x40] sm:$0xf]
        %v956 = vld [vmem:[%s938 + $0x44] sm:$0xf]
        %v957 = vld [vmem:[%s938 + $0x48] sm:$0xf]
        %v958 = vld [vmem:[%s938 + $0x4c] sm:$0xf]
        %v959 = vld [vmem:[%s938 + $0x50] sm:$0xf]
        %v960 = vld [vmem:[%s938 + $0x54] sm:$0xf]
        %v961 = vld [vmem:[%s938 + $0x58] sm:$0xf]
        %v962 = vld [vmem:[%s938 + $0x5c] sm:$0xf]
        %v963 = vld [vmem:[%s938 + $0x60] sm:$0xf]
        %v964 = vld [vmem:[%s938 + $0x64] sm:$0xf]
        %v965 = vld [vmem:[%s938 + $0x68] sm:$0xf]
        %v966 = vld [vmem:[%s938 + $0x6c] sm:$0xf]
        %v967 = vld [vmem:[%s938 + $0x70] sm:$0xf]
        %v968 = vld [vmem:[%s938 + $0x74] sm:$0xf]
        %v969 = vld [vmem:[%s938 + $0x78] sm:$0xf]
        %v970 = vld [vmem:[%s938 + $0x7c] sm:$0xf]
        %v971 = vld [vmem:[%s938 + $0x80] sm:$0xf]
        %v972 = vld [vmem:[%s938 + $0x84] sm:$0xf]
        %v973 = vld [vmem:[%s938 + $0x88] sm:$0xf]
        %v974 = vld [vmem:[%s938 + $0x8c] sm:$0xf]
        %v975 = vld [vmem:[%s938 + $0x90] sm:$0xf]
        %v976 = vld [vmem:[%s938 + $0x94] sm:$0xf]
        %v977 = vld [vmem:[%s938 + $0x98] sm:$0xf]
        %v978 = vld [vmem:[%s938 + $0x9c] sm:$0xf]
        %v979 = vld [vmem:[%s938 + $0xa0] sm:$0xf]
        %v980 = vld [vmem:[%s938 + $0xa4] sm:$0xf]
        %v981 = vld [vmem:[%s938 + $0xa8] sm:$0xf]
        %v982 = vld [vmem:[%s938 + $0xac] sm:$0xf]
        %v983 = vld [vmem:[%s938 + $0xb0] sm:$0xf]
        %v984 = vld [vmem:[%s938 + $0xb4] sm:$0xf]
        %v985 = vld [vmem:[%s938 + $0xb8] sm:$0xf]
        %v986 = vld [vmem:[%s938 + $0xbc] sm:$0xf]
        %v1035 = vunpack.c.l.b16 %v939
        %v1036 = vunpack.c.l.b16 %v940
        %v1037 = vunpack.c.l.b16 %v941
        %v1038 = vunpack.c.l.b16 %v942
        %v1039 = vunpack.c.l.b16 %v943
        %v1040 = vunpack.c.l.b16 %v944
        %v1041 = vunpack.c.l.b16 %v945
        %v1042 = vunpack.c.l.b16 %v946
        %v1043 = vunpack.c.l.b16 %v947
        %v1044 = vunpack.c.l.b16 %v948
        %v1045 = vunpack.c.l.b16 %v949
        %v1046 = vunpack.c.l.b16 %v950
        %v1047 = vunpack.c.l.b16 %v951
        %v1048 = vunpack.c.l.b16 %v952
        %v1049 = vunpack.c.l.b16 %v953
        %v1050 = vunpack.c.l.b16 %v954
        %v1051 = vunpack.c.l.b16 %v955
        %v1052 = vunpack.c.l.b16 %v956
        %v1053 = vunpack.c.l.b16 %v957
        %v1054 = vunpack.c.l.b16 %v958
        %v1055 = vunpack.c.l.b16 %v959
        %v1056 = vunpack.c.l.b16 %v960
        %v1057 = vunpack.c.l.b16 %v961
        %v1058 = vunpack.c.l.b16 %v962
        %v1059 = vunpack.c.l.b16 %v963
        %v1060 = vunpack.c.l.b16 %v964
        %v1061 = vunpack.c.l.b16 %v965
        %v1062 = vunpack.c.l.b16 %v966
        %v1063 = vunpack.c.l.b16 %v967
        %v1064 = vunpack.c.l.b16 %v968
        %v1065 = vunpack.c.l.b16 %v969
        %v1066 = vunpack.c.l.b16 %v970
        %v1067 = vunpack.c.l.b16 %v971
        %v1068 = vunpack.c.l.b16 %v972
        %v1069 = vunpack.c.l.b16 %v973
        %v1070 = vunpack.c.l.b16 %v974
        %v1071 = vunpack.c.l.b16 %v975
        %v1072 = vunpack.c.l.b16 %v976
        %v1073 = vunpack.c.l.b16 %v977
        %v1074 = vunpack.c.l.b16 %v978
        %v1075 = vunpack.c.l.b16 %v979
        %v1076 = vunpack.c.l.b16 %v980
        %v1077 = vunpack.c.l.b16 %v981
        %v1078 = vunpack.c.l.b16 %v982
        %v1079 = vunpack.c.l.b16 %v983
        %v1080 = vunpack.c.l.b16 %v984
        %v1081 = vunpack.c.l.b16 %v985
        %v1082 = vunpack.c.l.b16 %v986
        %v1083 = vpack.c.b16 %v1036, %v1035
        %v1084 = vpack.c.b16 %v1038, %v1037
        %v1085 = vpack.c.b16 %v1040, %v1039
        %v1086 = vpack.c.b16 %v1042, %v1041
        %v1087 = vpack.c.b16 %v1044, %v1043
        %v1088 = vpack.c.b16 %v1046, %v1045
        %v1089 = vpack.c.b16 %v1048, %v1047
        %v1090 = vpack.c.b16 %v1050, %v1049
        %v1091 = vpack.c.b16 %v1052, %v1051
        %v1092 = vpack.c.b16 %v1054, %v1053
        %v1093 = vpack.c.b16 %v1056, %v1055
        %v1094 = vpack.c.b16 %v1058, %v1057
        %v1095 = vpack.c.b16 %v1060, %v1059
        %v1096 = vpack.c.b16 %v1062, %v1061
        %v1097 = vpack.c.b16 %v1064, %v1063
        %v1098 = vpack.c.b16 %v1066, %v1065
        %v1099 = vpack.c.b16 %v1068, %v1067
        %v1100 = vpack.c.b16 %v1070, %v1069
        %v1101 = vpack.c.b16 %v1072, %v1071
        %v1102 = vpack.c.b16 %v1074, %v1073
        %v1103 = vpack.c.b16 %v1076, %v1075
        %v1104 = vpack.c.b16 %v1078, %v1077
        %v1105 = vpack.c.b16 %v1080, %v1079
        %v1106 = vpack.c.b16 %v1082, %v1081
        %1131 = vmatprep.subr.bf16.mxu0 0
        %1132 = vmatpush1.bf16.msra.mxu0 %v1083
        %1133 = vmatprep.subr.bf16.mxu0 0
        %1134 = vmatpush1.bf16.msra.mxu0 %v1084
        %1135 = vmatprep.subr.bf16.mxu0 0
        %1136 = vmatpush1.bf16.msra.mxu0 %v1085
        %1137 = vmatprep.subr.bf16.mxu0 0
        %1138 = vmatpush1.bf16.msra.mxu0 %v1086
        %1139 = vmatprep.subr.bf16.mxu0 0
        %1140 = vmatpush1.bf16.msra.mxu0 %v1087
        %1141 = vmatprep.subr.bf16.mxu0 0
        %1142 = vmatpush1.bf16.msra.mxu0 %v1088
        %1143 = vmatprep.subr.bf16.mxu0 0
        %1144 = vmatpush1.bf16.msra.mxu0 %v1089
        %1145 = vmatprep.subr.bf16.mxu0 0
        %1146 = vmatpush1.bf16.msra.mxu0 %v1090
        %1147 = vmatprep.subr.bf16.mxu0 0
        %1148 = vmatpush1.bf16.msra.mxu0 %v1091
        %1149 = vmatprep.subr.bf16.mxu0 0
        %1150 = vmatpush1.bf16.msra.mxu0 %v1092
        %1151 = vmatprep.subr.bf16.mxu0 0
        %1152 = vmatpush1.bf16.msra.mxu0 %v1093
        %1153 = vmatprep.subr.bf16.mxu0 0
        %1154 = vmatpush1.bf16.msra.mxu0 %v1094
        %1155 = vmatprep.subr.bf16.mxu0 0
        %1156 = vmatpush1.bf16.msra.mxu0 %v1095
        %1157 = vmatprep.subr.bf16.mxu0 0
        %1158 = vmatpush1.bf16.msra.mxu0 %v1096
        %1159 = vmatprep.subr.bf16.mxu0 0
        %1160 = vmatpush1.bf16.msra.mxu0 %v1097
        %1161 = vmatprep.subr.bf16.mxu0 0
        %1162 = vmatpush1.bf16.msra.mxu0 %v1098
        %1163 = vmatprep.mubr.bf16.mxu0 %v915
        %1164 = vmatmul.mubr.bf16.gmra.mrb[0].mxu0 %v914
        %v1165 = vpop.f32.mrb[0].mxu0
        %v1166 = vadd.f32 0.0, %v1165
        %v1167 = vpop.f32.mrb[0].mxu0
        %v1168 = vpop.f32.mrb[0].mxu0
        %v1169 = vadd.f32 0.0, %v1168
        %v1170 = vpop.f32.mrb[0].mxu0
        %1171 = vmatprep.mubr.bf16.mxu0 %v918
        %1172 = vmatmul.mubr.bf16.gmra.mrb[0].mxu0 %v917
        %v1173 = vpop.f32.mrb[0].mxu0
        %v1174 = vadd.f32 0.0, %v1173
        %v1175 = vpop.f32.mrb[0].mxu0
        %v1176 = vpop.f32.mrb[0].mxu0
        %v1177 = vadd.f32 0.0, %v1176
        %v1178 = vpop.f32.mrb[0].mxu0
        %1179 = vmatprep.mubr.bf16.mxu0 %v921
        %1180 = vmatmul.mubr.bf16.gmra.mrb[0].mxu0 %v920
        %v1181 = vpop.f32.mrb[0].mxu0
        %v1182 = vadd.f32 0.0, %v1181
        %v1183 = vpop.f32.mrb[0].mxu0
        %v1184 = vpop.f32.mrb[0].mxu0
        %v1185 = vadd.f32 0.0, %v1184
        %v1186 = vpop.f32.mrb[0].mxu0
        %1187 = vmatprep.mubr.bf16.mxu0 %v924
        %1188 = vmatmul.mubr.bf16.gmra.mrb[0].mxu0 %v923
        %v1189 = vpop.f32.mrb[0].mxu0
        %v1190 = vadd.f32 0.0, %v1189
        %v1191 = vpop.f32.mrb[0].mxu0
        %v1192 = vpop.f32.mrb[0].mxu0
        %v1193 = vadd.f32 0.0, %v1192
        %v1194 = vpop.f32.mrb[0].mxu0
        %1195 = vmatprep.mubr.bf16.mxu0 %v927
        %1196 = vmatmul.mubr.bf16.gmra.mrb[0].mxu0 %v926
        %v1197 = vpop.f32.mrb[0].mxu0
        %v1198 = vadd.f32 0.0, %v1197
        %v1199 = vpop.f32.mrb[0].mxu0
        %v1200 = vpop.f32.mrb[0].mxu0
        %v1201 = vadd.f32 0.0, %v1200
        %v1202 = vpop.f32.mrb[0].mxu0
        %1203 = vmatprep.mubr.bf16.mxu0 %v930
        %1204 = vmatmul.mubr.bf16.gmra.mrb[0].mxu0 %v929
        %v1205 = vpop.f32.mrb[0].mxu0
        %v1206 = vadd.f32 0.0, %v1205
        %v1207 = vpop.f32.mrb[0].mxu0
        %v1208 = vpop.f32.mrb[0].mxu0
        %v1209 = vadd.f32 0.0, %v1208
        %v1210 = vpop.f32.mrb[0].mxu0
        %1211 = vmatprep.mubr.bf16.mxu0 %v933
        %1212 = vmatmul.mubr.bf16.gmra.mrb[0].mxu0 %v932
        %v1213 = vpop.f32.mrb[0].mxu0
        %v1214 = vadd.f32 0.0, %v1213
        %v1215 = vpop.f32.mrb[0].mxu0
        %v1216 = vpop.f32.mrb[0].mxu0
        %v1217 = vadd.f32 0.0, %v1216
        %v1218 = vpop.f32.mrb[0].mxu0
        %1219 = vmatprep.mubr.bf16.mxu0 %v936
        %1220 = vmatmul.mubr.bf16.gmra.mrb[0].mxu0 %v935
        %v1221 = vpop.f32.mrb[0].mxu0
        %v1222 = vadd.f32 0.0, %v1221
        %v1223 = vpop.f32.mrb[0].mxu0
        %v1224 = vpop.f32.mrb[0].mxu0
        %v1225 = vadd.f32 0.0, %v1224
        %v1226 = vpop.f32.mrb[0].mxu0
        %1227 = vdwg.mxu0
        %1228 = vmatprep.subr.bf16.mxu0 0
        %1229 = vmatpush1.bf16.msra.mxu0 %v1099
        %1230 = vmatprep.subr.bf16.mxu0 0
        %1231 = vmatpush1.bf16.msra.mxu0 %v1100
        %1232 = vmatprep.subr.bf16.mxu0 0
        %1233 = vmatpush1.bf16.msra.mxu0 %v1101
        %1234 = vmatprep.subr.bf16.mxu0 0
        %1235 = vmatpush1.bf16.msra.mxu0 %v1102
        %1236 = vmatprep.subr.bf16.mxu0 0
        %1237 = vmatpush1.bf16.msra.mxu0 %v1103
        %1238 = vmatprep.subr.bf16.mxu0 0
        %1239 = vmatpush1.bf16.msra.mxu0 %v1104
        %1240 = vmatprep.subr.bf16.mxu0 0
        %1241 = vmatpush1.bf16.msra.mxu0 %v1105
        %1242 = vmatprep.subr.bf16.mxu0 0
        %1243 = vmatpush1.bf16.msra.mxu0 %v1106
        %1244 = vmatprep.subr.bf16.mxu0 0
        %1245 = vmatpush1.bf16.msra.mxu0 0
        %1246 = vmatprep.subr.bf16.mxu0 0
        %1247 = vmatpush1.bf16.msra.mxu0 0
        %1248 = vmatprep.subr.bf16.mxu0 0
        %1249 = vmatpush1.bf16.msra.mxu0 0
        %1250 = vmatprep.subr.bf16.mxu0 0
        %1251 = vmatpush1.bf16.msra.mxu0 0
        %1252 = vmatprep.subr.bf16.mxu0 0
        %1253 = vmatpush1.bf16.msra.mxu0 0
        %1254 = vmatprep.subr.bf16.mxu0 0
        %1255 = vmatpush1.bf16.msra.mxu0 0
        %1256 = vmatprep.subr.bf16.mxu0 0
        %1257 = vmatpush1.bf16.msra.mxu0 0
        %1258 = vmatprep.subr.bf16.mxu0 0
        %1259 = vmatpush1.bf16.msra.mxu0 0
        %1260 = vmatprep.mubr.bf16.mxu0 0
        %1261 = vmatmul.mubr.bf16.gmra.mrb[0].mxu0 %v916
        %v1262 = vpop.f32.mrb[0].mxu0
        %v1263 = vadd.f32 %v1166, %v1262
        %v1264 = vpop.f32.mrb[0].mxu0
        %v1265 = vpop.f32.mrb[0].mxu0
        %v1266 = vadd.f32 %v1169, %v1265
        %v1267 = vpop.f32.mrb[0].mxu0
        %1268 = vmatprep.mubr.bf16.mxu0 0
        %1269 = vmatmul.mubr.bf16.gmra.mrb[0].mxu0 %v919
        %v1270 = vpop.f32.mrb[0].mxu0
        %v1271 = vadd.f32 %v1174, %v1270
        %v1272 = vpop.f32.mrb[0].mxu0
        %v1273 = vpop.f32.mrb[0].mxu0
        %v1274 = vadd.f32 %v1177, %v1273
        %v1275 = vpop.f32.mrb[0].mxu0
        %1276 = vmatprep.mubr.bf16.mxu0 0
        %1277 = vmatmul.mubr.bf16.gmra.mrb[0].mxu0 %v922
        %v1278 = vpop.f32.mrb[0].mxu0
        %v1279 = vadd.f32 %v1182, %v1278
        %v1280 = vpop.f32.mrb[0].mxu0
        %v1281 = vpop.f32.mrb[0].mxu0
        %v1282 = vadd.f32 %v1185, %v1281
        %v1283 = vpop.f32.mrb[0].mxu0
        %1284 = vmatprep.mubr.bf16.mxu0 0
        %1285 = vmatmul.mubr.bf16.gmra.mrb[0].mxu0 %v925
        %v1286 = vpop.f32.mrb[0].mxu0
        %v1287 = vadd.f32 %v1190, %v1286
        %v1288 = vpop.f32.mrb[0].mxu0
        %v1289 = vpop.f32.mrb[0].mxu0
        %v1290 = vadd.f32 %v1193, %v1289
        %v1291 = vpop.f32.mrb[0].mxu0
        %1292 = vmatprep.mubr.bf16.mxu0 0
        %1293 = vmatmul.mubr.bf16.gmra.mrb[0].mxu0 %v928
        %v1294 = vpop.f32.mrb[0].mxu0
        %v1295 = vadd.f32 %v1198, %v1294
        %v1296 = vpop.f32.mrb[0].mxu0
        %v1297 = vpop.f32.mrb[0].mxu0
        %v1298 = vadd.f32 %v1201, %v1297
        %v1299 = vpop.f32.mrb[0].mxu0
        %1300 = vmatprep.mubr.bf16.mxu0 0
        %1301 = vmatmul.mubr.bf16.gmra.mrb[0].mxu0 %v931
        %v1302 = vpop.f32.mrb[0].mxu0
        %v1303 = vadd.f32 %v1206, %v1302
        %v1304 = vpop.f32.mrb[0].mxu0
        %v1305 = vpop.f32.mrb[0].mxu0
        %v1306 = vadd.f32 %v1209, %v1305
        %v1307 = vpop.f32.mrb[0].mxu0
        %1308 = vmatprep.mubr.bf16.mxu0 0
        %1309 = vmatmul.mubr.bf16.gmra.mrb[0].mxu0 %v934
        %v1310 = vpop.f32.mrb[0].mxu0
        %v1311 = vadd.f32 %v1214, %v1310
        %v1312 = vpop.f32.mrb[0].mxu0
        %v1313 = vpop.f32.mrb[0].mxu0
        %v1314 = vadd.f32 %v1217, %v1313
        %v1315 = vpop.f32.mrb[0].mxu0
        %1316 = vmatprep.mubr.bf16.mxu0 0
        %1317 = vmatmul.mubr.bf16.gmra.mrb[0].mxu0 %v937
        %v1318 = vpop.f32.mrb[0].mxu0
        %v1319 = vadd.f32 %v1222, %v1318
        %v1320 = vpop.f32.mrb[0].mxu0
        %v1321 = vpop.f32.mrb[0].mxu0
        %v1322 = vadd.f32 %v1225, %v1321
        %v1323 = vpop.f32.mrb[0].mxu0
        %1324 = vdwg.mxu0
        %v1373 = vunpack.c.l.b16 %v866
        %v1374 = vunpack.c.l.b16 %v867
        %v1375 = vunpack.c.l.b16 %v868
        %v1376 = vunpack.c.l.b16 %v869
        %v1377 = vunpack.c.l.b16 %v870
        %v1378 = vunpack.c.l.b16 %v871
        %v1379 = vunpack.c.l.b16 %v872
        %v1380 = vunpack.c.l.b16 %v873
        %v1381 = vunpack.c.l.b16 %v874
        %v1382 = vunpack.c.l.b16 %v875
        %v1383 = vunpack.c.l.b16 %v876
        %v1384 = vunpack.c.l.b16 %v877
        %v1385 = vunpack.c.l.b16 %v878
        %v1386 = vunpack.c.l.b16 %v879
        %v1387 = vunpack.c.l.b16 %v880
        %v1388 = vunpack.c.l.b16 %v881
        %v1389 = vunpack.c.l.b16 %v882
        %v1390 = vunpack.c.l.b16 %v883
        %v1391 = vunpack.c.l.b16 %v884
        %v1392 = vunpack.c.l.b16 %v885
        %v1393 = vunpack.c.l.b16 %v886
        %v1394 = vunpack.c.l.b16 %v887
        %v1395 = vunpack.c.l.b16 %v888
        %v1396 = vunpack.c.l.b16 %v889
        %v1397 = vunpack.c.l.b16 %v890
        %v1398 = vunpack.c.l.b16 %v891
        %v1399 = vunpack.c.l.b16 %v892
        %v1400 = vunpack.c.l.b16 %v893
        %v1401 = vunpack.c.l.b16 %v894
        %v1402 = vunpack.c.l.b16 %v895
        %v1403 = vunpack.c.l.b16 %v896
        %v1404 = vunpack.c.l.b16 %v897
        %v1405 = vunpack.c.l.b16 %v898
        %v1406 = vunpack.c.l.b16 %v899
        %v1407 = vunpack.c.l.b16 %v900
        %v1408 = vunpack.c.l.b16 %v901
        %v1409 = vunpack.c.l.b16 %v902
        %v1410 = vunpack.c.l.b16 %v903
        %v1411 = vunpack.c.l.b16 %v904
        %v1412 = vunpack.c.l.b16 %v905
        %v1413 = vunpack.c.l.b16 %v906
        %v1414 = vunpack.c.l.b16 %v907
        %v1415 = vunpack.c.l.b16 %v908
        %v1416 = vunpack.c.l.b16 %v909
        %v1417 = vunpack.c.l.b16 %v910
        %v1418 = vunpack.c.l.b16 %v911
        %v1419 = vunpack.c.l.b16 %v912
        %v1420 = vunpack.c.l.b16 %v913
        %v1421 = vpack.c.b16 %v1374, %v1373
        %v1422 = vpack.c.b16 %v1376, %v1375
        %v1423 = vpack.c.b16 %v1378, %v1377
        %v1424 = vpack.c.b16 %v1380, %v1379
        %v1425 = vpack.c.b16 %v1382, %v1381
        %v1426 = vpack.c.b16 %v1384, %v1383
        %v1427 = vpack.c.b16 %v1386, %v1385
        %v1428 = vpack.c.b16 %v1388, %v1387
        %v1429 = vpack.c.b16 %v1390, %v1389
        %v1430 = vpack.c.b16 %v1392, %v1391
        %v1431 = vpack.c.b16 %v1394, %v1393
        %v1432 = vpack.c.b16 %v1396, %v1395
        %v1433 = vpack.c.b16 %v1398, %v1397
        %v1434 = vpack.c.b16 %v1400, %v1399
        %v1435 = vpack.c.b16 %v1402, %v1401
        %v1436 = vpack.c.b16 %v1404, %v1403
        %v1437 = vpack.c.b16 %v1406, %v1405
        %v1438 = vpack.c.b16 %v1408, %v1407
        %v1439 = vpack.c.b16 %v1410, %v1409
        %v1440 = vpack.c.b16 %v1412, %v1411
        %v1441 = vpack.c.b16 %v1414, %v1413
        %v1442 = vpack.c.b16 %v1416, %v1415
        %v1443 = vpack.c.b16 %v1418, %v1417
        %v1444 = vpack.c.b16 %v1420, %v1419
        %1469 = vmatprep.subr.bf16.mxu0 0
        %1470 = vmatpush1.bf16.msra.mxu0 %v1421
        %1471 = vmatprep.subr.bf16.mxu0 0
        %1472 = vmatpush1.bf16.msra.mxu0 %v1422
        %1473 = vmatprep.subr.bf16.mxu0 0
        %1474 = vmatpush1.bf16.msra.mxu0 %v1423
        %1475 = vmatprep.subr.bf16.mxu0 0
        %1476 = vmatpush1.bf16.msra.mxu0 %v1424
        %1477 = vmatprep.subr.bf16.mxu0 0
        %1478 = vmatpush1.bf16.msra.mxu0 %v1425
        %1479 = vmatprep.subr.bf16.mxu0 0
        %1480 = vmatpush1.bf16.msra.mxu0 %v1426
        %1481 = vmatprep.subr.bf16.mxu0 0
        %1482 = vmatpush1.bf16.msra.mxu0 %v1427
        %1483 = vmatprep.subr.bf16.mxu0 0
        %1484 = vmatpush1.bf16.msra.mxu0 %v1428
        %1485 = vmatprep.subr.bf16.mxu0 0
        %1486 = vmatpush1.bf16.msra.mxu0 %v1429
        %1487 = vmatprep.subr.bf16.mxu0 0
        %1488 = vmatpush1.bf16.msra.mxu0 %v1430
        %1489 = vmatprep.subr.bf16.mxu0 0
        %1490 = vmatpush1.bf16.msra.mxu0 %v1431
        %1491 = vmatprep.subr.bf16.mxu0 0
        %1492 = vmatpush1.bf16.msra.mxu0 %v1432
        %1493 = vmatprep.subr.bf16.mxu0 0
        %1494 = vmatpush1.bf16.msra.mxu0 %v1433
        %1495 = vmatprep.subr.bf16.mxu0 0
        %1496 = vmatpush1.bf16.msra.mxu0 %v1434
        %1497 = vmatprep.subr.bf16.mxu0 0
        %1498 = vmatpush1.bf16.msra.mxu0 %v1435
        %1499 = vmatprep.subr.bf16.mxu0 0
        %1500 = vmatpush1.bf16.msra.mxu0 %v1436
        %1501 = vmatprep.mubr.bf16.mxu0 %v843
        %1502 = vmatmul.mubr.bf16.gmra.mrb[0].mxu0 %v842
        %v1503 = vpop.f32.mrb[0].mxu0
        %v1504 = vadd.f32 %v1263, %v1503
        %v1505 = vpop.f32.mrb[0].mxu0
        %v1506 = vpop.f32.mrb[0].mxu0
        %v1507 = vadd.f32 %v1266, %v1506
        %v1508 = vpop.f32.mrb[0].mxu0
        %1509 = vmatprep.mubr.bf16.mxu0 %v846
        %1510 = vmatmul.mubr.bf16.gmra.mrb[0].mxu0 %v845
        %v1511 = vpop.f32.mrb[0].mxu0
        %v1512 = vadd.f32 %v1271, %v1511
        %v1513 = vpop.f32.mrb[0].mxu0
        %v1514 = vpop.f32.mrb[0].mxu0
        %v1515 = vadd.f32 %v1274, %v1514
        %v1516 = vpop.f32.mrb[0].mxu0
        %1517 = vmatprep.mubr.bf16.mxu0 %v849
        %1518 = vmatmul.mubr.bf16.gmra.mrb[0].mxu0 %v848
        %v1519 = vpop.f32.mrb[0].mxu0
        %v1520 = vadd.f32 %v1279, %v1519
        %v1521 = vpop.f32.mrb[0].mxu0
        %v1522 = vpop.f32.mrb[0].mxu0
        %v1523 = vadd.f32 %v1282, %v1522
        %v1524 = vpop.f32.mrb[0].mxu0
        %1525 = vmatprep.mubr.bf16.mxu0 %v852
        %1526 = vmatmul.mubr.bf16.gmra.mrb[0].mxu0 %v851
        %v1527 = vpop.f32.mrb[0].mxu0
        %v1528 = vadd.f32 %v1287, %v1527
        %v1529 = vpop.f32.mrb[0].mxu0
        %v1530 = vpop.f32.mrb[0].mxu0
        %v1531 = vadd.f32 %v1290, %v1530
        %v1532 = vpop.f32.mrb[0].mxu0
        %1533 = vmatprep.mubr.bf16.mxu0 %v855
        %1534 = vmatmul.mubr.bf16.gmra.mrb[0].mxu0 %v854
        %v1535 = vpop.f32.mrb[0].mxu0
        %v1536 = vadd.f32 %v1295, %v1535
        %v1537 = vpop.f32.mrb[0].mxu0
        %v1538 = vpop.f32.mrb[0].mxu0
        %v1539 = vadd.f32 %v1298, %v1538
        %v1540 = vpop.f32.mrb[0].mxu0
        %1541 = vmatprep.mubr.bf16.mxu0 %v858
        %1542 = vmatmul.mubr.bf16.gmra.mrb[0].mxu0 %v857
        %v1543 = vpop.f32.mrb[0].mxu0
        %v1544 = vadd.f32 %v1303, %v1543
        %v1545 = vpop.f32.mrb[0].mxu0
        %v1546 = vpop.f32.mrb[0].mxu0
        %v1547 = vadd.f32 %v1306, %v1546
        %v1548 = vpop.f32.mrb[0].mxu0
        %1549 = vmatprep.mubr.bf16.mxu0 %v861
        %1550 = vmatmul.mubr.bf16.gmra.mrb[0].mxu0 %v860
        %v1551 = vpop.f32.mrb[0].mxu0
        %v1552 = vadd.f32 %v1311, %v1551
        %v1553 = vpop.f32.mrb[0].mxu0
        %v1554 = vpop.f32.mrb[0].mxu0
        %v1555 = vadd.f32 %v1314, %v1554
        %v1556 = vpop.f32.mrb[0].mxu0
        %1557 = vmatprep.mubr.bf16.mxu0 %v864
        %1558 = vmatmul.mubr.bf16.gmra.mrb[0].mxu0 %v863
        %v1559 = vpop.f32.mrb[0].mxu0
        %v1560 = vadd.f32 %v1319, %v1559
        %v1561 = vpop.f32.mrb[0].mxu0
        %v1562 = vpop.f32.mrb[0].mxu0
        %v1563 = vadd.f32 %v1322, %v1562
        %v1564 = vpop.f32.mrb[0].mxu0
        %1565 = vdwg.mxu0
        %1566 = vmatprep.subr.bf16.mxu0 0
        %1567 = vmatpush1.bf16.msra.mxu0 %v1437
        %1568 = vmatprep.subr.bf16.mxu0 0
        %1569 = vmatpush1.bf16.msra.mxu0 %v1438
        %1570 = vmatprep.subr.bf16.mxu0 0
        %1571 = vmatpush1.bf16.msra.mxu0 %v1439
        %1572 = vmatprep.subr.bf16.mxu0 0
        %1573 = vmatpush1.bf16.msra.mxu0 %v1440
        %1574 = vmatprep.subr.bf16.mxu0 0
        %1575 = vmatpush1.bf16.msra.mxu0 %v1441
        %1576 = vmatprep.subr.bf16.mxu0 0
        %1577 = vmatpush1.bf16.msra.mxu0 %v1442
        %1578 = vmatprep.subr.bf16.mxu0 0
        %1579 = vmatpush1.bf16.msra.mxu0 %v1443
        %1580 = vmatprep.subr.bf16.mxu0 0
        %1581 = vmatpush1.bf16.msra.mxu0 %v1444
        %1582 = vmatprep.subr.bf16.mxu0 0
        %1583 = vmatpush1.bf16.msra.mxu0 0
        %1584 = vmatprep.subr.bf16.mxu0 0
        %1585 = vmatpush1.bf16.msra.mxu0 0
        %1586 = vmatprep.subr.bf16.mxu0 0
        %1587 = vmatpush1.bf16.msra.mxu0 0
        %1588 = vmatprep.subr.bf16.mxu0 0
        %1589 = vmatpush1.bf16.msra.mxu0 0
        %1590 = vmatprep.subr.bf16.mxu0 0
        %1591 = vmatpush1.bf16.msra.mxu0 0
        %1592 = vmatprep.subr.bf16.mxu0 0
        %1593 = vmatpush1.bf16.msra.mxu0 0
        %1594 = vmatprep.subr.bf16.mxu0 0
        %1595 = vmatpush1.bf16.msra.mxu0 0
        %1596 = vmatprep.subr.bf16.mxu0 0
        %1597 = vmatpush1.bf16.msra.mxu0 0
        %1598 = vmatprep.mubr.bf16.mxu0 0
        %1599 = vmatmul.mubr.bf16.gmra.mrb[0].mxu0 %v844
        %v1600 = vpop.f32.mrb[0].mxu0
        %v1601 = vadd.f32 %v1504, %v1600
        %v1602 = vpop.f32.mrb[0].mxu0
        %v1603 = vpop.f32.mrb[0].mxu0
        %v1604 = vadd.f32 %v1507, %v1603
        %v1605 = vpop.f32.mrb[0].mxu0
        %1606 = vmatprep.mubr.bf16.mxu0 0
        %1607 = vmatmul.mubr.bf16.gmra.mrb[0].mxu0 %v847
        %v1608 = vpop.f32.mrb[0].mxu0
        %v1609 = vadd.f32 %v1512, %v1608
        %v1610 = vpop.f32.mrb[0].mxu0
        %v1611 = vpop.f32.mrb[0].mxu0
        %v1612 = vadd.f32 %v1515, %v1611
        %v1613 = vpop.f32.mrb[0].mxu0
        %1614 = vmatprep.mubr.bf16.mxu0 0
        %1615 = vmatmul.mubr.bf16.gmra.mrb[0].mxu0 %v850
        %v1616 = vpop.f32.mrb[0].mxu0
        %v1617 = vadd.f32 %v1520, %v1616
        %v1618 = vpop.f32.mrb[0].mxu0
        %v1619 = vpop.f32.mrb[0].mxu0
        %v1620 = vadd.f32 %v1523, %v1619
        %v1621 = vpop.f32.mrb[0].mxu0
        %1622 = vmatprep.mubr.bf16.mxu0 0
        %1623 = vmatmul.mubr.bf16.gmra.mrb[0].mxu0 %v853
        %v1624 = vpop.f32.mrb[0].mxu0
        %v1625 = vadd.f32 %v1528, %v1624
        %v1626 = vpop.f32.mrb[0].mxu0
        %v1627 = vpop.f32.mrb[0].mxu0
        %v1628 = vadd.f32 %v1531, %v1627
        %v1629 = vpop.f32.mrb[0].mxu0
        %1630 = vmatprep.mubr.bf16.mxu0 0
        %1631 = vmatmul.mubr.bf16.gmra.mrb[0].mxu0 %v856
        %v1632 = vpop.f32.mrb[0].mxu0
        %v1633 = vadd.f32 %v1536, %v1632
        %v1634 = vpop.f32.mrb[0].mxu0
        %v1635 = vpop.f32.mrb[0].mxu0
        %v1636 = vadd.f32 %v1539, %v1635
        %v1637 = vpop.f32.mrb[0].mxu0
        %1638 = vmatprep.mubr.bf16.mxu0 0
        %1639 = vmatmul.mubr.bf16.gmra.mrb[0].mxu0 %v859
        %v1640 = vpop.f32.mrb[0].mxu0
        %v1641 = vadd.f32 %v1544, %v1640
        %v1642 = vpop.f32.mrb[0].mxu0
        %v1643 = vpop.f32.mrb[0].mxu0
        %v1644 = vadd.f32 %v1547, %v1643
        %v1645 = vpop.f32.mrb[0].mxu0
        %1646 = vmatprep.mubr.bf16.mxu0 0
        %1647 = vmatmul.mubr.bf16.gmra.mrb[0].mxu0 %v862
        %v1648 = vpop.f32.mrb[0].mxu0
        %v1649 = vadd.f32 %v1552, %v1648
        %v1650 = vpop.f32.mrb[0].mxu0
        %v1651 = vpop.f32.mrb[0].mxu0
        %v1652 = vadd.f32 %v1555, %v1651
        %v1653 = vpop.f32.mrb[0].mxu0
        %1654 = vmatprep.mubr.bf16.mxu0 0
        %1655 = vmatmul.mubr.bf16.gmra.mrb[0].mxu0 %v865
        %v1656 = vpop.f32.mrb[0].mxu0
        %v1657 = vadd.f32 %v1560, %v1656
        %v1658 = vpop.f32.mrb[0].mxu0
        %v1659 = vpop.f32.mrb[0].mxu0
        %v1660 = vadd.f32 %v1563, %v1659
        %v1661 = vpop.f32.mrb[0].mxu0
        %1662 = vdwg.mxu0
        %s1663 = scalar_lea.vmem [#allocation2], 48
        %v1664 = vld [vmem:[%s1663] sm:$0xff]
        %v1665 = vld [vmem:[%s1663 + $0x8] sm:$0xff]
        %v1666 = vld [vmem:[%s1663 + $0x10] sm:$0xff]
        %v1667 = vld [vmem:[%s1663 + $0x18] sm:$0xff]
        %v1668 = vld [vmem:[%s1663 + $0x20] sm:$0xff]
        %v1669 = vld [vmem:[%s1663 + $0x28] sm:$0xff]
        %v1670 = vld [vmem:[%s1663 + $0x30] sm:$0xff]
        %v1671 = vld [vmem:[%s1663 + $0x38] sm:$0xff]
        %v1672 = vld [vmem:[%s1663 + $0x40] sm:$0xff]
        %v1673 = vld [vmem:[%s1663 + $0x48] sm:$0xff]
        %v1674 = vld [vmem:[%s1663 + $0x50] sm:$0xff]
        %v1675 = vld [vmem:[%s1663 + $0x58] sm:$0xff]
        %v1676 = vld [vmem:[%s1663 + $0x60] sm:$0xff]
        %v1677 = vld [vmem:[%s1663 + $0x68] sm:$0xff]
        %v1678 = vld [vmem:[%s1663 + $0x70] sm:$0xff]
        %v1679 = vld [vmem:[%s1663 + $0x78] sm:$0xff]
        %v1680 = vld [vmem:[%s1663 + $0x80] sm:$0xff]
        %v1681 = vld [vmem:[%s1663 + $0x88] sm:$0xff]
        %v1682 = vld [vmem:[%s1663 + $0x90] sm:$0xff]
        %v1683 = vld [vmem:[%s1663 + $0x98] sm:$0xff]
        %v1684 = vld [vmem:[%s1663 + $0xa0] sm:$0xff]
        %v1685 = vld [vmem:[%s1663 + $0xa8] sm:$0xff]
        %v1686 = vld [vmem:[%s1663 + $0xb0] sm:$0xff]
        %v1687 = vld [vmem:[%s1663 + $0xb8] sm:$0xff]
        %s1688 = scalar_lea.vmem [#allocation7], 384
        %v1689 = vld [vmem:[%s1688] sm:$0xf]
        %v1690 = vld [vmem:[%s1688 + $0x4] sm:$0xf]
        %v1691 = vld [vmem:[%s1688 + $0x8] sm:$0xf]
        %v1692 = vld [vmem:[%s1688 + $0xc] sm:$0xf]
        %v1693 = vld [vmem:[%s1688 + $0x10] sm:$0xf]
        %v1694 = vld [vmem:[%s1688 + $0x14] sm:$0xf]
        %v1695 = vld [vmem:[%s1688 + $0x18] sm:$0xf]
        %v1696 = vld [vmem:[%s1688 + $0x1c] sm:$0xf]
        %v1697 = vld [vmem:[%s1688 + $0x20] sm:$0xf]
        %v1698 = vld [vmem:[%s1688 + $0x24] sm:$0xf]
        %v1699 = vld [vmem:[%s1688 + $0x28] sm:$0xf]
        %v1700 = vld [vmem:[%s1688 + $0x2c] sm:$0xf]
        %v1701 = vld [vmem:[%s1688 + $0x30] sm:$0xf]
        %v1702 = vld [vmem:[%s1688 + $0x34] sm:$0xf]
        %v1703 = vld [vmem:[%s1688 + $0x38] sm:$0xf]
        %v1704 = vld [vmem:[%s1688 + $0x3c] sm:$0xf]
        %v1705 = vld [vmem:[%s1688 + $0x40] sm:$0xf]
        %v1706 = vld [vmem:[%s1688 + $0x44] sm:$0xf]
        %v1707 = vld [vmem:[%s1688 + $0x48] sm:$0xf]
        %v1708 = vld [vmem:[%s1688 + $0x4c] sm:$0xf]
        %v1709 = vld [vmem:[%s1688 + $0x50] sm:$0xf]
        %v1710 = vld [vmem:[%s1688 + $0x54] sm:$0xf]
        %v1711 = vld [vmem:[%s1688 + $0x58] sm:$0xf]
        %v1712 = vld [vmem:[%s1688 + $0x5c] sm:$0xf]
        %v1713 = vld [vmem:[%s1688 + $0x60] sm:$0xf]
        %v1714 = vld [vmem:[%s1688 + $0x64] sm:$0xf]
        %v1715 = vld [vmem:[%s1688 + $0x68] sm:$0xf]
        %v1716 = vld [vmem:[%s1688 + $0x6c] sm:$0xf]
        %v1717 = vld [vmem:[%s1688 + $0x70] sm:$0xf]
        %v1718 = vld [vmem:[%s1688 + $0x74] sm:$0xf]
        %v1719 = vld [vmem:[%s1688 + $0x78] sm:$0xf]
        %v1720 = vld [vmem:[%s1688 + $0x7c] sm:$0xf]
        %v1721 = vld [vmem:[%s1688 + $0x80] sm:$0xf]
        %v1722 = vld [vmem:[%s1688 + $0x84] sm:$0xf]
        %v1723 = vld [vmem:[%s1688 + $0x88] sm:$0xf]
        %v1724 = vld [vmem:[%s1688 + $0x8c] sm:$0xf]
        %v1725 = vld [vmem:[%s1688 + $0x90] sm:$0xf]
        %v1726 = vld [vmem:[%s1688 + $0x94] sm:$0xf]
        %v1727 = vld [vmem:[%s1688 + $0x98] sm:$0xf]
        %v1728 = vld [vmem:[%s1688 + $0x9c] sm:$0xf]
        %v1729 = vld [vmem:[%s1688 + $0xa0] sm:$0xf]
        %v1730 = vld [vmem:[%s1688 + $0xa4] sm:$0xf]
        %v1731 = vld [vmem:[%s1688 + $0xa8] sm:$0xf]
        %v1732 = vld [vmem:[%s1688 + $0xac] sm:$0xf]
        %v1733 = vld [vmem:[%s1688 + $0xb0] sm:$0xf]
        %v1734 = vld [vmem:[%s1688 + $0xb4] sm:$0xf]
        %v1735 = vld [vmem:[%s1688 + $0xb8] sm:$0xf]
        %v1736 = vld [vmem:[%s1688 + $0xbc] sm:$0xf]
        %v1785 = vunpack.c.l.b16 %v1689
        %v1786 = vunpack.c.l.b16 %v1690
        %v1787 = vunpack.c.l.b16 %v1691
        %v1788 = vunpack.c.l.b16 %v1692
        %v1789 = vunpack.c.l.b16 %v1693
        %v1790 = vunpack.c.l.b16 %v1694
        %v1791 = vunpack.c.l.b16 %v1695
        %v1792 = vunpack.c.l.b16 %v1696
        %v1793 = vunpack.c.l.b16 %v1697
        %v1794 = vunpack.c.l.b16 %v1698
        %v1795 = vunpack.c.l.b16 %v1699
        %v1796 = vunpack.c.l.b16 %v1700
        %v1797 = vunpack.c.l.b16 %v1701
        %v1798 = vunpack.c.l.b16 %v1702
        %v1799 = vunpack.c.l.b16 %v1703
        %v1800 = vunpack.c.l.b16 %v1704
        %v1801 = vunpack.c.l.b16 %v1705
        %v1802 = vunpack.c.l.b16 %v1706
        %v1803 = vunpack.c.l.b16 %v1707
        %v1804 = vunpack.c.l.b16 %v1708
        %v1805 = vunpack.c.l.b16 %v1709
        %v1806 = vunpack.c.l.b16 %v1710
        %v1807 = vunpack.c.l.b16 %v1711
        %v1808 = vunpack.c.l.b16 %v1712
        %v1809 = vunpack.c.l.b16 %v1713
        %v1810 = vunpack.c.l.b16 %v1714
        %v1811 = vunpack.c.l.b16 %v1715
        %v1812 = vunpack.c.l.b16 %v1716
        %v1813 = vunpack.c.l.b16 %v1717
        %v1814 = vunpack.c.l.b16 %v1718
        %v1815 = vunpack.c.l.b16 %v1719
        %v1816 = vunpack.c.l.b16 %v1720
        %v1817 = vunpack.c.l.b16 %v1721
        %v1818 = vunpack.c.l.b16 %v1722
        %v1819 = vunpack.c.l.b16 %v1723
        %v1820 = vunpack.c.l.b16 %v1724
        %v1821 = vunpack.c.l.b16 %v1725
        %v1822 = vunpack.c.l.b16 %v1726
        %v1823 = vunpack.c.l.b16 %v1727
        %v1824 = vunpack.c.l.b16 %v1728
        %v1825 = vunpack.c.l.b16 %v1729
        %v1826 = vunpack.c.l.b16 %v1730
        %v1827 = vunpack.c.l.b16 %v1731
        %v1828 = vunpack.c.l.b16 %v1732
        %v1829 = vunpack.c.l.b16 %v1733
        %v1830 = vunpack.c.l.b16 %v1734
        %v1831 = vunpack.c.l.b16 %v1735
        %v1832 = vunpack.c.l.b16 %v1736
        %v1833 = vpack.c.b16 %v1786, %v1785
        %v1834 = vpack.c.b16 %v1788, %v1787
        %v1835 = vpack.c.b16 %v1790, %v1789
        %v1836 = vpack.c.b16 %v1792, %v1791
        %v1837 = vpack.c.b16 %v1794, %v1793
        %v1838 = vpack.c.b16 %v1796, %v1795
        %v1839 = vpack.c.b16 %v1798, %v1797
        %v1840 = vpack.c.b16 %v1800, %v1799
        %v1841 = vpack.c.b16 %v1802, %v1801
        %v1842 = vpack.c.b16 %v1804, %v1803
        %v1843 = vpack.c.b16 %v1806, %v1805
        %v1844 = vpack.c.b16 %v1808, %v1807
        %v1845 = vpack.c.b16 %v1810, %v1809
        %v1846 = vpack.c.b16 %v1812, %v1811
        %v1847 = vpack.c.b16 %v1814, %v1813
        %v1848 = vpack.c.b16 %v1816, %v1815
        %v1849 = vpack.c.b16 %v1818, %v1817
        %v1850 = vpack.c.b16 %v1820, %v1819
        %v1851 = vpack.c.b16 %v1822, %v1821
        %v1852 = vpack.c.b16 %v1824, %v1823
        %v1853 = vpack.c.b16 %v1826, %v1825
        %v1854 = vpack.c.b16 %v1828, %v1827
        %v1855 = vpack.c.b16 %v1830, %v1829
        %v1856 = vpack.c.b16 %v1832, %v1831
        %1881 = vmatprep.subr.bf16.mxu0 0
        %1882 = vmatpush1.bf16.msra.mxu0 %v1833
        %1883 = vmatprep.subr.bf16.mxu0 0
        %1884 = vmatpush1.bf16.msra.mxu0 %v1834
        %1885 = vmatprep.subr.bf16.mxu0 0
        %1886 = vmatpush1.bf16.msra.mxu0 %v1835
        %1887 = vmatprep.subr.bf16.mxu0 0
        %1888 = vmatpush1.bf16.msra.mxu0 %v1836
        %1889 = vmatprep.subr.bf16.mxu0 0
        %1890 = vmatpush1.bf16.msra.mxu0 %v1837
        %1891 = vmatprep.subr.bf16.mxu0 0
        %1892 = vmatpush1.bf16.msra.mxu0 %v1838
        %1893 = vmatprep.subr.bf16.mxu0 0
        %1894 = vmatpush1.bf16.msra.mxu0 %v1839
        %1895 = vmatprep.subr.bf16.mxu0 0
        %1896 = vmatpush1.bf16.msra.mxu0 %v1840
        %1897 = vmatprep.subr.bf16.mxu0 0
        %1898 = vmatpush1.bf16.msra.mxu0 %v1841
        %1899 = vmatprep.subr.bf16.mxu0 0
        %1900 = vmatpush1.bf16.msra.mxu0 %v1842
        %1901 = vmatprep.subr.bf16.mxu0 0
        %1902 = vmatpush1.bf16.msra.mxu0 %v1843
        %1903 = vmatprep.subr.bf16.mxu0 0
        %1904 = vmatpush1.bf16.msra.mxu0 %v1844
        %1905 = vmatprep.subr.bf16.mxu0 0
        %1906 = vmatpush1.bf16.msra.mxu0 %v1845
        %1907 = vmatprep.subr.bf16.mxu0 0
        %1908 = vmatpush1.bf16.msra.mxu0 %v1846
        %1909 = vmatprep.subr.bf16.mxu0 0
        %1910 = vmatpush1.bf16.msra.mxu0 %v1847
        %1911 = vmatprep.subr.bf16.mxu0 0
        %1912 = vmatpush1.bf16.msra.mxu0 %v1848
        %1913 = vmatprep.mubr.bf16.mxu0 %v1665
        %1914 = vmatmul.mubr.bf16.gmra.mrb[0].mxu0 %v1664
        %v1915 = vpop.f32.mrb[0].mxu0
        %v1916 = vadd.f32 0.0, %v1915
        %v1917 = vpop.f32.mrb[0].mxu0
        %v1918 = vpop.f32.mrb[0].mxu0
        %v1919 = vadd.f32 0.0, %v1918
        %v1920 = vpop.f32.mrb[0].mxu0
        %1921 = vmatprep.mubr.bf16.mxu0 %v1668
        %1922 = vmatmul.mubr.bf16.gmra.mrb[0].mxu0 %v1667
        %v1923 = vpop.f32.mrb[0].mxu0
        %v1924 = vadd.f32 0.0, %v1923
        %v1925 = vpop.f32.mrb[0].mxu0
        %v1926 = vpop.f32.mrb[0].mxu0
        %v1927 = vadd.f32 0.0, %v1926
        %v1928 = vpop.f32.mrb[0].mxu0
        %1929 = vmatprep.mubr.bf16.mxu0 %v1671
        %1930 = vmatmul.mubr.bf16.gmra.mrb[0].mxu0 %v1670
        %v1931 = vpop.f32.mrb[0].mxu0
        %v1932 = vadd.f32 0.0, %v1931
        %v1933 = vpop.f32.mrb[0].mxu0
        %v1934 = vpop.f32.mrb[0].mxu0
        %v1935 = vadd.f32 0.0, %v1934
        %v1936 = vpop.f32.mrb[0].mxu0
        %1937 = vmatprep.mubr.bf16.mxu0 %v1674
        %1938 = vmatmul.mubr.bf16.gmra.mrb[0].mxu0 %v1673
        %v1939 = vpop.f32.mrb[0].mxu0
        %v1940 = vadd.f32 0.0, %v1939
        %v1941 = vpop.f32.mrb[0].mxu0
        %v1942 = vpop.f32.mrb[0].mxu0
        %v1943 = vadd.f32 0.0, %v1942
        %v1944 = vpop.f32.mrb[0].mxu0
        %1945 = vmatprep.mubr.bf16.mxu0 %v1677
        %1946 = vmatmul.mubr.bf16.gmra.mrb[0].mxu0 %v1676
        %v1947 = vpop.f32.mrb[0].mxu0
        %v1948 = vadd.f32 0.0, %v1947
        %v1949 = vpop.f32.mrb[0].mxu0
        %v1950 = vpop.f32.mrb[0].mxu0
        %v1951 = vadd.f32 0.0, %v1950
        %v1952 = vpop.f32.mrb[0].mxu0
        %1953 = vmatprep.mubr.bf16.mxu0 %v1680
        %1954 = vmatmul.mubr.bf16.gmra.mrb[0].mxu0 %v1679
        %v1955 = vpop.f32.mrb[0].mxu0
        %v1956 = vadd.f32 0.0, %v1955
        %v1957 = vpop.f32.mrb[0].mxu0
        %v1958 = vpop.f32.mrb[0].mxu0
        %v1959 = vadd.f32 0.0, %v1958
        %v1960 = vpop.f32.mrb[0].mxu0
        %1961 = vmatprep.mubr.bf16.mxu0 %v1683
        %1962 = vmatmul.mubr.bf16.gmra.mrb[0].mxu0 %v1682
        %v1963 = vpop.f32.mrb[0].mxu0
        %v1964 = vadd.f32 0.0, %v1963
        %v1965 = vpop.f32.mrb[0].mxu0
        %v1966 = vpop.f32.mrb[0].mxu0
        %v1967 = vadd.f32 0.0, %v1966
        %v1968 = vpop.f32.mrb[0].mxu0
        %1969 = vmatprep.mubr.bf16.mxu0 %v1686
        %1970 = vmatmul.mubr.bf16.gmra.mrb[0].mxu0 %v1685
        %v1971 = vpop.f32.mrb[0].mxu0
        %v1972 = vadd.f32 0.0, %v1971
        %v1973 = vpop.f32.mrb[0].mxu0
        %v1974 = vpop.f32.mrb[0].mxu0
        %v1975 = vadd.f32 0.0, %v1974
        %v1976 = vpop.f32.mrb[0].mxu0
        %1977 = vdwg.mxu0
        %1978 = vmatprep.subr.bf16.mxu0 0
        %1979 = vmatpush1.bf16.msra.mxu0 %v1849
        %1980 = vmatprep.subr.bf16.mxu0 0
        %1981 = vmatpush1.bf16.msra.mxu0 %v1850
        %1982 = vmatprep.subr.bf16.mxu0 0
        %1983 = vmatpush1.bf16.msra.mxu0 %v1851
        %1984 = vmatprep.subr.bf16.mxu0 0
        %1985 = vmatpush1.bf16.msra.mxu0 %v1852
        %1986 = vmatprep.subr.bf16.mxu0 0
        %1987 = vmatpush1.bf16.msra.mxu0 %v1853
        %1988 = vmatprep.subr.bf16.mxu0 0
        %1989 = vmatpush1.bf16.msra.mxu0 %v1854
        %1990 = vmatprep.subr.bf16.mxu0 0
        %1991 = vmatpush1.bf16.msra.mxu0 %v1855
        %1992 = vmatprep.subr.bf16.mxu0 0
        %1993 = vmatpush1.bf16.msra.mxu0 %v1856
        %1994 = vmatprep.subr.bf16.mxu0 0
        %1995 = vmatpush1.bf16.msra.mxu0 0
        %1996 = vmatprep.subr.bf16.mxu0 0
        %1997 = vmatpush1.bf16.msra.mxu0 0
        %1998 = vmatprep.subr.bf16.mxu0 0
        %1999 = vmatpush1.bf16.msra.mxu0 0
        %2000 = vmatprep.subr.bf16.mxu0 0
        %2001 = vmatpush1.bf16.msra.mxu0 0
        %2002 = vmatprep.subr.bf16.mxu0 0
        %2003 = vmatpush1.bf16.msra.mxu0 0
        %2004 = vmatprep.subr.bf16.mxu0 0
        %2005 = vmatpush1.bf16.msra.mxu0 0
        %2006 = vmatprep.subr.bf16.mxu0 0
        %2007 = vmatpush1.bf16.msra.mxu0 0
        %2008 = vmatprep.subr.bf16.mxu0 0
        %2009 = vmatpush1.bf16.msra.mxu0 0
        %2010 = vmatprep.mubr.bf16.mxu0 0
        %2011 = vmatmul.mubr.bf16.gmra.mrb[0].mxu0 %v1666
        %v2012 = vpop.f32.mrb[0].mxu0
        %v2013 = vadd.f32 %v1916, %v2012
        %v2014 = vpop.f32.mrb[0].mxu0
        %v2015 = vpop.f32.mrb[0].mxu0
        %v2016 = vadd.f32 %v1919, %v2015
        %v2017 = vpop.f32.mrb[0].mxu0
        %2018 = vmatprep.mubr.bf16.mxu0 0
        %2019 = vmatmul.mubr.bf16.gmra.mrb[0].mxu0 %v1669
        %v2020 = vpop.f32.mrb[0].mxu0
        %v2021 = vadd.f32 %v1924, %v2020
        %v2022 = vpop.f32.mrb[0].mxu0
        %v2023 = vpop.f32.mrb[0].mxu0
        %v2024 = vadd.f32 %v1927, %v2023
        %v2025 = vpop.f32.mrb[0].mxu0
        %2026 = vmatprep.mubr.bf16.mxu0 0
        %2027 = vmatmul.mubr.bf16.gmra.mrb[0].mxu0 %v1672
        %v2028 = vpop.f32.mrb[0].mxu0
        %v2029 = vadd.f32 %v1932, %v2028
        %v2030 = vpop.f32.mrb[0].mxu0
        %v2031 = vpop.f32.mrb[0].mxu0
        %v2032 = vadd.f32 %v1935, %v2031
        %v2033 = vpop.f32.mrb[0].mxu0
        %2034 = vmatprep.mubr.bf16.mxu0 0
        %2035 = vmatmul.mubr.bf16.gmra.mrb[0].mxu0 %v1675
        %v2036 = vpop.f32.mrb[0].mxu0
        %v2037 = vadd.f32 %v1940, %v2036
        %v2038 = vpop.f32.mrb[0].mxu0
        %v2039 = vpop.f32.mrb[0].mxu0
        %v2040 = vadd.f32 %v1943, %v2039
        %v2041 = vpop.f32.mrb[0].mxu0
        %2042 = vmatprep.mubr.bf16.mxu0 0
        %2043 = vmatmul.mubr.bf16.gmra.mrb[0].mxu0 %v1678
        %v2044 = vpop.f32.mrb[0].mxu0
        %v2045 = vadd.f32 %v1948, %v2044
        %v2046 = vpop.f32.mrb[0].mxu0
        %v2047 = vpop.f32.mrb[0].mxu0
        %v2048 = vadd.f32 %v1951, %v2047
        %v2049 = vpop.f32.mrb[0].mxu0
        %2050 = vmatprep.mubr.bf16.mxu0 0
        %2051 = vmatmul.mubr.bf16.gmra.mrb[0].mxu0 %v1681
        %v2052 = vpop.f32.mrb[0].mxu0
        %v2053 = vadd.f32 %v1956, %v2052
        %v2054 = vpop.f32.mrb[0].mxu0
        %v2055 = vpop.f32.mrb[0].mxu0
        %v2056 = vadd.f32 %v1959, %v2055
        %v2057 = vpop.f32.mrb[0].mxu0
        %2058 = vmatprep.mubr.bf16.mxu0 0
        %2059 = vmatmul.mubr.bf16.gmra.mrb[0].mxu0 %v1684
        %v2060 = vpop.f32.mrb[0].mxu0
        %v2061 = vadd.f32 %v1964, %v2060
        %v2062 = vpop.f32.mrb[0].mxu0
        %v2063 = vpop.f32.mrb[0].mxu0
        %v2064 = vadd.f32 %v1967, %v2063
        %v2065 = vpop.f32.mrb[0].mxu0
        %2066 = vmatprep.mubr.bf16.mxu0 0
        %2067 = vmatmul.mubr.bf16.gmra.mrb[0].mxu0 %v1687
        %v2068 = vpop.f32.mrb[0].mxu0
        %v2069 = vadd.f32 %v1972, %v2068
        %v2070 = vpop.f32.mrb[0].mxu0
        %v2071 = vpop.f32.mrb[0].mxu0
        %v2072 = vadd.f32 %v1975, %v2071
        %v2073 = vpop.f32.mrb[0].mxu0
        %2074 = vdwg.mxu0
        %v2075 = vadd.f32 %v1601, %v2013
        %v2076 = vadd.f32 %v1604, %v2016
        %v2077 = vadd.f32 %v1609, %v2021
        %v2078 = vadd.f32 %v1612, %v2024
        %v2079 = vadd.f32 %v1617, %v2029
        %v2080 = vadd.f32 %v1620, %v2032
        %v2081 = vadd.f32 %v1625, %v2037
        %v2082 = vadd.f32 %v1628, %v2040
        %v2083 = vadd.f32 %v1633, %v2045
        %v2084 = vadd.f32 %v1636, %v2048
        %v2085 = vadd.f32 %v1641, %v2053
        %v2086 = vadd.f32 %v1644, %v2056
        %v2087 = vadd.f32 %v1649, %v2061
        %v2088 = vadd.f32 %v1652, %v2064
        %v2089 = vadd.f32 %v1657, %v2069
        %v2090 = vadd.f32 %v1660, %v2072
        %v2092 = vlaneseq
        %v2093 = vshrl.u32 %v2092, 7
        %v2094 = vsub.s32 0, %v2093
        %v2095 = vrot.slane %v329, %v2094
        %v2097 = vmul.f32 %v2075, %v2095
        %v2098 = vmul.f32 %v2076, %v2095
        %v2099 = vmul.f32 %v2077, %v2095
        %v2100 = vmul.f32 %v2078, %v2095
        %v2101 = vmul.f32 %v2079, %v2095
        %v2102 = vmul.f32 %v2080, %v2095
        %v2103 = vmul.f32 %v2081, %v2095
        %v2104 = vmul.f32 %v2082, %v2095
        %v2105 = vmul.f32 %v2083, %v2095
        %v2106 = vmul.f32 %v2084, %v2095
        %v2107 = vmul.f32 %v2085, %v2095
        %v2108 = vmul.f32 %v2086, %v2095
        %v2109 = vmul.f32 %v2087, %v2095
        %v2110 = vmul.f32 %v2088, %v2095
        %v2111 = vmul.f32 %v2089, %v2095
        %v2112 = vmul.f32 %v2090, %v2095
        %v2114 = vlaneseq
        %v2115 = vshrl.u32 %v2114, 7
        %v2116 = vsub.s32 0, %v2115
        %v2117 = vrot.slane %v330, %v2116
        %v2119 = vadd.f32 %v2097, %v2117
        %v2120 = vadd.f32 %v2098, %v2117
        %v2121 = vadd.f32 %v2099, %v2117
        %v2122 = vadd.f32 %v2100, %v2117
        %v2123 = vadd.f32 %v2101, %v2117
        %v2124 = vadd.f32 %v2102, %v2117
        %v2125 = vadd.f32 %v2103, %v2117
        %v2126 = vadd.f32 %v2104, %v2117
        %v2127 = vadd.f32 %v2105, %v2117
        %v2128 = vadd.f32 %v2106, %v2117
        %v2129 = vadd.f32 %v2107, %v2117
        %v2130 = vadd.f32 %v2108, %v2117
        %v2131 = vadd.f32 %v2109, %v2117
        %v2132 = vadd.f32 %v2110, %v2117
        %v2133 = vadd.f32 %v2111, %v2117
        %v2134 = vadd.f32 %v2112, %v2117
        %v2135 = vmax.f32 %v2119, 0.0
        %v2136 = vmax.f32 %v2120, 0.0
        %v2137 = vmax.f32 %v2121, 0.0
        %v2138 = vmax.f32 %v2122, 0.0
        %v2139 = vmax.f32 %v2123, 0.0
        %v2140 = vmax.f32 %v2124, 0.0
        %v2141 = vmax.f32 %v2125, 0.0
        %v2142 = vmax.f32 %v2126, 0.0
        %v2143 = vmax.f32 %v2127, 0.0
        %v2144 = vmax.f32 %v2128, 0.0
        %v2145 = vmax.f32 %v2129, 0.0
        %v2146 = vmax.f32 %v2130, 0.0
        %v2147 = vmax.f32 %v2131, 0.0
        %v2148 = vmax.f32 %v2132, 0.0
        %v2149 = vmax.f32 %v2133, 0.0
        %v2150 = vmax.f32 %v2134, 0.0
        %v2167 = vrot.slane %v2135, 7
        %v2168 = vrot.slane %v2136, 7
        %v2169 = vsel %vm453, %v2167, %v2168
        %v2170 = vrot.slane %v2137, 7
        %v2171 = vrot.slane %v2138, 7
        %v2172 = vsel %vm453, %v2170, %v2171
        %v2173 = vrot.slane %v2139, 7
        %v2174 = vrot.slane %v2140, 7
        %v2175 = vsel %vm453, %v2173, %v2174
        %v2176 = vrot.slane %v2141, 7
        %v2177 = vrot.slane %v2142, 7
        %v2178 = vsel %vm453, %v2176, %v2177
        %v2179 = vrot.slane %v2143, 7
        %v2180 = vrot.slane %v2144, 7
        %v2181 = vsel %vm453, %v2179, %v2180
        %v2182 = vrot.slane %v2145, 7
        %v2183 = vrot.slane %v2146, 7
        %v2184 = vsel %vm453, %v2182, %v2183
        %v2185 = vrot.slane %v2147, 7
        %v2186 = vrot.slane %v2148, 7
        %v2187 = vsel %vm453, %v2185, %v2186
        %v2188 = vrot.slane %v2149, 7
        %v2189 = vrot.slane %v2150, 7
        %v2190 = vsel %vm453, %v2188, %v2189
        %v2207 = vsel %vm453, 0.0, %v2167
        %v2208 = vsel %vm453, 0.0, %v2170
        %v2209 = vsel %vm453, 0.0, %v2173
        %v2210 = vsel %vm453, 0.0, %v2176
        %v2211 = vsel %vm453, 0.0, %v2179
        %v2212 = vsel %vm453, 0.0, %v2182
        %v2213 = vsel %vm453, 0.0, %v2185
        %v2214 = vsel %vm453, 0.0, %v2188
        %v2215 = vrot.slane %v2135, 1
        %v2216 = vrot.slane %v2136, 1
        %v2217 = vsel %vm502, %v2215, %v2216
        %v2218 = vrot.slane %v2137, 1
        %v2219 = vrot.slane %v2138, 1
        %v2220 = vsel %vm502, %v2218, %v2219
        %v2221 = vrot.slane %v2139, 1
        %v2222 = vrot.slane %v2140, 1
        %v2223 = vsel %vm502, %v2221, %v2222
        %v2224 = vrot.slane %v2141, 1
        %v2225 = vrot.slane %v2142, 1
        %v2226 = vsel %vm502, %v2224, %v2225
        %v2227 = vrot.slane %v2143, 1
        %v2228 = vrot.slane %v2144, 1
        %v2229 = vsel %vm502, %v2227, %v2228
        %v2230 = vrot.slane %v2145, 1
        %v2231 = vrot.slane %v2146, 1
        %v2232 = vsel %vm502, %v2230, %v2231
        %v2233 = vrot.slane %v2147, 1
        %v2234 = vrot.slane %v2148, 1
        %v2235 = vsel %vm502, %v2233, %v2234
        %v2236 = vrot.slane %v2149, 1
        %v2237 = vrot.slane %v2150, 1
        %v2238 = vsel %vm502, %v2236, %v2237
        %v2255 = vsel %vm502, %v2216, 0.0
        %v2256 = vsel %vm502, %v2219, 0.0
        %v2257 = vsel %vm502, %v2222, 0.0
        %v2258 = vsel %vm502, %v2225, 0.0
        %v2259 = vsel %vm502, %v2228, 0.0
        %v2260 = vsel %vm502, %v2231, 0.0
        %v2261 = vsel %vm502, %v2234, 0.0
        %v2262 = vsel %vm502, %v2237, 0.0
        %v2263 = vpack.c.bf16 %v2169, %v2207
        %v2264 = vpack.c.bf16 %v2172, %v2208
        %v2265 = vpack.c.bf16 %v2175, %v2209
        %v2266 = vpack.c.bf16 %v2178, %v2210
        %v2267 = vpack.c.bf16 %v2181, %v2211
        %v2268 = vpack.c.bf16 %v2184, %v2212
        %v2269 = vpack.c.bf16 %v2187, %v2213
        %v2270 = vpack.c.bf16 %v2190, %v2214
        %s2271 = scalar_lea.vmem [#allocation3], 24
        %2272 = vst [vmem:[%s2271] sm:$0xff] %v2263
        %2273 = vst [vmem:[%s2271 + $0x18] sm:$0xff] %v2264
        %2274 = vst [vmem:[%s2271 + $0x30] sm:$0xff] %v2265
        %2275 = vst [vmem:[%s2271 + $0x48] sm:$0xff] %v2266
        %2276 = vst [vmem:[%s2271 + $0x60] sm:$0xff] %v2267
        %2277 = vst [vmem:[%s2271 + $0x78] sm:$0xff] %v2268
        %2278 = vst [vmem:[%s2271 + $0x90] sm:$0xff] %v2269
        %2279 = vst [vmem:[%s2271 + $0xa8] sm:$0xff] %v2270
        %v2280 = vpack.c.bf16 %v2136, %v2135
        %v2281 = vpack.c.bf16 %v2138, %v2137
        %v2282 = vpack.c.bf16 %v2140, %v2139
        %v2283 = vpack.c.bf16 %v2142, %v2141
        %v2284 = vpack.c.bf16 %v2144, %v2143
        %v2285 = vpack.c.bf16 %v2146, %v2145
        %v2286 = vpack.c.bf16 %v2148, %v2147
        %v2287 = vpack.c.bf16 %v2150, %v2149
        %2288 = vst [vmem:[%s2271 + $0x8] sm:$0xff] %v2280
        %2289 = vst [vmem:[%s2271 + $0x20] sm:$0xff] %v2281
        %2290 = vst [vmem:[%s2271 + $0x38] sm:$0xff] %v2282
        %2291 = vst [vmem:[%s2271 + $0x50] sm:$0xff] %v2283
        %2292 = vst [vmem:[%s2271 + $0x68] sm:$0xff] %v2284
        %2293 = vst [vmem:[%s2271 + $0x80] sm:$0xff] %v2285
        %2294 = vst [vmem:[%s2271 + $0x98] sm:$0xff] %v2286
        %2295 = vst [vmem:[%s2271 + $0xb0] sm:$0xff] %v2287
        %v2296 = vpack.c.bf16 %v2255, %v2217
        %v2297 = vpack.c.bf16 %v2256, %v2220
        %v2298 = vpack.c.bf16 %v2257, %v2223
        %v2299 = vpack.c.bf16 %v2258, %v2226
        %v2300 = vpack.c.bf16 %v2259, %v2229
        %v2301 = vpack.c.bf16 %v2260, %v2232
        %v2302 = vpack.c.bf16 %v2261, %v2235
        %v2303 = vpack.c.bf16 %v2262, %v2238
        %2304 = vst [vmem:[%s2271 + $0x10] sm:$0xff] %v2296
        %2305 = vst [vmem:[%s2271 + $0x28] sm:$0xff] %v2297
        %2306 = vst [vmem:[%s2271 + $0x40] sm:$0xff] %v2298
        %2307 = vst [vmem:[%s2271 + $0x58] sm:$0xff] %v2299
        %2308 = vst [vmem:[%s2271 + $0x70] sm:$0xff] %v2300
        %2309 = vst [vmem:[%s2271 + $0x88] sm:$0xff] %v2301
        %2310 = vst [vmem:[%s2271 + $0xa0] sm:$0xff] %v2302
        %2311 = vst [vmem:[%s2271 + $0xb8] sm:$0xff] %v2303
        %s2312 = scalar_lea.vmem [#allocation2], 192
        %v2313 = vld [vmem:[%s2312] sm:$0xff]
        %v2314 = vld [vmem:[%s2312 + $0x8] sm:$0xff]
        %v2315 = vld [vmem:[%s2312 + $0x10] sm:$0xff]
        %v2316 = vld [vmem:[%s2312 + $0x18] sm:$0xff]
        %v2317 = vld [vmem:[%s2312 + $0x20] sm:$0xff]
        %v2318 = vld [vmem:[%s2312 + $0x28] sm:$0xff]
        %v2319 = vld [vmem:[%s2312 + $0x30] sm:$0xff]
        %v2320 = vld [vmem:[%s2312 + $0x38] sm:$0xff]
        %v2321 = vld [vmem:[%s2312 + $0x40] sm:$0xff]
        %v2322 = vld [vmem:[%s2312 + $0x48] sm:$0xff]
        %v2323 = vld [vmem:[%s2312 + $0x50] sm:$0xff]
        %v2324 = vld [vmem:[%s2312 + $0x58] sm:$0xff]
        %v2325 = vld [vmem:[%s2312 + $0x60] sm:$0xff]
        %v2326 = vld [vmem:[%s2312 + $0x68] sm:$0xff]
        %v2327 = vld [vmem:[%s2312 + $0x70] sm:$0xff]
        %v2328 = vld [vmem:[%s2312 + $0x78] sm:$0xff]
        %v2329 = vld [vmem:[%s2312 + $0x80] sm:$0xff]
        %v2330 = vld [vmem:[%s2312 + $0x88] sm:$0xff]
        %v2331 = vld [vmem:[%s2312 + $0x90] sm:$0xff]
        %v2332 = vld [vmem:[%s2312 + $0x98] sm:$0xff]
        %v2333 = vld [vmem:[%s2312 + $0xa0] sm:$0xff]
        %v2334 = vld [vmem:[%s2312 + $0xa8] sm:$0xff]
        %v2335 = vld [vmem:[%s2312 + $0xb0] sm:$0xff]
        %v2336 = vld [vmem:[%s2312 + $0xb8] sm:$0xff]
        %v2337 = vld [vmem:[#allocation7] sm:$0xf]
        %v2338 = vld [vmem:[#allocation7 + $0x4] sm:$0xf]
        %v2339 = vld [vmem:[#allocation7 + $0x8] sm:$0xf]
        %v2340 = vld [vmem:[#allocation7 + $0xc] sm:$0xf]
        %v2341 = vld [vmem:[#allocation7 + $0x10] sm:$0xf]
        %v2342 = vld [vmem:[#allocation7 + $0x14] sm:$0xf]
        %v2343 = vld [vmem:[#allocation7 + $0x18] sm:$0xf]
        %v2344 = vld [vmem:[#allocation7 + $0x1c] sm:$0xf]
        %v2345 = vld [vmem:[#allocation7 + $0x20] sm:$0xf]
        %v2346 = vld [vmem:[#allocation7 + $0x24] sm:$0xf]
        %v2347 = vld [vmem:[#allocation7 + $0x28] sm:$0xf]
        %v2348 = vld [vmem:[#allocation7 + $0x2c] sm:$0xf]
        %v2349 = vld [vmem:[#allocation7 + $0x30] sm:$0xf]
        %v2350 = vld [vmem:[#allocation7 + $0x34] sm:$0xf]
        %v2351 = vld [vmem:[#allocation7 + $0x38] sm:$0xf]
        %v2352 = vld [vmem:[#allocation7 + $0x3c] sm:$0xf]
        %v2353 = vld [vmem:[#allocation7 + $0x40] sm:$0xf]
        %v2354 = vld [vmem:[#allocation7 + $0x44] sm:$0xf]
        %v2355 = vld [vmem:[#allocation7 + $0x48] sm:$0xf]
        %v2356 = vld [vmem:[#allocation7 + $0x4c] sm:$0xf]
        %v2357 = vld [vmem:[#allocation7 + $0x50] sm:$0xf]
        %v2358 = vld [vmem:[#allocation7 + $0x54] sm:$0xf]
        %v2359 = vld [vmem:[#allocation7 + $0x58] sm:$0xf]
        %v2360 = vld [vmem:[#allocation7 + $0x5c] sm:$0xf]
        %v2361 = vld [vmem:[#allocation7 + $0x60] sm:$0xf]
        %v2362 = vld [vmem:[#allocation7 + $0x64] sm:$0xf]
        %v2363 = vld [vmem:[#allocation7 + $0x68] sm:$0xf]
        %v2364 = vld [vmem:[#allocation7 + $0x6c] sm:$0xf]
        %v2365 = vld [vmem:[#allocation7 + $0x70] sm:$0xf]
        %v2366 = vld [vmem:[#allocation7 + $0x74] sm:$0xf]
        %v2367 = vld [vmem:[#allocation7 + $0x78] sm:$0xf]
        %v2368 = vld [vmem:[#allocation7 + $0x7c] sm:$0xf]
        %v2369 = vld [vmem:[#allocation7 + $0x80] sm:$0xf]
        %v2370 = vld [vmem:[#allocation7 + $0x84] sm:$0xf]
        %v2371 = vld [vmem:[#allocation7 + $0x88] sm:$0xf]
        %v2372 = vld [vmem:[#allocation7 + $0x8c] sm:$0xf]
        %v2373 = vld [vmem:[#allocation7 + $0x90] sm:$0xf]
        %v2374 = vld [vmem:[#allocation7 + $0x94] sm:$0xf]
        %v2375 = vld [vmem:[#allocation7 + $0x98] sm:$0xf]
        %v2376 = vld [vmem:[#allocation7 + $0x9c] sm:$0xf]
        %v2377 = vld [vmem:[#allocation7 + $0xa0] sm:$0xf]
        %v2378 = vld [vmem:[#allocation7 + $0xa4] sm:$0xf]
        %v2379 = vld [vmem:[#allocation7 + $0xa8] sm:$0xf]
        %v2380 = vld [vmem:[#allocation7 + $0xac] sm:$0xf]
        %v2381 = vld [vmem:[#allocation7 + $0xb0] sm:$0xf]
        %v2382 = vld [vmem:[#allocation7 + $0xb4] sm:$0xf]
        %v2383 = vld [vmem:[#allocation7 + $0xb8] sm:$0xf]
        %v2384 = vld [vmem:[#allocation7 + $0xbc] sm:$0xf]
        %v2385 = vld [vmem:[%s801] sm:$0xff]
        %v2386 = vld [vmem:[%s801 + $0x8] sm:$0xff]
        %v2387 = vld [vmem:[%s801 + $0x10] sm:$0xff]
        %v2388 = vld [vmem:[%s801 + $0x18] sm:$0xff]
        %v2389 = vld [vmem:[%s801 + $0x20] sm:$0xff]
        %v2390 = vld [vmem:[%s801 + $0x28] sm:$0xff]
        %v2391 = vld [vmem:[%s801 + $0x30] sm:$0xff]
        %v2392 = vld [vmem:[%s801 + $0x38] sm:$0xff]
        %v2393 = vld [vmem:[%s801 + $0x40] sm:$0xff]
        %v2394 = vld [vmem:[%s801 + $0x48] sm:$0xff]
        %v2395 = vld [vmem:[%s801 + $0x50] sm:$0xff]
        %v2396 = vld [vmem:[%s801 + $0x58] sm:$0xff]
        %v2397 = vld [vmem:[%s801 + $0x60] sm:$0xff]
        %v2398 = vld [vmem:[%s801 + $0x68] sm:$0xff]
        %v2399 = vld [vmem:[%s801 + $0x70] sm:$0xff]
        %v2400 = vld [vmem:[%s801 + $0x78] sm:$0xff]
        %v2401 = vld [vmem:[%s801 + $0x80] sm:$0xff]
        %v2402 = vld [vmem:[%s801 + $0x88] sm:$0xff]
        %v2403 = vld [vmem:[%s801 + $0x90] sm:$0xff]
        %v2404 = vld [vmem:[%s801 + $0x98] sm:$0xff]
        %v2405 = vld [vmem:[%s801 + $0xa0] sm:$0xff]
        %v2406 = vld [vmem:[%s801 + $0xa8] sm:$0xff]
        %v2407 = vld [vmem:[%s801 + $0xb0] sm:$0xff]
        %v2408 = vld [vmem:[%s801 + $0xb8] sm:$0xff]
        %v2409 = vld [vmem:[%s938] sm:$0xf]
        %v2410 = vld [vmem:[%s938 + $0x4] sm:$0xf]
        %v2411 = vld [vmem:[%s938 + $0x8] sm:$0xf]
        %v2412 = vld [vmem:[%s938 + $0xc] sm:$0xf]
        %v2413 = vld [vmem:[%s938 + $0x10] sm:$0xf]
        %v2414 = vld [vmem:[%s938 + $0x14] sm:$0xf]
        %v2415 = vld [vmem:[%s938 + $0x18] sm:$0xf]
        %v2416 = vld [vmem:[%s938 + $0x1c] sm:$0xf]
        %v2417 = vld [vmem:[%s938 + $0x20] sm:$0xf]
        %v2418 = vld [vmem:[%s938 + $0x24] sm:$0xf]
        %v2419 = vld [vmem:[%s938 + $0x28] sm:$0xf]
        %v2420 = vld [vmem:[%s938 + $0x2c] sm:$0xf]
        %v2421 = vld [vmem:[%s938 + $0x30] sm:$0xf]
        %v2422 = vld [vmem:[%s938 + $0x34] sm:$0xf]
        %v2423 = vld [vmem:[%s938 + $0x38] sm:$0xf]
        %v2424 = vld [vmem:[%s938 + $0x3c] sm:$0xf]
        %v2425 = vld [vmem:[%s938 + $0x40] sm:$0xf]
        %v2426 = vld [vmem:[%s938 + $0x44] sm:$0xf]
        %v2427 = vld [vmem:[%s938 + $0x48] sm:$0xf]
        %v2428 = vld [vmem:[%s938 + $0x4c] sm:$0xf]
        %v2429 = vld [vmem:[%s938 + $0x50] sm:$0xf]
        %v2430 = vld [vmem:[%s938 + $0x54] sm:$0xf]
        %v2431 = vld [vmem:[%s938 + $0x58] sm:$0xf]
        %v2432 = vld [vmem:[%s938 + $0x5c] sm:$0xf]
        %v2433 = vld [vmem:[%s938 + $0x60] sm:$0xf]
        %v2434 = vld [vmem:[%s938 + $0x64] sm:$0xf]
        %v2435 = vld [vmem:[%s938 + $0x68] sm:$0xf]
        %v2436 = vld [vmem:[%s938 + $0x6c] sm:$0xf]
        %v2437 = vld [vmem:[%s938 + $0x70] sm:$0xf]
        %v2438 = vld [vmem:[%s938 + $0x74] sm:$0xf]
        %v2439 = vld [vmem:[%s938 + $0x78] sm:$0xf]
        %v2440 = vld [vmem:[%s938 + $0x7c] sm:$0xf]
        %v2441 = vld [vmem:[%s938 + $0x80] sm:$0xf]
        %v2442 = vld [vmem:[%s938 + $0x84] sm:$0xf]
        %v2443 = vld [vmem:[%s938 + $0x88] sm:$0xf]
        %v2444 = vld [vmem:[%s938 + $0x8c] sm:$0xf]
        %v2445 = vld [vmem:[%s938 + $0x90] sm:$0xf]
        %v2446 = vld [vmem:[%s938 + $0x94] sm:$0xf]
        %v2447 = vld [vmem:[%s938 + $0x98] sm:$0xf]
        %v2448 = vld [vmem:[%s938 + $0x9c] sm:$0xf]
        %v2449 = vld [vmem:[%s938 + $0xa0] sm:$0xf]
        %v2450 = vld [vmem:[%s938 + $0xa4] sm:$0xf]
        %v2451 = vld [vmem:[%s938 + $0xa8] sm:$0xf]
        %v2452 = vld [vmem:[%s938 + $0xac] sm:$0xf]
        %v2453 = vld [vmem:[%s938 + $0xb0] sm:$0xf]
        %v2454 = vld [vmem:[%s938 + $0xb4] sm:$0xf]
        %v2455 = vld [vmem:[%s938 + $0xb8] sm:$0xf]
        %v2456 = vld [vmem:[%s938 + $0xbc] sm:$0xf]
        %v2505 = vunpack.c.l.b16 %v2409
        %v2506 = vunpack.c.l.b16 %v2410
        %v2507 = vunpack.c.l.b16 %v2411
        %v2508 = vunpack.c.l.b16 %v2412
        %v2509 = vunpack.c.l.b16 %v2413
        %v2510 = vunpack.c.l.b16 %v2414
        %v2511 = vunpack.c.l.b16 %v2415
        %v2512 = vunpack.c.l.b16 %v2416
        %v2513 = vunpack.c.l.b16 %v2417
        %v2514 = vunpack.c.l.b16 %v2418
        %v2515 = vunpack.c.l.b16 %v2419
        %v2516 = vunpack.c.l.b16 %v2420
        %v2517 = vunpack.c.l.b16 %v2421
        %v2518 = vunpack.c.l.b16 %v2422
        %v2519 = vunpack.c.l.b16 %v2423
        %v2520 = vunpack.c.l.b16 %v2424
        %v2521 = vunpack.c.l.b16 %v2425
        %v2522 = vunpack.c.l.b16 %v2426
        %v2523 = vunpack.c.l.b16 %v2427
        %v2524 = vunpack.c.l.b16 %v2428
        %v2525 = vunpack.c.l.b16 %v2429
        %v2526 = vunpack.c.l.b16 %v2430
        %v2527 = vunpack.c.l.b16 %v2431
        %v2528 = vunpack.c.l.b16 %v2432
        %v2529 = vunpack.c.l.b16 %v2433
        %v2530 = vunpack.c.l.b16 %v2434
        %v2531 = vunpack.c.l.b16 %v2435
        %v2532 = vunpack.c.l.b16 %v2436
        %v2533 = vunpack.c.l.b16 %v2437
        %v2534 = vunpack.c.l.b16 %v2438
        %v2535 = vunpack.c.l.b16 %v2439
        %v2536 = vunpack.c.l.b16 %v2440
        %v2537 = vunpack.c.l.b16 %v2441
        %v2538 = vunpack.c.l.b16 %v2442
        %v2539 = vunpack.c.l.b16 %v2443
        %v2540 = vunpack.c.l.b16 %v2444
        %v2541 = vunpack.c.l.b16 %v2445
        %v2542 = vunpack.c.l.b16 %v2446
        %v2543 = vunpack.c.l.b16 %v2447
        %v2544 = vunpack.c.l.b16 %v2448
        %v2545 = vunpack.c.l.b16 %v2449
        %v2546 = vunpack.c.l.b16 %v2450
        %v2547 = vunpack.c.l.b16 %v2451
        %v2548 = vunpack.c.l.b16 %v2452
        %v2549 = vunpack.c.l.b16 %v2453
        %v2550 = vunpack.c.l.b16 %v2454
        %v2551 = vunpack.c.l.b16 %v2455
        %v2552 = vunpack.c.l.b16 %v2456
        %v2553 = vpack.c.b16 %v2506, %v2505
        %v2554 = vpack.c.b16 %v2508, %v2507
        %v2555 = vpack.c.b16 %v2510, %v2509
        %v2556 = vpack.c.b16 %v2512, %v2511
        %v2557 = vpack.c.b16 %v2514, %v2513
        %v2558 = vpack.c.b16 %v2516, %v2515
        %v2559 = vpack.c.b16 %v2518, %v2517
        %v2560 = vpack.c.b16 %v2520, %v2519
        %v2561 = vpack.c.b16 %v2522, %v2521
        %v2562 = vpack.c.b16 %v2524, %v2523
        %v2563 = vpack.c.b16 %v2526, %v2525
        %v2564 = vpack.c.b16 %v2528, %v2527
        %v2565 = vpack.c.b16 %v2530, %v2529
        %v2566 = vpack.c.b16 %v2532, %v2531
        %v2567 = vpack.c.b16 %v2534, %v2533
        %v2568 = vpack.c.b16 %v2536, %v2535
        %v2569 = vpack.c.b16 %v2538, %v2537
        %v2570 = vpack.c.b16 %v2540, %v2539
        %v2571 = vpack.c.b16 %v2542, %v2541
        %v2572 = vpack.c.b16 %v2544, %v2543
        %v2573 = vpack.c.b16 %v2546, %v2545
        %v2574 = vpack.c.b16 %v2548, %v2547
        %v2575 = vpack.c.b16 %v2550, %v2549
        %v2576 = vpack.c.b16 %v2552, %v2551
        %2601 = vmatprep.subr.bf16.mxu0 0
        %2602 = vmatpush1.bf16.msra.mxu0 %v2553
        %2603 = vmatprep.subr.bf16.mxu0 0
        %2604 = vmatpush1.bf16.msra.mxu0 %v2554
        %2605 = vmatprep.subr.bf16.mxu0 0
        %2606 = vmatpush1.bf16.msra.mxu0 %v2555
        %2607 = vmatprep.subr.bf16.mxu0 0
        %2608 = vmatpush1.bf16.msra.mxu0 %v2556
        %2609 = vmatprep.subr.bf16.mxu0 0
        %2610 = vmatpush1.bf16.msra.mxu0 %v2557
        %2611 = vmatprep.subr.bf16.mxu0 0
        %2612 = vmatpush1.bf16.msra.mxu0 %v2558
        %2613 = vmatprep.subr.bf16.mxu0 0
        %2614 = vmatpush1.bf16.msra.mxu0 %v2559
        %2615 = vmatprep.subr.bf16.mxu0 0
        %2616 = vmatpush1.bf16.msra.mxu0 %v2560
        %2617 = vmatprep.subr.bf16.mxu0 0
        %2618 = vmatpush1.bf16.msra.mxu0 %v2561
        %2619 = vmatprep.subr.bf16.mxu0 0
        %2620 = vmatpush1.bf16.msra.mxu0 %v2562
        %2621 = vmatprep.subr.bf16.mxu0 0
        %2622 = vmatpush1.bf16.msra.mxu0 %v2563
        %2623 = vmatprep.subr.bf16.mxu0 0
        %2624 = vmatpush1.bf16.msra.mxu0 %v2564
        %2625 = vmatprep.subr.bf16.mxu0 0
        %2626 = vmatpush1.bf16.msra.mxu0 %v2565
        %2627 = vmatprep.subr.bf16.mxu0 0
        %2628 = vmatpush1.bf16.msra.mxu0 %v2566
        %2629 = vmatprep.subr.bf16.mxu0 0
        %2630 = vmatpush1.bf16.msra.mxu0 %v2567
        %2631 = vmatprep.subr.bf16.mxu0 0
        %2632 = vmatpush1.bf16.msra.mxu0 %v2568
        %2633 = vmatprep.mubr.bf16.mxu0 %v2386
        %2634 = vmatmul.mubr.bf16.gmra.mrb[0].mxu0 %v2385
        %v2635 = vpop.f32.mrb[0].mxu0
        %v2636 = vadd.f32 0.0, %v2635
        %v2637 = vpop.f32.mrb[0].mxu0
        %v2638 = vpop.f32.mrb[0].mxu0
        %v2639 = vadd.f32 0.0, %v2638
        %v2640 = vpop.f32.mrb[0].mxu0
        %2641 = vmatprep.mubr.bf16.mxu0 %v2389
        %2642 = vmatmul.mubr.bf16.gmra.mrb[0].mxu0 %v2388
        %v2643 = vpop.f32.mrb[0].mxu0
        %v2644 = vadd.f32 0.0, %v2643
        %v2645 = vpop.f32.mrb[0].mxu0
        %v2646 = vpop.f32.mrb[0].mxu0
        %v2647 = vadd.f32 0.0, %v2646
        %v2648 = vpop.f32.mrb[0].mxu0
        %2649 = vmatprep.mubr.bf16.mxu0 %v2392
        %2650 = vmatmul.mubr.bf16.gmra.mrb[0].mxu0 %v2391
        %v2651 = vpop.f32.mrb[0].mxu0
        %v2652 = vadd.f32 0.0, %v2651
        %v2653 = vpop.f32.mrb[0].mxu0
        %v2654 = vpop.f32.mrb[0].mxu0
        %v2655 = vadd.f32 0.0, %v2654
        %v2656 = vpop.f32.mrb[0].mxu0
        %2657 = vmatprep.mubr.bf16.mxu0 %v2395
        %2658 = vmatmul.mubr.bf16.gmra.mrb[0].mxu0 %v2394
        %v2659 = vpop.f32.mrb[0].mxu0
        %v2660 = vadd.f32 0.0, %v2659
        %v2661 = vpop.f32.mrb[0].mxu0
        %v2662 = vpop.f32.mrb[0].mxu0
        %v2663 = vadd.f32 0.0, %v2662
        %v2664 = vpop.f32.mrb[0].mxu0
        %2665 = vmatprep.mubr.bf16.mxu0 %v2398
        %2666 = vmatmul.mubr.bf16.gmra.mrb[0].mxu0 %v2397
        %v2667 = vpop.f32.mrb[0].mxu0
        %v2668 = vadd.f32 0.0, %v2667
        %v2669 = vpop.f32.mrb[0].mxu0
        %v2670 = vpop.f32.mrb[0].mxu0
        %v2671 = vadd.f32 0.0, %v2670
        %v2672 = vpop.f32.mrb[0].mxu0
        %2673 = vmatprep.mubr.bf16.mxu0 %v2401
        %2674 = vmatmul.mubr.bf16.gmra.mrb[0].mxu0 %v2400
        %v2675 = vpop.f32.mrb[0].mxu0
        %v2676 = vadd.f32 0.0, %v2675
        %v2677 = vpop.f32.mrb[0].mxu0
        %v2678 = vpop.f32.mrb[0].mxu0
        %v2679 = vadd.f32 0.0, %v2678
        %v2680 = vpop.f32.mrb[0].mxu0
        %2681 = vmatprep.mubr.bf16.mxu0 %v2404
        %2682 = vmatmul.mubr.bf16.gmra.mrb[0].mxu0 %v2403
        %v2683 = vpop.f32.mrb[0].mxu0
        %v2684 = vadd.f32 0.0, %v2683
        %v2685 = vpop.f32.mrb[0].mxu0
        %v2686 = vpop.f32.mrb[0].mxu0
        %v2687 = vadd.f32 0.0, %v2686
        %v2688 = vpop.f32.mrb[0].mxu0
        %2689 = vmatprep.mubr.bf16.mxu0 %v2407
        %2690 = vmatmul.mubr.bf16.gmra.mrb[0].mxu0 %v2406
        %v2691 = vpop.f32.mrb[0].mxu0
        %v2692 = vadd.f32 0.0, %v2691
        %v2693 = vpop.f32.mrb[0].mxu0
        %v2694 = vpop.f32.mrb[0].mxu0
        %v2695 = vadd.f32 0.0, %v2694
        %v2696 = vpop.f32.mrb[0].mxu0
        %2697 = vdwg.mxu0
        %2698 = vmatprep.subr.bf16.mxu0 0
        %2699 = vmatpush1.bf16.msra.mxu0 %v2569
        %2700 = vmatprep.subr.bf16.mxu0 0
        %2701 = vmatpush1.bf16.msra.mxu0 %v2570
        %2702 = vmatprep.subr.bf16.mxu0 0
        %2703 = vmatpush1.bf16.msra.mxu0 %v2571
        %2704 = vmatprep.subr.bf16.mxu0 0
        %2705 = vmatpush1.bf16.msra.mxu0 %v2572
        %2706 = vmatprep.subr.bf16.mxu0 0
        %2707 = vmatpush1.bf16.msra.mxu0 %v2573
        %2708 = vmatprep.subr.bf16.mxu0 0
        %2709 = vmatpush1.bf16.msra.mxu0 %v2574
        %2710 = vmatprep.subr.bf16.mxu0 0
        %2711 = vmatpush1.bf16.msra.mxu0 %v2575
        %2712 = vmatprep.subr.bf16.mxu0 0
        %2713 = vmatpush1.bf16.msra.mxu0 %v2576
        %2714 = vmatprep.subr.bf16.mxu0 0
        %2715 = vmatpush1.bf16.msra.mxu0 0
        %2716 = vmatprep.subr.bf16.mxu0 0
        %2717 = vmatpush1.bf16.msra.mxu0 0
        %2718 = vmatprep.subr.bf16.mxu0 0
        %2719 = vmatpush1.bf16.msra.mxu0 0
        %2720 = vmatprep.subr.bf16.mxu0 0
        %2721 = vmatpush1.bf16.msra.mxu0 0
        %2722 = vmatprep.subr.bf16.mxu0 0
        %2723 = vmatpush1.bf16.msra.mxu0 0
        %2724 = vmatprep.subr.bf16.mxu0 0
        %2725 = vmatpush1.bf16.msra.mxu0 0
        %2726 = vmatprep.subr.bf16.mxu0 0
        %2727 = vmatpush1.bf16.msra.mxu0 0
        %2728 = vmatprep.subr.bf16.mxu0 0
        %2729 = vmatpush1.bf16.msra.mxu0 0
        %2730 = vmatprep.mubr.bf16.mxu0 0
        %2731 = vmatmul.mubr.bf16.gmra.mrb[0].mxu0 %v2387
        %v2732 = vpop.f32.mrb[0].mxu0
        %v2733 = vadd.f32 %v2636, %v2732
        %v2734 = vpop.f32.mrb[0].mxu0
        %v2735 = vpop.f32.mrb[0].mxu0
        %v2736 = vadd.f32 %v2639, %v2735
        %v2737 = vpop.f32.mrb[0].mxu0
        %2738 = vmatprep.mubr.bf16.mxu0 0
        %2739 = vmatmul.mubr.bf16.gmra.mrb[0].mxu0 %v2390
        %v2740 = vpop.f32.mrb[0].mxu0
        %v2741 = vadd.f32 %v2644, %v2740
        %v2742 = vpop.f32.mrb[0].mxu0
        %v2743 = vpop.f32.mrb[0].mxu0
        %v2744 = vadd.f32 %v2647, %v2743
        %v2745 = vpop.f32.mrb[0].mxu0
        %2746 = vmatprep.mubr.bf16.mxu0 0
        %2747 = vmatmul.mubr.bf16.gmra.mrb[0].mxu0 %v2393
        %v2748 = vpop.f32.mrb[0].mxu0
        %v2749 = vadd.f32 %v2652, %v2748
        %v2750 = vpop.f32.mrb[0].mxu0
        %v2751 = vpop.f32.mrb[0].mxu0
        %v2752 = vadd.f32 %v2655, %v2751
        %v2753 = vpop.f32.mrb[0].mxu0
        %2754 = vmatprep.mubr.bf16.mxu0 0
        %2755 = vmatmul.mubr.bf16.gmra.mrb[0].mxu0 %v2396
        %v2756 = vpop.f32.mrb[0].mxu0
        %v2757 = vadd.f32 %v2660, %v2756
        %v2758 = vpop.f32.mrb[0].mxu0
        %v2759 = vpop.f32.mrb[0].mxu0
        %v2760 = vadd.f32 %v2663, %v2759
        %v2761 = vpop.f32.mrb[0].mxu0
        %2762 = vmatprep.mubr.bf16.mxu0 0
        %2763 = vmatmul.mubr.bf16.gmra.mrb[0].mxu0 %v2399
        %v2764 = vpop.f32.mrb[0].mxu0
        %v2765 = vadd.f32 %v2668, %v2764
        %v2766 = vpop.f32.mrb[0].mxu0
        %v2767 = vpop.f32.mrb[0].mxu0
        %v2768 = vadd.f32 %v2671, %v2767
        %v2769 = vpop.f32.mrb[0].mxu0
        %2770 = vmatprep.mubr.bf16.mxu0 0
        %2771 = vmatmul.mubr.bf16.gmra.mrb[0].mxu0 %v2402
        %v2772 = vpop.f32.mrb[0].mxu0
        %v2773 = vadd.f32 %v2676, %v2772
        %v2774 = vpop.f32.mrb[0].mxu0
        %v2775 = vpop.f32.mrb[0].mxu0
        %v2776 = vadd.f32 %v2679, %v2775
        %v2777 = vpop.f32.mrb[0].mxu0
        %2778 = vmatprep.mubr.bf16.mxu0 0
        %2779 = vmatmul.mubr.bf16.gmra.mrb[0].mxu0 %v2405
        %v2780 = vpop.f32.mrb[0].mxu0
        %v2781 = vadd.f32 %v2684, %v2780
        %v2782 = vpop.f32.mrb[0].mxu0
        %v2783 = vpop.f32.mrb[0].mxu0
        %v2784 = vadd.f32 %v2687, %v2783
        %v2785 = vpop.f32.mrb[0].mxu0
        %2786 = vmatprep.mubr.bf16.mxu0 0
        %2787 = vmatmul.mubr.bf16.gmra.mrb[0].mxu0 %v2408
        %v2788 = vpop.f32.mrb[0].mxu0
        %v2789 = vadd.f32 %v2692, %v2788
        %v2790 = vpop.f32.mrb[0].mxu0
        %v2791 = vpop.f32.mrb[0].mxu0
        %v2792 = vadd.f32 %v2695, %v2791
        %v2793 = vpop.f32.mrb[0].mxu0
        %2794 = vdwg.mxu0
        %v2843 = vunpack.c.l.b16 %v2337
        %v2844 = vunpack.c.l.b16 %v2338
        %v2845 = vunpack.c.l.b16 %v2339
        %v2846 = vunpack.c.l.b16 %v2340
        %v2847 = vunpack.c.l.b16 %v2341
        %v2848 = vunpack.c.l.b16 %v2342
        %v2849 = vunpack.c.l.b16 %v2343
        %v2850 = vunpack.c.l.b16 %v2344
        %v2851 = vunpack.c.l.b16 %v2345
        %v2852 = vunpack.c.l.b16 %v2346
        %v2853 = vunpack.c.l.b16 %v2347
        %v2854 = vunpack.c.l.b16 %v2348
        %v2855 = vunpack.c.l.b16 %v2349
        %v2856 = vunpack.c.l.b16 %v2350
        %v2857 = vunpack.c.l.b16 %v2351
        %v2858 = vunpack.c.l.b16 %v2352
        %v2859 = vunpack.c.l.b16 %v2353
        %v2860 = vunpack.c.l.b16 %v2354
        %v2861 = vunpack.c.l.b16 %v2355
        %v2862 = vunpack.c.l.b16 %v2356
        %v2863 = vunpack.c.l.b16 %v2357
        %v2864 = vunpack.c.l.b16 %v2358
        %v2865 = vunpack.c.l.b16 %v2359
        %v2866 = vunpack.c.l.b16 %v2360
        %v2867 = vunpack.c.l.b16 %v2361
        %v2868 = vunpack.c.l.b16 %v2362
        %v2869 = vunpack.c.l.b16 %v2363
        %v2870 = vunpack.c.l.b16 %v2364
        %v2871 = vunpack.c.l.b16 %v2365
        %v2872 = vunpack.c.l.b16 %v2366
        %v2873 = vunpack.c.l.b16 %v2367
        %v2874 = vunpack.c.l.b16 %v2368
        %v2875 = vunpack.c.l.b16 %v2369
        %v2876 = vunpack.c.l.b16 %v2370
        %v2877 = vunpack.c.l.b16 %v2371
        %v2878 = vunpack.c.l.b16 %v2372
        %v2879 = vunpack.c.l.b16 %v2373
        %v2880 = vunpack.c.l.b16 %v2374
        %v2881 = vunpack.c.l.b16 %v2375
        %v2882 = vunpack.c.l.b16 %v2376
        %v2883 = vunpack.c.l.b16 %v2377
        %v2884 = vunpack.c.l.b16 %v2378
        %v2885 = vunpack.c.l.b16 %v2379
        %v2886 = vunpack.c.l.b16 %v2380
        %v2887 = vunpack.c.l.b16 %v2381
        %v2888 = vunpack.c.l.b16 %v2382
        %v2889 = vunpack.c.l.b16 %v2383
        %v2890 = vunpack.c.l.b16 %v2384
        %v2891 = vpack.c.b16 %v2844, %v2843
        %v2892 = vpack.c.b16 %v2846, %v2845
        %v2893 = vpack.c.b16 %v2848, %v2847
        %v2894 = vpack.c.b16 %v2850, %v2849
        %v2895 = vpack.c.b16 %v2852, %v2851
        %v2896 = vpack.c.b16 %v2854, %v2853
        %v2897 = vpack.c.b16 %v2856, %v2855
        %v2898 = vpack.c.b16 %v2858, %v2857
        %v2899 = vpack.c.b16 %v2860, %v2859
        %v2900 = vpack.c.b16 %v2862, %v2861
        %v2901 = vpack.c.b16 %v2864, %v2863
        %v2902 = vpack.c.b16 %v2866, %v2865
        %v2903 = vpack.c.b16 %v2868, %v2867
        %v2904 = vpack.c.b16 %v2870, %v2869
        %v2905 = vpack.c.b16 %v2872, %v2871
        %v2906 = vpack.c.b16 %v2874, %v2873
        %v2907 = vpack.c.b16 %v2876, %v2875
        %v2908 = vpack.c.b16 %v2878, %v2877
        %v2909 = vpack.c.b16 %v2880, %v2879
        %v2910 = vpack.c.b16 %v2882, %v2881
        %v2911 = vpack.c.b16 %v2884, %v2883
        %v2912 = vpack.c.b16 %v2886, %v2885
        %v2913 = vpack.c.b16 %v2888, %v2887
        %v2914 = vpack.c.b16 %v2890, %v2889
        %2939 = vmatprep.subr.bf16.mxu0 0
        %2940 = vmatpush1.bf16.msra.mxu0 %v2891
        %2941 = vmatprep.subr.bf16.mxu0 0
        %2942 = vmatpush1.bf16.msra.mxu0 %v2892
        %2943 = vmatprep.subr.bf16.mxu0 0
        %2944 = vmatpush1.bf16.msra.mxu0 %v2893
        %2945 = vmatprep.subr.bf16.mxu0 0
        %2946 = vmatpush1.bf16.msra.mxu0 %v2894
        %2947 = vmatprep.subr.bf16.mxu0 0
        %2948 = vmatpush1.bf16.msra.mxu0 %v2895
        %2949 = vmatprep.subr.bf16.mxu0 0
        %2950 = vmatpush1.bf16.msra.mxu0 %v2896
        %2951 = vmatprep.subr.bf16.mxu0 0
        %2952 = vmatpush1.bf16.msra.mxu0 %v2897
        %2953 = vmatprep.subr.bf16.mxu0 0
        %2954 = vmatpush1.bf16.msra.mxu0 %v2898
        %2955 = vmatprep.subr.bf16.mxu0 0
        %2956 = vmatpush1.bf16.msra.mxu0 %v2899
        %2957 = vmatprep.subr.bf16.mxu0 0
        %2958 = vmatpush1.bf16.msra.mxu0 %v2900
        %2959 = vmatprep.subr.bf16.mxu0 0
        %2960 = vmatpush1.bf16.msra.mxu0 %v2901
        %2961 = vmatprep.subr.bf16.mxu0 0
        %2962 = vmatpush1.bf16.msra.mxu0 %v2902
        %2963 = vmatprep.subr.bf16.mxu0 0
        %2964 = vmatpush1.bf16.msra.mxu0 %v2903
        %2965 = vmatprep.subr.bf16.mxu0 0
        %2966 = vmatpush1.bf16.msra.mxu0 %v2904
        %2967 = vmatprep.subr.bf16.mxu0 0
        %2968 = vmatpush1.bf16.msra.mxu0 %v2905
        %2969 = vmatprep.subr.bf16.mxu0 0
        %2970 = vmatpush1.bf16.msra.mxu0 %v2906
        %2971 = vmatprep.mubr.bf16.mxu0 %v2314
        %2972 = vmatmul.mubr.bf16.gmra.mrb[0].mxu0 %v2313
        %v2973 = vpop.f32.mrb[0].mxu0
        %v2974 = vadd.f32 %v2733, %v2973
        %v2975 = vpop.f32.mrb[0].mxu0
        %v2976 = vpop.f32.mrb[0].mxu0
        %v2977 = vadd.f32 %v2736, %v2976
        %v2978 = vpop.f32.mrb[0].mxu0
        %2979 = vmatprep.mubr.bf16.mxu0 %v2317
        %2980 = vmatmul.mubr.bf16.gmra.mrb[0].mxu0 %v2316
        %v2981 = vpop.f32.mrb[0].mxu0
        %v2982 = vadd.f32 %v2741, %v2981
        %v2983 = vpop.f32.mrb[0].mxu0
        %v2984 = vpop.f32.mrb[0].mxu0
        %v2985 = vadd.f32 %v2744, %v2984
        %v2986 = vpop.f32.mrb[0].mxu0
        %2987 = vmatprep.mubr.bf16.mxu0 %v2320
        %2988 = vmatmul.mubr.bf16.gmra.mrb[0].mxu0 %v2319
        %v2989 = vpop.f32.mrb[0].mxu0
        %v2990 = vadd.f32 %v2749, %v2989
        %v2991 = vpop.f32.mrb[0].mxu0
        %v2992 = vpop.f32.mrb[0].mxu0
        %v2993 = vadd.f32 %v2752, %v2992
        %v2994 = vpop.f32.mrb[0].mxu0
        %2995 = vmatprep.mubr.bf16.mxu0 %v2323
        %2996 = vmatmul.mubr.bf16.gmra.mrb[0].mxu0 %v2322
        %v2997 = vpop.f32.mrb[0].mxu0
        %v2998 = vadd.f32 %v2757, %v2997
        %v2999 = vpop.f32.mrb[0].mxu0
        %v3000 = vpop.f32.mrb[0].mxu0
        %v3001 = vadd.f32 %v2760, %v3000
        %v3002 = vpop.f32.mrb[0].mxu0
        %3003 = vmatprep.mubr.bf16.mxu0 %v2326
        %3004 = vmatmul.mubr.bf16.gmra.mrb[0].mxu0 %v2325
        %v3005 = vpop.f32.mrb[0].mxu0
        %v3006 = vadd.f32 %v2765, %v3005
        %v3007 = vpop.f32.mrb[0].mxu0
        %v3008 = vpop.f32.mrb[0].mxu0
        %v3009 = vadd.f32 %v2768, %v3008
        %v3010 = vpop.f32.mrb[0].mxu0
        %3011 = vmatprep.mubr.bf16.mxu0 %v2329
        %3012 = vmatmul.mubr.bf16.gmra.mrb[0].mxu0 %v2328
        %v3013 = vpop.f32.mrb[0].mxu0
        %v3014 = vadd.f32 %v2773, %v3013
        %v3015 = vpop.f32.mrb[0].mxu0
        %v3016 = vpop.f32.mrb[0].mxu0
        %v3017 = vadd.f32 %v2776, %v3016
        %v3018 = vpop.f32.mrb[0].mxu0
        %3019 = vmatprep.mubr.bf16.mxu0 %v2332
        %3020 = vmatmul.mubr.bf16.gmra.mrb[0].mxu0 %v2331
        %v3021 = vpop.f32.mrb[0].mxu0
        %v3022 = vadd.f32 %v2781, %v3021
        %v3023 = vpop.f32.mrb[0].mxu0
        %v3024 = vpop.f32.mrb[0].mxu0
        %v3025 = vadd.f32 %v2784, %v3024
        %v3026 = vpop.f32.mrb[0].mxu0
        %3027 = vmatprep.mubr.bf16.mxu0 %v2335
        %3028 = vmatmul.mubr.bf16.gmra.mrb[0].mxu0 %v2334
        %v3029 = vpop.f32.mrb[0].mxu0
        %v3030 = vadd.f32 %v2789, %v3029
        %v3031 = vpop.f32.mrb[0].mxu0
        %v3032 = vpop.f32.mrb[0].mxu0
        %v3033 = vadd.f32 %v2792, %v3032
        %v3034 = vpop.f32.mrb[0].mxu0
        %3035 = vdwg.mxu0
        %3036 = vmatprep.subr.bf16.mxu0 0
        %3037 = vmatpush1.bf16.msra.mxu0 %v2907
        %3038 = vmatprep.subr.bf16.mxu0 0
        %3039 = vmatpush1.bf16.msra.mxu0 %v2908
        %3040 = vmatprep.subr.bf16.mxu0 0
        %3041 = vmatpush1.bf16.msra.mxu0 %v2909
        %3042 = vmatprep.subr.bf16.mxu0 0
        %3043 = vmatpush1.bf16.msra.mxu0 %v2910
        %3044 = vmatprep.subr.bf16.mxu0 0
        %3045 = vmatpush1.bf16.msra.mxu0 %v2911
        %3046 = vmatprep.subr.bf16.mxu0 0
        %3047 = vmatpush1.bf16.msra.mxu0 %v2912
        %3048 = vmatprep.subr.bf16.mxu0 0
        %3049 = vmatpush1.bf16.msra.mxu0 %v2913
        %3050 = vmatprep.subr.bf16.mxu0 0
        %3051 = vmatpush1.bf16.msra.mxu0 %v2914
        %3052 = vmatprep.subr.bf16.mxu0 0
        %3053 = vmatpush1.bf16.msra.mxu0 0
        %3054 = vmatprep.subr.bf16.mxu0 0
        %3055 = vmatpush1.bf16.msra.mxu0 0
        %3056 = vmatprep.subr.bf16.mxu0 0
        %3057 = vmatpush1.bf16.msra.mxu0 0
        %3058 = vmatprep.subr.bf16.mxu0 0
        %3059 = vmatpush1.bf16.msra.mxu0 0
        %3060 = vmatprep.subr.bf16.mxu0 0
        %3061 = vmatpush1.bf16.msra.mxu0 0
        %3062 = vmatprep.subr.bf16.mxu0 0
        %3063 = vmatpush1.bf16.msra.mxu0 0
        %3064 = vmatprep.subr.bf16.mxu0 0
        %3065 = vmatpush1.bf16.msra.mxu0 0
        %3066 = vmatprep.subr.bf16.mxu0 0
        %3067 = vmatpush1.bf16.msra.mxu0 0
        %3068 = vmatprep.mubr.bf16.mxu0 0
        %3069 = vmatmul.mubr.bf16.gmra.mrb[0].mxu0 %v2315
        %v3070 = vpop.f32.mrb[0].mxu0
        %v3071 = vadd.f32 %v2974, %v3070
        %v3072 = vpop.f32.mrb[0].mxu0
        %v3073 = vpop.f32.mrb[0].mxu0
        %v3074 = vadd.f32 %v2977, %v3073
        %v3075 = vpop.f32.mrb[0].mxu0
        %3076 = vmatprep.mubr.bf16.mxu0 0
        %3077 = vmatmul.mubr.bf16.gmra.mrb[0].mxu0 %v2318
        %v3078 = vpop.f32.mrb[0].mxu0
        %v3079 = vadd.f32 %v2982, %v3078
        %v3080 = vpop.f32.mrb[0].mxu0
        %v3081 = vpop.f32.mrb[0].mxu0
        %v3082 = vadd.f32 %v2985, %v3081
        %v3083 = vpop.f32.mrb[0].mxu0
        %3084 = vmatprep.mubr.bf16.mxu0 0
        %3085 = vmatmul.mubr.bf16.gmra.mrb[0].mxu0 %v2321
        %v3086 = vpop.f32.mrb[0].mxu0
        %v3087 = vadd.f32 %v2990, %v3086
        %v3088 = vpop.f32.mrb[0].mxu0
        %v3089 = vpop.f32.mrb[0].mxu0
        %v3090 = vadd.f32 %v2993, %v3089
        %v3091 = vpop.f32.mrb[0].mxu0
        %3092 = vmatprep.mubr.bf16.mxu0 0
        %3093 = vmatmul.mubr.bf16.gmra.mrb[0].mxu0 %v2324
        %v3094 = vpop.f32.mrb[0].mxu0
        %v3095 = vadd.f32 %v2998, %v3094
        %v3096 = vpop.f32.mrb[0].mxu0
        %v3097 = vpop.f32.mrb[0].mxu0
        %v3098 = vadd.f32 %v3001, %v3097
        %v3099 = vpop.f32.mrb[0].mxu0
        %3100 = vmatprep.mubr.bf16.mxu0 0
        %3101 = vmatmul.mubr.bf16.gmra.mrb[0].mxu0 %v2327
        %v3102 = vpop.f32.mrb[0].mxu0
        %v3103 = vadd.f32 %v3006, %v3102
        %v3104 = vpop.f32.mrb[0].mxu0
        %v3105 = vpop.f32.mrb[0].mxu0
        %v3106 = vadd.f32 %v3009, %v3105
        %v3107 = vpop.f32.mrb[0].mxu0
        %3108 = vmatprep.mubr.bf16.mxu0 0
        %3109 = vmatmul.mubr.bf16.gmra.mrb[0].mxu0 %v2330
        %v3110 = vpop.f32.mrb[0].mxu0
        %v3111 = vadd.f32 %v3014, %v3110
        %v3112 = vpop.f32.mrb[0].mxu0
        %v3113 = vpop.f32.mrb[0].mxu0
        %v3114 = vadd.f32 %v3017, %v3113
        %v3115 = vpop.f32.mrb[0].mxu0
        %3116 = vmatprep.mubr.bf16.mxu0 0
        %3117 = vmatmul.mubr.bf16.gmra.mrb[0].mxu0 %v2333
        %v3118 = vpop.f32.mrb[0].mxu0
        %v3119 = vadd.f32 %v3022, %v3118
        %v3120 = vpop.f32.mrb[0].mxu0
        %v3121 = vpop.f32.mrb[0].mxu0
        %v3122 = vadd.f32 %v3025, %v3121
        %v3123 = vpop.f32.mrb[0].mxu0
        %3124 = vmatprep.mubr.bf16.mxu0 0
        %3125 = vmatmul.mubr.bf16.gmra.mrb[0].mxu0 %v2336
        %v3126 = vpop.f32.mrb[0].mxu0
        %v3127 = vadd.f32 %v3030, %v3126
        %v3128 = vpop.f32.mrb[0].mxu0
        %v3129 = vpop.f32.mrb[0].mxu0
        %v3130 = vadd.f32 %v3033, %v3129
        %v3131 = vpop.f32.mrb[0].mxu0
        %3132 = vdwg.mxu0
        %s3133 = scalar_lea.vmem [#allocation2], 240
        %v3134 = vld [vmem:[%s3133] sm:$0xff]
        %v3135 = vld [vmem:[%s3133 + $0x8] sm:$0xff]
        %v3136 = vld [vmem:[%s3133 + $0x10] sm:$0xff]
        %v3137 = vld [vmem:[%s3133 + $0x18] sm:$0xff]
        %v3138 = vld [vmem:[%s3133 + $0x20] sm:$0xff]
        %v3139 = vld [vmem:[%s3133 + $0x28] sm:$0xff]
        %v3140 = vld [vmem:[%s3133 + $0x30] sm:$0xff]
        %v3141 = vld [vmem:[%s3133 + $0x38] sm:$0xff]
        %v3142 = vld [vmem:[%s3133 + $0x40] sm:$0xff]
        %v3143 = vld [vmem:[%s3133 + $0x48] sm:$0xff]
        %v3144 = vld [vmem:[%s3133 + $0x50] sm:$0xff]
        %v3145 = vld [vmem:[%s3133 + $0x58] sm:$0xff]
        %v3146 = vld [vmem:[%s3133 + $0x60] sm:$0xff]
        %v3147 = vld [vmem:[%s3133 + $0x68] sm:$0xff]
        %v3148 = vld [vmem:[%s3133 + $0x70] sm:$0xff]
        %v3149 = vld [vmem:[%s3133 + $0x78] sm:$0xff]
        %v3150 = vld [vmem:[%s3133 + $0x80] sm:$0xff]
        %v3151 = vld [vmem:[%s3133 + $0x88] sm:$0xff]
        %v3152 = vld [vmem:[%s3133 + $0x90] sm:$0xff]
        %v3153 = vld [vmem:[%s3133 + $0x98] sm:$0xff]
        %v3154 = vld [vmem:[%s3133 + $0xa0] sm:$0xff]
        %v3155 = vld [vmem:[%s3133 + $0xa8] sm:$0xff]
        %v3156 = vld [vmem:[%s3133 + $0xb0] sm:$0xff]
        %v3157 = vld [vmem:[%s3133 + $0xb8] sm:$0xff]
        %v3158 = vld [vmem:[%s1688] sm:$0xf]
        %v3159 = vld [vmem:[%s1688 + $0x4] sm:$0xf]
        %v3160 = vld [vmem:[%s1688 + $0x8] sm:$0xf]
        %v3161 = vld [vmem:[%s1688 + $0xc] sm:$0xf]
        %v3162 = vld [vmem:[%s1688 + $0x10] sm:$0xf]
        %v3163 = vld [vmem:[%s1688 + $0x14] sm:$0xf]
        %v3164 = vld [vmem:[%s1688 + $0x18] sm:$0xf]
        %v3165 = vld [vmem:[%s1688 + $0x1c] sm:$0xf]
        %v3166 = vld [vmem:[%s1688 + $0x20] sm:$0xf]
        %v3167 = vld [vmem:[%s1688 + $0x24] sm:$0xf]
        %v3168 = vld [vmem:[%s1688 + $0x28] sm:$0xf]
        %v3169 = vld [vmem:[%s1688 + $0x2c] sm:$0xf]
        %v3170 = vld [vmem:[%s1688 + $0x30] sm:$0xf]
        %v3171 = vld [vmem:[%s1688 + $0x34] sm:$0xf]
        %v3172 = vld [vmem:[%s1688 + $0x38] sm:$0xf]
        %v3173 = vld [vmem:[%s1688 + $0x3c] sm:$0xf]
        %v3174 = vld [vmem:[%s1688 + $0x40] sm:$0xf]
        %v3175 = vld [vmem:[%s1688 + $0x44] sm:$0xf]
        %v3176 = vld [vmem:[%s1688 + $0x48] sm:$0xf]
        %v3177 = vld [vmem:[%s1688 + $0x4c] sm:$0xf]
        %v3178 = vld [vmem:[%s1688 + $0x50] sm:$0xf]
        %v3179 = vld [vmem:[%s1688 + $0x54] sm:$0xf]
        %v3180 = vld [vmem:[%s1688 + $0x58] sm:$0xf]
        %v3181 = vld [vmem:[%s1688 + $0x5c] sm:$0xf]
        %v3182 = vld [vmem:[%s1688 + $0x60] sm:$0xf]
        %v3183 = vld [vmem:[%s1688 + $0x64] sm:$0xf]
        %v3184 = vld [vmem:[%s1688 + $0x68] sm:$0xf]
        %v3185 = vld [vmem:[%s1688 + $0x6c] sm:$0xf]
        %v3186 = vld [vmem:[%s1688 + $0x70] sm:$0xf]
        %v3187 = vld [vmem:[%s1688 + $0x74] sm:$0xf]
        %v3188 = vld [vmem:[%s1688 + $0x78] sm:$0xf]
        %v3189 = vld [vmem:[%s1688 + $0x7c] sm:$0xf]
        %v3190 = vld [vmem:[%s1688 + $0x80] sm:$0xf]
        %v3191 = vld [vmem:[%s1688 + $0x84] sm:$0xf]
        %v3192 = vld [vmem:[%s1688 + $0x88] sm:$0xf]
        %v3193 = vld [vmem:[%s1688 + $0x8c] sm:$0xf]
        %v3194 = vld [vmem:[%s1688 + $0x90] sm:$0xf]
        %v3195 = vld [vmem:[%s1688 + $0x94] sm:$0xf]
        %v3196 = vld [vmem:[%s1688 + $0x98] sm:$0xf]
        %v3197 = vld [vmem:[%s1688 + $0x9c] sm:$0xf]
        %v3198 = vld [vmem:[%s1688 + $0xa0] sm:$0xf]
        %v3199 = vld [vmem:[%s1688 + $0xa4] sm:$0xf]
        %v3200 = vld [vmem:[%s1688 + $0xa8] sm:$0xf]
        %v3201 = vld [vmem:[%s1688 + $0xac] sm:$0xf]
        %v3202 = vld [vmem:[%s1688 + $0xb0] sm:$0xf]
        %v3203 = vld [vmem:[%s1688 + $0xb4] sm:$0xf]
        %v3204 = vld [vmem:[%s1688 + $0xb8] sm:$0xf]
        %v3205 = vld [vmem:[%s1688 + $0xbc] sm:$0xf]
        %v3254 = vunpack.c.l.b16 %v3158
        %v3255 = vunpack.c.l.b16 %v3159
        %v3256 = vunpack.c.l.b16 %v3160
        %v3257 = vunpack.c.l.b16 %v3161
        %v3258 = vunpack.c.l.b16 %v3162
        %v3259 = vunpack.c.l.b16 %v3163
        %v3260 = vunpack.c.l.b16 %v3164
        %v3261 = vunpack.c.l.b16 %v3165
        %v3262 = vunpack.c.l.b16 %v3166
        %v3263 = vunpack.c.l.b16 %v3167
        %v3264 = vunpack.c.l.b16 %v3168
        %v3265 = vunpack.c.l.b16 %v3169
        %v3266 = vunpack.c.l.b16 %v3170
        %v3267 = vunpack.c.l.b16 %v3171
        %v3268 = vunpack.c.l.b16 %v3172
        %v3269 = vunpack.c.l.b16 %v3173
        %v3270 = vunpack.c.l.b16 %v3174
        %v3271 = vunpack.c.l.b16 %v3175
        %v3272 = vunpack.c.l.b16 %v3176
        %v3273 = vunpack.c.l.b16 %v3177
        %v3274 = vunpack.c.l.b16 %v3178
        %v3275 = vunpack.c.l.b16 %v3179
        %v3276 = vunpack.c.l.b16 %v3180
        %v3277 = vunpack.c.l.b16 %v3181
        %v3278 = vunpack.c.l.b16 %v3182
        %v3279 = vunpack.c.l.b16 %v3183
        %v3280 = vunpack.c.l.b16 %v3184
        %v3281 = vunpack.c.l.b16 %v3185
        %v3282 = vunpack.c.l.b16 %v3186
        %v3283 = vunpack.c.l.b16 %v3187
        %v3284 = vunpack.c.l.b16 %v3188
        %v3285 = vunpack.c.l.b16 %v3189
        %v3286 = vunpack.c.l.b16 %v3190
        %v3287 = vunpack.c.l.b16 %v3191
        %v3288 = vunpack.c.l.b16 %v3192
        %v3289 = vunpack.c.l.b16 %v3193
        %v3290 = vunpack.c.l.b16 %v3194
        %v3291 = vunpack.c.l.b16 %v3195
        %v3292 = vunpack.c.l.b16 %v3196
        %v3293 = vunpack.c.l.b16 %v3197
        %v3294 = vunpack.c.l.b16 %v3198
        %v3295 = vunpack.c.l.b16 %v3199
        %v3296 = vunpack.c.l.b16 %v3200
        %v3297 = vunpack.c.l.b16 %v3201
        %v3298 = vunpack.c.l.b16 %v3202
        %v3299 = vunpack.c.l.b16 %v3203
        %v3300 = vunpack.c.l.b16 %v3204
        %v3301 = vunpack.c.l.b16 %v3205
        %v3302 = vpack.c.b16 %v3255, %v3254
        %v3303 = vpack.c.b16 %v3257, %v3256
        %v3304 = vpack.c.b16 %v3259, %v3258
        %v3305 = vpack.c.b16 %v3261, %v3260
        %v3306 = vpack.c.b16 %v3263, %v3262
        %v3307 = vpack.c.b16 %v3265, %v3264
        %v3308 = vpack.c.b16 %v3267, %v3266
        %v3309 = vpack.c.b16 %v3269, %v3268
        %v3310 = vpack.c.b16 %v3271, %v3270
        %v3311 = vpack.c.b16 %v3273, %v3272
        %v3312 = vpack.c.b16 %v3275, %v3274
        %v3313 = vpack.c.b16 %v3277, %v3276
        %v3314 = vpack.c.b16 %v3279, %v3278
        %v3315 = vpack.c.b16 %v3281, %v3280
        %v3316 = vpack.c.b16 %v3283, %v3282
        %v3317 = vpack.c.b16 %v3285, %v3284
        %v3318 = vpack.c.b16 %v3287, %v3286
        %v3319 = vpack.c.b16 %v3289, %v3288
        %v3320 = vpack.c.b16 %v3291, %v3290
        %v3321 = vpack.c.b16 %v3293, %v3292
        %v3322 = vpack.c.b16 %v3295, %v3294
        %v3323 = vpack.c.b16 %v3297, %v3296
        %v3324 = vpack.c.b16 %v3299, %v3298
        %v3325 = vpack.c.b16 %v3301, %v3300
        %3350 = vmatprep.subr.bf16.mxu0 0
        %3351 = vmatpush1.bf16.msra.mxu0 %v3302
        %3352 = vmatprep.subr.bf16.mxu0 0
        %3353 = vmatpush1.bf16.msra.mxu0 %v3303
        %3354 = vmatprep.subr.bf16.mxu0 0
        %3355 = vmatpush1.bf16.msra.mxu0 %v3304
        %3356 = vmatprep.subr.bf16.mxu0 0
        %3357 = vmatpush1.bf16.msra.mxu0 %v3305
        %3358 = vmatprep.subr.bf16.mxu0 0
        %3359 = vmatpush1.bf16.msra.mxu0 %v3306
        %3360 = vmatprep.subr.bf16.mxu0 0
        %3361 = vmatpush1.bf16.msra.mxu0 %v3307
        %3362 = vmatprep.subr.bf16.mxu0 0
        %3363 = vmatpush1.bf16.msra.mxu0 %v3308
        %3364 = vmatprep.subr.bf16.mxu0 0
        %3365 = vmatpush1.bf16.msra.mxu0 %v3309
        %3366 = vmatprep.subr.bf16.mxu0 0
        %3367 = vmatpush1.bf16.msra.mxu0 %v3310
        %3368 = vmatprep.subr.bf16.mxu0 0
        %3369 = vmatpush1.bf16.msra.mxu0 %v3311
        %3370 = vmatprep.subr.bf16.mxu0 0
        %3371 = vmatpush1.bf16.msra.mxu0 %v3312
        %3372 = vmatprep.subr.bf16.mxu0 0
        %3373 = vmatpush1.bf16.msra.mxu0 %v3313
        %3374 = vmatprep.subr.bf16.mxu0 0
        %3375 = vmatpush1.bf16.msra.mxu0 %v3314
        %3376 = vmatprep.subr.bf16.mxu0 0
        %3377 = vmatpush1.bf16.msra.mxu0 %v3315
        %3378 = vmatprep.subr.bf16.mxu0 0
        %3379 = vmatpush1.bf16.msra.mxu0 %v3316
        %3380 = vmatprep.subr.bf16.mxu0 0
        %3381 = vmatpush1.bf16.msra.mxu0 %v3317
        %3382 = vmatprep.mubr.bf16.mxu0 %v3135
        %3383 = vmatmul.mubr.bf16.gmra.mrb[0].mxu0 %v3134
        %v3384 = vpop.f32.mrb[0].mxu0
        %v3385 = vadd.f32 0.0, %v3384
        %v3386 = vpop.f32.mrb[0].mxu0
        %v3387 = vpop.f32.mrb[0].mxu0
        %v3388 = vadd.f32 0.0, %v3387
        %v3389 = vpop.f32.mrb[0].mxu0
        %3390 = vmatprep.mubr.bf16.mxu0 %v3138
        %3391 = vmatmul.mubr.bf16.gmra.mrb[0].mxu0 %v3137
        %v3392 = vpop.f32.mrb[0].mxu0
        %v3393 = vadd.f32 0.0, %v3392
        %v3394 = vpop.f32.mrb[0].mxu0
        %v3395 = vpop.f32.mrb[0].mxu0
        %v3396 = vadd.f32 0.0, %v3395
        %v3397 = vpop.f32.mrb[0].mxu0
        %3398 = vmatprep.mubr.bf16.mxu0 %v3141
        %3399 = vmatmul.mubr.bf16.gmra.mrb[0].mxu0 %v3140
        %v3400 = vpop.f32.mrb[0].mxu0
        %v3401 = vadd.f32 0.0, %v3400
        %v3402 = vpop.f32.mrb[0].mxu0
        %v3403 = vpop.f32.mrb[0].mxu0
        %v3404 = vadd.f32 0.0, %v3403
        %v3405 = vpop.f32.mrb[0].mxu0
        %3406 = vmatprep.mubr.bf16.mxu0 %v3144
        %3407 = vmatmul.mubr.bf16.gmra.mrb[0].mxu0 %v3143
        %v3408 = vpop.f32.mrb[0].mxu0
        %v3409 = vadd.f32 0.0, %v3408
        %v3410 = vpop.f32.mrb[0].mxu0
        %v3411 = vpop.f32.mrb[0].mxu0
        %v3412 = vadd.f32 0.0, %v3411
        %v3413 = vpop.f32.mrb[0].mxu0
        %3414 = vmatprep.mubr.bf16.mxu0 %v3147
        %3415 = vmatmul.mubr.bf16.gmra.mrb[0].mxu0 %v3146
        %v3416 = vpop.f32.mrb[0].mxu0
        %v3417 = vadd.f32 0.0, %v3416
        %v3418 = vpop.f32.mrb[0].mxu0
        %v3419 = vpop.f32.mrb[0].mxu0
        %v3420 = vadd.f32 0.0, %v3419
        %v3421 = vpop.f32.mrb[0].mxu0
        %3422 = vmatprep.mubr.bf16.mxu0 %v3150
        %3423 = vmatmul.mubr.bf16.gmra.mrb[0].mxu0 %v3149
        %v3424 = vpop.f32.mrb[0].mxu0
        %v3425 = vadd.f32 0.0, %v3424
        %v3426 = vpop.f32.mrb[0].mxu0
        %v3427 = vpop.f32.mrb[0].mxu0
        %v3428 = vadd.f32 0.0, %v3427
        %v3429 = vpop.f32.mrb[0].mxu0
        %3430 = vmatprep.mubr.bf16.mxu0 %v3153
        %3431 = vmatmul.mubr.bf16.gmra.mrb[0].mxu0 %v3152
        %v3432 = vpop.f32.mrb[0].mxu0
        %v3433 = vadd.f32 0.0, %v3432
        %v3434 = vpop.f32.mrb[0].mxu0
        %v3435 = vpop.f32.mrb[0].mxu0
        %v3436 = vadd.f32 0.0, %v3435
        %v3437 = vpop.f32.mrb[0].mxu0
        %3438 = vmatprep.mubr.bf16.mxu0 %v3156
        %3439 = vmatmul.mubr.bf16.gmra.mrb[0].mxu0 %v3155
        %v3440 = vpop.f32.mrb[0].mxu0
        %v3441 = vadd.f32 0.0, %v3440
        %v3442 = vpop.f32.mrb[0].mxu0
        %v3443 = vpop.f32.mrb[0].mxu0
        %v3444 = vadd.f32 0.0, %v3443
        %v3445 = vpop.f32.mrb[0].mxu0
        %3446 = vdwg.mxu0
        %3447 = vmatprep.subr.bf16.mxu0 0
        %3448 = vmatpush1.bf16.msra.mxu0 %v3318
        %3449 = vmatprep.subr.bf16.mxu0 0
        %3450 = vmatpush1.bf16.msra.mxu0 %v3319
        %3451 = vmatprep.subr.bf16.mxu0 0
        %3452 = vmatpush1.bf16.msra.mxu0 %v3320
        %3453 = vmatprep.subr.bf16.mxu0 0
        %3454 = vmatpush1.bf16.msra.mxu0 %v3321
        %3455 = vmatprep.subr.bf16.mxu0 0
        %3456 = vmatpush1.bf16.msra.mxu0 %v3322
        %3457 = vmatprep.subr.bf16.mxu0 0
        %3458 = vmatpush1.bf16.msra.mxu0 %v3323
        %3459 = vmatprep.subr.bf16.mxu0 0
        %3460 = vmatpush1.bf16.msra.mxu0 %v3324
        %3461 = vmatprep.subr.bf16.mxu0 0
        %3462 = vmatpush1.bf16.msra.mxu0 %v3325
        %3463 = vmatprep.subr.bf16.mxu0 0
        %3464 = vmatpush1.bf16.msra.mxu0 0
        %3465 = vmatprep.subr.bf16.mxu0 0
        %3466 = vmatpush1.bf16.msra.mxu0 0
        %3467 = vmatprep.subr.bf16.mxu0 0
        %3468 = vmatpush1.bf16.msra.mxu0 0
        %3469 = vmatprep.subr.bf16.mxu0 0
        %3470 = vmatpush1.bf16.msra.mxu0 0
        %3471 = vmatprep.subr.bf16.mxu0 0
        %3472 = vmatpush1.bf16.msra.mxu0 0
        %3473 = vmatprep.subr.bf16.mxu0 0
        %3474 = vmatpush1.bf16.msra.mxu0 0
        %3475 = vmatprep.subr.bf16.mxu0 0
        %3476 = vmatpush1.bf16.msra.mxu0 0
        %3477 = vmatprep.subr.bf16.mxu0 0
        %3478 = vmatpush1.bf16.msra.mxu0 0
        %3479 = vmatprep.mubr.bf16.mxu0 0
        %3480 = vmatmul.mubr.bf16.gmra.mrb[0].mxu0 %v3136
        %v3481 = vpop.f32.mrb[0].mxu0
        %v3482 = vadd.f32 %v3385, %v3481
        %v3483 = vpop.f32.mrb[0].mxu0
        %v3484 = vpop.f32.mrb[0].mxu0
        %v3485 = vadd.f32 %v3388, %v3484
        %v3486 = vpop.f32.mrb[0].mxu0
        %3487 = vmatprep.mubr.bf16.mxu0 0
        %3488 = vmatmul.mubr.bf16.gmra.mrb[0].mxu0 %v3139
        %v3489 = vpop.f32.mrb[0].mxu0
        %v3490 = vadd.f32 %v3393, %v3489
        %v3491 = vpop.f32.mrb[0].mxu0
        %v3492 = vpop.f32.mrb[0].mxu0
        %v3493 = vadd.f32 %v3396, %v3492
        %v3494 = vpop.f32.mrb[0].mxu0
        %3495 = vmatprep.mubr.bf16.mxu0 0
        %3496 = vmatmul.mubr.bf16.gmra.mrb[0].mxu0 %v3142
        %v3497 = vpop.f32.mrb[0].mxu0
        %v3498 = vadd.f32 %v3401, %v3497
        %v3499 = vpop.f32.mrb[0].mxu0
        %v3500 = vpop.f32.mrb[0].mxu0
        %v3501 = vadd.f32 %v3404, %v3500
        %v3502 = vpop.f32.mrb[0].mxu0
        %3503 = vmatprep.mubr.bf16.mxu0 0
        %3504 = vmatmul.mubr.bf16.gmra.mrb[0].mxu0 %v3145
        %v3505 = vpop.f32.mrb[0].mxu0
        %v3506 = vadd.f32 %v3409, %v3505
        %v3507 = vpop.f32.mrb[0].mxu0
        %v3508 = vpop.f32.mrb[0].mxu0
        %v3509 = vadd.f32 %v3412, %v3508
        %v3510 = vpop.f32.mrb[0].mxu0
        %3511 = vmatprep.mubr.bf16.mxu0 0
        %3512 = vmatmul.mubr.bf16.gmra.mrb[0].mxu0 %v3148
        %v3513 = vpop.f32.mrb[0].mxu0
        %v3514 = vadd.f32 %v3417, %v3513
        %v3515 = vpop.f32.mrb[0].mxu0
        %v3516 = vpop.f32.mrb[0].mxu0
        %v3517 = vadd.f32 %v3420, %v3516
        %v3518 = vpop.f32.mrb[0].mxu0
        %3519 = vmatprep.mubr.bf16.mxu0 0
        %3520 = vmatmul.mubr.bf16.gmra.mrb[0].mxu0 %v3151
        %v3521 = vpop.f32.mrb[0].mxu0
        %v3522 = vadd.f32 %v3425, %v3521
        %v3523 = vpop.f32.mrb[0].mxu0
        %v3524 = vpop.f32.mrb[0].mxu0
        %v3525 = vadd.f32 %v3428, %v3524
        %v3526 = vpop.f32.mrb[0].mxu0
        %3527 = vmatprep.mubr.bf16.mxu0 0
        %3528 = vmatmul.mubr.bf16.gmra.mrb[0].mxu0 %v3154
        %v3529 = vpop.f32.mrb[0].mxu0
        %v3530 = vadd.f32 %v3433, %v3529
        %v3531 = vpop.f32.mrb[0].mxu0
        %v3532 = vpop.f32.mrb[0].mxu0
        %v3533 = vadd.f32 %v3436, %v3532
        %v3534 = vpop.f32.mrb[0].mxu0
        %3535 = vmatprep.mubr.bf16.mxu0 0
        %3536 = vmatmul.mubr.bf16.gmra.mrb[0].mxu0 %v3157
        %v3537 = vpop.f32.mrb[0].mxu0
        %v3538 = vadd.f32 %v3441, %v3537
        %v3539 = vpop.f32.mrb[0].mxu0
        %v3540 = vpop.f32.mrb[0].mxu0
        %v3541 = vadd.f32 %v3444, %v3540
        %v3542 = vpop.f32.mrb[0].mxu0
        %3543 = vdwg.mxu0
        %v3544 = vadd.f32 %v3071, %v3482
        %v3545 = vadd.f32 %v3074, %v3485
        %v3546 = vadd.f32 %v3079, %v3490
        %v3547 = vadd.f32 %v3082, %v3493
        %v3548 = vadd.f32 %v3087, %v3498
        %v3549 = vadd.f32 %v3090, %v3501
        %v3550 = vadd.f32 %v3095, %v3506
        %v3551 = vadd.f32 %v3098, %v3509
        %v3552 = vadd.f32 %v3103, %v3514
        %v3553 = vadd.f32 %v3106, %v3517
        %v3554 = vadd.f32 %v3111, %v3522
        %v3555 = vadd.f32 %v3114, %v3525
        %v3556 = vadd.f32 %v3119, %v3530
        %v3557 = vadd.f32 %v3122, %v3533
        %v3558 = vadd.f32 %v3127, %v3538
        %v3559 = vadd.f32 %v3130, %v3541
        %v3560 = vmul.f32 %v3544, %v2095
        %v3561 = vmul.f32 %v3545, %v2095
        %v3562 = vmul.f32 %v3546, %v2095
        %v3563 = vmul.f32 %v3547, %v2095
        %v3564 = vmul.f32 %v3548, %v2095
        %v3565 = vmul.f32 %v3549, %v2095
        %v3566 = vmul.f32 %v3550, %v2095
        %v3567 = vmul.f32 %v3551, %v2095
        %v3568 = vmul.f32 %v3552, %v2095
        %v3569 = vmul.f32 %v3553, %v2095
        %v3570 = vmul.f32 %v3554, %v2095
        %v3571 = vmul.f32 %v3555, %v2095
        %v3572 = vmul.f32 %v3556, %v2095
        %v3573 = vmul.f32 %v3557, %v2095
        %v3574 = vmul.f32 %v3558, %v2095
        %v3575 = vmul.f32 %v3559, %v2095
        %v3576 = vadd.f32 %v3560, %v2117
        %v3577 = vadd.f32 %v3561, %v2117
        %v3578 = vadd.f32 %v3562, %v2117
        %v3579 = vadd.f32 %v3563, %v2117
        %v3580 = vadd.f32 %v3564, %v2117
        %v3581 = vadd.f32 %v3565, %v2117
        %v3582 = vadd.f32 %v3566, %v2117
        %v3583 = vadd.f32 %v3567, %v2117
        %v3584 = vadd.f32 %v3568, %v2117
        %v3585 = vadd.f32 %v3569, %v2117
        %v3586 = vadd.f32 %v3570, %v2117
        %v3587 = vadd.f32 %v3571, %v2117
        %v3588 = vadd.f32 %v3572, %v2117
        %v3589 = vadd.f32 %v3573, %v2117
        %v3590 = vadd.f32 %v3574, %v2117
        %v3591 = vadd.f32 %v3575, %v2117
        %v3592 = vmax.f32 %v3576, 0.0
        %v3593 = vmax.f32 %v3577, 0.0
        %v3594 = vmax.f32 %v3578, 0.0
        %v3595 = vmax.f32 %v3579, 0.0
        %v3596 = vmax.f32 %v3580, 0.0
        %v3597 = vmax.f32 %v3581, 0.0
        %v3598 = vmax.f32 %v3582, 0.0
        %v3599 = vmax.f32 %v3583, 0.0
        %v3600 = vmax.f32 %v3584, 0.0
        %v3601 = vmax.f32 %v3585, 0.0
        %v3602 = vmax.f32 %v3586, 0.0
        %v3603 = vmax.f32 %v3587, 0.0
        %v3604 = vmax.f32 %v3588, 0.0
        %v3605 = vmax.f32 %v3589, 0.0
        %v3606 = vmax.f32 %v3590, 0.0
        %v3607 = vmax.f32 %v3591, 0.0
        %v3624 = vrot.slane %v3592, 7
        %v3625 = vrot.slane %v3593, 7
        %v3626 = vsel %vm453, %v3624, %v3625
        %v3627 = vrot.slane %v3594, 7
        %v3628 = vrot.slane %v3595, 7
        %v3629 = vsel %vm453, %v3627, %v3628
        %v3630 = vrot.slane %v3596, 7
        %v3631 = vrot.slane %v3597, 7
        %v3632 = vsel %vm453, %v3630, %v3631
        %v3633 = vrot.slane %v3598, 7
        %v3634 = vrot.slane %v3599, 7
        %v3635 = vsel %vm453, %v3633, %v3634
        %v3636 = vrot.slane %v3600, 7
        %v3637 = vrot.slane %v3601, 7
        %v3638 = vsel %vm453, %v3636, %v3637
        %v3639 = vrot.slane %v3602, 7
        %v3640 = vrot.slane %v3603, 7
        %v3641 = vsel %vm453, %v3639, %v3640
        %v3642 = vrot.slane %v3604, 7
        %v3643 = vrot.slane %v3605, 7
        %v3644 = vsel %vm453, %v3642, %v3643
        %v3645 = vrot.slane %v3606, 7
        %v3646 = vrot.slane %v3607, 7
        %v3647 = vsel %vm453, %v3645, %v3646
        %v3664 = vsel %vm453, 0.0, %v3624
        %v3665 = vsel %vm453, 0.0, %v3627
        %v3666 = vsel %vm453, 0.0, %v3630
        %v3667 = vsel %vm453, 0.0, %v3633
        %v3668 = vsel %vm453, 0.0, %v3636
        %v3669 = vsel %vm453, 0.0, %v3639
        %v3670 = vsel %vm453, 0.0, %v3642
        %v3671 = vsel %vm453, 0.0, %v3645
        %v3672 = vrot.slane %v3592, 1
        %v3673 = vrot.slane %v3593, 1
        %v3674 = vsel %vm502, %v3672, %v3673
        %v3675 = vrot.slane %v3594, 1
        %v3676 = vrot.slane %v3595, 1
        %v3677 = vsel %vm502, %v3675, %v3676
        %v3678 = vrot.slane %v3596, 1
        %v3679 = vrot.slane %v3597, 1
        %v3680 = vsel %vm502, %v3678, %v3679
        %v3681 = vrot.slane %v3598, 1
        %v3682 = vrot.slane %v3599, 1
        %v3683 = vsel %vm502, %v3681, %v3682
        %v3684 = vrot.slane %v3600, 1
        %v3685 = vrot.slane %v3601, 1
        %v3686 = vsel %vm502, %v3684, %v3685
        %v3687 = vrot.slane %v3602, 1
        %v3688 = vrot.slane %v3603, 1
        %v3689 = vsel %vm502, %v3687, %v3688
        %v3690 = vrot.slane %v3604, 1
        %v3691 = vrot.slane %v3605, 1
        %v3692 = vsel %vm502, %v3690, %v3691
        %v3693 = vrot.slane %v3606, 1
        %v3694 = vrot.slane %v3607, 1
        %v3695 = vsel %vm502, %v3693, %v3694
        %v3712 = vsel %vm502, %v3673, 0.0
        %v3713 = vsel %vm502, %v3676, 0.0
        %v3714 = vsel %vm502, %v3679, 0.0
        %v3715 = vsel %vm502, %v3682, 0.0
        %v3716 = vsel %vm502, %v3685, 0.0
        %v3717 = vsel %vm502, %v3688, 0.0
        %v3718 = vsel %vm502, %v3691, 0.0
        %v3719 = vsel %vm502, %v3694, 0.0
        %v3720 = vpack.c.bf16 %v3626, %v3664
        %v3721 = vpack.c.bf16 %v3629, %v3665
        %v3722 = vpack.c.bf16 %v3632, %v3666
        %v3723 = vpack.c.bf16 %v3635, %v3667
        %v3724 = vpack.c.bf16 %v3638, %v3668
        %v3725 = vpack.c.bf16 %v3641, %v3669
        %v3726 = vpack.c.bf16 %v3644, %v3670
        %v3727 = vpack.c.bf16 %v3647, %v3671
        %s3728 = scalar_lea.vmem [#allocation3], 216
        %3729 = vst [vmem:[%s3728] sm:$0xff] %v3720
        %3730 = vst [vmem:[%s3728 + $0x18] sm:$0xff] %v3721
        %3731 = vst [vmem:[%s3728 + $0x30] sm:$0xff] %v3722
        %3732 = vst [vmem:[%s3728 + $0x48] sm:$0xff] %v3723
        %3733 = vst [vmem:[%s3728 + $0x60] sm:$0xff] %v3724
        %3734 = vst [vmem:[%s3728 + $0x78] sm:$0xff] %v3725
        %3735 = vst [vmem:[%s3728 + $0x90] sm:$0xff] %v3726
        %3736 = vst [vmem:[%s3728 + $0xa8] sm:$0xff] %v3727
        %v3737 = vpack.c.bf16 %v3593, %v3592
        %v3738 = vpack.c.bf16 %v3595, %v3594
        %v3739 = vpack.c.bf16 %v3597, %v3596
        %v3740 = vpack.c.bf16 %v3599, %v3598
        %v3741 = vpack.c.bf16 %v3601, %v3600
        %v3742 = vpack.c.bf16 %v3603, %v3602
        %v3743 = vpack.c.bf16 %v3605, %v3604
        %v3744 = vpack.c.bf16 %v3607, %v3606
        %3745 = vst [vmem:[%s3728 + $0x8] sm:$0xff] %v3737
        %3746 = vst [vmem:[%s3728 + $0x20] sm:$0xff] %v3738
        %3747 = vst [vmem:[%s3728 + $0x38] sm:$0xff] %v3739
        %3748 = vst [vmem:[%s3728 + $0x50] sm:$0xff] %v3740
        %3749 = vst [vmem:[%s3728 + $0x68] sm:$0xff] %v3741
        %3750 = vst [vmem:[%s3728 + $0x80] sm:$0xff] %v3742
        %3751 = vst [vmem:[%s3728 + $0x98] sm:$0xff] %v3743
        %3752 = vst [vmem:[%s3728 + $0xb0] sm:$0xff] %v3744
        %v3753 = vpack.c.bf16 %v3712, %v3674
        %v3754 = vpack.c.bf16 %v3713, %v3677
        %v3755 = vpack.c.bf16 %v3714, %v3680
        %v3756 = vpack.c.bf16 %v3715, %v3683
        %v3757 = vpack.c.bf16 %v3716, %v3686
        %v3758 = vpack.c.bf16 %v3717, %v3689
        %v3759 = vpack.c.bf16 %v3718, %v3692
        %v3760 = vpack.c.bf16 %v3719, %v3695
        %3761 = vst [vmem:[%s3728 + $0x10] sm:$0xff] %v3753
        %3762 = vst [vmem:[%s3728 + $0x28] sm:$0xff] %v3754
        %3763 = vst [vmem:[%s3728 + $0x40] sm:$0xff] %v3755
        %3764 = vst [vmem:[%s3728 + $0x58] sm:$0xff] %v3756
        %3765 = vst [vmem:[%s3728 + $0x70] sm:$0xff] %v3757
        %3766 = vst [vmem:[%s3728 + $0x88] sm:$0xff] %v3758
        %3767 = vst [vmem:[%s3728 + $0xa0] sm:$0xff] %v3759
        %3768 = vst [vmem:[%s3728 + $0xb8] sm:$0xff] %v3760
        %v3769 = vld [vmem:[#allocation3] sm:$0xff]
        %v3770 = vld [vmem:[#allocation3 + $0x8] sm:$0xff]
        %v3771 = vld [vmem:[#allocation3 + $0x10] sm:$0xff]
        %v3772 = vld [vmem:[#allocation3 + $0x18] sm:$0xff]
        %v3773 = vld [vmem:[#allocation3 + $0x20] sm:$0xff]
        %v3774 = vld [vmem:[#allocation3 + $0x28] sm:$0xff]
        %v3775 = vld [vmem:[#allocation3 + $0x30] sm:$0xff]
        %v3776 = vld [vmem:[#allocation3 + $0x38] sm:$0xff]
        %v3777 = vld [vmem:[#allocation3 + $0x40] sm:$0xff]
        %v3778 = vld [vmem:[#allocation3 + $0x48] sm:$0xff]
        %v3779 = vld [vmem:[#allocation3 + $0x50] sm:$0xff]
        %v3780 = vld [vmem:[#allocation3 + $0x58] sm:$0xff]
        %v3781 = vld [vmem:[#allocation3 + $0x60] sm:$0xff]
        %v3782 = vld [vmem:[#allocation3 + $0x68] sm:$0xff]
        %v3783 = vld [vmem:[#allocation3 + $0x70] sm:$0xff]
        %v3784 = vld [vmem:[#allocation3 + $0x78] sm:$0xff]
        %v3785 = vld [vmem:[#allocation3 + $0x80] sm:$0xff]
        %v3786 = vld [vmem:[#allocation3 + $0x88] sm:$0xff]
        %v3787 = vld [vmem:[#allocation3 + $0x90] sm:$0xff]
        %v3788 = vld [vmem:[#allocation3 + $0x98] sm:$0xff]
        %v3789 = vld [vmem:[#allocation3 + $0xa0] sm:$0xff]
        %v3790 = vld [vmem:[#allocation3 + $0xa8] sm:$0xff]
        %v3791 = vld [vmem:[#allocation3 + $0xb0] sm:$0xff]
        %v3792 = vld [vmem:[#allocation3 + $0xb8] sm:$0xff]
        %v3793 = vld [vmem:[#allocation9] sm:$0xf]
        %v3794 = vld [vmem:[#allocation9 + $0x4] sm:$0xf]
        %v3795 = vld [vmem:[#allocation9 + $0x8] sm:$0xf]
        %v3796 = vld [vmem:[#allocation9 + $0xc] sm:$0xf]
        %v3797 = vld [vmem:[#allocation9 + $0x10] sm:$0xf]
        %v3798 = vld [vmem:[#allocation9 + $0x14] sm:$0xf]
        %v3799 = vld [vmem:[#allocation9 + $0x18] sm:$0xf]
        %v3800 = vld [vmem:[#allocation9 + $0x1c] sm:$0xf]
        %v3801 = vld [vmem:[#allocation9 + $0x20] sm:$0xf]
        %v3802 = vld [vmem:[#allocation9 + $0x24] sm:$0xf]
        %v3803 = vld [vmem:[#allocation9 + $0x28] sm:$0xf]
        %v3804 = vld [vmem:[#allocation9 + $0x2c] sm:$0xf]
        %v3805 = vld [vmem:[#allocation9 + $0x30] sm:$0xf]
        %v3806 = vld [vmem:[#allocation9 + $0x34] sm:$0xf]
        %v3807 = vld [vmem:[#allocation9 + $0x38] sm:$0xf]
        %v3808 = vld [vmem:[#allocation9 + $0x3c] sm:$0xf]
        %v3809 = vld [vmem:[#allocation9 + $0x40] sm:$0xf]
        %v3810 = vld [vmem:[#allocation9 + $0x44] sm:$0xf]
        %v3811 = vld [vmem:[#allocation9 + $0x48] sm:$0xf]
        %v3812 = vld [vmem:[#allocation9 + $0x4c] sm:$0xf]
        %v3813 = vld [vmem:[#allocation9 + $0x50] sm:$0xf]
        %v3814 = vld [vmem:[#allocation9 + $0x54] sm:$0xf]
        %v3815 = vld [vmem:[#allocation9 + $0x58] sm:$0xf]
        %v3816 = vld [vmem:[#allocation9 + $0x5c] sm:$0xf]
        %v3817 = vld [vmem:[#allocation9 + $0x60] sm:$0xf]
        %v3818 = vld [vmem:[#allocation9 + $0x64] sm:$0xf]
        %v3819 = vld [vmem:[#allocation9 + $0x68] sm:$0xf]
        %v3820 = vld [vmem:[#allocation9 + $0x6c] sm:$0xf]
        %v3821 = vld [vmem:[#allocation9 + $0x70] sm:$0xf]
        %v3822 = vld [vmem:[#allocation9 + $0x74] sm:$0xf]
        %v3823 = vld [vmem:[#allocation9 + $0x78] sm:$0xf]
        %v3824 = vld [vmem:[#allocation9 + $0x7c] sm:$0xf]
        %v3825 = vld [vmem:[#allocation9 + $0x80] sm:$0xf]
        %v3826 = vld [vmem:[#allocation9 + $0x84] sm:$0xf]
        %v3827 = vld [vmem:[#allocation9 + $0x88] sm:$0xf]
        %v3828 = vld [vmem:[#allocation9 + $0x8c] sm:$0xf]
        %v3829 = vld [vmem:[#allocation9 + $0x90] sm:$0xf]
        %v3830 = vld [vmem:[#allocation9 + $0x94] sm:$0xf]
        %v3831 = vld [vmem:[#allocation9 + $0x98] sm:$0xf]
        %v3832 = vld [vmem:[#allocation9 + $0x9c] sm:$0xf]
        %v3833 = vld [vmem:[#allocation9 + $0xa0] sm:$0xf]
        %v3834 = vld [vmem:[#allocation9 + $0xa4] sm:$0xf]
        %v3835 = vld [vmem:[#allocation9 + $0xa8] sm:$0xf]
        %v3836 = vld [vmem:[#allocation9 + $0xac] sm:$0xf]
        %v3837 = vld [vmem:[#allocation9 + $0xb0] sm:$0xf]
        %v3838 = vld [vmem:[#allocation9 + $0xb4] sm:$0xf]
        %v3839 = vld [vmem:[#allocation9 + $0xb8] sm:$0xf]
        %v3840 = vld [vmem:[#allocation9 + $0xbc] sm:$0xf]
        %v3841 = vld [vmem:[%s2271] sm:$0xff]
        %v3842 = vld [vmem:[%s2271 + $0x8] sm:$0xff]
        %v3843 = vld [vmem:[%s2271 + $0x10] sm:$0xff]
        %v3844 = vld [vmem:[%s2271 + $0x18] sm:$0xff]
        %v3845 = vld [vmem:[%s2271 + $0x20] sm:$0xff]
        %v3846 = vld [vmem:[%s2271 + $0x28] sm:$0xff]
        %v3847 = vld [vmem:[%s2271 + $0x30] sm:$0xff]
        %v3848 = vld [vmem:[%s2271 + $0x38] sm:$0xff]
        %v3849 = vld [vmem:[%s2271 + $0x40] sm:$0xff]
        %v3850 = vld [vmem:[%s2271 + $0x48] sm:$0xff]
        %v3851 = vld [vmem:[%s2271 + $0x50] sm:$0xff]
        %v3852 = vld [vmem:[%s2271 + $0x58] sm:$0xff]
        %v3853 = vld [vmem:[%s2271 + $0x60] sm:$0xff]
        %v3854 = vld [vmem:[%s2271 + $0x68] sm:$0xff]
        %v3855 = vld [vmem:[%s2271 + $0x70] sm:$0xff]
        %v3856 = vld [vmem:[%s2271 + $0x78] sm:$0xff]
        %v3857 = vld [vmem:[%s2271 + $0x80] sm:$0xff]
        %v3858 = vld [vmem:[%s2271 + $0x88] sm:$0xff]
        %v3859 = vld [vmem:[%s2271 + $0x90] sm:$0xff]
        %v3860 = vld [vmem:[%s2271 + $0x98] sm:$0xff]
        %v3861 = vld [vmem:[%s2271 + $0xa0] sm:$0xff]
        %v3862 = vld [vmem:[%s2271 + $0xa8] sm:$0xff]
        %v3863 = vld [vmem:[%s2271 + $0xb0] sm:$0xff]
        %v3864 = vld [vmem:[%s2271 + $0xb8] sm:$0xff]
        %s3865 = scalar_lea.vmem [#allocation9], 192
        %v3866 = vld [vmem:[%s3865] sm:$0xf]
        %v3867 = vld [vmem:[%s3865 + $0x4] sm:$0xf]
        %v3868 = vld [vmem:[%s3865 + $0x8] sm:$0xf]
        %v3869 = vld [vmem:[%s3865 + $0xc] sm:$0xf]
        %v3870 = vld [vmem:[%s3865 + $0x10] sm:$0xf]
        %v3871 = vld [vmem:[%s3865 + $0x14] sm:$0xf]
        %v3872 = vld [vmem:[%s3865 + $0x18] sm:$0xf]
        %v3873 = vld [vmem:[%s3865 + $0x1c] sm:$0xf]
        %v3874 = vld [vmem:[%s3865 + $0x20] sm:$0xf]
        %v3875 = vld [vmem:[%s3865 + $0x24] sm:$0xf]
        %v3876 = vld [vmem:[%s3865 + $0x28] sm:$0xf]
        %v3877 = vld [vmem:[%s3865 + $0x2c] sm:$0xf]
        %v3878 = vld [vmem:[%s3865 + $0x30] sm:$0xf]
        %v3879 = vld [vmem:[%s3865 + $0x34] sm:$0xf]
        %v3880 = vld [vmem:[%s3865 + $0x38] sm:$0xf]
        %v3881 = vld [vmem:[%s3865 + $0x3c] sm:$0xf]
        %v3882 = vld [vmem:[%s3865 + $0x40] sm:$0xf]
        %v3883 = vld [vmem:[%s3865 + $0x44] sm:$0xf]
        %v3884 = vld [vmem:[%s3865 + $0x48] sm:$0xf]
        %v3885 = vld [vmem:[%s3865 + $0x4c] sm:$0xf]
        %v3886 = vld [vmem:[%s3865 + $0x50] sm:$0xf]
        %v3887 = vld [vmem:[%s3865 + $0x54] sm:$0xf]
        %v3888 = vld [vmem:[%s3865 + $0x58] sm:$0xf]
        %v3889 = vld [vmem:[%s3865 + $0x5c] sm:$0xf]
        %v3890 = vld [vmem:[%s3865 + $0x60] sm:$0xf]
        %v3891 = vld [vmem:[%s3865 + $0x64] sm:$0xf]
        %v3892 = vld [vmem:[%s3865 + $0x68] sm:$0xf]
        %v3893 = vld [vmem:[%s3865 + $0x6c] sm:$0xf]
        %v3894 = vld [vmem:[%s3865 + $0x70] sm:$0xf]
        %v3895 = vld [vmem:[%s3865 + $0x74] sm:$0xf]
        %v3896 = vld [vmem:[%s3865 + $0x78] sm:$0xf]
        %v3897 = vld [vmem:[%s3865 + $0x7c] sm:$0xf]
        %v3898 = vld [vmem:[%s3865 + $0x80] sm:$0xf]
        %v3899 = vld [vmem:[%s3865 + $0x84] sm:$0xf]
        %v3900 = vld [vmem:[%s3865 + $0x88] sm:$0xf]
        %v3901 = vld [vmem:[%s3865 + $0x8c] sm:$0xf]
        %v3902 = vld [vmem:[%s3865 + $0x90] sm:$0xf]
        %v3903 = vld [vmem:[%s3865 + $0x94] sm:$0xf]
        %v3904 = vld [vmem:[%s3865 + $0x98] sm:$0xf]
        %v3905 = vld [vmem:[%s3865 + $0x9c] sm:$0xf]
        %v3906 = vld [vmem:[%s3865 + $0xa0] sm:$0xf]
        %v3907 = vld [vmem:[%s3865 + $0xa4] sm:$0xf]
        %v3908 = vld [vmem:[%s3865 + $0xa8] sm:$0xf]
        %v3909 = vld [vmem:[%s3865 + $0xac] sm:$0xf]
        %v3910 = vld [vmem:[%s3865 + $0xb0] sm:$0xf]
        %v3911 = vld [vmem:[%s3865 + $0xb4] sm:$0xf]
        %v3912 = vld [vmem:[%s3865 + $0xb8] sm:$0xf]
        %v3913 = vld [vmem:[%s3865 + $0xbc] sm:$0xf]
        %v3962 = vunpack.c.l.b16 %v3866
        %v3963 = vunpack.c.l.b16 %v3867
        %v3964 = vunpack.c.l.b16 %v3868
        %v3965 = vunpack.c.l.b16 %v3869
        %v3966 = vunpack.c.l.b16 %v3870
        %v3967 = vunpack.c.l.b16 %v3871
        %v3968 = vunpack.c.l.b16 %v3872
        %v3969 = vunpack.c.l.b16 %v3873
        %v3970 = vunpack.c.l.b16 %v3874
        %v3971 = vunpack.c.l.b16 %v3875
        %v3972 = vunpack.c.l.b16 %v3876
        %v3973 = vunpack.c.l.b16 %v3877
        %v3974 = vunpack.c.l.b16 %v3878
        %v3975 = vunpack.c.l.b16 %v3879
        %v3976 = vunpack.c.l.b16 %v3880
        %v3977 = vunpack.c.l.b16 %v3881
        %v3978 = vunpack.c.l.b16 %v3882
        %v3979 = vunpack.c.l.b16 %v3883
        %v3980 = vunpack.c.l.b16 %v3884
        %v3981 = vunpack.c.l.b16 %v3885
        %v3982 = vunpack.c.l.b16 %v3886
        %v3983 = vunpack.c.l.b16 %v3887
        %v3984 = vunpack.c.l.b16 %v3888
        %v3985 = vunpack.c.l.b16 %v3889
        %v3986 = vunpack.c.l.b16 %v3890
        %v3987 = vunpack.c.l.b16 %v3891
        %v3988 = vunpack.c.l.b16 %v3892
        %v3989 = vunpack.c.l.b16 %v3893
        %v3990 = vunpack.c.l.b16 %v3894
        %v3991 = vunpack.c.l.b16 %v3895
        %v3992 = vunpack.c.l.b16 %v3896
        %v3993 = vunpack.c.l.b16 %v3897
        %v3994 = vunpack.c.l.b16 %v3898
        %v3995 = vunpack.c.l.b16 %v3899
        %v3996 = vunpack.c.l.b16 %v3900
        %v3997 = vunpack.c.l.b16 %v3901
        %v3998 = vunpack.c.l.b16 %v3902
        %v3999 = vunpack.c.l.b16 %v3903
        %v4000 = vunpack.c.l.b16 %v3904
        %v4001 = vunpack.c.l.b16 %v3905
        %v4002 = vunpack.c.l.b16 %v3906
        %v4003 = vunpack.c.l.b16 %v3907
        %v4004 = vunpack.c.l.b16 %v3908
        %v4005 = vunpack.c.l.b16 %v3909
        %v4006 = vunpack.c.l.b16 %v3910
        %v4007 = vunpack.c.l.b16 %v3911
        %v4008 = vunpack.c.l.b16 %v3912
        %v4009 = vunpack.c.l.b16 %v3913
        %v4010 = vpack.c.b16 %v3963, %v3962
        %v4011 = vpack.c.b16 %v3965, %v3964
        %v4012 = vpack.c.b16 %v3967, %v3966
        %v4013 = vpack.c.b16 %v3969, %v3968
        %v4014 = vpack.c.b16 %v3971, %v3970
        %v4015 = vpack.c.b16 %v3973, %v3972
        %v4016 = vpack.c.b16 %v3975, %v3974
        %v4017 = vpack.c.b16 %v3977, %v3976
        %v4018 = vpack.c.b16 %v3979, %v3978
        %v4019 = vpack.c.b16 %v3981, %v3980
        %v4020 = vpack.c.b16 %v3983, %v3982
        %v4021 = vpack.c.b16 %v3985, %v3984
        %v4022 = vpack.c.b16 %v3987, %v3986
        %v4023 = vpack.c.b16 %v3989, %v3988
        %v4024 = vpack.c.b16 %v3991, %v3990
        %v4025 = vpack.c.b16 %v3993, %v3992
        %v4026 = vpack.c.b16 %v3995, %v3994
        %v4027 = vpack.c.b16 %v3997, %v3996
        %v4028 = vpack.c.b16 %v3999, %v3998
        %v4029 = vpack.c.b16 %v4001, %v4000
        %v4030 = vpack.c.b16 %v4003, %v4002
        %v4031 = vpack.c.b16 %v4005, %v4004
        %v4032 = vpack.c.b16 %v4007, %v4006
        %v4033 = vpack.c.b16 %v4009, %v4008
        %4058 = vmatprep.subr.bf16.mxu0 0
        %4059 = vmatpush1.bf16.msra.mxu0 %v4010
        %4060 = vmatprep.subr.bf16.mxu0 0
        %4061 = vmatpush1.bf16.msra.mxu0 %v4011
        %4062 = vmatprep.subr.bf16.mxu0 0
        %4063 = vmatpush1.bf16.msra.mxu0 %v4012
        %4064 = vmatprep.subr.bf16.mxu0 0
        %4065 = vmatpush1.bf16.msra.mxu0 %v4013
        %4066 = vmatprep.subr.bf16.mxu0 0
        %4067 = vmatpush1.bf16.msra.mxu0 %v4014
        %4068 = vmatprep.subr.bf16.mxu0 0
        %4069 = vmatpush1.bf16.msra.mxu0 %v4015
        %4070 = vmatprep.subr.bf16.mxu0 0
        %4071 = vmatpush1.bf16.msra.mxu0 %v4016
        %4072 = vmatprep.subr.bf16.mxu0 0
        %4073 = vmatpush1.bf16.msra.mxu0 %v4017
        %4074 = vmatprep.subr.bf16.mxu0 0
        %4075 = vmatpush1.bf16.msra.mxu0 %v4018
        %4076 = vmatprep.subr.bf16.mxu0 0
        %4077 = vmatpush1.bf16.msra.mxu0 %v4019
        %4078 = vmatprep.subr.bf16.mxu0 0
        %4079 = vmatpush1.bf16.msra.mxu0 %v4020
        %4080 = vmatprep.subr.bf16.mxu0 0
        %4081 = vmatpush1.bf16.msra.mxu0 %v4021
        %4082 = vmatprep.subr.bf16.mxu0 0
        %4083 = vmatpush1.bf16.msra.mxu0 %v4022
        %4084 = vmatprep.subr.bf16.mxu0 0
        %4085 = vmatpush1.bf16.msra.mxu0 %v4023
        %4086 = vmatprep.subr.bf16.mxu0 0
        %4087 = vmatpush1.bf16.msra.mxu0 %v4024
        %4088 = vmatprep.subr.bf16.mxu0 0
        %4089 = vmatpush1.bf16.msra.mxu0 %v4025
        %4090 = vmatprep.mubr.bf16.mxu0 %v3842
        %4091 = vmatmul.mubr.bf16.gmra.mrb[0].mxu0 %v3841
        %v4092 = vpop.f32.mrb[0].mxu0
        %v4093 = vadd.f32 0.0, %v4092
        %v4094 = vpop.f32.mrb[0].mxu0
        %v4095 = vpop.f32.mrb[0].mxu0
        %v4096 = vadd.f32 0.0, %v4095
        %v4097 = vpop.f32.mrb[0].mxu0
        %4098 = vmatprep.mubr.bf16.mxu0 %v3845
        %4099 = vmatmul.mubr.bf16.gmra.mrb[0].mxu0 %v3844
        %v4100 = vpop.f32.mrb[0].mxu0
        %v4101 = vadd.f32 0.0, %v4100
        %v4102 = vpop.f32.mrb[0].mxu0
        %v4103 = vpop.f32.mrb[0].mxu0
        %v4104 = vadd.f32 0.0, %v4103
        %v4105 = vpop.f32.mrb[0].mxu0
        %4106 = vmatprep.mubr.bf16.mxu0 %v3848
        %4107 = vmatmul.mubr.bf16.gmra.mrb[0].mxu0 %v3847
        %v4108 = vpop.f32.mrb[0].mxu0
        %v4109 = vadd.f32 0.0, %v4108
        %v4110 = vpop.f32.mrb[0].mxu0
        %v4111 = vpop.f32.mrb[0].mxu0
        %v4112 = vadd.f32 0.0, %v4111
        %v4113 = vpop.f32.mrb[0].mxu0
        %4114 = vmatprep.mubr.bf16.mxu0 %v3851
        %4115 = vmatmul.mubr.bf16.gmra.mrb[0].mxu0 %v3850
        %v4116 = vpop.f32.mrb[0].mxu0
        %v4117 = vadd.f32 0.0, %v4116
        %v4118 = vpop.f32.mrb[0].mxu0
        %v4119 = vpop.f32.mrb[0].mxu0
        %v4120 = vadd.f32 0.0, %v4119
        %v4121 = vpop.f32.mrb[0].mxu0
        %4122 = vmatprep.mubr.bf16.mxu0 %v3854
        %4123 = vmatmul.mubr.bf16.gmra.mrb[0].mxu0 %v3853
        %v4124 = vpop.f32.mrb[0].mxu0
        %v4125 = vadd.f32 0.0, %v4124
        %v4126 = vpop.f32.mrb[0].mxu0
        %v4127 = vpop.f32.mrb[0].mxu0
        %v4128 = vadd.f32 0.0, %v4127
        %v4129 = vpop.f32.mrb[0].mxu0
        %4130 = vmatprep.mubr.bf16.mxu0 %v3857
        %4131 = vmatmul.mubr.bf16.gmra.mrb[0].mxu0 %v3856
        %v4132 = vpop.f32.mrb[0].mxu0
        %v4133 = vadd.f32 0.0, %v4132
        %v4134 = vpop.f32.mrb[0].mxu0
        %v4135 = vpop.f32.mrb[0].mxu0
        %v4136 = vadd.f32 0.0, %v4135
        %v4137 = vpop.f32.mrb[0].mxu0
        %4138 = vmatprep.mubr.bf16.mxu0 %v3860
        %4139 = vmatmul.mubr.bf16.gmra.mrb[0].mxu0 %v3859
        %v4140 = vpop.f32.mrb[0].mxu0
        %v4141 = vadd.f32 0.0, %v4140
        %v4142 = vpop.f32.mrb[0].mxu0
        %v4143 = vpop.f32.mrb[0].mxu0
        %v4144 = vadd.f32 0.0, %v4143
        %v4145 = vpop.f32.mrb[0].mxu0
        %4146 = vmatprep.mubr.bf16.mxu0 %v3863
        %4147 = vmatmul.mubr.bf16.gmra.mrb[0].mxu0 %v3862
        %v4148 = vpop.f32.mrb[0].mxu0
        %v4149 = vadd.f32 0.0, %v4148
        %v4150 = vpop.f32.mrb[0].mxu0
        %v4151 = vpop.f32.mrb[0].mxu0
        %v4152 = vadd.f32 0.0, %v4151
        %v4153 = vpop.f32.mrb[0].mxu0
        %4154 = vdwg.mxu0
        %4155 = vmatprep.subr.bf16.mxu0 0
        %4156 = vmatpush1.bf16.msra.mxu0 %v4026
        %4157 = vmatprep.subr.bf16.mxu0 0
        %4158 = vmatpush1.bf16.msra.mxu0 %v4027
        %4159 = vmatprep.subr.bf16.mxu0 0
        %4160 = vmatpush1.bf16.msra.mxu0 %v4028
        %4161 = vmatprep.subr.bf16.mxu0 0
        %4162 = vmatpush1.bf16.msra.mxu0 %v4029
        %4163 = vmatprep.subr.bf16.mxu0 0
        %4164 = vmatpush1.bf16.msra.mxu0 %v4030
        %4165 = vmatprep.subr.bf16.mxu0 0
        %4166 = vmatpush1.bf16.msra.mxu0 %v4031
        %4167 = vmatprep.subr.bf16.mxu0 0
        %4168 = vmatpush1.bf16.msra.mxu0 %v4032
        %4169 = vmatprep.subr.bf16.mxu0 0
        %4170 = vmatpush1.bf16.msra.mxu0 %v4033
        %4171 = vmatprep.subr.bf16.mxu0 0
        %4172 = vmatpush1.bf16.msra.mxu0 0
        %4173 = vmatprep.subr.bf16.mxu0 0
        %4174 = vmatpush1.bf16.msra.mxu0 0
        %4175 = vmatprep.subr.bf16.mxu0 0
        %4176 = vmatpush1.bf16.msra.mxu0 0
        %4177 = vmatprep.subr.bf16.mxu0 0
        %4178 = vmatpush1.bf16.msra.mxu0 0
        %4179 = vmatprep.subr.bf16.mxu0 0
        %4180 = vmatpush1.bf16.msra.mxu0 0
        %4181 = vmatprep.subr.bf16.mxu0 0
        %4182 = vmatpush1.bf16.msra.mxu0 0
        %4183 = vmatprep.subr.bf16.mxu0 0
        %4184 = vmatpush1.bf16.msra.mxu0 0
        %4185 = vmatprep.subr.bf16.mxu0 0
        %4186 = vmatpush1.bf16.msra.mxu0 0
        %4187 = vmatprep.mubr.bf16.mxu0 0
        %4188 = vmatmul.mubr.bf16.gmra.mrb[0].mxu0 %v3843
        %v4189 = vpop.f32.mrb[0].mxu0
        %v4190 = vadd.f32 %v4093, %v4189
        %v4191 = vpop.f32.mrb[0].mxu0
        %v4192 = vpop.f32.mrb[0].mxu0
        %v4193 = vadd.f32 %v4096, %v4192
        %v4194 = vpop.f32.mrb[0].mxu0
        %4195 = vmatprep.mubr.bf16.mxu0 0
        %4196 = vmatmul.mubr.bf16.gmra.mrb[0].mxu0 %v3846
        %v4197 = vpop.f32.mrb[0].mxu0
        %v4198 = vadd.f32 %v4101, %v4197
        %v4199 = vpop.f32.mrb[0].mxu0
        %v4200 = vpop.f32.mrb[0].mxu0
        %v4201 = vadd.f32 %v4104, %v4200
        %v4202 = vpop.f32.mrb[0].mxu0
        %4203 = vmatprep.mubr.bf16.mxu0 0
        %4204 = vmatmul.mubr.bf16.gmra.mrb[0].mxu0 %v3849
        %v4205 = vpop.f32.mrb[0].mxu0
        %v4206 = vadd.f32 %v4109, %v4205
        %v4207 = vpop.f32.mrb[0].mxu0
        %v4208 = vpop.f32.mrb[0].mxu0
        %v4209 = vadd.f32 %v4112, %v4208
        %v4210 = vpop.f32.mrb[0].mxu0
        %4211 = vmatprep.mubr.bf16.mxu0 0
        %4212 = vmatmul.mubr.bf16.gmra.mrb[0].mxu0 %v3852
        %v4213 = vpop.f32.mrb[0].mxu0
        %v4214 = vadd.f32 %v4117, %v4213
        %v4215 = vpop.f32.mrb[0].mxu0
        %v4216 = vpop.f32.mrb[0].mxu0
        %v4217 = vadd.f32 %v4120, %v4216
        %v4218 = vpop.f32.mrb[0].mxu0
        %4219 = vmatprep.mubr.bf16.mxu0 0
        %4220 = vmatmul.mubr.bf16.gmra.mrb[0].mxu0 %v3855
        %v4221 = vpop.f32.mrb[0].mxu0
        %v4222 = vadd.f32 %v4125, %v4221
        %v4223 = vpop.f32.mrb[0].mxu0
        %v4224 = vpop.f32.mrb[0].mxu0
        %v4225 = vadd.f32 %v4128, %v4224
        %v4226 = vpop.f32.mrb[0].mxu0
        %4227 = vmatprep.mubr.bf16.mxu0 0
        %4228 = vmatmul.mubr.bf16.gmra.mrb[0].mxu0 %v3858
        %v4229 = vpop.f32.mrb[0].mxu0
        %v4230 = vadd.f32 %v4133, %v4229
        %v4231 = vpop.f32.mrb[0].mxu0
        %v4232 = vpop.f32.mrb[0].mxu0
        %v4233 = vadd.f32 %v4136, %v4232
        %v4234 = vpop.f32.mrb[0].mxu0
        %4235 = vmatprep.mubr.bf16.mxu0 0
        %4236 = vmatmul.mubr.bf16.gmra.mrb[0].mxu0 %v3861
        %v4237 = vpop.f32.mrb[0].mxu0
        %v4238 = vadd.f32 %v4141, %v4237
        %v4239 = vpop.f32.mrb[0].mxu0
        %v4240 = vpop.f32.mrb[0].mxu0
        %v4241 = vadd.f32 %v4144, %v4240
        %v4242 = vpop.f32.mrb[0].mxu0
        %4243 = vmatprep.mubr.bf16.mxu0 0
        %4244 = vmatmul.mubr.bf16.gmra.mrb[0].mxu0 %v3864
        %v4245 = vpop.f32.mrb[0].mxu0
        %v4246 = vadd.f32 %v4149, %v4245
        %v4247 = vpop.f32.mrb[0].mxu0
        %v4248 = vpop.f32.mrb[0].mxu0
        %v4249 = vadd.f32 %v4152, %v4248
        %v4250 = vpop.f32.mrb[0].mxu0
        %4251 = vdwg.mxu0
        %v4300 = vunpack.c.l.b16 %v3793
        %v4301 = vunpack.c.l.b16 %v3794
        %v4302 = vunpack.c.l.b16 %v3795
        %v4303 = vunpack.c.l.b16 %v3796
        %v4304 = vunpack.c.l.b16 %v3797
        %v4305 = vunpack.c.l.b16 %v3798
        %v4306 = vunpack.c.l.b16 %v3799
        %v4307 = vunpack.c.l.b16 %v3800
        %v4308 = vunpack.c.l.b16 %v3801
        %v4309 = vunpack.c.l.b16 %v3802
        %v4310 = vunpack.c.l.b16 %v3803
        %v4311 = vunpack.c.l.b16 %v3804
        %v4312 = vunpack.c.l.b16 %v3805
        %v4313 = vunpack.c.l.b16 %v3806
        %v4314 = vunpack.c.l.b16 %v3807
        %v4315 = vunpack.c.l.b16 %v3808
        %v4316 = vunpack.c.l.b16 %v3809
        %v4317 = vunpack.c.l.b16 %v3810
        %v4318 = vunpack.c.l.b16 %v3811
        %v4319 = vunpack.c.l.b16 %v3812
        %v4320 = vunpack.c.l.b16 %v3813
        %v4321 = vunpack.c.l.b16 %v3814
        %v4322 = vunpack.c.l.b16 %v3815
        %v4323 = vunpack.c.l.b16 %v3816
        %v4324 = vunpack.c.l.b16 %v3817
        %v4325 = vunpack.c.l.b16 %v3818
        %v4326 = vunpack.c.l.b16 %v3819
        %v4327 = vunpack.c.l.b16 %v3820
        %v4328 = vunpack.c.l.b16 %v3821
        %v4329 = vunpack.c.l.b16 %v3822
        %v4330 = vunpack.c.l.b16 %v3823
        %v4331 = vunpack.c.l.b16 %v3824
        %v4332 = vunpack.c.l.b16 %v3825
        %v4333 = vunpack.c.l.b16 %v3826
        %v4334 = vunpack.c.l.b16 %v3827
        %v4335 = vunpack.c.l.b16 %v3828
        %v4336 = vunpack.c.l.b16 %v3829
        %v4337 = vunpack.c.l.b16 %v3830
        %v4338 = vunpack.c.l.b16 %v3831
        %v4339 = vunpack.c.l.b16 %v3832
        %v4340 = vunpack.c.l.b16 %v3833
        %v4341 = vunpack.c.l.b16 %v3834
        %v4342 = vunpack.c.l.b16 %v3835
        %v4343 = vunpack.c.l.b16 %v3836
        %v4344 = vunpack.c.l.b16 %v3837
        %v4345 = vunpack.c.l.b16 %v3838
        %v4346 = vunpack.c.l.b16 %v3839
        %v4347 = vunpack.c.l.b16 %v3840
        %v4348 = vpack.c.b16 %v4301, %v4300
        %v4349 = vpack.c.b16 %v4303, %v4302
        %v4350 = vpack.c.b16 %v4305, %v4304
        %v4351 = vpack.c.b16 %v4307, %v4306
        %v4352 = vpack.c.b16 %v4309, %v4308
        %v4353 = vpack.c.b16 %v4311, %v4310
        %v4354 = vpack.c.b16 %v4313, %v4312
        %v4355 = vpack.c.b16 %v4315, %v4314
        %v4356 = vpack.c.b16 %v4317, %v4316
        %v4357 = vpack.c.b16 %v4319, %v4318
        %v4358 = vpack.c.b16 %v4321, %v4320
        %v4359 = vpack.c.b16 %v4323, %v4322
        %v4360 = vpack.c.b16 %v4325, %v4324
        %v4361 = vpack.c.b16 %v4327, %v4326
        %v4362 = vpack.c.b16 %v4329, %v4328
        %v4363 = vpack.c.b16 %v4331, %v4330
        %v4364 = vpack.c.b16 %v4333, %v4332
        %v4365 = vpack.c.b16 %v4335, %v4334
        %v4366 = vpack.c.b16 %v4337, %v4336
        %v4367 = vpack.c.b16 %v4339, %v4338
        %v4368 = vpack.c.b16 %v4341, %v4340
        %v4369 = vpack.c.b16 %v4343, %v4342
        %v4370 = vpack.c.b16 %v4345, %v4344
        %v4371 = vpack.c.b16 %v4347, %v4346
        %4396 = vmatprep.subr.bf16.mxu0 0
        %4397 = vmatpush1.bf16.msra.mxu0 %v4348
        %4398 = vmatprep.subr.bf16.mxu0 0
        %4399 = vmatpush1.bf16.msra.mxu0 %v4349
        %4400 = vmatprep.subr.bf16.mxu0 0
        %4401 = vmatpush1.bf16.msra.mxu0 %v4350
        %4402 = vmatprep.subr.bf16.mxu0 0
        %4403 = vmatpush1.bf16.msra.mxu0 %v4351
        %4404 = vmatprep.subr.bf16.mxu0 0
        %4405 = vmatpush1.bf16.msra.mxu0 %v4352
        %4406 = vmatprep.subr.bf16.mxu0 0
        %4407 = vmatpush1.bf16.msra.mxu0 %v4353
        %4408 = vmatprep.subr.bf16.mxu0 0
        %4409 = vmatpush1.bf16.msra.mxu0 %v4354
        %4410 = vmatprep.subr.bf16.mxu0 0
        %4411 = vmatpush1.bf16.msra.mxu0 %v4355
        %4412 = vmatprep.subr.bf16.mxu0 0
        %4413 = vmatpush1.bf16.msra.mxu0 %v4356
        %4414 = vmatprep.subr.bf16.mxu0 0
        %4415 = vmatpush1.bf16.msra.mxu0 %v4357
        %4416 = vmatprep.subr.bf16.mxu0 0
        %4417 = vmatpush1.bf16.msra.mxu0 %v4358
        %4418 = vmatprep.subr.bf16.mxu0 0
        %4419 = vmatpush1.bf16.msra.mxu0 %v4359
        %4420 = vmatprep.subr.bf16.mxu0 0
        %4421 = vmatpush1.bf16.msra.mxu0 %v4360
        %4422 = vmatprep.subr.bf16.mxu0 0
        %4423 = vmatpush1.bf16.msra.mxu0 %v4361
        %4424 = vmatprep.subr.bf16.mxu0 0
        %4425 = vmatpush1.bf16.msra.mxu0 %v4362
        %4426 = vmatprep.subr.bf16.mxu0 0
        %4427 = vmatpush1.bf16.msra.mxu0 %v4363
        %4428 = vmatprep.mubr.bf16.mxu0 %v3770
        %4429 = vmatmul.mubr.bf16.gmra.mrb[0].mxu0 %v3769
        %v4430 = vpop.f32.mrb[0].mxu0
        %v4431 = vadd.f32 %v4190, %v4430
        %v4432 = vpop.f32.mrb[0].mxu0
        %v4433 = vpop.f32.mrb[0].mxu0
        %v4434 = vadd.f32 %v4193, %v4433
        %v4435 = vpop.f32.mrb[0].mxu0
        %4436 = vmatprep.mubr.bf16.mxu0 %v3773
        %4437 = vmatmul.mubr.bf16.gmra.mrb[0].mxu0 %v3772
        %v4438 = vpop.f32.mrb[0].mxu0
        %v4439 = vadd.f32 %v4198, %v4438
        %v4440 = vpop.f32.mrb[0].mxu0
        %v4441 = vpop.f32.mrb[0].mxu0
        %v4442 = vadd.f32 %v4201, %v4441
        %v4443 = vpop.f32.mrb[0].mxu0
        %4444 = vmatprep.mubr.bf16.mxu0 %v3776
        %4445 = vmatmul.mubr.bf16.gmra.mrb[0].mxu0 %v3775
        %v4446 = vpop.f32.mrb[0].mxu0
        %v4447 = vadd.f32 %v4206, %v4446
        %v4448 = vpop.f32.mrb[0].mxu0
        %v4449 = vpop.f32.mrb[0].mxu0
        %v4450 = vadd.f32 %v4209, %v4449
        %v4451 = vpop.f32.mrb[0].mxu0
        %4452 = vmatprep.mubr.bf16.mxu0 %v3779
        %4453 = vmatmul.mubr.bf16.gmra.mrb[0].mxu0 %v3778
        %v4454 = vpop.f32.mrb[0].mxu0
        %v4455 = vadd.f32 %v4214, %v4454
        %v4456 = vpop.f32.mrb[0].mxu0
        %v4457 = vpop.f32.mrb[0].mxu0
        %v4458 = vadd.f32 %v4217, %v4457
        %v4459 = vpop.f32.mrb[0].mxu0
        %4460 = vmatprep.mubr.bf16.mxu0 %v3782
        %4461 = vmatmul.mubr.bf16.gmra.mrb[0].mxu0 %v3781
        %v4462 = vpop.f32.mrb[0].mxu0
        %v4463 = vadd.f32 %v4222, %v4462
        %v4464 = vpop.f32.mrb[0].mxu0
        %v4465 = vpop.f32.mrb[0].mxu0
        %v4466 = vadd.f32 %v4225, %v4465
        %v4467 = vpop.f32.mrb[0].mxu0
        %4468 = vmatprep.mubr.bf16.mxu0 %v3785
        %4469 = vmatmul.mubr.bf16.gmra.mrb[0].mxu0 %v3784
        %v4470 = vpop.f32.mrb[0].mxu0
        %v4471 = vadd.f32 %v4230, %v4470
        %v4472 = vpop.f32.mrb[0].mxu0
        %v4473 = vpop.f32.mrb[0].mxu0
        %v4474 = vadd.f32 %v4233, %v4473
        %v4475 = vpop.f32.mrb[0].mxu0
        %4476 = vmatprep.mubr.bf16.mxu0 %v3788
        %4477 = vmatmul.mubr.bf16.gmra.mrb[0].mxu0 %v3787
        %v4478 = vpop.f32.mrb[0].mxu0
        %v4479 = vadd.f32 %v4238, %v4478
        %v4480 = vpop.f32.mrb[0].mxu0
        %v4481 = vpop.f32.mrb[0].mxu0
        %v4482 = vadd.f32 %v4241, %v4481
        %v4483 = vpop.f32.mrb[0].mxu0
        %4484 = vmatprep.mubr.bf16.mxu0 %v3791
        %4485 = vmatmul.mubr.bf16.gmra.mrb[0].mxu0 %v3790
        %v4486 = vpop.f32.mrb[0].mxu0
        %v4487 = vadd.f32 %v4246, %v4486
        %v4488 = vpop.f32.mrb[0].mxu0
        %v4489 = vpop.f32.mrb[0].mxu0
        %v4490 = vadd.f32 %v4249, %v4489
        %v4491 = vpop.f32.mrb[0].mxu0
        %4492 = vdwg.mxu0
        %4493 = vmatprep.subr.bf16.mxu0 0
        %4494 = vmatpush1.bf16.msra.mxu0 %v4364
        %4495 = vmatprep.subr.bf16.mxu0 0
        %4496 = vmatpush1.bf16.msra.mxu0 %v4365
        %4497 = vmatprep.subr.bf16.mxu0 0
        %4498 = vmatpush1.bf16.msra.mxu0 %v4366
        %4499 = vmatprep.subr.bf16.mxu0 0
        %4500 = vmatpush1.bf16.msra.mxu0 %v4367
        %4501 = vmatprep.subr.bf16.mxu0 0
        %4502 = vmatpush1.bf16.msra.mxu0 %v4368
        %4503 = vmatprep.subr.bf16.mxu0 0
        %4504 = vmatpush1.bf16.msra.mxu0 %v4369
        %4505 = vmatprep.subr.bf16.mxu0 0
        %4506 = vmatpush1.bf16.msra.mxu0 %v4370
        %4507 = vmatprep.subr.bf16.mxu0 0
        %4508 = vmatpush1.bf16.msra.mxu0 %v4371
        %4509 = vmatprep.subr.bf16.mxu0 0
        %4510 = vmatpush1.bf16.msra.mxu0 0
        %4511 = vmatprep.subr.bf16.mxu0 0
        %4512 = vmatpush1.bf16.msra.mxu0 0
        %4513 = vmatprep.subr.bf16.mxu0 0
        %4514 = vmatpush1.bf16.msra.mxu0 0
        %4515 = vmatprep.subr.bf16.mxu0 0
        %4516 = vmatpush1.bf16.msra.mxu0 0
        %4517 = vmatprep.subr.bf16.mxu0 0
        %4518 = vmatpush1.bf16.msra.mxu0 0
        %4519 = vmatprep.subr.bf16.mxu0 0
        %4520 = vmatpush1.bf16.msra.mxu0 0
        %4521 = vmatprep.subr.bf16.mxu0 0
        %4522 = vmatpush1.bf16.msra.mxu0 0
        %4523 = vmatprep.subr.bf16.mxu0 0
        %4524 = vmatpush1.bf16.msra.mxu0 0
        %4525 = vmatprep.mubr.bf16.mxu0 0
        %4526 = vmatmul.mubr.bf16.gmra.mrb[0].mxu0 %v3771
        %v4527 = vpop.f32.mrb[0].mxu0
        %v4528 = vadd.f32 %v4431, %v4527
        %v4529 = vpop.f32.mrb[0].mxu0
        %v4530 = vpop.f32.mrb[0].mxu0
        %v4531 = vadd.f32 %v4434, %v4530
        %v4532 = vpop.f32.mrb[0].mxu0
        %4533 = vmatprep.mubr.bf16.mxu0 0
        %4534 = vmatmul.mubr.bf16.gmra.mrb[0].mxu0 %v3774
        %v4535 = vpop.f32.mrb[0].mxu0
        %v4536 = vadd.f32 %v4439, %v4535
        %v4537 = vpop.f32.mrb[0].mxu0
        %v4538 = vpop.f32.mrb[0].mxu0
        %v4539 = vadd.f32 %v4442, %v4538
        %v4540 = vpop.f32.mrb[0].mxu0
        %4541 = vmatprep.mubr.bf16.mxu0 0
        %4542 = vmatmul.mubr.bf16.gmra.mrb[0].mxu0 %v3777
        %v4543 = vpop.f32.mrb[0].mxu0
        %v4544 = vadd.f32 %v4447, %v4543
        %v4545 = vpop.f32.mrb[0].mxu0
        %v4546 = vpop.f32.mrb[0].mxu0
        %v4547 = vadd.f32 %v4450, %v4546
        %v4548 = vpop.f32.mrb[0].mxu0
        %4549 = vmatprep.mubr.bf16.mxu0 0
        %4550 = vmatmul.mubr.bf16.gmra.mrb[0].mxu0 %v3780
        %v4551 = vpop.f32.mrb[0].mxu0
        %v4552 = vadd.f32 %v4455, %v4551
        %v4553 = vpop.f32.mrb[0].mxu0
        %v4554 = vpop.f32.mrb[0].mxu0
        %v4555 = vadd.f32 %v4458, %v4554
        %v4556 = vpop.f32.mrb[0].mxu0
        %4557 = vmatprep.mubr.bf16.mxu0 0
        %4558 = vmatmul.mubr.bf16.gmra.mrb[0].mxu0 %v3783
        %v4559 = vpop.f32.mrb[0].mxu0
        %v4560 = vadd.f32 %v4463, %v4559
        %v4561 = vpop.f32.mrb[0].mxu0
        %v4562 = vpop.f32.mrb[0].mxu0
        %v4563 = vadd.f32 %v4466, %v4562
        %v4564 = vpop.f32.mrb[0].mxu0
        %4565 = vmatprep.mubr.bf16.mxu0 0
        %4566 = vmatmul.mubr.bf16.gmra.mrb[0].mxu0 %v3786
        %v4567 = vpop.f32.mrb[0].mxu0
        %v4568 = vadd.f32 %v4471, %v4567
        %v4569 = vpop.f32.mrb[0].mxu0
        %v4570 = vpop.f32.mrb[0].mxu0
        %v4571 = vadd.f32 %v4474, %v4570
        %v4572 = vpop.f32.mrb[0].mxu0
        %4573 = vmatprep.mubr.bf16.mxu0 0
        %4574 = vmatmul.mubr.bf16.gmra.mrb[0].mxu0 %v3789
        %v4575 = vpop.f32.mrb[0].mxu0
        %v4576 = vadd.f32 %v4479, %v4575
        %v4577 = vpop.f32.mrb[0].mxu0
        %v4578 = vpop.f32.mrb[0].mxu0
        %v4579 = vadd.f32 %v4482, %v4578
        %v4580 = vpop.f32.mrb[0].mxu0
        %4581 = vmatprep.mubr.bf16.mxu0 0
        %4582 = vmatmul.mubr.bf16.gmra.mrb[0].mxu0 %v3792
        %v4583 = vpop.f32.mrb[0].mxu0
        %v4584 = vadd.f32 %v4487, %v4583
        %v4585 = vpop.f32.mrb[0].mxu0
        %v4586 = vpop.f32.mrb[0].mxu0
        %v4587 = vadd.f32 %v4490, %v4586
        %v4588 = vpop.f32.mrb[0].mxu0
        %4589 = vdwg.mxu0
        %s4590 = scalar_lea.vmem [#allocation3], 48
        %v4591 = vld [vmem:[%s4590] sm:$0xff]
        %v4592 = vld [vmem:[%s4590 + $0x8] sm:$0xff]
        %v4593 = vld [vmem:[%s4590 + $0x10] sm:$0xff]
        %v4594 = vld [vmem:[%s4590 + $0x18] sm:$0xff]
        %v4595 = vld [vmem:[%s4590 + $0x20] sm:$0xff]
        %v4596 = vld [vmem:[%s4590 + $0x28] sm:$0xff]
        %v4597 = vld [vmem:[%s4590 + $0x30] sm:$0xff]
        %v4598 = vld [vmem:[%s4590 + $0x38] sm:$0xff]
        %v4599 = vld [vmem:[%s4590 + $0x40] sm:$0xff]
        %v4600 = vld [vmem:[%s4590 + $0x48] sm:$0xff]
        %v4601 = vld [vmem:[%s4590 + $0x50] sm:$0xff]
        %v4602 = vld [vmem:[%s4590 + $0x58] sm:$0xff]
        %v4603 = vld [vmem:[%s4590 + $0x60] sm:$0xff]
        %v4604 = vld [vmem:[%s4590 + $0x68] sm:$0xff]
        %v4605 = vld [vmem:[%s4590 + $0x70] sm:$0xff]
        %v4606 = vld [vmem:[%s4590 + $0x78] sm:$0xff]
        %v4607 = vld [vmem:[%s4590 + $0x80] sm:$0xff]
        %v4608 = vld [vmem:[%s4590 + $0x88] sm:$0xff]
        %v4609 = vld [vmem:[%s4590 + $0x90] sm:$0xff]
        %v4610 = vld [vmem:[%s4590 + $0x98] sm:$0xff]
        %v4611 = vld [vmem:[%s4590 + $0xa0] sm:$0xff]
        %v4612 = vld [vmem:[%s4590 + $0xa8] sm:$0xff]
        %v4613 = vld [vmem:[%s4590 + $0xb0] sm:$0xff]
        %v4614 = vld [vmem:[%s4590 + $0xb8] sm:$0xff]
        %s4615 = scalar_lea.vmem [#allocation9], 384
        %v4616 = vld [vmem:[%s4615] sm:$0xf]
        %v4617 = vld [vmem:[%s4615 + $0x4] sm:$0xf]
        %v4618 = vld [vmem:[%s4615 + $0x8] sm:$0xf]
        %v4619 = vld [vmem:[%s4615 + $0xc] sm:$0xf]
        %v4620 = vld [vmem:[%s4615 + $0x10] sm:$0xf]
        %v4621 = vld [vmem:[%s4615 + $0x14] sm:$0xf]
        %v4622 = vld [vmem:[%s4615 + $0x18] sm:$0xf]
        %v4623 = vld [vmem:[%s4615 + $0x1c] sm:$0xf]
        %v4624 = vld [vmem:[%s4615 + $0x20] sm:$0xf]
        %v4625 = vld [vmem:[%s4615 + $0x24] sm:$0xf]
        %v4626 = vld [vmem:[%s4615 + $0x28] sm:$0xf]
        %v4627 = vld [vmem:[%s4615 + $0x2c] sm:$0xf]
        %v4628 = vld [vmem:[%s4615 + $0x30] sm:$0xf]
        %v4629 = vld [vmem:[%s4615 + $0x34] sm:$0xf]
        %v4630 = vld [vmem:[%s4615 + $0x38] sm:$0xf]
        %v4631 = vld [vmem:[%s4615 + $0x3c] sm:$0xf]
        %v4632 = vld [vmem:[%s4615 + $0x40] sm:$0xf]
        %v4633 = vld [vmem:[%s4615 + $0x44] sm:$0xf]
        %v4634 = vld [vmem:[%s4615 + $0x48] sm:$0xf]
        %v4635 = vld [vmem:[%s4615 + $0x4c] sm:$0xf]
        %v4636 = vld [vmem:[%s4615 + $0x50] sm:$0xf]
        %v4637 = vld [vmem:[%s4615 + $0x54] sm:$0xf]
        %v4638 = vld [vmem:[%s4615 + $0x58] sm:$0xf]
        %v4639 = vld [vmem:[%s4615 + $0x5c] sm:$0xf]
        %v4640 = vld [vmem:[%s4615 + $0x60] sm:$0xf]
        %v4641 = vld [vmem:[%s4615 + $0x64] sm:$0xf]
        %v4642 = vld [vmem:[%s4615 + $0x68] sm:$0xf]
        %v4643 = vld [vmem:[%s4615 + $0x6c] sm:$0xf]
        %v4644 = vld [vmem:[%s4615 + $0x70] sm:$0xf]
        %v4645 = vld [vmem:[%s4615 + $0x74] sm:$0xf]
        %v4646 = vld [vmem:[%s4615 + $0x78] sm:$0xf]
        %v4647 = vld [vmem:[%s4615 + $0x7c] sm:$0xf]
        %v4648 = vld [vmem:[%s4615 + $0x80] sm:$0xf]
        %v4649 = vld [vmem:[%s4615 + $0x84] sm:$0xf]
        %v4650 = vld [vmem:[%s4615 + $0x88] sm:$0xf]
        %v4651 = vld [vmem:[%s4615 + $0x8c] sm:$0xf]
        %v4652 = vld [vmem:[%s4615 + $0x90] sm:$0xf]
        %v4653 = vld [vmem:[%s4615 + $0x94] sm:$0xf]
        %v4654 = vld [vmem:[%s4615 + $0x98] sm:$0xf]
        %v4655 = vld [vmem:[%s4615 + $0x9c] sm:$0xf]
        %v4656 = vld [vmem:[%s4615 + $0xa0] sm:$0xf]
        %v4657 = vld [vmem:[%s4615 + $0xa4] sm:$0xf]
        %v4658 = vld [vmem:[%s4615 + $0xa8] sm:$0xf]
        %v4659 = vld [vmem:[%s4615 + $0xac] sm:$0xf]
        %v4660 = vld [vmem:[%s4615 + $0xb0] sm:$0xf]
        %v4661 = vld [vmem:[%s4615 + $0xb4] sm:$0xf]
        %v4662 = vld [vmem:[%s4615 + $0xb8] sm:$0xf]
        %v4663 = vld [vmem:[%s4615 + $0xbc] sm:$0xf]
        %v4712 = vunpack.c.l.b16 %v4616
        %v4713 = vunpack.c.l.b16 %v4617
        %v4714 = vunpack.c.l.b16 %v4618
        %v4715 = vunpack.c.l.b16 %v4619
        %v4716 = vunpack.c.l.b16 %v4620
        %v4717 = vunpack.c.l.b16 %v4621
        %v4718 = vunpack.c.l.b16 %v4622
        %v4719 = vunpack.c.l.b16 %v4623
        %v4720 = vunpack.c.l.b16 %v4624
        %v4721 = vunpack.c.l.b16 %v4625
        %v4722 = vunpack.c.l.b16 %v4626
        %v4723 = vunpack.c.l.b16 %v4627
        %v4724 = vunpack.c.l.b16 %v4628
        %v4725 = vunpack.c.l.b16 %v4629
        %v4726 = vunpack.c.l.b16 %v4630
        %v4727 = vunpack.c.l.b16 %v4631
        %v4728 = vunpack.c.l.b16 %v4632
        %v4729 = vunpack.c.l.b16 %v4633
        %v4730 = vunpack.c.l.b16 %v4634
        %v4731 = vunpack.c.l.b16 %v4635
        %v4732 = vunpack.c.l.b16 %v4636
        %v4733 = vunpack.c.l.b16 %v4637
        %v4734 = vunpack.c.l.b16 %v4638
        %v4735 = vunpack.c.l.b16 %v4639
        %v4736 = vunpack.c.l.b16 %v4640
        %v4737 = vunpack.c.l.b16 %v4641
        %v4738 = vunpack.c.l.b16 %v4642
        %v4739 = vunpack.c.l.b16 %v4643
        %v4740 = vunpack.c.l.b16 %v4644
        %v4741 = vunpack.c.l.b16 %v4645
        %v4742 = vunpack.c.l.b16 %v4646
        %v4743 = vunpack.c.l.b16 %v4647
        %v4744 = vunpack.c.l.b16 %v4648
        %v4745 = vunpack.c.l.b16 %v4649
        %v4746 = vunpack.c.l.b16 %v4650
        %v4747 = vunpack.c.l.b16 %v4651
        %v4748 = vunpack.c.l.b16 %v4652
        %v4749 = vunpack.c.l.b16 %v4653
        %v4750 = vunpack.c.l.b16 %v4654
        %v4751 = vunpack.c.l.b16 %v4655
        %v4752 = vunpack.c.l.b16 %v4656
        %v4753 = vunpack.c.l.b16 %v4657
        %v4754 = vunpack.c.l.b16 %v4658
        %v4755 = vunpack.c.l.b16 %v4659
        %v4756 = vunpack.c.l.b16 %v4660
        %v4757 = vunpack.c.l.b16 %v4661
        %v4758 = vunpack.c.l.b16 %v4662
        %v4759 = vunpack.c.l.b16 %v4663
        %v4760 = vpack.c.b16 %v4713, %v4712
        %v4761 = vpack.c.b16 %v4715, %v4714
        %v4762 = vpack.c.b16 %v4717, %v4716
        %v4763 = vpack.c.b16 %v4719, %v4718
        %v4764 = vpack.c.b16 %v4721, %v4720
        %v4765 = vpack.c.b16 %v4723, %v4722
        %v4766 = vpack.c.b16 %v4725, %v4724
        %v4767 = vpack.c.b16 %v4727, %v4726
        %v4768 = vpack.c.b16 %v4729, %v4728
        %v4769 = vpack.c.b16 %v4731, %v4730
        %v4770 = vpack.c.b16 %v4733, %v4732
        %v4771 = vpack.c.b16 %v4735, %v4734
        %v4772 = vpack.c.b16 %v4737, %v4736
        %v4773 = vpack.c.b16 %v4739, %v4738
        %v4774 = vpack.c.b16 %v4741, %v4740
        %v4775 = vpack.c.b16 %v4743, %v4742
        %v4776 = vpack.c.b16 %v4745, %v4744
        %v4777 = vpack.c.b16 %v4747, %v4746
        %v4778 = vpack.c.b16 %v4749, %v4748
        %v4779 = vpack.c.b16 %v4751, %v4750
        %v4780 = vpack.c.b16 %v4753, %v4752
        %v4781 = vpack.c.b16 %v4755, %v4754
        %v4782 = vpack.c.b16 %v4757, %v4756
        %v4783 = vpack.c.b16 %v4759, %v4758
        %4808 = vmatprep.subr.bf16.mxu0 0
        %4809 = vmatpush1.bf16.msra.mxu0 %v4760
        %4810 = vmatprep.subr.bf16.mxu0 0
        %4811 = vmatpush1.bf16.msra.mxu0 %v4761
        %4812 = vmatprep.subr.bf16.mxu0 0
        %4813 = vmatpush1.bf16.msra.mxu0 %v4762
        %4814 = vmatprep.subr.bf16.mxu0 0
        %4815 = vmatpush1.bf16.msra.mxu0 %v4763
        %4816 = vmatprep.subr.bf16.mxu0 0
        %4817 = vmatpush1.bf16.msra.mxu0 %v4764
        %4818 = vmatprep.subr.bf16.mxu0 0
        %4819 = vmatpush1.bf16.msra.mxu0 %v4765
        %4820 = vmatprep.subr.bf16.mxu0 0
        %4821 = vmatpush1.bf16.msra.mxu0 %v4766
        %4822 = vmatprep.subr.bf16.mxu0 0
        %4823 = vmatpush1.bf16.msra.mxu0 %v4767
        %4824 = vmatprep.subr.bf16.mxu0 0
        %4825 = vmatpush1.bf16.msra.mxu0 %v4768
        %4826 = vmatprep.subr.bf16.mxu0 0
        %4827 = vmatpush1.bf16.msra.mxu0 %v4769
        %4828 = vmatprep.subr.bf16.mxu0 0
        %4829 = vmatpush1.bf16.msra.mxu0 %v4770
        %4830 = vmatprep.subr.bf16.mxu0 0
        %4831 = vmatpush1.bf16.msra.mxu0 %v4771
        %4832 = vmatprep.subr.bf16.mxu0 0
        %4833 = vmatpush1.bf16.msra.mxu0 %v4772
        %4834 = vmatprep.subr.bf16.mxu0 0
        %4835 = vmatpush1.bf16.msra.mxu0 %v4773
        %4836 = vmatprep.subr.bf16.mxu0 0
        %4837 = vmatpush1.bf16.msra.mxu0 %v4774
        %4838 = vmatprep.subr.bf16.mxu0 0
        %4839 = vmatpush1.bf16.msra.mxu0 %v4775
        %4840 = vmatprep.mubr.bf16.mxu0 %v4592
        %4841 = vmatmul.mubr.bf16.gmra.mrb[0].mxu0 %v4591
        %v4842 = vpop.f32.mrb[0].mxu0
        %v4843 = vadd.f32 0.0, %v4842
        %v4844 = vpop.f32.mrb[0].mxu0
        %v4845 = vpop.f32.mrb[0].mxu0
        %v4846 = vadd.f32 0.0, %v4845
        %v4847 = vpop.f32.mrb[0].mxu0
        %4848 = vmatprep.mubr.bf16.mxu0 %v4595
        %4849 = vmatmul.mubr.bf16.gmra.mrb[0].mxu0 %v4594
        %v4850 = vpop.f32.mrb[0].mxu0
        %v4851 = vadd.f32 0.0, %v4850
        %v4852 = vpop.f32.mrb[0].mxu0
        %v4853 = vpop.f32.mrb[0].mxu0
        %v4854 = vadd.f32 0.0, %v4853
        %v4855 = vpop.f32.mrb[0].mxu0
        %4856 = vmatprep.mubr.bf16.mxu0 %v4598
        %4857 = vmatmul.mubr.bf16.gmra.mrb[0].mxu0 %v4597
        %v4858 = vpop.f32.mrb[0].mxu0
        %v4859 = vadd.f32 0.0, %v4858
        %v4860 = vpop.f32.mrb[0].mxu0
        %v4861 = vpop.f32.mrb[0].mxu0
        %v4862 = vadd.f32 0.0, %v4861
        %v4863 = vpop.f32.mrb[0].mxu0
        %4864 = vmatprep.mubr.bf16.mxu0 %v4601
        %4865 = vmatmul.mubr.bf16.gmra.mrb[0].mxu0 %v4600
        %v4866 = vpop.f32.mrb[0].mxu0
        %v4867 = vadd.f32 0.0, %v4866
        %v4868 = vpop.f32.mrb[0].mxu0
        %v4869 = vpop.f32.mrb[0].mxu0
        %v4870 = vadd.f32 0.0, %v4869
        %v4871 = vpop.f32.mrb[0].mxu0
        %4872 = vmatprep.mubr.bf16.mxu0 %v4604
        %4873 = vmatmul.mubr.bf16.gmra.mrb[0].mxu0 %v4603
        %v4874 = vpop.f32.mrb[0].mxu0
        %v4875 = vadd.f32 0.0, %v4874
        %v4876 = vpop.f32.mrb[0].mxu0
        %v4877 = vpop.f32.mrb[0].mxu0
        %v4878 = vadd.f32 0.0, %v4877
        %v4879 = vpop.f32.mrb[0].mxu0
        %4880 = vmatprep.mubr.bf16.mxu0 %v4607
        %4881 = vmatmul.mubr.bf16.gmra.mrb[0].mxu0 %v4606
        %v4882 = vpop.f32.mrb[0].mxu0
        %v4883 = vadd.f32 0.0, %v4882
        %v4884 = vpop.f32.mrb[0].mxu0
        %v4885 = vpop.f32.mrb[0].mxu0
        %v4886 = vadd.f32 0.0, %v4885
        %v4887 = vpop.f32.mrb[0].mxu0
        %4888 = vmatprep.mubr.bf16.mxu0 %v4610
        %4889 = vmatmul.mubr.bf16.gmra.mrb[0].mxu0 %v4609
        %v4890 = vpop.f32.mrb[0].mxu0
        %v4891 = vadd.f32 0.0, %v4890
        %v4892 = vpop.f32.mrb[0].mxu0
        %v4893 = vpop.f32.mrb[0].mxu0
        %v4894 = vadd.f32 0.0, %v4893
        %v4895 = vpop.f32.mrb[0].mxu0
        %4896 = vmatprep.mubr.bf16.mxu0 %v4613
        %4897 = vmatmul.mubr.bf16.gmra.mrb[0].mxu0 %v4612
        %v4898 = vpop.f32.mrb[0].mxu0
        %v4899 = vadd.f32 0.0, %v4898
        %v4900 = vpop.f32.mrb[0].mxu0
        %v4901 = vpop.f32.mrb[0].mxu0
        %v4902 = vadd.f32 0.0, %v4901
        %v4903 = vpop.f32.mrb[0].mxu0
        %4904 = vdwg.mxu0
        %4905 = vmatprep.subr.bf16.mxu0 0
        %4906 = vmatpush1.bf16.msra.mxu0 %v4776
        %4907 = vmatprep.subr.bf16.mxu0 0
        %4908 = vmatpush1.bf16.msra.mxu0 %v4777
        %4909 = vmatprep.subr.bf16.mxu0 0
        %4910 = vmatpush1.bf16.msra.mxu0 %v4778
        %4911 = vmatprep.subr.bf16.mxu0 0
        %4912 = vmatpush1.bf16.msra.mxu0 %v4779
        %4913 = vmatprep.subr.bf16.mxu0 0
        %4914 = vmatpush1.bf16.msra.mxu0 %v4780
        %4915 = vmatprep.subr.bf16.mxu0 0
        %4916 = vmatpush1.bf16.msra.mxu0 %v4781
        %4917 = vmatprep.subr.bf16.mxu0 0
        %4918 = vmatpush1.bf16.msra.mxu0 %v4782
        %4919 = vmatprep.subr.bf16.mxu0 0
        %4920 = vmatpush1.bf16.msra.mxu0 %v4783
        %4921 = vmatprep.subr.bf16.mxu0 0
        %4922 = vmatpush1.bf16.msra.mxu0 0
        %4923 = vmatprep.subr.bf16.mxu0 0
        %4924 = vmatpush1.bf16.msra.mxu0 0
        %4925 = vmatprep.subr.bf16.mxu0 0
        %4926 = vmatpush1.bf16.msra.mxu0 0
        %4927 = vmatprep.subr.bf16.mxu0 0
        %4928 = vmatpush1.bf16.msra.mxu0 0
        %4929 = vmatprep.subr.bf16.mxu0 0
        %4930 = vmatpush1.bf16.msra.mxu0 0
        %4931 = vmatprep.subr.bf16.mxu0 0
        %4932 = vmatpush1.bf16.msra.mxu0 0
        %4933 = vmatprep.subr.bf16.mxu0 0
        %4934 = vmatpush1.bf16.msra.mxu0 0
        %4935 = vmatprep.subr.bf16.mxu0 0
        %4936 = vmatpush1.bf16.msra.mxu0 0
        %4937 = vmatprep.mubr.bf16.mxu0 0
        %4938 = vmatmul.mubr.bf16.gmra.mrb[0].mxu0 %v4593
        %v4939 = vpop.f32.mrb[0].mxu0
        %v4940 = vadd.f32 %v4843, %v4939
        %v4941 = vpop.f32.mrb[0].mxu0
        %v4942 = vpop.f32.mrb[0].mxu0
        %v4943 = vadd.f32 %v4846, %v4942
        %v4944 = vpop.f32.mrb[0].mxu0
        %4945 = vmatprep.mubr.bf16.mxu0 0
        %4946 = vmatmul.mubr.bf16.gmra.mrb[0].mxu0 %v4596
        %v4947 = vpop.f32.mrb[0].mxu0
        %v4948 = vadd.f32 %v4851, %v4947
        %v4949 = vpop.f32.mrb[0].mxu0
        %v4950 = vpop.f32.mrb[0].mxu0
        %v4951 = vadd.f32 %v4854, %v4950
        %v4952 = vpop.f32.mrb[0].mxu0
        %4953 = vmatprep.mubr.bf16.mxu0 0
        %4954 = vmatmul.mubr.bf16.gmra.mrb[0].mxu0 %v4599
        %v4955 = vpop.f32.mrb[0].mxu0
        %v4956 = vadd.f32 %v4859, %v4955
        %v4957 = vpop.f32.mrb[0].mxu0
        %v4958 = vpop.f32.mrb[0].mxu0
        %v4959 = vadd.f32 %v4862, %v4958
        %v4960 = vpop.f32.mrb[0].mxu0
        %4961 = vmatprep.mubr.bf16.mxu0 0
        %4962 = vmatmul.mubr.bf16.gmra.mrb[0].mxu0 %v4602
        %v4963 = vpop.f32.mrb[0].mxu0
        %v4964 = vadd.f32 %v4867, %v4963
        %v4965 = vpop.f32.mrb[0].mxu0
        %v4966 = vpop.f32.mrb[0].mxu0
        %v4967 = vadd.f32 %v4870, %v4966
        %v4968 = vpop.f32.mrb[0].mxu0
        %4969 = vmatprep.mubr.bf16.mxu0 0
        %4970 = vmatmul.mubr.bf16.gmra.mrb[0].mxu0 %v4605
        %v4971 = vpop.f32.mrb[0].mxu0
        %v4972 = vadd.f32 %v4875, %v4971
        %v4973 = vpop.f32.mrb[0].mxu0
        %v4974 = vpop.f32.mrb[0].mxu0
        %v4975 = vadd.f32 %v4878, %v4974
        %v4976 = vpop.f32.mrb[0].mxu0
        %4977 = vmatprep.mubr.bf16.mxu0 0
        %4978 = vmatmul.mubr.bf16.gmra.mrb[0].mxu0 %v4608
        %v4979 = vpop.f32.mrb[0].mxu0
        %v4980 = vadd.f32 %v4883, %v4979
        %v4981 = vpop.f32.mrb[0].mxu0
        %v4982 = vpop.f32.mrb[0].mxu0
        %v4983 = vadd.f32 %v4886, %v4982
        %v4984 = vpop.f32.mrb[0].mxu0
        %4985 = vmatprep.mubr.bf16.mxu0 0
        %4986 = vmatmul.mubr.bf16.gmra.mrb[0].mxu0 %v4611
        %v4987 = vpop.f32.mrb[0].mxu0
        %v4988 = vadd.f32 %v4891, %v4987
        %v4989 = vpop.f32.mrb[0].mxu0
        %v4990 = vpop.f32.mrb[0].mxu0
        %v4991 = vadd.f32 %v4894, %v4990
        %v4992 = vpop.f32.mrb[0].mxu0
        %4993 = vmatprep.mubr.bf16.mxu0 0
        %4994 = vmatmul.mubr.bf16.gmra.mrb[0].mxu0 %v4614
        %v4995 = vpop.f32.mrb[0].mxu0
        %v4996 = vadd.f32 %v4899, %v4995
        %v4997 = vpop.f32.mrb[0].mxu0
        %v4998 = vpop.f32.mrb[0].mxu0
        %v4999 = vadd.f32 %v4902, %v4998
        %v5000 = vpop.f32.mrb[0].mxu0
        %5001 = vdwg.mxu0
        %v5002 = vadd.f32 %v4528, %v4940
        %v5003 = vadd.f32 %v4531, %v4943
        %v5004 = vadd.f32 %v4536, %v4948
        %v5005 = vadd.f32 %v4539, %v4951
        %v5006 = vadd.f32 %v4544, %v4956
        %v5007 = vadd.f32 %v4547, %v4959
        %v5008 = vadd.f32 %v4552, %v4964
        %v5009 = vadd.f32 %v4555, %v4967
        %v5010 = vadd.f32 %v4560, %v4972
        %v5011 = vadd.f32 %v4563, %v4975
        %v5012 = vadd.f32 %v4568, %v4980
        %v5013 = vadd.f32 %v4571, %v4983
        %v5014 = vadd.f32 %v4576, %v4988
        %v5015 = vadd.f32 %v4579, %v4991
        %v5016 = vadd.f32 %v4584, %v4996
        %v5017 = vadd.f32 %v4587, %v4999
        %v5018 = vld [vmem:[%s287] sm:$0xf]
        %v5019 = vld [vmem:[%s287 + $0x4] sm:$0xf]
        %v5020 = vld [vmem:[%s287 + $0x8] sm:$0xf]
        %v5021 = vld [vmem:[%s287 + $0xc] sm:$0xf]
        %v5022 = vld [vmem:[%s287 + $0x10] sm:$0xf]
        %v5023 = vld [vmem:[%s287 + $0x14] sm:$0xf]
        %v5024 = vld [vmem:[%s287 + $0x18] sm:$0xf]
        %v5025 = vld [vmem:[%s287 + $0x1c] sm:$0xf]
        %v5026 = vld [vmem:[%s287 + $0x20] sm:$0xf]
        %v5027 = vld [vmem:[%s287 + $0x24] sm:$0xf]
        %v5028 = vld [vmem:[%s287 + $0x28] sm:$0xf]
        %v5029 = vld [vmem:[%s287 + $0x2c] sm:$0xf]
        %v5030 = vld [vmem:[%s287 + $0x30] sm:$0xf]
        %v5031 = vld [vmem:[%s287 + $0x34] sm:$0xf]
        %v5032 = vld [vmem:[%s287 + $0x38] sm:$0xf]
        %v5033 = vld [vmem:[%s287 + $0x3c] sm:$0xf]
        %v5034 = vunpack.c.l.bf16 %v5018
        %v5035 = vunpack.c.l.bf16 %v5019
        %v5036 = vunpack.c.l.bf16 %v5020
        %v5037 = vunpack.c.l.bf16 %v5021
        %v5038 = vunpack.c.l.bf16 %v5022
        %v5039 = vunpack.c.l.bf16 %v5023
        %v5040 = vunpack.c.l.bf16 %v5024
        %v5041 = vunpack.c.l.bf16 %v5025
        %v5042 = vunpack.c.l.bf16 %v5026
        %v5043 = vunpack.c.l.bf16 %v5027
        %v5044 = vunpack.c.l.bf16 %v5028
        %v5045 = vunpack.c.l.bf16 %v5029
        %v5046 = vunpack.c.l.bf16 %v5030
        %v5047 = vunpack.c.l.bf16 %v5031
        %v5048 = vunpack.c.l.bf16 %v5032
        %v5049 = vunpack.c.l.bf16 %v5033
        %v5050 = vadd.f32 %v5002, %v5034
        %v5051 = vadd.f32 %v5003, %v5035
        %v5052 = vadd.f32 %v5004, %v5036
        %v5053 = vadd.f32 %v5005, %v5037
        %v5054 = vadd.f32 %v5006, %v5038
        %v5055 = vadd.f32 %v5007, %v5039
        %v5056 = vadd.f32 %v5008, %v5040
        %v5057 = vadd.f32 %v5009, %v5041
        %v5058 = vadd.f32 %v5010, %v5042
        %v5059 = vadd.f32 %v5011, %v5043
        %v5060 = vadd.f32 %v5012, %v5044
        %v5061 = vadd.f32 %v5013, %v5045
        %v5062 = vadd.f32 %v5014, %v5046
        %v5063 = vadd.f32 %v5015, %v5047
        %v5064 = vadd.f32 %v5016, %v5048
        %v5065 = vadd.f32 %v5017, %v5049
        %5066 = vst [vmem:[%s325] sm:$0xff] %v5050
        %5067 = vst [vmem:[%s325 + $0x8] sm:$0xff] %v5051
        %5068 = vst [vmem:[%s325 + $0x10] sm:$0xff] %v5052
        %5069 = vst [vmem:[%s325 + $0x18] sm:$0xff] %v5053
        %5070 = vst [vmem:[%s325 + $0x20] sm:$0xff] %v5054
        %5071 = vst [vmem:[%s325 + $0x28] sm:$0xff] %v5055
        %5072 = vst [vmem:[%s325 + $0x30] sm:$0xff] %v5056
        %5073 = vst [vmem:[%s325 + $0x38] sm:$0xff] %v5057
        %5074 = vst [vmem:[%s325 + $0x40] sm:$0xff] %v5058
        %5075 = vst [vmem:[%s325 + $0x48] sm:$0xff] %v5059
        %5076 = vst [vmem:[%s325 + $0x50] sm:$0xff] %v5060
        %5077 = vst [vmem:[%s325 + $0x58] sm:$0xff] %v5061
        %5078 = vst [vmem:[%s325 + $0x60] sm:$0xff] %v5062
        %5079 = vst [vmem:[%s325 + $0x68] sm:$0xff] %v5063
        %5080 = vst [vmem:[%s325 + $0x70] sm:$0xff] %v5064
        %5081 = vst [vmem:[%s325 + $0x78] sm:$0xff] %v5065
        %s5082 = scalar_lea.vmem [#allocation3], 192
        %v5083 = vld [vmem:[%s5082] sm:$0xff]
        %v5084 = vld [vmem:[%s5082 + $0x8] sm:$0xff]
        %v5085 = vld [vmem:[%s5082 + $0x10] sm:$0xff]
        %v5086 = vld [vmem:[%s5082 + $0x18] sm:$0xff]
        %v5087 = vld [vmem:[%s5082 + $0x20] sm:$0xff]
        %v5088 = vld [vmem:[%s5082 + $0x28] sm:$0xff]
        %v5089 = vld [vmem:[%s5082 + $0x30] sm:$0xff]
        %v5090 = vld [vmem:[%s5082 + $0x38] sm:$0xff]
        %v5091 = vld [vmem:[%s5082 + $0x40] sm:$0xff]
        %v5092 = vld [vmem:[%s5082 + $0x48] sm:$0xff]
        %v5093 = vld [vmem:[%s5082 + $0x50] sm:$0xff]
        %v5094 = vld [vmem:[%s5082 + $0x58] sm:$0xff]
        %v5095 = vld [vmem:[%s5082 + $0x60] sm:$0xff]
        %v5096 = vld [vmem:[%s5082 + $0x68] sm:$0xff]
        %v5097 = vld [vmem:[%s5082 + $0x70] sm:$0xff]
        %v5098 = vld [vmem:[%s5082 + $0x78] sm:$0xff]
        %v5099 = vld [vmem:[%s5082 + $0x80] sm:$0xff]
        %v5100 = vld [vmem:[%s5082 + $0x88] sm:$0xff]
        %v5101 = vld [vmem:[%s5082 + $0x90] sm:$0xff]
        %v5102 = vld [vmem:[%s5082 + $0x98] sm:$0xff]
        %v5103 = vld [vmem:[%s5082 + $0xa0] sm:$0xff]
        %v5104 = vld [vmem:[%s5082 + $0xa8] sm:$0xff]
        %v5105 = vld [vmem:[%s5082 + $0xb0] sm:$0xff]
        %v5106 = vld [vmem:[%s5082 + $0xb8] sm:$0xff]
        %v5107 = vld [vmem:[#allocation9] sm:$0xf]
        %v5108 = vld [vmem:[#allocation9 + $0x4] sm:$0xf]
        %v5109 = vld [vmem:[#allocation9 + $0x8] sm:$0xf]
        %v5110 = vld [vmem:[#allocation9 + $0xc] sm:$0xf]
        %v5111 = vld [vmem:[#allocation9 + $0x10] sm:$0xf]
        %v5112 = vld [vmem:[#allocation9 + $0x14] sm:$0xf]
        %v5113 = vld [vmem:[#allocation9 + $0x18] sm:$0xf]
        %v5114 = vld [vmem:[#allocation9 + $0x1c] sm:$0xf]
        %v5115 = vld [vmem:[#allocation9 + $0x20] sm:$0xf]
        %v5116 = vld [vmem:[#allocation9 + $0x24] sm:$0xf]
        %v5117 = vld [vmem:[#allocation9 + $0x28] sm:$0xf]
        %v5118 = vld [vmem:[#allocation9 + $0x2c] sm:$0xf]
        %v5119 = vld [vmem:[#allocation9 + $0x30] sm:$0xf]
        %v5120 = vld [vmem:[#allocation9 + $0x34] sm:$0xf]
        %v5121 = vld [vmem:[#allocation9 + $0x38] sm:$0xf]
        %v5122 = vld [vmem:[#allocation9 + $0x3c] sm:$0xf]
        %v5123 = vld [vmem:[#allocation9 + $0x40] sm:$0xf]
        %v5124 = vld [vmem:[#allocation9 + $0x44] sm:$0xf]
        %v5125 = vld [vmem:[#allocation9 + $0x48] sm:$0xf]
        %v5126 = vld [vmem:[#allocation9 + $0x4c] sm:$0xf]
        %v5127 = vld [vmem:[#allocation9 + $0x50] sm:$0xf]
        %v5128 = vld [vmem:[#allocation9 + $0x54] sm:$0xf]
        %v5129 = vld [vmem:[#allocation9 + $0x58] sm:$0xf]
        %v5130 = vld [vmem:[#allocation9 + $0x5c] sm:$0xf]
        %v5131 = vld [vmem:[#allocation9 + $0x60] sm:$0xf]
        %v5132 = vld [vmem:[#allocation9 + $0x64] sm:$0xf]
        %v5133 = vld [vmem:[#allocation9 + $0x68] sm:$0xf]
        %v5134 = vld [vmem:[#allocation9 + $0x6c] sm:$0xf]
        %v5135 = vld [vmem:[#allocation9 + $0x70] sm:$0xf]
        %v5136 = vld [vmem:[#allocation9 + $0x74] sm:$0xf]
        %v5137 = vld [vmem:[#allocation9 + $0x78] sm:$0xf]
        %v5138 = vld [vmem:[#allocation9 + $0x7c] sm:$0xf]
        %v5139 = vld [vmem:[#allocation9 + $0x80] sm:$0xf]
        %v5140 = vld [vmem:[#allocation9 + $0x84] sm:$0xf]
        %v5141 = vld [vmem:[#allocation9 + $0x88] sm:$0xf]
        %v5142 = vld [vmem:[#allocation9 + $0x8c] sm:$0xf]
        %v5143 = vld [vmem:[#allocation9 + $0x90] sm:$0xf]
        %v5144 = vld [vmem:[#allocation9 + $0x94] sm:$0xf]
        %v5145 = vld [vmem:[#allocation9 + $0x98] sm:$0xf]
        %v5146 = vld [vmem:[#allocation9 + $0x9c] sm:$0xf]
        %v5147 = vld [vmem:[#allocation9 + $0xa0] sm:$0xf]
        %v5148 = vld [vmem:[#allocation9 + $0xa4] sm:$0xf]
        %v5149 = vld [vmem:[#allocation9 + $0xa8] sm:$0xf]
        %v5150 = vld [vmem:[#allocation9 + $0xac] sm:$0xf]
        %v5151 = vld [vmem:[#allocation9 + $0xb0] sm:$0xf]
        %v5152 = vld [vmem:[#allocation9 + $0xb4] sm:$0xf]
        %v5153 = vld [vmem:[#allocation9 + $0xb8] sm:$0xf]
        %v5154 = vld [vmem:[#allocation9 + $0xbc] sm:$0xf]
        %v5155 = vld [vmem:[%s3728] sm:$0xff]
        %v5156 = vld [vmem:[%s3728 + $0x8] sm:$0xff]
        %v5157 = vld [vmem:[%s3728 + $0x10] sm:$0xff]
        %v5158 = vld [vmem:[%s3728 + $0x18] sm:$0xff]
        %v5159 = vld [vmem:[%s3728 + $0x20] sm:$0xff]
        %v5160 = vld [vmem:[%s3728 + $0x28] sm:$0xff]
        %v5161 = vld [vmem:[%s3728 + $0x30] sm:$0xff]
        %v5162 = vld [vmem:[%s3728 + $0x38] sm:$0xff]
        %v5163 = vld [vmem:[%s3728 + $0x40] sm:$0xff]
        %v5164 = vld [vmem:[%s3728 + $0x48] sm:$0xff]
        %v5165 = vld [vmem:[%s3728 + $0x50] sm:$0xff]
        %v5166 = vld [vmem:[%s3728 + $0x58] sm:$0xff]
        %v5167 = vld [vmem:[%s3728 + $0x60] sm:$0xff]
        %v5168 = vld [vmem:[%s3728 + $0x68] sm:$0xff]
        %v5169 = vld [vmem:[%s3728 + $0x70] sm:$0xff]
        %v5170 = vld [vmem:[%s3728 + $0x78] sm:$0xff]
        %v5171 = vld [vmem:[%s3728 + $0x80] sm:$0xff]
        %v5172 = vld [vmem:[%s3728 + $0x88] sm:$0xff]
        %v5173 = vld [vmem:[%s3728 + $0x90] sm:$0xff]
        %v5174 = vld [vmem:[%s3728 + $0x98] sm:$0xff]
        %v5175 = vld [vmem:[%s3728 + $0xa0] sm:$0xff]
        %v5176 = vld [vmem:[%s3728 + $0xa8] sm:$0xff]
        %v5177 = vld [vmem:[%s3728 + $0xb0] sm:$0xff]
        %v5178 = vld [vmem:[%s3728 + $0xb8] sm:$0xff]
        %v5179 = vld [vmem:[%s3865] sm:$0xf]
        %v5180 = vld [vmem:[%s3865 + $0x4] sm:$0xf]
        %v5181 = vld [vmem:[%s3865 + $0x8] sm:$0xf]
        %v5182 = vld [vmem:[%s3865 + $0xc] sm:$0xf]
        %v5183 = vld [vmem:[%s3865 + $0x10] sm:$0xf]
        %v5184 = vld [vmem:[%s3865 + $0x14] sm:$0xf]
        %v5185 = vld [vmem:[%s3865 + $0x18] sm:$0xf]
        %v5186 = vld [vmem:[%s3865 + $0x1c] sm:$0xf]
        %v5187 = vld [vmem:[%s3865 + $0x20] sm:$0xf]
        %v5188 = vld [vmem:[%s3865 + $0x24] sm:$0xf]
        %v5189 = vld [vmem:[%s3865 + $0x28] sm:$0xf]
        %v5190 = vld [vmem:[%s3865 + $0x2c] sm:$0xf]
        %v5191 = vld [vmem:[%s3865 + $0x30] sm:$0xf]
        %v5192 = vld [vmem:[%s3865 + $0x34] sm:$0xf]
        %v5193 = vld [vmem:[%s3865 + $0x38] sm:$0xf]
        %v5194 = vld [vmem:[%s3865 + $0x3c] sm:$0xf]
        %v5195 = vld [vmem:[%s3865 + $0x40] sm:$0xf]
        %v5196 = vld [vmem:[%s3865 + $0x44] sm:$0xf]
        %v5197 = vld [vmem:[%s3865 + $0x48] sm:$0xf]
        %v5198 = vld [vmem:[%s3865 + $0x4c] sm:$0xf]
        %v5199 = vld [vmem:[%s3865 + $0x50] sm:$0xf]
        %v5200 = vld [vmem:[%s3865 + $0x54] sm:$0xf]
        %v5201 = vld [vmem:[%s3865 + $0x58] sm:$0xf]
        %v5202 = vld [vmem:[%s3865 + $0x5c] sm:$0xf]
        %v5203 = vld [vmem:[%s3865 + $0x60] sm:$0xf]
        %v5204 = vld [vmem:[%s3865 + $0x64] sm:$0xf]
        %v5205 = vld [vmem:[%s3865 + $0x68] sm:$0xf]
        %v5206 = vld [vmem:[%s3865 + $0x6c] sm:$0xf]
        %v5207 = vld [vmem:[%s3865 + $0x70] sm:$0xf]
        %v5208 = vld [vmem:[%s3865 + $0x74] sm:$0xf]
        %v5209 = vld [vmem:[%s3865 + $0x78] sm:$0xf]
        %v5210 = vld [vmem:[%s3865 + $0x7c] sm:$0xf]
        %v5211 = vld [vmem:[%s3865 + $0x80] sm:$0xf]
        %v5212 = vld [vmem:[%s3865 + $0x84] sm:$0xf]
        %v5213 = vld [vmem:[%s3865 + $0x88] sm:$0xf]
        %v5214 = vld [vmem:[%s3865 + $0x8c] sm:$0xf]
        %v5215 = vld [vmem:[%s3865 + $0x90] sm:$0xf]
        %v5216 = vld [vmem:[%s3865 + $0x94] sm:$0xf]
        %v5217 = vld [vmem:[%s3865 + $0x98] sm:$0xf]
        %v5218 = vld [vmem:[%s3865 + $0x9c] sm:$0xf]
        %v5219 = vld [vmem:[%s3865 + $0xa0] sm:$0xf]
        %v5220 = vld [vmem:[%s3865 + $0xa4] sm:$0xf]
        %v5221 = vld [vmem:[%s3865 + $0xa8] sm:$0xf]
        %v5222 = vld [vmem:[%s3865 + $0xac] sm:$0xf]
        %v5223 = vld [vmem:[%s3865 + $0xb0] sm:$0xf]
        %v5224 = vld [vmem:[%s3865 + $0xb4] sm:$0xf]
        %v5225 = vld [vmem:[%s3865 + $0xb8] sm:$0xf]
        %v5226 = vld [vmem:[%s3865 + $0xbc] sm:$0xf]
        %v5275 = vunpack.c.l.b16 %v5179
        %v5276 = vunpack.c.l.b16 %v5180
        %v5277 = vunpack.c.l.b16 %v5181
        %v5278 = vunpack.c.l.b16 %v5182
        %v5279 = vunpack.c.l.b16 %v5183
        %v5280 = vunpack.c.l.b16 %v5184
        %v5281 = vunpack.c.l.b16 %v5185
        %v5282 = vunpack.c.l.b16 %v5186
        %v5283 = vunpack.c.l.b16 %v5187
        %v5284 = vunpack.c.l.b16 %v5188
        %v5285 = vunpack.c.l.b16 %v5189
        %v5286 = vunpack.c.l.b16 %v5190
        %v5287 = vunpack.c.l.b16 %v5191
        %v5288 = vunpack.c.l.b16 %v5192
        %v5289 = vunpack.c.l.b16 %v5193
        %v5290 = vunpack.c.l.b16 %v5194
        %v5291 = vunpack.c.l.b16 %v5195
        %v5292 = vunpack.c.l.b16 %v5196
        %v5293 = vunpack.c.l.b16 %v5197
        %v5294 = vunpack.c.l.b16 %v5198
        %v5295 = vunpack.c.l.b16 %v5199
        %v5296 = vunpack.c.l.b16 %v5200
        %v5297 = vunpack.c.l.b16 %v5201
        %v5298 = vunpack.c.l.b16 %v5202
        %v5299 = vunpack.c.l.b16 %v5203
        %v5300 = vunpack.c.l.b16 %v5204
        %v5301 = vunpack.c.l.b16 %v5205
        %v5302 = vunpack.c.l.b16 %v5206
        %v5303 = vunpack.c.l.b16 %v5207
        %v5304 = vunpack.c.l.b16 %v5208
        %v5305 = vunpack.c.l.b16 %v5209
        %v5306 = vunpack.c.l.b16 %v5210
        %v5307 = vunpack.c.l.b16 %v5211
        %v5308 = vunpack.c.l.b16 %v5212
        %v5309 = vunpack.c.l.b16 %v5213
        %v5310 = vunpack.c.l.b16 %v5214
        %v5311 = vunpack.c.l.b16 %v5215
        %v5312 = vunpack.c.l.b16 %v5216
        %v5313 = vunpack.c.l.b16 %v5217
        %v5314 = vunpack.c.l.b16 %v5218
        %v5315 = vunpack.c.l.b16 %v5219
        %v5316 = vunpack.c.l.b16 %v5220
        %v5317 = vunpack.c.l.b16 %v5221
        %v5318 = vunpack.c.l.b16 %v5222
        %v5319 = vunpack.c.l.b16 %v5223
        %v5320 = vunpack.c.l.b16 %v5224
        %v5321 = vunpack.c.l.b16 %v5225
        %v5322 = vunpack.c.l.b16 %v5226
        %v5323 = vpack.c.b16 %v5276, %v5275
        %v5324 = vpack.c.b16 %v5278, %v5277
        %v5325 = vpack.c.b16 %v5280, %v5279
        %v5326 = vpack.c.b16 %v5282, %v5281
        %v5327 = vpack.c.b16 %v5284, %v5283
        %v5328 = vpack.c.b16 %v5286, %v5285
        %v5329 = vpack.c.b16 %v5288, %v5287
        %v5330 = vpack.c.b16 %v5290, %v5289
        %v5331 = vpack.c.b16 %v5292, %v5291
        %v5332 = vpack.c.b16 %v5294, %v5293
        %v5333 = vpack.c.b16 %v5296, %v5295
        %v5334 = vpack.c.b16 %v5298, %v5297
        %v5335 = vpack.c.b16 %v5300, %v5299
        %v5336 = vpack.c.b16 %v5302, %v5301
        %v5337 = vpack.c.b16 %v5304, %v5303
        %v5338 = vpack.c.b16 %v5306, %v5305
        %v5339 = vpack.c.b16 %v5308, %v5307
        %v5340 = vpack.c.b16 %v5310, %v5309
        %v5341 = vpack.c.b16 %v5312, %v5311
        %v5342 = vpack.c.b16 %v5314, %v5313
        %v5343 = vpack.c.b16 %v5316, %v5315
        %v5344 = vpack.c.b16 %v5318, %v5317
        %v5345 = vpack.c.b16 %v5320, %v5319
        %v5346 = vpack.c.b16 %v5322, %v5321
        %5371 = vmatprep.subr.bf16.mxu0 0
        %5372 = vmatpush1.bf16.msra.mxu0 %v5323
        %5373 = vmatprep.subr.bf16.mxu0 0
        %5374 = vmatpush1.bf16.msra.mxu0 %v5324
        %5375 = vmatprep.subr.bf16.mxu0 0
        %5376 = vmatpush1.bf16.msra.mxu0 %v5325
        %5377 = vmatprep.subr.bf16.mxu0 0
        %5378 = vmatpush1.bf16.msra.mxu0 %v5326
        %5379 = vmatprep.subr.bf16.mxu0 0
        %5380 = vmatpush1.bf16.msra.mxu0 %v5327
        %5381 = vmatprep.subr.bf16.mxu0 0
        %5382 = vmatpush1.bf16.msra.mxu0 %v5328
        %5383 = vmatprep.subr.bf16.mxu0 0
        %5384 = vmatpush1.bf16.msra.mxu0 %v5329
        %5385 = vmatprep.subr.bf16.mxu0 0
        %5386 = vmatpush1.bf16.msra.mxu0 %v5330
        %5387 = vmatprep.subr.bf16.mxu0 0
        %5388 = vmatpush1.bf16.msra.mxu0 %v5331
        %5389 = vmatprep.subr.bf16.mxu0 0
        %5390 = vmatpush1.bf16.msra.mxu0 %v5332
        %5391 = vmatprep.subr.bf16.mxu0 0
        %5392 = vmatpush1.bf16.msra.mxu0 %v5333
        %5393 = vmatprep.subr.bf16.mxu0 0
        %5394 = vmatpush1.bf16.msra.mxu0 %v5334
        %5395 = vmatprep.subr.bf16.mxu0 0
        %5396 = vmatpush1.bf16.msra.mxu0 %v5335
        %5397 = vmatprep.subr.bf16.mxu0 0
        %5398 = vmatpush1.bf16.msra.mxu0 %v5336
        %5399 = vmatprep.subr.bf16.mxu0 0
        %5400 = vmatpush1.bf16.msra.mxu0 %v5337
        %5401 = vmatprep.subr.bf16.mxu0 0
        %5402 = vmatpush1.bf16.msra.mxu0 %v5338
        %5403 = vmatprep.mubr.bf16.mxu0 %v5156
        %5404 = vmatmul.mubr.bf16.gmra.mrb[0].mxu0 %v5155
        %v5405 = vpop.f32.mrb[0].mxu0
        %v5406 = vadd.f32 0.0, %v5405
        %v5407 = vpop.f32.mrb[0].mxu0
        %v5408 = vpop.f32.mrb[0].mxu0
        %v5409 = vadd.f32 0.0, %v5408
        %v5410 = vpop.f32.mrb[0].mxu0
        %5411 = vmatprep.mubr.bf16.mxu0 %v5159
        %5412 = vmatmul.mubr.bf16.gmra.mrb[0].mxu0 %v5158
        %v5413 = vpop.f32.mrb[0].mxu0
        %v5414 = vadd.f32 0.0, %v5413
        %v5415 = vpop.f32.mrb[0].mxu0
        %v5416 = vpop.f32.mrb[0].mxu0
        %v5417 = vadd.f32 0.0, %v5416
        %v5418 = vpop.f32.mrb[0].mxu0
        %5419 = vmatprep.mubr.bf16.mxu0 %v5162
        %5420 = vmatmul.mubr.bf16.gmra.mrb[0].mxu0 %v5161
        %v5421 = vpop.f32.mrb[0].mxu0
        %v5422 = vadd.f32 0.0, %v5421
        %v5423 = vpop.f32.mrb[0].mxu0
        %v5424 = vpop.f32.mrb[0].mxu0
        %v5425 = vadd.f32 0.0, %v5424
        %v5426 = vpop.f32.mrb[0].mxu0
        %5427 = vmatprep.mubr.bf16.mxu0 %v5165
        %5428 = vmatmul.mubr.bf16.gmra.mrb[0].mxu0 %v5164
        %v5429 = vpop.f32.mrb[0].mxu0
        %v5430 = vadd.f32 0.0, %v5429
        %v5431 = vpop.f32.mrb[0].mxu0
        %v5432 = vpop.f32.mrb[0].mxu0
        %v5433 = vadd.f32 0.0, %v5432
        %v5434 = vpop.f32.mrb[0].mxu0
        %5435 = vmatprep.mubr.bf16.mxu0 %v5168
        %5436 = vmatmul.mubr.bf16.gmra.mrb[0].mxu0 %v5167
        %v5437 = vpop.f32.mrb[0].mxu0
        %v5438 = vadd.f32 0.0, %v5437
        %v5439 = vpop.f32.mrb[0].mxu0
        %v5440 = vpop.f32.mrb[0].mxu0
        %v5441 = vadd.f32 0.0, %v5440
        %v5442 = vpop.f32.mrb[0].mxu0
        %5443 = vmatprep.mubr.bf16.mxu0 %v5171
        %5444 = vmatmul.mubr.bf16.gmra.mrb[0].mxu0 %v5170
        %v5445 = vpop.f32.mrb[0].mxu0
        %v5446 = vadd.f32 0.0, %v5445
        %v5447 = vpop.f32.mrb[0].mxu0
        %v5448 = vpop.f32.mrb[0].mxu0
        %v5449 = vadd.f32 0.0, %v5448
        %v5450 = vpop.f32.mrb[0].mxu0
        %5451 = vmatprep.mubr.bf16.mxu0 %v5174
        %5452 = vmatmul.mubr.bf16.gmra.mrb[0].mxu0 %v5173
        %v5453 = vpop.f32.mrb[0].mxu0
        %v5454 = vadd.f32 0.0, %v5453
        %v5455 = vpop.f32.mrb[0].mxu0
        %v5456 = vpop.f32.mrb[0].mxu0
        %v5457 = vadd.f32 0.0, %v5456
        %v5458 = vpop.f32.mrb[0].mxu0
        %5459 = vmatprep.mubr.bf16.mxu0 %v5177
        %5460 = vmatmul.mubr.bf16.gmra.mrb[0].mxu0 %v5176
        %v5461 = vpop.f32.mrb[0].mxu0
        %v5462 = vadd.f32 0.0, %v5461
        %v5463 = vpop.f32.mrb[0].mxu0
        %v5464 = vpop.f32.mrb[0].mxu0
        %v5465 = vadd.f32 0.0, %v5464
        %v5466 = vpop.f32.mrb[0].mxu0
        %5467 = vdwg.mxu0
        %5468 = vmatprep.subr.bf16.mxu0 0
        %5469 = vmatpush1.bf16.msra.mxu0 %v5339
        %5470 = vmatprep.subr.bf16.mxu0 0
        %5471 = vmatpush1.bf16.msra.mxu0 %v5340
        %5472 = vmatprep.subr.bf16.mxu0 0
        %5473 = vmatpush1.bf16.msra.mxu0 %v5341
        %5474 = vmatprep.subr.bf16.mxu0 0
        %5475 = vmatpush1.bf16.msra.mxu0 %v5342
        %5476 = vmatprep.subr.bf16.mxu0 0
        %5477 = vmatpush1.bf16.msra.mxu0 %v5343
        %5478 = vmatprep.subr.bf16.mxu0 0
        %5479 = vmatpush1.bf16.msra.mxu0 %v5344
        %5480 = vmatprep.subr.bf16.mxu0 0
        %5481 = vmatpush1.bf16.msra.mxu0 %v5345
        %5482 = vmatprep.subr.bf16.mxu0 0
        %5483 = vmatpush1.bf16.msra.mxu0 %v5346
        %5484 = vmatprep.subr.bf16.mxu0 0
        %5485 = vmatpush1.bf16.msra.mxu0 0
        %5486 = vmatprep.subr.bf16.mxu0 0
        %5487 = vmatpush1.bf16.msra.mxu0 0
        %5488 = vmatprep.subr.bf16.mxu0 0
        %5489 = vmatpush1.bf16.msra.mxu0 0
        %5490 = vmatprep.subr.bf16.mxu0 0
        %5491 = vmatpush1.bf16.msra.mxu0 0
        %5492 = vmatprep.subr.bf16.mxu0 0
        %5493 = vmatpush1.bf16.msra.mxu0 0
        %5494 = vmatprep.subr.bf16.mxu0 0
        %5495 = vmatpush1.bf16.msra.mxu0 0
        %5496 = vmatprep.subr.bf16.mxu0 0
        %5497 = vmatpush1.bf16.msra.mxu0 0
        %5498 = vmatprep.subr.bf16.mxu0 0
        %5499 = vmatpush1.bf16.msra.mxu0 0
        %5500 = vmatprep.mubr.bf16.mxu0 0
        %5501 = vmatmul.mubr.bf16.gmra.mrb[0].mxu0 %v5157
        %v5502 = vpop.f32.mrb[0].mxu0
        %v5503 = vadd.f32 %v5406, %v5502
        %v5504 = vpop.f32.mrb[0].mxu0
        %v5505 = vpop.f32.mrb[0].mxu0
        %v5506 = vadd.f32 %v5409, %v5505
        %v5507 = vpop.f32.mrb[0].mxu0
        %5508 = vmatprep.mubr.bf16.mxu0 0
        %5509 = vmatmul.mubr.bf16.gmra.mrb[0].mxu0 %v5160
        %v5510 = vpop.f32.mrb[0].mxu0
        %v5511 = vadd.f32 %v5414, %v5510
        %v5512 = vpop.f32.mrb[0].mxu0
        %v5513 = vpop.f32.mrb[0].mxu0
        %v5514 = vadd.f32 %v5417, %v5513
        %v5515 = vpop.f32.mrb[0].mxu0
        %5516 = vmatprep.mubr.bf16.mxu0 0
        %5517 = vmatmul.mubr.bf16.gmra.mrb[0].mxu0 %v5163
        %v5518 = vpop.f32.mrb[0].mxu0
        %v5519 = vadd.f32 %v5422, %v5518
        %v5520 = vpop.f32.mrb[0].mxu0
        %v5521 = vpop.f32.mrb[0].mxu0
        %v5522 = vadd.f32 %v5425, %v5521
        %v5523 = vpop.f32.mrb[0].mxu0
        %5524 = vmatprep.mubr.bf16.mxu0 0
        %5525 = vmatmul.mubr.bf16.gmra.mrb[0].mxu0 %v5166
        %v5526 = vpop.f32.mrb[0].mxu0
        %v5527 = vadd.f32 %v5430, %v5526
        %v5528 = vpop.f32.mrb[0].mxu0
        %v5529 = vpop.f32.mrb[0].mxu0
        %v5530 = vadd.f32 %v5433, %v5529
        %v5531 = vpop.f32.mrb[0].mxu0
        %5532 = vmatprep.mubr.bf16.mxu0 0
        %5533 = vmatmul.mubr.bf16.gmra.mrb[0].mxu0 %v5169
        %v5534 = vpop.f32.mrb[0].mxu0
        %v5535 = vadd.f32 %v5438, %v5534
        %v5536 = vpop.f32.mrb[0].mxu0
        %v5537 = vpop.f32.mrb[0].mxu0
        %v5538 = vadd.f32 %v5441, %v5537
        %v5539 = vpop.f32.mrb[0].mxu0
        %5540 = vmatprep.mubr.bf16.mxu0 0
        %5541 = vmatmul.mubr.bf16.gmra.mrb[0].mxu0 %v5172
        %v5542 = vpop.f32.mrb[0].mxu0
        %v5543 = vadd.f32 %v5446, %v5542
        %v5544 = vpop.f32.mrb[0].mxu0
        %v5545 = vpop.f32.mrb[0].mxu0
        %v5546 = vadd.f32 %v5449, %v5545
        %v5547 = vpop.f32.mrb[0].mxu0
        %5548 = vmatprep.mubr.bf16.mxu0 0
        %5549 = vmatmul.mubr.bf16.gmra.mrb[0].mxu0 %v5175
        %v5550 = vpop.f32.mrb[0].mxu0
        %v5551 = vadd.f32 %v5454, %v5550
        %v5552 = vpop.f32.mrb[0].mxu0
        %v5553 = vpop.f32.mrb[0].mxu0
        %v5554 = vadd.f32 %v5457, %v5553
        %v5555 = vpop.f32.mrb[0].mxu0
        %5556 = vmatprep.mubr.bf16.mxu0 0
        %5557 = vmatmul.mubr.bf16.gmra.mrb[0].mxu0 %v5178
        %v5558 = vpop.f32.mrb[0].mxu0
        %v5559 = vadd.f32 %v5462, %v5558
        %v5560 = vpop.f32.mrb[0].mxu0
        %v5561 = vpop.f32.mrb[0].mxu0
        %v5562 = vadd.f32 %v5465, %v5561
        %v5563 = vpop.f32.mrb[0].mxu0
        %5564 = vdwg.mxu0
        %v5613 = vunpack.c.l.b16 %v5107
        %v5614 = vunpack.c.l.b16 %v5108
        %v5615 = vunpack.c.l.b16 %v5109
        %v5616 = vunpack.c.l.b16 %v5110
        %v5617 = vunpack.c.l.b16 %v5111
        %v5618 = vunpack.c.l.b16 %v5112
        %v5619 = vunpack.c.l.b16 %v5113
        %v5620 = vunpack.c.l.b16 %v5114
        %v5621 = vunpack.c.l.b16 %v5115
        %v5622 = vunpack.c.l.b16 %v5116
        %v5623 = vunpack.c.l.b16 %v5117
        %v5624 = vunpack.c.l.b16 %v5118
        %v5625 = vunpack.c.l.b16 %v5119
        %v5626 = vunpack.c.l.b16 %v5120
        %v5627 = vunpack.c.l.b16 %v5121
        %v5628 = vunpack.c.l.b16 %v5122
        %v5629 = vunpack.c.l.b16 %v5123
        %v5630 = vunpack.c.l.b16 %v5124
        %v5631 = vunpack.c.l.b16 %v5125
        %v5632 = vunpack.c.l.b16 %v5126
        %v5633 = vunpack.c.l.b16 %v5127
        %v5634 = vunpack.c.l.b16 %v5128
        %v5635 = vunpack.c.l.b16 %v5129
        %v5636 = vunpack.c.l.b16 %v5130
        %v5637 = vunpack.c.l.b16 %v5131
        %v5638 = vunpack.c.l.b16 %v5132
        %v5639 = vunpack.c.l.b16 %v5133
        %v5640 = vunpack.c.l.b16 %v5134
        %v5641 = vunpack.c.l.b16 %v5135
        %v5642 = vunpack.c.l.b16 %v5136
        %v5643 = vunpack.c.l.b16 %v5137
        %v5644 = vunpack.c.l.b16 %v5138
        %v5645 = vunpack.c.l.b16 %v5139
        %v5646 = vunpack.c.l.b16 %v5140
        %v5647 = vunpack.c.l.b16 %v5141
        %v5648 = vunpack.c.l.b16 %v5142
        %v5649 = vunpack.c.l.b16 %v5143
        %v5650 = vunpack.c.l.b16 %v5144
        %v5651 = vunpack.c.l.b16 %v5145
        %v5652 = vunpack.c.l.b16 %v5146
        %v5653 = vunpack.c.l.b16 %v5147
        %v5654 = vunpack.c.l.b16 %v5148
        %v5655 = vunpack.c.l.b16 %v5149
        %v5656 = vunpack.c.l.b16 %v5150
        %v5657 = vunpack.c.l.b16 %v5151
        %v5658 = vunpack.c.l.b16 %v5152
        %v5659 = vunpack.c.l.b16 %v5153
        %v5660 = vunpack.c.l.b16 %v5154
        %v5661 = vpack.c.b16 %v5614, %v5613
        %v5662 = vpack.c.b16 %v5616, %v5615
        %v5663 = vpack.c.b16 %v5618, %v5617
        %v5664 = vpack.c.b16 %v5620, %v5619
        %v5665 = vpack.c.b16 %v5622, %v5621
        %v5666 = vpack.c.b16 %v5624, %v5623
        %v5667 = vpack.c.b16 %v5626, %v5625
        %v5668 = vpack.c.b16 %v5628, %v5627
        %v5669 = vpack.c.b16 %v5630, %v5629
        %v5670 = vpack.c.b16 %v5632, %v5631
        %v5671 = vpack.c.b16 %v5634, %v5633
        %v5672 = vpack.c.b16 %v5636, %v5635
        %v5673 = vpack.c.b16 %v5638, %v5637
        %v5674 = vpack.c.b16 %v5640, %v5639
        %v5675 = vpack.c.b16 %v5642, %v5641
        %v5676 = vpack.c.b16 %v5644, %v5643
        %v5677 = vpack.c.b16 %v5646, %v5645
        %v5678 = vpack.c.b16 %v5648, %v5647
        %v5679 = vpack.c.b16 %v5650, %v5649
        %v5680 = vpack.c.b16 %v5652, %v5651
        %v5681 = vpack.c.b16 %v5654, %v5653
        %v5682 = vpack.c.b16 %v5656, %v5655
        %v5683 = vpack.c.b16 %v5658, %v5657
        %v5684 = vpack.c.b16 %v5660, %v5659
        %5709 = vmatprep.subr.bf16.mxu0 0
        %5710 = vmatpush1.bf16.msra.mxu0 %v5661
        %5711 = vmatprep.subr.bf16.mxu0 0
        %5712 = vmatpush1.bf16.msra.mxu0 %v5662
        %5713 = vmatprep.subr.bf16.mxu0 0
        %5714 = vmatpush1.bf16.msra.mxu0 %v5663
        %5715 = vmatprep.subr.bf16.mxu0 0
        %5716 = vmatpush1.bf16.msra.mxu0 %v5664
        %5717 = vmatprep.subr.bf16.mxu0 0
        %5718 = vmatpush1.bf16.msra.mxu0 %v5665
        %5719 = vmatprep.subr.bf16.mxu0 0
        %5720 = vmatpush1.bf16.msra.mxu0 %v5666
        %5721 = vmatprep.subr.bf16.mxu0 0
        %5722 = vmatpush1.bf16.msra.mxu0 %v5667
        %5723 = vmatprep.subr.bf16.mxu0 0
        %5724 = vmatpush1.bf16.msra.mxu0 %v5668
        %5725 = vmatprep.subr.bf16.mxu0 0
        %5726 = vmatpush1.bf16.msra.mxu0 %v5669
        %5727 = vmatprep.subr.bf16.mxu0 0
        %5728 = vmatpush1.bf16.msra.mxu0 %v5670
        %5729 = vmatprep.subr.bf16.mxu0 0
        %5730 = vmatpush1.bf16.msra.mxu0 %v5671
        %5731 = vmatprep.subr.bf16.mxu0 0
        %5732 = vmatpush1.bf16.msra.mxu0 %v5672
        %5733 = vmatprep.subr.bf16.mxu0 0
        %5734 = vmatpush1.bf16.msra.mxu0 %v5673
        %5735 = vmatprep.subr.bf16.mxu0 0
        %5736 = vmatpush1.bf16.msra.mxu0 %v5674
        %5737 = vmatprep.subr.bf16.mxu0 0
        %5738 = vmatpush1.bf16.msra.mxu0 %v5675
        %5739 = vmatprep.subr.bf16.mxu0 0
        %5740 = vmatpush1.bf16.msra.mxu0 %v5676
        %5741 = vmatprep.mubr.bf16.mxu0 %v5084
        %5742 = vmatmul.mubr.bf16.gmra.mrb[0].mxu0 %v5083
        %v5743 = vpop.f32.mrb[0].mxu0
        %v5744 = vadd.f32 %v5503, %v5743
        %v5745 = vpop.f32.mrb[0].mxu0
        %v5746 = vpop.f32.mrb[0].mxu0
        %v5747 = vadd.f32 %v5506, %v5746
        %v5748 = vpop.f32.mrb[0].mxu0
        %5749 = vmatprep.mubr.bf16.mxu0 %v5087
        %5750 = vmatmul.mubr.bf16.gmra.mrb[0].mxu0 %v5086
        %v5751 = vpop.f32.mrb[0].mxu0
        %v5752 = vadd.f32 %v5511, %v5751
        %v5753 = vpop.f32.mrb[0].mxu0
        %v5754 = vpop.f32.mrb[0].mxu0
        %v5755 = vadd.f32 %v5514, %v5754
        %v5756 = vpop.f32.mrb[0].mxu0
        %5757 = vmatprep.mubr.bf16.mxu0 %v5090
        %5758 = vmatmul.mubr.bf16.gmra.mrb[0].mxu0 %v5089
        %v5759 = vpop.f32.mrb[0].mxu0
        %v5760 = vadd.f32 %v5519, %v5759
        %v5761 = vpop.f32.mrb[0].mxu0
        %v5762 = vpop.f32.mrb[0].mxu0
        %v5763 = vadd.f32 %v5522, %v5762
        %v5764 = vpop.f32.mrb[0].mxu0
        %5765 = vmatprep.mubr.bf16.mxu0 %v5093
        %5766 = vmatmul.mubr.bf16.gmra.mrb[0].mxu0 %v5092
        %v5767 = vpop.f32.mrb[0].mxu0
        %v5768 = vadd.f32 %v5527, %v5767
        %v5769 = vpop.f32.mrb[0].mxu0
        %v5770 = vpop.f32.mrb[0].mxu0
        %v5771 = vadd.f32 %v5530, %v5770
        %v5772 = vpop.f32.mrb[0].mxu0
        %5773 = vmatprep.mubr.bf16.mxu0 %v5096
        %5774 = vmatmul.mubr.bf16.gmra.mrb[0].mxu0 %v5095
        %v5775 = vpop.f32.mrb[0].mxu0
        %v5776 = vadd.f32 %v5535, %v5775
        %v5777 = vpop.f32.mrb[0].mxu0
        %v5778 = vpop.f32.mrb[0].mxu0
        %v5779 = vadd.f32 %v5538, %v5778
        %v5780 = vpop.f32.mrb[0].mxu0
        %5781 = vmatprep.mubr.bf16.mxu0 %v5099
        %5782 = vmatmul.mubr.bf16.gmra.mrb[0].mxu0 %v5098
        %v5783 = vpop.f32.mrb[0].mxu0
        %v5784 = vadd.f32 %v5543, %v5783
        %v5785 = vpop.f32.mrb[0].mxu0
        %v5786 = vpop.f32.mrb[0].mxu0
        %v5787 = vadd.f32 %v5546, %v5786
        %v5788 = vpop.f32.mrb[0].mxu0
        %5789 = vmatprep.mubr.bf16.mxu0 %v5102
        %5790 = vmatmul.mubr.bf16.gmra.mrb[0].mxu0 %v5101
        %v5791 = vpop.f32.mrb[0].mxu0
        %v5792 = vadd.f32 %v5551, %v5791
        %v5793 = vpop.f32.mrb[0].mxu0
        %v5794 = vpop.f32.mrb[0].mxu0
        %v5795 = vadd.f32 %v5554, %v5794
        %v5796 = vpop.f32.mrb[0].mxu0
        %5797 = vmatprep.mubr.bf16.mxu0 %v5105
        %5798 = vmatmul.mubr.bf16.gmra.mrb[0].mxu0 %v5104
        %v5799 = vpop.f32.mrb[0].mxu0
        %v5800 = vadd.f32 %v5559, %v5799
        %v5801 = vpop.f32.mrb[0].mxu0
        %v5802 = vpop.f32.mrb[0].mxu0
        %v5803 = vadd.f32 %v5562, %v5802
        %v5804 = vpop.f32.mrb[0].mxu0
        %5805 = vdwg.mxu0
        %5806 = vmatprep.subr.bf16.mxu0 0
        %5807 = vmatpush1.bf16.msra.mxu0 %v5677
        %5808 = vmatprep.subr.bf16.mxu0 0
        %5809 = vmatpush1.bf16.msra.mxu0 %v5678
        %5810 = vmatprep.subr.bf16.mxu0 0
        %5811 = vmatpush1.bf16.msra.mxu0 %v5679
        %5812 = vmatprep.subr.bf16.mxu0 0
        %5813 = vmatpush1.bf16.msra.mxu0 %v5680
        %5814 = vmatprep.subr.bf16.mxu0 0
        %5815 = vmatpush1.bf16.msra.mxu0 %v5681
        %5816 = vmatprep.subr.bf16.mxu0 0
        %5817 = vmatpush1.bf16.msra.mxu0 %v5682
        %5818 = vmatprep.subr.bf16.mxu0 0
        %5819 = vmatpush1.bf16.msra.mxu0 %v5683
        %5820 = vmatprep.subr.bf16.mxu0 0
        %5821 = vmatpush1.bf16.msra.mxu0 %v5684
        %5822 = vmatprep.subr.bf16.mxu0 0
        %5823 = vmatpush1.bf16.msra.mxu0 0
        %5824 = vmatprep.subr.bf16.mxu0 0
        %5825 = vmatpush1.bf16.msra.mxu0 0
        %5826 = vmatprep.subr.bf16.mxu0 0
        %5827 = vmatpush1.bf16.msra.mxu0 0
        %5828 = vmatprep.subr.bf16.mxu0 0
        %5829 = vmatpush1.bf16.msra.mxu0 0
        %5830 = vmatprep.subr.bf16.mxu0 0
        %5831 = vmatpush1.bf16.msra.mxu0 0
        %5832 = vmatprep.subr.bf16.mxu0 0
        %5833 = vmatpush1.bf16.msra.mxu0 0
        %5834 = vmatprep.subr.bf16.mxu0 0
        %5835 = vmatpush1.bf16.msra.mxu0 0
        %5836 = vmatprep.subr.bf16.mxu0 0
        %5837 = vmatpush1.bf16.msra.mxu0 0
        %5838 = vmatprep.mubr.bf16.mxu0 0
        %5839 = vmatmul.mubr.bf16.gmra.mrb[0].mxu0 %v5085
        %v5840 = vpop.f32.mrb[0].mxu0
        %v5841 = vadd.f32 %v5744, %v5840
        %v5842 = vpop.f32.mrb[0].mxu0
        %v5843 = vpop.f32.mrb[0].mxu0
        %v5844 = vadd.f32 %v5747, %v5843
        %v5845 = vpop.f32.mrb[0].mxu0
        %5846 = vmatprep.mubr.bf16.mxu0 0
        %5847 = vmatmul.mubr.bf16.gmra.mrb[0].mxu0 %v5088
        %v5848 = vpop.f32.mrb[0].mxu0
        %v5849 = vadd.f32 %v5752, %v5848
        %v5850 = vpop.f32.mrb[0].mxu0
        %v5851 = vpop.f32.mrb[0].mxu0
        %v5852 = vadd.f32 %v5755, %v5851
        %v5853 = vpop.f32.mrb[0].mxu0
        %5854 = vmatprep.mubr.bf16.mxu0 0
        %5855 = vmatmul.mubr.bf16.gmra.mrb[0].mxu0 %v5091
        %v5856 = vpop.f32.mrb[0].mxu0
        %v5857 = vadd.f32 %v5760, %v5856
        %v5858 = vpop.f32.mrb[0].mxu0
        %v5859 = vpop.f32.mrb[0].mxu0
        %v5860 = vadd.f32 %v5763, %v5859
        %v5861 = vpop.f32.mrb[0].mxu0
        %5862 = vmatprep.mubr.bf16.mxu0 0
        %5863 = vmatmul.mubr.bf16.gmra.mrb[0].mxu0 %v5094
        %v5864 = vpop.f32.mrb[0].mxu0
        %v5865 = vadd.f32 %v5768, %v5864
        %v5866 = vpop.f32.mrb[0].mxu0
        %v5867 = vpop.f32.mrb[0].mxu0
        %v5868 = vadd.f32 %v5771, %v5867
        %v5869 = vpop.f32.mrb[0].mxu0
        %5870 = vmatprep.mubr.bf16.mxu0 0
        %5871 = vmatmul.mubr.bf16.gmra.mrb[0].mxu0 %v5097
        %v5872 = vpop.f32.mrb[0].mxu0
        %v5873 = vadd.f32 %v5776, %v5872
        %v5874 = vpop.f32.mrb[0].mxu0
        %v5875 = vpop.f32.mrb[0].mxu0
        %v5876 = vadd.f32 %v5779, %v5875
        %v5877 = vpop.f32.mrb[0].mxu0
        %5878 = vmatprep.mubr.bf16.mxu0 0
        %5879 = vmatmul.mubr.bf16.gmra.mrb[0].mxu0 %v5100
        %v5880 = vpop.f32.mrb[0].mxu0
        %v5881 = vadd.f32 %v5784, %v5880
        %v5882 = vpop.f32.mrb[0].mxu0
        %v5883 = vpop.f32.mrb[0].mxu0
        %v5884 = vadd.f32 %v5787, %v5883
        %v5885 = vpop.f32.mrb[0].mxu0
        %5886 = vmatprep.mubr.bf16.mxu0 0
        %5887 = vmatmul.mubr.bf16.gmra.mrb[0].mxu0 %v5103
        %v5888 = vpop.f32.mrb[0].mxu0
        %v5889 = vadd.f32 %v5792, %v5888
        %v5890 = vpop.f32.mrb[0].mxu0
        %v5891 = vpop.f32.mrb[0].mxu0
        %v5892 = vadd.f32 %v5795, %v5891
        %v5893 = vpop.f32.mrb[0].mxu0
        %5894 = vmatprep.mubr.bf16.mxu0 0
        %5895 = vmatmul.mubr.bf16.gmra.mrb[0].mxu0 %v5106
        %v5896 = vpop.f32.mrb[0].mxu0
        %v5897 = vadd.f32 %v5800, %v5896
        %v5898 = vpop.f32.mrb[0].mxu0
        %v5899 = vpop.f32.mrb[0].mxu0
        %v5900 = vadd.f32 %v5803, %v5899
        %v5901 = vpop.f32.mrb[0].mxu0
        %5902 = vdwg.mxu0
        %s5903 = scalar_lea.vmem [#allocation3], 240
        %v5904 = vld [vmem:[%s5903] sm:$0xff]
        %v5905 = vld [vmem:[%s5903 + $0x8] sm:$0xff]
        %v5906 = vld [vmem:[%s5903 + $0x10] sm:$0xff]
        %v5907 = vld [vmem:[%s5903 + $0x18] sm:$0xff]
        %v5908 = vld [vmem:[%s5903 + $0x20] sm:$0xff]
        %v5909 = vld [vmem:[%s5903 + $0x28] sm:$0xff]
        %v5910 = vld [vmem:[%s5903 + $0x30] sm:$0xff]
        %v5911 = vld [vmem:[%s5903 + $0x38] sm:$0xff]
        %v5912 = vld [vmem:[%s5903 + $0x40] sm:$0xff]
        %v5913 = vld [vmem:[%s5903 + $0x48] sm:$0xff]
        %v5914 = vld [vmem:[%s5903 + $0x50] sm:$0xff]
        %v5915 = vld [vmem:[%s5903 + $0x58] sm:$0xff]
        %v5916 = vld [vmem:[%s5903 + $0x60] sm:$0xff]
        %v5917 = vld [vmem:[%s5903 + $0x68] sm:$0xff]
        %v5918 = vld [vmem:[%s5903 + $0x70] sm:$0xff]
        %v5919 = vld [vmem:[%s5903 + $0x78] sm:$0xff]
        %v5920 = vld [vmem:[%s5903 + $0x80] sm:$0xff]
        %v5921 = vld [vmem:[%s5903 + $0x88] sm:$0xff]
        %v5922 = vld [vmem:[%s5903 + $0x90] sm:$0xff]
        %v5923 = vld [vmem:[%s5903 + $0x98] sm:$0xff]
        %v5924 = vld [vmem:[%s5903 + $0xa0] sm:$0xff]
        %v5925 = vld [vmem:[%s5903 + $0xa8] sm:$0xff]
        %v5926 = vld [vmem:[%s5903 + $0xb0] sm:$0xff]
        %v5927 = vld [vmem:[%s5903 + $0xb8] sm:$0xff]
        %v5928 = vld [vmem:[%s4615] sm:$0xf]
        %v5929 = vld [vmem:[%s4615 + $0x4] sm:$0xf]
        %v5930 = vld [vmem:[%s4615 + $0x8] sm:$0xf]
        %v5931 = vld [vmem:[%s4615 + $0xc] sm:$0xf]
        %v5932 = vld [vmem:[%s4615 + $0x10] sm:$0xf]
        %v5933 = vld [vmem:[%s4615 + $0x14] sm:$0xf]
        %v5934 = vld [vmem:[%s4615 + $0x18] sm:$0xf]
        %v5935 = vld [vmem:[%s4615 + $0x1c] sm:$0xf]
        %v5936 = vld [vmem:[%s4615 + $0x20] sm:$0xf]
        %v5937 = vld [vmem:[%s4615 + $0x24] sm:$0xf]
        %v5938 = vld [vmem:[%s4615 + $0x28] sm:$0xf]
        %v5939 = vld [vmem:[%s4615 + $0x2c] sm:$0xf]
        %v5940 = vld [vmem:[%s4615 + $0x30] sm:$0xf]
        %v5941 = vld [vmem:[%s4615 + $0x34] sm:$0xf]
        %v5942 = vld [vmem:[%s4615 + $0x38] sm:$0xf]
        %v5943 = vld [vmem:[%s4615 + $0x3c] sm:$0xf]
        %v5944 = vld [vmem:[%s4615 + $0x40] sm:$0xf]
        %v5945 = vld [vmem:[%s4615 + $0x44] sm:$0xf]
        %v5946 = vld [vmem:[%s4615 + $0x48] sm:$0xf]
        %v5947 = vld [vmem:[%s4615 + $0x4c] sm:$0xf]
        %v5948 = vld [vmem:[%s4615 + $0x50] sm:$0xf]
        %v5949 = vld [vmem:[%s4615 + $0x54] sm:$0xf]
        %v5950 = vld [vmem:[%s4615 + $0x58] sm:$0xf]
        %v5951 = vld [vmem:[%s4615 + $0x5c] sm:$0xf]
        %v5952 = vld [vmem:[%s4615 + $0x60] sm:$0xf]
        %v5953 = vld [vmem:[%s4615 + $0x64] sm:$0xf]
        %v5954 = vld [vmem:[%s4615 + $0x68] sm:$0xf]
        %v5955 = vld [vmem:[%s4615 + $0x6c] sm:$0xf]
        %v5956 = vld [vmem:[%s4615 + $0x70] sm:$0xf]
        %v5957 = vld [vmem:[%s4615 + $0x74] sm:$0xf]
        %v5958 = vld [vmem:[%s4615 + $0x78] sm:$0xf]
        %v5959 = vld [vmem:[%s4615 + $0x7c] sm:$0xf]
        %v5960 = vld [vmem:[%s4615 + $0x80] sm:$0xf]
        %v5961 = vld [vmem:[%s4615 + $0x84] sm:$0xf]
        %v5962 = vld [vmem:[%s4615 + $0x88] sm:$0xf]
        %v5963 = vld [vmem:[%s4615 + $0x8c] sm:$0xf]
        %v5964 = vld [vmem:[%s4615 + $0x90] sm:$0xf]
        %v5965 = vld [vmem:[%s4615 + $0x94] sm:$0xf]
        %v5966 = vld [vmem:[%s4615 + $0x98] sm:$0xf]
        %v5967 = vld [vmem:[%s4615 + $0x9c] sm:$0xf]
        %v5968 = vld [vmem:[%s4615 + $0xa0] sm:$0xf]
        %v5969 = vld [vmem:[%s4615 + $0xa4] sm:$0xf]
        %v5970 = vld [vmem:[%s4615 + $0xa8] sm:$0xf]
        %v5971 = vld [vmem:[%s4615 + $0xac] sm:$0xf]
        %v5972 = vld [vmem:[%s4615 + $0xb0] sm:$0xf]
        %v5973 = vld [vmem:[%s4615 + $0xb4] sm:$0xf]
        %v5974 = vld [vmem:[%s4615 + $0xb8] sm:$0xf]
        %v5975 = vld [vmem:[%s4615 + $0xbc] sm:$0xf]
        %v6024 = vunpack.c.l.b16 %v5928
        %v6025 = vunpack.c.l.b16 %v5929
        %v6026 = vunpack.c.l.b16 %v5930
        %v6027 = vunpack.c.l.b16 %v5931
        %v6028 = vunpack.c.l.b16 %v5932
        %v6029 = vunpack.c.l.b16 %v5933
        %v6030 = vunpack.c.l.b16 %v5934
        %v6031 = vunpack.c.l.b16 %v5935
        %v6032 = vunpack.c.l.b16 %v5936
        %v6033 = vunpack.c.l.b16 %v5937
        %v6034 = vunpack.c.l.b16 %v5938
        %v6035 = vunpack.c.l.b16 %v5939
        %v6036 = vunpack.c.l.b16 %v5940
        %v6037 = vunpack.c.l.b16 %v5941
        %v6038 = vunpack.c.l.b16 %v5942
        %v6039 = vunpack.c.l.b16 %v5943
        %v6040 = vunpack.c.l.b16 %v5944
        %v6041 = vunpack.c.l.b16 %v5945
        %v6042 = vunpack.c.l.b16 %v5946
        %v6043 = vunpack.c.l.b16 %v5947
        %v6044 = vunpack.c.l.b16 %v5948
        %v6045 = vunpack.c.l.b16 %v5949
        %v6046 = vunpack.c.l.b16 %v5950
        %v6047 = vunpack.c.l.b16 %v5951
        %v6048 = vunpack.c.l.b16 %v5952
        %v6049 = vunpack.c.l.b16 %v5953
        %v6050 = vunpack.c.l.b16 %v5954
        %v6051 = vunpack.c.l.b16 %v5955
        %v6052 = vunpack.c.l.b16 %v5956
        %v6053 = vunpack.c.l.b16 %v5957
        %v6054 = vunpack.c.l.b16 %v5958
        %v6055 = vunpack.c.l.b16 %v5959
        %v6056 = vunpack.c.l.b16 %v5960
        %v6057 = vunpack.c.l.b16 %v5961
        %v6058 = vunpack.c.l.b16 %v5962
        %v6059 = vunpack.c.l.b16 %v5963
        %v6060 = vunpack.c.l.b16 %v5964
        %v6061 = vunpack.c.l.b16 %v5965
        %v6062 = vunpack.c.l.b16 %v5966
        %v6063 = vunpack.c.l.b16 %v5967
        %v6064 = vunpack.c.l.b16 %v5968
        %v6065 = vunpack.c.l.b16 %v5969
        %v6066 = vunpack.c.l.b16 %v5970
        %v6067 = vunpack.c.l.b16 %v5971
        %v6068 = vunpack.c.l.b16 %v5972
        %v6069 = vunpack.c.l.b16 %v5973
        %v6070 = vunpack.c.l.b16 %v5974
        %v6071 = vunpack.c.l.b16 %v5975
        %v6072 = vpack.c.b16 %v6025, %v6024
        %v6073 = vpack.c.b16 %v6027, %v6026
        %v6074 = vpack.c.b16 %v6029, %v6028
        %v6075 = vpack.c.b16 %v6031, %v6030
        %v6076 = vpack.c.b16 %v6033, %v6032
        %v6077 = vpack.c.b16 %v6035, %v6034
        %v6078 = vpack.c.b16 %v6037, %v6036
        %v6079 = vpack.c.b16 %v6039, %v6038
        %v6080 = vpack.c.b16 %v6041, %v6040
        %v6081 = vpack.c.b16 %v6043, %v6042
        %v6082 = vpack.c.b16 %v6045, %v6044
        %v6083 = vpack.c.b16 %v6047, %v6046
        %v6084 = vpack.c.b16 %v6049, %v6048
        %v6085 = vpack.c.b16 %v6051, %v6050
        %v6086 = vpack.c.b16 %v6053, %v6052
        %v6087 = vpack.c.b16 %v6055, %v6054
        %v6088 = vpack.c.b16 %v6057, %v6056
        %v6089 = vpack.c.b16 %v6059, %v6058
        %v6090 = vpack.c.b16 %v6061, %v6060
        %v6091 = vpack.c.b16 %v6063, %v6062
        %v6092 = vpack.c.b16 %v6065, %v6064
        %v6093 = vpack.c.b16 %v6067, %v6066
        %v6094 = vpack.c.b16 %v6069, %v6068
        %v6095 = vpack.c.b16 %v6071, %v6070
        %6120 = vmatprep.subr.bf16.mxu0 0
        %6121 = vmatpush1.bf16.msra.mxu0 %v6072
        %6122 = vmatprep.subr.bf16.mxu0 0
        %6123 = vmatpush1.bf16.msra.mxu0 %v6073
        %6124 = vmatprep.subr.bf16.mxu0 0
        %6125 = vmatpush1.bf16.msra.mxu0 %v6074
        %6126 = vmatprep.subr.bf16.mxu0 0
        %6127 = vmatpush1.bf16.msra.mxu0 %v6075
        %6128 = vmatprep.subr.bf16.mxu0 0
        %6129 = vmatpush1.bf16.msra.mxu0 %v6076
        %6130 = vmatprep.subr.bf16.mxu0 0
        %6131 = vmatpush1.bf16.msra.mxu0 %v6077
        %6132 = vmatprep.subr.bf16.mxu0 0
        %6133 = vmatpush1.bf16.msra.mxu0 %v6078
        %6134 = vmatprep.subr.bf16.mxu0 0
        %6135 = vmatpush1.bf16.msra.mxu0 %v6079
        %6136 = vmatprep.subr.bf16.mxu0 0
        %6137 = vmatpush1.bf16.msra.mxu0 %v6080
        %6138 = vmatprep.subr.bf16.mxu0 0
        %6139 = vmatpush1.bf16.msra.mxu0 %v6081
        %6140 = vmatprep.subr.bf16.mxu0 0
        %6141 = vmatpush1.bf16.msra.mxu0 %v6082
        %6142 = vmatprep.subr.bf16.mxu0 0
        %6143 = vmatpush1.bf16.msra.mxu0 %v6083
        %6144 = vmatprep.subr.bf16.mxu0 0
        %6145 = vmatpush1.bf16.msra.mxu0 %v6084
        %6146 = vmatprep.subr.bf16.mxu0 0
        %6147 = vmatpush1.bf16.msra.mxu0 %v6085
        %6148 = vmatprep.subr.bf16.mxu0 0
        %6149 = vmatpush1.bf16.msra.mxu0 %v6086
        %6150 = vmatprep.subr.bf16.mxu0 0
        %6151 = vmatpush1.bf16.msra.mxu0 %v6087
        %6152 = vmatprep.mubr.bf16.mxu0 %v5905
        %6153 = vmatmul.mubr.bf16.gmra.mrb[0].mxu0 %v5904
        %v6154 = vpop.f32.mrb[0].mxu0
        %v6155 = vadd.f32 0.0, %v6154
        %v6156 = vpop.f32.mrb[0].mxu0
        %v6157 = vpop.f32.mrb[0].mxu0
        %v6158 = vadd.f32 0.0, %v6157
        %v6159 = vpop.f32.mrb[0].mxu0
        %6160 = vmatprep.mubr.bf16.mxu0 %v5908
        %6161 = vmatmul.mubr.bf16.gmra.mrb[0].mxu0 %v5907
        %v6162 = vpop.f32.mrb[0].mxu0
        %v6163 = vadd.f32 0.0, %v6162
        %v6164 = vpop.f32.mrb[0].mxu0
        %v6165 = vpop.f32.mrb[0].mxu0
        %v6166 = vadd.f32 0.0, %v6165
        %v6167 = vpop.f32.mrb[0].mxu0
        %6168 = vmatprep.mubr.bf16.mxu0 %v5911
        %6169 = vmatmul.mubr.bf16.gmra.mrb[0].mxu0 %v5910
        %v6170 = vpop.f32.mrb[0].mxu0
        %v6171 = vadd.f32 0.0, %v6170
        %v6172 = vpop.f32.mrb[0].mxu0
        %v6173 = vpop.f32.mrb[0].mxu0
        %v6174 = vadd.f32 0.0, %v6173
        %v6175 = vpop.f32.mrb[0].mxu0
        %6176 = vmatprep.mubr.bf16.mxu0 %v5914
        %6177 = vmatmul.mubr.bf16.gmra.mrb[0].mxu0 %v5913
        %v6178 = vpop.f32.mrb[0].mxu0
        %v6179 = vadd.f32 0.0, %v6178
        %v6180 = vpop.f32.mrb[0].mxu0
        %v6181 = vpop.f32.mrb[0].mxu0
        %v6182 = vadd.f32 0.0, %v6181
        %v6183 = vpop.f32.mrb[0].mxu0
        %6184 = vmatprep.mubr.bf16.mxu0 %v5917
        %6185 = vmatmul.mubr.bf16.gmra.mrb[0].mxu0 %v5916
        %v6186 = vpop.f32.mrb[0].mxu0
        %v6187 = vadd.f32 0.0, %v6186
        %v6188 = vpop.f32.mrb[0].mxu0
        %v6189 = vpop.f32.mrb[0].mxu0
        %v6190 = vadd.f32 0.0, %v6189
        %v6191 = vpop.f32.mrb[0].mxu0
        %6192 = vmatprep.mubr.bf16.mxu0 %v5920
        %6193 = vmatmul.mubr.bf16.gmra.mrb[0].mxu0 %v5919
        %v6194 = vpop.f32.mrb[0].mxu0
        %v6195 = vadd.f32 0.0, %v6194
        %v6196 = vpop.f32.mrb[0].mxu0
        %v6197 = vpop.f32.mrb[0].mxu0
        %v6198 = vadd.f32 0.0, %v6197
        %v6199 = vpop.f32.mrb[0].mxu0
        %6200 = vmatprep.mubr.bf16.mxu0 %v5923
        %6201 = vmatmul.mubr.bf16.gmra.mrb[0].mxu0 %v5922
        %v6202 = vpop.f32.mrb[0].mxu0
        %v6203 = vadd.f32 0.0, %v6202
        %v6204 = vpop.f32.mrb[0].mxu0
        %v6205 = vpop.f32.mrb[0].mxu0
        %v6206 = vadd.f32 0.0, %v6205
        %v6207 = vpop.f32.mrb[0].mxu0
        %6208 = vmatprep.mubr.bf16.mxu0 %v5926
        %6209 = vmatmul.mubr.bf16.gmra.mrb[0].mxu0 %v5925
        %v6210 = vpop.f32.mrb[0].mxu0
        %v6211 = vadd.f32 0.0, %v6210
        %v6212 = vpop.f32.mrb[0].mxu0
        %v6213 = vpop.f32.mrb[0].mxu0
        %v6214 = vadd.f32 0.0, %v6213
        %v6215 = vpop.f32.mrb[0].mxu0
        %6216 = vdwg.mxu0
        %6217 = vmatprep.subr.bf16.mxu0 0
        %6218 = vmatpush1.bf16.msra.mxu0 %v6088
        %6219 = vmatprep.subr.bf16.mxu0 0
        %6220 = vmatpush1.bf16.msra.mxu0 %v6089
        %6221 = vmatprep.subr.bf16.mxu0 0
        %6222 = vmatpush1.bf16.msra.mxu0 %v6090
        %6223 = vmatprep.subr.bf16.mxu0 0
        %6224 = vmatpush1.bf16.msra.mxu0 %v6091
        %6225 = vmatprep.subr.bf16.mxu0 0
        %6226 = vmatpush1.bf16.msra.mxu0 %v6092
        %6227 = vmatprep.subr.bf16.mxu0 0
        %6228 = vmatpush1.bf16.msra.mxu0 %v6093
        %6229 = vmatprep.subr.bf16.mxu0 0
        %6230 = vmatpush1.bf16.msra.mxu0 %v6094
        %6231 = vmatprep.subr.bf16.mxu0 0
        %6232 = vmatpush1.bf16.msra.mxu0 %v6095
        %6233 = vmatprep.subr.bf16.mxu0 0
        %6234 = vmatpush1.bf16.msra.mxu0 0
        %6235 = vmatprep.subr.bf16.mxu0 0
        %6236 = vmatpush1.bf16.msra.mxu0 0
        %6237 = vmatprep.subr.bf16.mxu0 0
        %6238 = vmatpush1.bf16.msra.mxu0 0
        %6239 = vmatprep.subr.bf16.mxu0 0
        %6240 = vmatpush1.bf16.msra.mxu0 0
        %6241 = vmatprep.subr.bf16.mxu0 0
        %6242 = vmatpush1.bf16.msra.mxu0 0
        %6243 = vmatprep.subr.bf16.mxu0 0
        %6244 = vmatpush1.bf16.msra.mxu0 0
        %6245 = vmatprep.subr.bf16.mxu0 0
        %6246 = vmatpush1.bf16.msra.mxu0 0
        %6247 = vmatprep.subr.bf16.mxu0 0
        %6248 = vmatpush1.bf16.msra.mxu0 0
        %6249 = vmatprep.mubr.bf16.mxu0 0
        %6250 = vmatmul.mubr.bf16.gmra.mrb[0].mxu0 %v5906
        %v6251 = vpop.f32.mrb[0].mxu0
        %v6252 = vadd.f32 %v6155, %v6251
        %v6253 = vpop.f32.mrb[0].mxu0
        %v6254 = vpop.f32.mrb[0].mxu0
        %v6255 = vadd.f32 %v6158, %v6254
        %v6256 = vpop.f32.mrb[0].mxu0
        %6257 = vmatprep.mubr.bf16.mxu0 0
        %6258 = vmatmul.mubr.bf16.gmra.mrb[0].mxu0 %v5909
        %v6259 = vpop.f32.mrb[0].mxu0
        %v6260 = vadd.f32 %v6163, %v6259
        %v6261 = vpop.f32.mrb[0].mxu0
        %v6262 = vpop.f32.mrb[0].mxu0
        %v6263 = vadd.f32 %v6166, %v6262
        %v6264 = vpop.f32.mrb[0].mxu0
        %6265 = vmatprep.mubr.bf16.mxu0 0
        %6266 = vmatmul.mubr.bf16.gmra.mrb[0].mxu0 %v5912
        %v6267 = vpop.f32.mrb[0].mxu0
        %v6268 = vadd.f32 %v6171, %v6267
        %v6269 = vpop.f32.mrb[0].mxu0
        %v6270 = vpop.f32.mrb[0].mxu0
        %v6271 = vadd.f32 %v6174, %v6270
        %v6272 = vpop.f32.mrb[0].mxu0
        %6273 = vmatprep.mubr.bf16.mxu0 0
        %6274 = vmatmul.mubr.bf16.gmra.mrb[0].mxu0 %v5915
        %v6275 = vpop.f32.mrb[0].mxu0
        %v6276 = vadd.f32 %v6179, %v6275
        %v6277 = vpop.f32.mrb[0].mxu0
        %v6278 = vpop.f32.mrb[0].mxu0
        %v6279 = vadd.f32 %v6182, %v6278
        %v6280 = vpop.f32.mrb[0].mxu0
        %6281 = vmatprep.mubr.bf16.mxu0 0
        %6282 = vmatmul.mubr.bf16.gmra.mrb[0].mxu0 %v5918
        %v6283 = vpop.f32.mrb[0].mxu0
        %v6284 = vadd.f32 %v6187, %v6283
        %v6285 = vpop.f32.mrb[0].mxu0
        %v6286 = vpop.f32.mrb[0].mxu0
        %v6287 = vadd.f32 %v6190, %v6286
        %v6288 = vpop.f32.mrb[0].mxu0
        %6289 = vmatprep.mubr.bf16.mxu0 0
        %6290 = vmatmul.mubr.bf16.gmra.mrb[0].mxu0 %v5921
        %v6291 = vpop.f32.mrb[0].mxu0
        %v6292 = vadd.f32 %v6195, %v6291
        %v6293 = vpop.f32.mrb[0].mxu0
        %v6294 = vpop.f32.mrb[0].mxu0
        %v6295 = vadd.f32 %v6198, %v6294
        %v6296 = vpop.f32.mrb[0].mxu0
        %6297 = vmatprep.mubr.bf16.mxu0 0
        %6298 = vmatmul.mubr.bf16.gmra.mrb[0].mxu0 %v5924
        %v6299 = vpop.f32.mrb[0].mxu0
        %v6300 = vadd.f32 %v6203, %v6299
        %v6301 = vpop.f32.mrb[0].mxu0
        %v6302 = vpop.f32.mrb[0].mxu0
        %v6303 = vadd.f32 %v6206, %v6302
        %v6304 = vpop.f32.mrb[0].mxu0
        %6305 = vmatprep.mubr.bf16.mxu0 0
        %6306 = vmatmul.mubr.bf16.gmra.mrb[0].mxu0 %v5927
        %v6307 = vpop.f32.mrb[0].mxu0
        %v6308 = vadd.f32 %v6211, %v6307
        %v6309 = vpop.f32.mrb[0].mxu0
        %v6310 = vpop.f32.mrb[0].mxu0
        %v6311 = vadd.f32 %v6214, %v6310
        %v6312 = vpop.f32.mrb[0].mxu0
        %6313 = vdwg.mxu0
        %v6314 = vadd.f32 %v5841, %v6252
        %v6315 = vadd.f32 %v5844, %v6255
        %v6316 = vadd.f32 %v5849, %v6260
        %v6317 = vadd.f32 %v5852, %v6263
        %v6318 = vadd.f32 %v5857, %v6268
        %v6319 = vadd.f32 %v5860, %v6271
        %v6320 = vadd.f32 %v5865, %v6276
        %v6321 = vadd.f32 %v5868, %v6279
        %v6322 = vadd.f32 %v5873, %v6284
        %v6323 = vadd.f32 %v5876, %v6287
        %v6324 = vadd.f32 %v5881, %v6292
        %v6325 = vadd.f32 %v5884, %v6295
        %v6326 = vadd.f32 %v5889, %v6300
        %v6327 = vadd.f32 %v5892, %v6303
        %v6328 = vadd.f32 %v5897, %v6308
        %v6329 = vadd.f32 %v5900, %v6311
        %v6330 = vld [vmem:[%s600] sm:$0xf]
        %v6331 = vld [vmem:[%s600 + $0x4] sm:$0xf]
        %v6332 = vld [vmem:[%s600 + $0x8] sm:$0xf]
        %v6333 = vld [vmem:[%s600 + $0xc] sm:$0xf]
        %v6334 = vld [vmem:[%s600 + $0x10] sm:$0xf]
        %v6335 = vld [vmem:[%s600 + $0x14] sm:$0xf]
        %v6336 = vld [vmem:[%s600 + $0x18] sm:$0xf]
        %v6337 = vld [vmem:[%s600 + $0x1c] sm:$0xf]
        %v6338 = vld [vmem:[%s600 + $0x20] sm:$0xf]
        %v6339 = vld [vmem:[%s600 + $0x24] sm:$0xf]
        %v6340 = vld [vmem:[%s600 + $0x28] sm:$0xf]
        %v6341 = vld [vmem:[%s600 + $0x2c] sm:$0xf]
        %v6342 = vld [vmem:[%s600 + $0x30] sm:$0xf]
        %v6343 = vld [vmem:[%s600 + $0x34] sm:$0xf]
        %v6344 = vld [vmem:[%s600 + $0x38] sm:$0xf]
        %v6345 = vld [vmem:[%s600 + $0x3c] sm:$0xf]
        %v6346 = vunpack.c.l.bf16 %v6330
        %v6347 = vunpack.c.l.bf16 %v6331
        %v6348 = vunpack.c.l.bf16 %v6332
        %v6349 = vunpack.c.l.bf16 %v6333
        %v6350 = vunpack.c.l.bf16 %v6334
        %v6351 = vunpack.c.l.bf16 %v6335
        %v6352 = vunpack.c.l.bf16 %v6336
        %v6353 = vunpack.c.l.bf16 %v6337
        %v6354 = vunpack.c.l.bf16 %v6338
        %v6355 = vunpack.c.l.bf16 %v6339
        %v6356 = vunpack.c.l.bf16 %v6340
        %v6357 = vunpack.c.l.bf16 %v6341
        %v6358 = vunpack.c.l.bf16 %v6342
        %v6359 = vunpack.c.l.bf16 %v6343
        %v6360 = vunpack.c.l.bf16 %v6344
        %v6361 = vunpack.c.l.bf16 %v6345
        %v6362 = vadd.f32 %v6314, %v6346
        %v6363 = vadd.f32 %v6315, %v6347
        %v6364 = vadd.f32 %v6316, %v6348
        %v6365 = vadd.f32 %v6317, %v6349
        %v6366 = vadd.f32 %v6318, %v6350
        %v6367 = vadd.f32 %v6319, %v6351
        %v6368 = vadd.f32 %v6320, %v6352
        %v6369 = vadd.f32 %v6321, %v6353
        %v6370 = vadd.f32 %v6322, %v6354
        %v6371 = vadd.f32 %v6323, %v6355
        %v6372 = vadd.f32 %v6324, %v6356
        %v6373 = vadd.f32 %v6325, %v6357
        %v6374 = vadd.f32 %v6326, %v6358
        %v6375 = vadd.f32 %v6327, %v6359
        %v6376 = vadd.f32 %v6328, %v6360
        %v6377 = vadd.f32 %v6329, %v6361
        %s6378 = scalar_lea.vmem %s325, 128 [#allocation10]
        %6379 = vst [vmem:[%s6378] sm:$0xff] %v6362
        %6380 = vst [vmem:[%s6378 + $0x8] sm:$0xff] %v6363
        %6381 = vst [vmem:[%s6378 + $0x10] sm:$0xff] %v6364
        %6382 = vst [vmem:[%s6378 + $0x18] sm:$0xff] %v6365
        %6383 = vst [vmem:[%s6378 + $0x20] sm:$0xff] %v6366
        %6384 = vst [vmem:[%s6378 + $0x28] sm:$0xff] %v6367
        %6385 = vst [vmem:[%s6378 + $0x30] sm:$0xff] %v6368
        %6386 = vst [vmem:[%s6378 + $0x38] sm:$0xff] %v6369
        %6387 = vst [vmem:[%s6378 + $0x40] sm:$0xff] %v6370
        %6388 = vst [vmem:[%s6378 + $0x48] sm:$0xff] %v6371
        %6389 = vst [vmem:[%s6378 + $0x50] sm:$0xff] %v6372
        %6390 = vst [vmem:[%s6378 + $0x58] sm:$0xff] %v6373
        %6391 = vst [vmem:[%s6378 + $0x60] sm:$0xff] %v6374
        %6392 = vst [vmem:[%s6378 + $0x68] sm:$0xff] %v6375
        %6393 = vst [vmem:[%s6378 + $0x70] sm:$0xff] %v6376
        %6394 = vst [vmem:[%s6378 + $0x78] sm:$0xff] %v6377
        %s6395 = sand.u32 %s185, 1
        %s6396 = scalar_lea.sflag [#allocation6], %s6395
        %s6397 = sand.u32 %s185, 1
        %s6398 = smul.addr %s6397, 256
        %s6399 = scalar_lea.vmem [#allocation10], %s6398
        // Predicated region
        $region61: #{tpu_custom_call.1} parent=47 // pred_check
          %p6400 = pneg %p195
        $region62: #{tpu_custom_call.1} parent=47 // pred_check_branch
          %6402 = sbr.rel (%p6400) target = $region64
        $region63: #{tpu_custom_call.1} parent=47 // pred_region
          %s6404 = ssub.s32 4096, 4096
          %6405 = vsyncadd %s6396, %s6404
          %s6406 = smul.addr %s25, 32
          %s6407 = smul.addr %s6406, 128
          %s6408 = scalar_lea.hbm %s7, %s6407
          %s6409 = sshll.u32 %s6399, 4
          %s6410 = int_to_ptr.vmem [resolvable:$true] %s6409
          %6415 = dma.vmem_to_hbm [thread:$0]  %s6410, 4096, %s6408, %s6396, 128, 128, 8
        $region64: #{tpu_custom_call.1} parent=47 // pred_fallthru
          _
      $region48: #{tpu_custom_call.1} parent=5 // pred_fallthru
        _
      %p6416 = scmp.le.s32.totalorder 2, %s20
      // Predicated region
      $region65: #{tpu_custom_call.1} parent=5 // pred_check
        %p6417 = pneg %p6416
      $region66: #{tpu_custom_call.1} parent=5 // pred_check_branch
        %6419 = sbr.rel (%p6417) target = $region68
      $region67: #{tpu_custom_call.1} parent=5 // pred_region
        %s6420 = ssub.s32 %s20, 2
        // Predicated region
        $region69: #{tpu_custom_call.1} parent=67 // pred_check
          %p6421 = pneg %p201
        $region70: #{tpu_custom_call.1} parent=67 // pred_check_branch
          %6423 = sbr.rel (%p6421) target = $region72
        $region71: #{tpu_custom_call.1} parent=67 // pred_region
          %s6424 = sand.u32 %s186, 1
          %s6425 = scalar_lea.sflag [#allocation6], %s6424
          %s6426 = sand.u32 %s186, 1
          %s6427 = smul.addr %s6426, 256
          %s6428 = scalar_lea.vmem [#allocation10], %s6427
          %6429 = dma.done %s6425, 4096
        $region72: #{tpu_custom_call.1} parent=67 // pred_fallthru
          _
      $region68: #{tpu_custom_call.1} parent=5 // pred_fallthru
        _
    $region6: #{tpu_custom_call.1} parent=1 // loop_footer
      %s24 = sadd.s32 1, %s20
    $region7: #{tpu_custom_call.1} parent=1 // loop_footer_branch
      %19 = sbr.rel target = $region3
    $region8: #{tpu_custom_call.1} parent=1 // loop_exit
      _
    %6430 = vsyncpa [#allocation5], 1
    %s6431 = scalar_lea.sflag [#allocation5], 1
    %6432 = vsyncpa %s6431, 1
    %6433 = vsyncpa [#allocation8], 1
    %6434 = vsyncpa [#allocation6], 1
    %s6435 = scalar_lea.sflag [#allocation6], 1
    %6436 = vsyncpa %s6435, 1

</llo_original>
